<compile_context>
chip_gen: v7x
topology: tpu7x:2x2x1
jax: 0.10.0
libtpu: 0.0.40
codegen_flags: <defaults>
</compile_context>

<pallas_src>
import functools

import jax
import jax.numpy as jnp
from jax import lax
from jax.experimental import pallas as pl
from jax.experimental.pallas import tpu as pltpu

INPUT_SIZE = 2
ACTION_SIZE = 31
GOAL_SIZE = 12
HIDDEN_SIZE = 10
BN_EPS = 1e-5

LANE = 128
SUB = 8
NEG_BIG = -1e30  # pads policy-logit columns so they vanish under log-softmax


def _pad_to(x, shape):
    pads = [(0, t - s) for s, t in zip(x.shape, shape)]
    return jnp.pad(x, pads)


# ---------------------------------------------------------------------------
# Fused Pallas kernel: RNN encoder -> (BN-folded) MLP -> policy/value heads
# ---------------------------------------------------------------------------
def pvnet_kernel(state_ref, goal_ref, wih_ref, whh_ref, rnnb_ref,
                 w1_ref, b1_ref, w0_ref, b0_ref,
                 w2a_ref, w2b_ref, b2_ref,
                 w3_ref, b3_ref,
                 wpv_ref, bpv_ref,
                 pi_ref, v_ref):
    BP = goal_ref.shape[0]
    T = state_ref.shape[0] // BP

    # ---- RNN encoder (Elman, ReLU). Input projection hoisted out of the
    #      recurrence: one well-shaped matmul, loop body is h = relu(X[t] + h@Whh).
    x_all = (jnp.dot(state_ref[...], wih_ref[...],
                     preferred_element_type=jnp.float32)
             + rnnb_ref[...])                                   # (T*BP, H_pad)
    whh = whh_ref[...]
    h = jnp.zeros((BP, whh.shape[1]), jnp.float32)
    for t in range(T):  # T static & small -> fully unrolled serial MXU chain
        h = jnp.maximum(
            x_all[t * BP:(t + 1) * BP]
            + jnp.dot(h, whh, preferred_element_type=jnp.float32),
            0.0)

    # ---- MLP stack. BatchNorm is folded into the (bf16) weights/biases in the
    #      wrapper; dropout = identity (eval). Activations stay f32.
    def linear_relu(x, w_ref, b_ref):
        y = jnp.dot(x.astype(jnp.bfloat16), w_ref[...],
                    preferred_element_type=jnp.float32) + b_ref[...]
        return jnp.maximum(y, 0.0)

    x = linear_relu(h, w1_ref, b1_ref)                          # (BP, 1024)
    g = linear_relu(goal_ref[...], w0_ref, b0_ref)              # (BP, 1024)

    # fc2 on concat(x, g) as a split matmul -- no lane-concat intermediate.
    y2 = (jnp.dot(x.astype(jnp.bfloat16), w2a_ref[...],
                  preferred_element_type=jnp.float32)
          + jnp.dot(g.astype(jnp.bfloat16), w2b_ref[...],
                    preferred_element_type=jnp.float32)
          + b2_ref[...])
    x = jnp.maximum(y2, 0.0)                                    # (BP, 1024)
    x = linear_relu(x, w3_ref, b3_ref)                          # (BP, 512)

    # ---- fused policy + value heads: one (BP,512)x(512,256) matmul.
    heads = (jnp.dot(x.astype(jnp.bfloat16), wpv_ref[...],
                     preferred_element_type=jnp.float32)
             + bpv_ref[...])                                    # (BP, 256)

    logits = heads[:, :LANE]        # policy logits (padded cols carry NEG_BIG bias)
    m = jnp.max(logits, axis=1, keepdims=True)
    z = logits - m
    lse = jnp.log(jnp.sum(jnp.exp(z), axis=1, keepdims=True))
    pi_ref[...] = z - lse                                       # log_softmax
    v_ref[...] = heads[:, LANE:]                                # value in column 0


# ---------------------------------------------------------------------------
# Parameters (deterministic, PyTorch-style uniform init)
# ---------------------------------------------------------------------------
def init_params(key):
    ks = jax.random.split(key, 16)

    def uni(k, shape, bound):
        return jax.random.uniform(k, shape, jnp.float32, -bound, bound)

    p = {}
    kr = 1.0 / jnp.sqrt(float(HIDDEN_SIZE))
    p["wih"] = uni(ks[0], (INPUT_SIZE, HIDDEN_SIZE), kr)      # == W_ih.T
    p["whh"] = uni(ks[1], (HIDDEN_SIZE, HIDDEN_SIZE), kr)     # == W_hh.T
    p["rnn_b"] = uni(ks[2], (HIDDEN_SIZE,), kr) + uni(ks[3], (HIDDEN_SIZE,), kr)

    def linear(kw, kb, fan_in, fan_out):
        b = 1.0 / jnp.sqrt(float(fan_in))
        return uni(kw, (fan_in, fan_out), b), uni(kb, (fan_out,), b)

    p["w0"], p["b0"] = linear(ks[4], ks[5], GOAL_SIZE, 1024)
    p["w1"], p["b1"] = linear(ks[6], ks[7], HIDDEN_SIZE, 1024)
    p["w2"], p["b2"] = linear(ks[8], ks[9], 2048, 1024)
    p["w3"], p["b3"] = linear(ks[10], ks[11], 1024, 512)
    p["wp"], p["bp"] = linear(ks[12], ks[13], 512, ACTION_SIZE)
    p["wv"], p["bv"] = linear(ks[14], ks[15], 512, 1)

    # BatchNorm1d defaults: gamma=1, beta=0, running_mean=0, running_var=1
    for name, n in (("bn0", 1024), ("bn1", 1024), ("bn2", 1024), ("bn3", 512)):
        p[name + "_gamma"] = jnp.ones((n,), jnp.float32)
        p[name + "_beta"] = jnp.zeros((n,), jnp.float32)
        p[name + "_mean"] = jnp.zeros((n,), jnp.float32)
        p[name + "_var"] = jnp.ones((n,), jnp.float32)
    return p


# ---------------------------------------------------------------------------
# Forward pass (single fused Pallas call)
# ---------------------------------------------------------------------------
@jax.jit
def policy_value_net(params, state, goal):
    B, T, _ = state.shape
    BP = max(SUB, ((B + SUB - 1) // SUB) * SUB)
    f32, bf16 = jnp.float32, jnp.bfloat16
    vmem = pl.BlockSpec(memory_space=pltpu.MemorySpace.VMEM)

    # ---- RNN inputs / params (tiny -> kept f32 for recurrence accuracy) ----
    state_tm = jnp.swapaxes(state, 0, 1).astype(f32)            # (T, B, IN)
    state_p = _pad_to(state_tm, (T, BP, LANE)).reshape(T * BP, LANE)
    wih_p = _pad_to(params["wih"], (LANE, LANE))
    whh_p = _pad_to(params["whh"], (LANE, LANE))
    rnnb_p = _pad_to(params["rnn_b"][None, :], (1, LANE))

    goal_p = _pad_to(goal.astype(f32), (BP, LANE))

    # ---- Fold eval-mode BatchNorm into the linear weights / biases ----------
    def fold_bn(w, b, name):
        scale = params[name + "_gamma"] * lax.rsqrt(params[name + "_var"] + BN_EPS)
        shift = params[name + "_beta"] - params[name + "_mean"] * scale
        return w * scale[None, :], b * scale + shift

    w1f, b1f = fold_bn(params["w1"], params["b1"], "bn1")
    w0f, b0f = fold_bn(params["w0"], params["b0"], "bn0")
    w2f, b2f = fold_bn(params["w2"], params["b2"], "bn2")
    w3f, b3f = fold_bn(params["w3"], params["b3"], "bn3")

    # bf16 weights (halve HBM bytes), f32 biases.
    w1_p = _pad_to(w1f, (LANE, 1024)).astype(bf16)
    w0_p = _pad_to(w0f, (LANE, 1024)).astype(bf16)
    w2a = w2f[:1024].astype(bf16)          # rows multiplying x (fc1 branch)
    w2b = w2f[1024:].astype(bf16)          # rows multiplying g (fc0 branch)
    w3_p = w3f.astype(bf16)

    # Fused policy/value head weights: (512, 256), lanes [0:128)=policy, [128:256)=value.
    wp_p = _pad_to(params["wp"], (512, LANE))
    wv_p = _pad_to(params["wv"], (512, LANE))
    wpv = jnp.concatenate([wp_p, wv_p], axis=1).astype(bf16)
    bp_p = jnp.concatenate(
        [params["bp"], jnp.full((LANE - ACTION_SIZE,), NEG_BIG, f32)])
    bv_p = _pad_to(params["bv"], (LANE,))
    bpv = jnp.concatenate([bp_p, bv_p])[None, :]                # (1, 256) f32

    args = (state_p, goal_p, wih_p, whh_p, rnnb_p,
            w1_p, b1f[None, :], w0_p, b0f[None, :],
            w2a, w2b, b2f[None, :],
            w3_p, b3f[None, :],
            wpv, bpv)

    pi_p, v_p = pl.pallas_call(
        pvnet_kernel,
        out_shape=(jax.ShapeDtypeStruct((BP, LANE), f32),
                   jax.ShapeDtypeStruct((BP, LANE), f32)),
        in_specs=[vmem] * len(args),
        out_specs=(vmem, vmem),
        compiler_params=pltpu.CompilerParams(vmem_limit_bytes=48 * 1024 * 1024),
    )(*args)

    pi = pi_p[:B, :ACTION_SIZE]
    v = v_p[:B, :1]
    return pi, v


# ---------------------------------------------------------------------------
# Pure-JAX reference (eval-mode semantics), for validation
# ---------------------------------------------------------------------------
def reference_forward(params, state, goal):
    hp = functools.partial(jnp.dot, precision=lax.Precision.HIGHEST)
    B = state.shape[0]

    def step(h, x_t):
        h = jax.nn.relu(hp(x_t, params["wih"]) + hp(h, params["whh"]) + params["rnn_b"])
        return h, None

    h0 = jnp.zeros((B, HIDDEN_SIZE), jnp.float32)
    h, _ = lax.scan(step, h0, jnp.swapaxes(state, 0, 1))

    def bn(name, y):
        scale = params[name + "_gamma"] / jnp.sqrt(params[name + "_var"] + BN_EPS)
        return (y - params[name + "_mean"]) * scale + params[name + "_beta"]

    x = jax.nn.relu(bn("bn1", hp(h, params["w1"]) + params["b1"]))
    g = jax.nn.relu(bn("bn0", hp(goal, params["w0"]) + params["b0"]))
    x = jnp.concatenate([x, g], axis=1)
    x = jax.nn.relu(bn("bn2", hp(x, params["w2"]) + params["b2"]))
    x = jax.nn.relu(bn("bn3", hp(x, params["w3"]) + params["b3"]))
    logits = hp(x, params["wp"]) + params["bp"]
    pi = jax.nn.log_softmax(logits, axis=1)
    v = hp(x, params["wv"]) + params["bv"]
    return pi, v


if __name__ == "__main__":
    B, T = 2, 8
    key = jax.random.PRNGKey(0)
    k_state, k_goal = jax.random.split(key)
    state = jax.random.normal(k_state, (B, T, INPUT_SIZE), jnp.float32)
    goal = jax.random.normal(k_goal, (B, GOAL_SIZE), jnp.float32)

    params = init_params(jax.random.PRNGKey(42))

    pi, v = policy_value_net(params, state, goal)
    jax.block_until_ready((pi, v))

    pi_ref, v_ref = reference_forward(params, state, goal)
    assert pi.shape == (B, ACTION_SIZE) and v.shape == (B, 1)
    assert bool(jnp.all(jnp.isfinite(pi))) and bool(jnp.all(jnp.isfinite(v)))
    assert bool(jnp.allclose(pi, pi_ref, atol=2e-2, rtol=2e-2))
    assert bool(jnp.allclose(v, v_ref, atol=2e-2, rtol=2e-2))
    print("KERNEL_OK")
</pallas_src>

<mosaic_0001>
module attributes {stable_mosaic.version = 11 : i64} {
  func.func @pvnet_kernel(%arg0: memref<64x128xf32, #tpu.memory_space<vmem>>, %arg1: memref<8x128xf32, #tpu.memory_space<vmem>>, %arg2: memref<128x128xf32, #tpu.memory_space<vmem>>, %arg3: memref<128x128xf32, #tpu.memory_space<vmem>>, %arg4: memref<1x128xf32, #tpu.memory_space<vmem>>, %arg5: memref<128x1024xbf16, #tpu.memory_space<vmem>>, %arg6: memref<1x1024xf32, #tpu.memory_space<vmem>>, %arg7: memref<128x1024xbf16, #tpu.memory_space<vmem>>, %arg8: memref<1x1024xf32, #tpu.memory_space<vmem>>, %arg9: memref<1024x1024xbf16, #tpu.memory_space<vmem>>, %arg10: memref<1024x1024xbf16, #tpu.memory_space<vmem>>, %arg11: memref<1x1024xf32, #tpu.memory_space<vmem>>, %arg12: memref<1024x512xbf16, #tpu.memory_space<vmem>>, %arg13: memref<1x512xf32, #tpu.memory_space<vmem>>, %arg14: memref<512x256xbf16, #tpu.memory_space<vmem>>, %arg15: memref<1x256xf32, #tpu.memory_space<vmem>>, %arg16: memref<8x128xf32, #tpu.memory_space<vmem>>, %arg17: memref<8x128xf32, #tpu.memory_space<vmem>>) attributes {dimension_semantics = [], scalar_prefetch = 0 : i64, scratch_operands = 0 : i64, tpu.core_type = #tpu.core_type<tc>} {
    %c0 = arith.constant 0 : index
    %c0_0 = arith.constant 0 : index
    %0 = vector.load %arg0[%c0, %c0_0] : memref<64x128xf32, #tpu.memory_space<vmem>>, vector<64x128xf32>
    %c0_1 = arith.constant 0 : index
    %c0_2 = arith.constant 0 : index
    %1 = vector.load %arg2[%c0_1, %c0_2] : memref<128x128xf32, #tpu.memory_space<vmem>>, vector<128x128xf32>
    %cst = arith.constant dense<0.000000e+00> : vector<64x128xf32>
    %2 = tpu.matmul %0, %1, %cst {dimension_numbers = #tpu.dot_dimension_numbers<[1], [0], [0], [1], [0, 0, 1, 1], [], []>} : vector<64x128xf32>, vector<128x128xf32>, vector<64x128xf32> -> vector<64x128xf32>
    %c0_3 = arith.constant 0 : index
    %c0_4 = arith.constant 0 : index
    %3 = vector.load %arg4[%c0_3, %c0_4] : memref<1x128xf32, #tpu.memory_space<vmem>>, vector<1x128xf32>
    %4 = vector.broadcast %3 : vector<1x128xf32> to vector<64x128xf32>
    %5 = arith.addf %2, %4 : vector<64x128xf32>
    %c0_5 = arith.constant 0 : index
    %c0_6 = arith.constant 0 : index
    %6 = vector.load %arg3[%c0_5, %c0_6] : memref<128x128xf32, #tpu.memory_space<vmem>>, vector<128x128xf32>
    %cst_7 = arith.constant 0.000000e+00 : f32
    %7 = vector.broadcast %cst_7 : f32 to vector<8x128xf32>
    %8 = vector.extract_strided_slice %5 {offsets = [0, 0], sizes = [8, 128], strides = [1, 1]} : vector<64x128xf32> to vector<8x128xf32>
    %cst_8 = arith.constant dense<0.000000e+00> : vector<8x128xf32>
    %9 = tpu.matmul %7, %6, %cst_8 {dimension_numbers = #tpu.dot_dimension_numbers<[1], [0], [0], [1], [0, 0, 1, 1], [], []>} : vector<8x128xf32>, vector<128x128xf32>, vector<8x128xf32> -> vector<8x128xf32>
    %10 = arith.addf %8, %9 : vector<8x128xf32>
    %cst_9 = arith.constant 0.000000e+00 : f32
    %11 = vector.broadcast %cst_9 : f32 to vector<8x128xf32>
    %12 = arith.maximumf %10, %11 : vector<8x128xf32>
    %13 = vector.extract_strided_slice %5 {offsets = [8, 0], sizes = [8, 128], strides = [1, 1]} : vector<64x128xf32> to vector<8x128xf32>
    %cst_10 = arith.constant dense<0.000000e+00> : vector<8x128xf32>
    %14 = tpu.matmul %12, %6, %cst_10 {dimension_numbers = #tpu.dot_dimension_numbers<[1], [0], [0], [1], [0, 0, 1, 1], [], []>} : vector<8x128xf32>, vector<128x128xf32>, vector<8x128xf32> -> vector<8x128xf32>
    %15 = arith.addf %13, %14 : vector<8x128xf32>
    %cst_11 = arith.constant 0.000000e+00 : f32
    %16 = vector.broadcast %cst_11 : f32 to vector<8x128xf32>
    %17 = arith.maximumf %15, %16 : vector<8x128xf32>
    %18 = vector.extract_strided_slice %5 {offsets = [16, 0], sizes = [8, 128], strides = [1, 1]} : vector<64x128xf32> to vector<8x128xf32>
    %cst_12 = arith.constant dense<0.000000e+00> : vector<8x128xf32>
    %19 = tpu.matmul %17, %6, %cst_12 {dimension_numbers = #tpu.dot_dimension_numbers<[1], [0], [0], [1], [0, 0, 1, 1], [], []>} : vector<8x128xf32>, vector<128x128xf32>, vector<8x128xf32> -> vector<8x128xf32>
    %20 = arith.addf %18, %19 : vector<8x128xf32>
    %cst_13 = arith.constant 0.000000e+00 : f32
    %21 = vector.broadcast %cst_13 : f32 to vector<8x128xf32>
    %22 = arith.maximumf %20, %21 : vector<8x128xf32>
    %23 = vector.extract_strided_slice %5 {offsets = [24, 0], sizes = [8, 128], strides = [1, 1]} : vector<64x128xf32> to vector<8x128xf32>
    %cst_14 = arith.constant dense<0.000000e+00> : vector<8x128xf32>
    %24 = tpu.matmul %22, %6, %cst_14 {dimension_numbers = #tpu.dot_dimension_numbers<[1], [0], [0], [1], [0, 0, 1, 1], [], []>} : vector<8x128xf32>, vector<128x128xf32>, vector<8x128xf32> -> vector<8x128xf32>
    %25 = arith.addf %23, %24 : vector<8x128xf32>
    %cst_15 = arith.constant 0.000000e+00 : f32
    %26 = vector.broadcast %cst_15 : f32 to vector<8x128xf32>
    %27 = arith.maximumf %25, %26 : vector<8x128xf32>
    %28 = vector.extract_strided_slice %5 {offsets = [32, 0], sizes = [8, 128], strides = [1, 1]} : vector<64x128xf32> to vector<8x128xf32>
    %cst_16 = arith.constant dense<0.000000e+00> : vector<8x128xf32>
    %29 = tpu.matmul %27, %6, %cst_16 {dimension_numbers = #tpu.dot_dimension_numbers<[1], [0], [0], [1], [0, 0, 1, 1], [], []>} : vector<8x128xf32>, vector<128x128xf32>, vector<8x128xf32> -> vector<8x128xf32>
    %30 = arith.addf %28, %29 : vector<8x128xf32>
    %cst_17 = arith.constant 0.000000e+00 : f32
    %31 = vector.broadcast %cst_17 : f32 to vector<8x128xf32>
    %32 = arith.maximumf %30, %31 : vector<8x128xf32>
    %33 = vector.extract_strided_slice %5 {offsets = [40, 0], sizes = [8, 128], strides = [1, 1]} : vector<64x128xf32> to vector<8x128xf32>
    %cst_18 = arith.constant dense<0.000000e+00> : vector<8x128xf32>
    %34 = tpu.matmul %32, %6, %cst_18 {dimension_numbers = #tpu.dot_dimension_numbers<[1], [0], [0], [1], [0, 0, 1, 1], [], []>} : vector<8x128xf32>, vector<128x128xf32>, vector<8x128xf32> -> vector<8x128xf32>
    %35 = arith.addf %33, %34 : vector<8x128xf32>
    %cst_19 = arith.constant 0.000000e+00 : f32
    %36 = vector.broadcast %cst_19 : f32 to vector<8x128xf32>
    %37 = arith.maximumf %35, %36 : vector<8x128xf32>
    %38 = vector.extract_strided_slice %5 {offsets = [48, 0], sizes = [8, 128], strides = [1, 1]} : vector<64x128xf32> to vector<8x128xf32>
    %cst_20 = arith.constant dense<0.000000e+00> : vector<8x128xf32>
    %39 = tpu.matmul %37, %6, %cst_20 {dimension_numbers = #tpu.dot_dimension_numbers<[1], [0], [0], [1], [0, 0, 1, 1], [], []>} : vector<8x128xf32>, vector<128x128xf32>, vector<8x128xf32> -> vector<8x128xf32>
    %40 = arith.addf %38, %39 : vector<8x128xf32>
    %cst_21 = arith.constant 0.000000e+00 : f32
    %41 = vector.broadcast %cst_21 : f32 to vector<8x128xf32>
    %42 = arith.maximumf %40, %41 : vector<8x128xf32>
    %43 = vector.extract_strided_slice %5 {offsets = [56, 0], sizes = [8, 128], strides = [1, 1]} : vector<64x128xf32> to vector<8x128xf32>
    %cst_22 = arith.constant dense<0.000000e+00> : vector<8x128xf32>
    %44 = tpu.matmul %42, %6, %cst_22 {dimension_numbers = #tpu.dot_dimension_numbers<[1], [0], [0], [1], [0, 0, 1, 1], [], []>} : vector<8x128xf32>, vector<128x128xf32>, vector<8x128xf32> -> vector<8x128xf32>
    %45 = arith.addf %43, %44 : vector<8x128xf32>
    %cst_23 = arith.constant 0.000000e+00 : f32
    %46 = vector.broadcast %cst_23 : f32 to vector<8x128xf32>
    %47 = arith.maximumf %45, %46 : vector<8x128xf32>
    %48 = arith.truncf %47 : vector<8x128xf32> to vector<8x128xbf16>
    %c0_24 = arith.constant 0 : index
    %c0_25 = arith.constant 0 : index
    %49 = vector.load %arg5[%c0_24, %c0_25] : memref<128x1024xbf16, #tpu.memory_space<vmem>>, vector<128x1024xbf16>
    %cst_26 = arith.constant dense<0.000000e+00> : vector<8x1024xf32>
    %50 = tpu.matmul %48, %49, %cst_26 {dimension_numbers = #tpu.dot_dimension_numbers<[1], [0], [0], [1], [0, 0, 1, 1], [], []>} : vector<8x128xbf16>, vector<128x1024xbf16>, vector<8x1024xf32> -> vector<8x1024xf32>
    %c0_27 = arith.constant 0 : index
    %c0_28 = arith.constant 0 : index
    %51 = vector.load %arg6[%c0_27, %c0_28] : memref<1x1024xf32, #tpu.memory_space<vmem>>, vector<1x1024xf32>
    %52 = vector.broadcast %51 : vector<1x1024xf32> to vector<8x1024xf32>
    %53 = arith.addf %50, %52 : vector<8x1024xf32>
    %cst_29 = arith.constant 0.000000e+00 : f32
    %54 = vector.broadcast %cst_29 : f32 to vector<8x1024xf32>
    %55 = arith.maximumf %53, %54 : vector<8x1024xf32>
    %c0_30 = arith.constant 0 : index
    %c0_31 = arith.constant 0 : index
    %56 = vector.load %arg1[%c0_30, %c0_31] : memref<8x128xf32, #tpu.memory_space<vmem>>, vector<8x128xf32>
    %57 = arith.truncf %56 : vector<8x128xf32> to vector<8x128xbf16>
    %c0_32 = arith.constant 0 : index
    %c0_33 = arith.constant 0 : index
    %58 = vector.load %arg7[%c0_32, %c0_33] : memref<128x1024xbf16, #tpu.memory_space<vmem>>, vector<128x1024xbf16>
    %cst_34 = arith.constant dense<0.000000e+00> : vector<8x1024xf32>
    %59 = tpu.matmul %57, %58, %cst_34 {dimension_numbers = #tpu.dot_dimension_numbers<[1], [0], [0], [1], [0, 0, 1, 1], [], []>} : vector<8x128xbf16>, vector<128x1024xbf16>, vector<8x1024xf32> -> vector<8x1024xf32>
    %c0_35 = arith.constant 0 : index
    %c0_36 = arith.constant 0 : index
    %60 = vector.load %arg8[%c0_35, %c0_36] : memref<1x1024xf32, #tpu.memory_space<vmem>>, vector<1x1024xf32>
    %61 = vector.broadcast %60 : vector<1x1024xf32> to vector<8x1024xf32>
    %62 = arith.addf %59, %61 : vector<8x1024xf32>
    %cst_37 = arith.constant 0.000000e+00 : f32
    %63 = vector.broadcast %cst_37 : f32 to vector<8x1024xf32>
    %64 = arith.maximumf %62, %63 : vector<8x1024xf32>
    %65 = arith.truncf %55 : vector<8x1024xf32> to vector<8x1024xbf16>
    %c0_38 = arith.constant 0 : index
    %c0_39 = arith.constant 0 : index
    %66 = vector.load %arg9[%c0_38, %c0_39] : memref<1024x1024xbf16, #tpu.memory_space<vmem>>, vector<1024x1024xbf16>
    %cst_40 = arith.constant dense<0.000000e+00> : vector<8x1024xf32>
    %67 = tpu.matmul %65, %66, %cst_40 {dimension_numbers = #tpu.dot_dimension_numbers<[1], [0], [0], [1], [0, 0, 1, 1], [], []>} : vector<8x1024xbf16>, vector<1024x1024xbf16>, vector<8x1024xf32> -> vector<8x1024xf32>
    %68 = arith.truncf %64 : vector<8x1024xf32> to vector<8x1024xbf16>
    %c0_41 = arith.constant 0 : index
    %c0_42 = arith.constant 0 : index
    %69 = vector.load %arg10[%c0_41, %c0_42] : memref<1024x1024xbf16, #tpu.memory_space<vmem>>, vector<1024x1024xbf16>
    %cst_43 = arith.constant dense<0.000000e+00> : vector<8x1024xf32>
    %70 = tpu.matmul %68, %69, %cst_43 {dimension_numbers = #tpu.dot_dimension_numbers<[1], [0], [0], [1], [0, 0, 1, 1], [], []>} : vector<8x1024xbf16>, vector<1024x1024xbf16>, vector<8x1024xf32> -> vector<8x1024xf32>
    %71 = arith.addf %67, %70 : vector<8x1024xf32>
    %c0_44 = arith.constant 0 : index
    %c0_45 = arith.constant 0 : index
    %72 = vector.load %arg11[%c0_44, %c0_45] : memref<1x1024xf32, #tpu.memory_space<vmem>>, vector<1x1024xf32>
    %73 = vector.broadcast %72 : vector<1x1024xf32> to vector<8x1024xf32>
    %74 = arith.addf %71, %73 : vector<8x1024xf32>
    %cst_46 = arith.constant 0.000000e+00 : f32
    %75 = vector.broadcast %cst_46 : f32 to vector<8x1024xf32>
    %76 = arith.maximumf %74, %75 : vector<8x1024xf32>
    %77 = arith.truncf %76 : vector<8x1024xf32> to vector<8x1024xbf16>
    %c0_47 = arith.constant 0 : index
    %c0_48 = arith.constant 0 : index
    %78 = vector.load %arg12[%c0_47, %c0_48] : memref<1024x512xbf16, #tpu.memory_space<vmem>>, vector<1024x512xbf16>
    %cst_49 = arith.constant dense<0.000000e+00> : vector<8x512xf32>
    %79 = tpu.matmul %77, %78, %cst_49 {dimension_numbers = #tpu.dot_dimension_numbers<[1], [0], [0], [1], [0, 0, 1, 1], [], []>} : vector<8x1024xbf16>, vector<1024x512xbf16>, vector<8x512xf32> -> vector<8x512xf32>
    %c0_50 = arith.constant 0 : index
    %c0_51 = arith.constant 0 : index
    %80 = vector.load %arg13[%c0_50, %c0_51] : memref<1x512xf32, #tpu.memory_space<vmem>>, vector<1x512xf32>
    %81 = vector.broadcast %80 : vector<1x512xf32> to vector<8x512xf32>
    %82 = arith.addf %79, %81 : vector<8x512xf32>
    %cst_52 = arith.constant 0.000000e+00 : f32
    %83 = vector.broadcast %cst_52 : f32 to vector<8x512xf32>
    %84 = arith.maximumf %82, %83 : vector<8x512xf32>
    %85 = arith.truncf %84 : vector<8x512xf32> to vector<8x512xbf16>
    %c0_53 = arith.constant 0 : index
    %c0_54 = arith.constant 0 : index
    %86 = vector.load %arg14[%c0_53, %c0_54] : memref<512x256xbf16, #tpu.memory_space<vmem>>, vector<512x256xbf16>
    %cst_55 = arith.constant dense<0.000000e+00> : vector<8x256xf32>
    %87 = tpu.matmul %85, %86, %cst_55 {dimension_numbers = #tpu.dot_dimension_numbers<[1], [0], [0], [1], [0, 0, 1, 1], [], []>} : vector<8x512xbf16>, vector<512x256xbf16>, vector<8x256xf32> -> vector<8x256xf32>
    %c0_56 = arith.constant 0 : index
    %c0_57 = arith.constant 0 : index
    %88 = vector.load %arg15[%c0_56, %c0_57] : memref<1x256xf32, #tpu.memory_space<vmem>>, vector<1x256xf32>
    %89 = vector.broadcast %88 : vector<1x256xf32> to vector<8x256xf32>
    %90 = arith.addf %87, %89 : vector<8x256xf32>
    %91 = vector.extract_strided_slice %90 {offsets = [0, 0], sizes = [8, 128], strides = [1, 1]} : vector<8x256xf32> to vector<8x128xf32>
    %cst_58 = arith.constant dense<0xFF800000> : vector<8xf32>
    %92 = vector.multi_reduction <maximumf>, %91, %cst_58 [1] : vector<8x128xf32> to vector<8xf32>
    %93 = vector.shape_cast %92 : vector<8xf32> to vector<8x1xf32>
    %94 = vector.broadcast %93 : vector<8x1xf32> to vector<8x128xf32>
    %95 = arith.subf %91, %94 : vector<8x128xf32>
    %96 = math.exp %95 : vector<8x128xf32>
    %cst_59 = arith.constant dense<0.000000e+00> : vector<8xf32>
    %97 = vector.multi_reduction <add>, %96, %cst_59 [1] : vector<8x128xf32> to vector<8xf32>
    %98 = vector.shape_cast %97 : vector<8xf32> to vector<8x1xf32>
    %99 = math.log %98 : vector<8x1xf32>
    %100 = vector.broadcast %99 : vector<8x1xf32> to vector<8x128xf32>
    %101 = arith.subf %95, %100 : vector<8x128xf32>
    %c0_60 = arith.constant 0 : index
    %c0_61 = arith.constant 0 : index
    %102 = vector.load %arg16[%c0_60, %c0_61] : memref<8x128xf32, #tpu.memory_space<vmem>>, vector<8x128xf32>
    tpu.vector_store %arg16[%c0_60, %c0_61], %101 {strides = array<i32>} : memref<8x128xf32, #tpu.memory_space<vmem>>, vector<8x128xf32>,
    %103 = vector.extract_strided_slice %90 {offsets = [0, 128], sizes = [8, 128], strides = [1, 1]} : vector<8x256xf32> to vector<8x128xf32>
    %c0_62 = arith.constant 0 : index
    %c0_63 = arith.constant 0 : index
    %104 = vector.load %arg17[%c0_62, %c0_63] : memref<8x128xf32, #tpu.memory_space<vmem>>, vector<8x128xf32>
    tpu.vector_store %arg17[%c0_62, %c0_63], %103 {strides = array<i32>} : memref<8x128xf32, #tpu.memory_space<vmem>>, vector<8x128xf32>,
    return
  }
}

</mosaic_0001>

<llo_original>
// kernel: policy_value_net.1
$region0: #{policy_value_net.1}
  #allocation0 [shape = 'u32[]', space=smem, size = 0x4, offset = 0x4, fixed_abs, tag = 'smem constant byte address 0x4 - core index']
  #allocation1 [shape = 'u32[144,128]{1,0:T(1,128)}', space=vmem, size = 0x12000, scoped, tag = 'internal scratch']
  %s0 = inlined_call_operand.vmem [shape: f32[64,128], index: 0, kind: input, shape index: {}]
  %s1 = inlined_call_operand.vmem [shape: f32[8,128], index: 1, kind: input, shape index: {}]
  %s2 = inlined_call_operand.vmem [shape: f32[128,128], index: 2, kind: input, shape index: {}]
  %s3 = inlined_call_operand.vmem [shape: f32[128,128], index: 3, kind: input, shape index: {}]
  %s4 = inlined_call_operand.vmem [shape: f32[1,128], index: 4, kind: input, shape index: {}]
  %s5 = inlined_call_operand.vmem [shape: bf16[128,1024], index: 5, kind: input, shape index: {}]
  %s6 = inlined_call_operand.vmem [shape: f32[1,1024], index: 6, kind: input, shape index: {}]
  %s7 = inlined_call_operand.vmem [shape: bf16[128,1024], index: 7, kind: input, shape index: {}]
  %s8 = inlined_call_operand.vmem [shape: f32[1,1024], index: 8, kind: input, shape index: {}]
  %s9 = inlined_call_operand.vmem [shape: bf16[1024,1024], index: 9, kind: input, shape index: {}]
  %s10 = inlined_call_operand.vmem [shape: bf16[1024,1024], index: 10, kind: input, shape index: {}]
  %s11 = inlined_call_operand.vmem [shape: f32[1,1024], index: 11, kind: input, shape index: {}]
  %s12 = inlined_call_operand.vmem [shape: bf16[1024,512], index: 12, kind: input, shape index: {}]
  %s13 = inlined_call_operand.vmem [shape: f32[1,512], index: 13, kind: input, shape index: {}]
  %s14 = inlined_call_operand.vmem [shape: bf16[512,256], index: 14, kind: input, shape index: {}]
  %s15 = inlined_call_operand.vmem [shape: f32[1,256], index: 15, kind: input, shape index: {}]
  %s16 = inlined_call_operand.vmem [shape: f32[8,128], index: 16, kind: output, shape index: {0}]
  %s17 = inlined_call_operand.vmem [shape: f32[8,128], index: 17, kind: output, shape index: {1}]
  %18 = xla_tuple %s16, %s17
  %s19 = sld [smem:[#allocation0]]
  $region82: #{policy_value_net.1} parent=0
    _
  %s21 = ssub.s32 1, %s19
  %s22 = scalar_select 0, %s21, %s19
  // Predicated region
  $region2: #{policy_value_net.1} parent=0 // pred_check
    _
  $region3: #{policy_value_net.1} parent=0 // pred_check_branch
    %24 = sbr.rel (0) target = $region5
  $region4: #{policy_value_net.1} parent=0 // pred_region
    _
  $region5: #{policy_value_net.1} parent=0 // pred_fallthru
    _
  // Predicated region
  $region6: #{policy_value_net.1} parent=0 // pred_check
    _
  $region7: #{policy_value_net.1} parent=0 // pred_check_branch
    %26 = sbr.rel (0) target = $region9
  $region8: #{policy_value_net.1} parent=0 // pred_region
    _
  $region9: #{policy_value_net.1} parent=0 // pred_fallthru
    _
  // Predicated region
  $region10: #{policy_value_net.1} parent=0 // pred_check
    _
  $region11: #{policy_value_net.1} parent=0 // pred_check_branch
    %28 = sbr.rel (0) target = $region13
  $region12: #{policy_value_net.1} parent=0 // pred_region
    _
  $region13: #{policy_value_net.1} parent=0 // pred_fallthru
    _
  // Predicated region
  $region14: #{policy_value_net.1} parent=0 // pred_check
    _
  $region15: #{policy_value_net.1} parent=0 // pred_check_branch
    %30 = sbr.rel (0) target = $region17
  $region16: #{policy_value_net.1} parent=0 // pred_region
    _
  $region17: #{policy_value_net.1} parent=0 // pred_fallthru
    _
  // Predicated region
  $region18: #{policy_value_net.1} parent=0 // pred_check
    _
  $region19: #{policy_value_net.1} parent=0 // pred_check_branch
    %32 = sbr.rel (0) target = $region21
  $region20: #{policy_value_net.1} parent=0 // pred_region
    _
  $region21: #{policy_value_net.1} parent=0 // pred_fallthru
    _
  // Predicated region
  $region22: #{policy_value_net.1} parent=0 // pred_check
    _
  $region23: #{policy_value_net.1} parent=0 // pred_check_branch
    %34 = sbr.rel (0) target = $region25
  $region24: #{policy_value_net.1} parent=0 // pred_region
    _
  $region25: #{policy_value_net.1} parent=0 // pred_fallthru
    _
  // Predicated region
  $region26: #{policy_value_net.1} parent=0 // pred_check
    _
  $region27: #{policy_value_net.1} parent=0 // pred_check_branch
    %36 = sbr.rel (0) target = $region29
  $region28: #{policy_value_net.1} parent=0 // pred_region
    _
  $region29: #{policy_value_net.1} parent=0 // pred_fallthru
    _
  // Predicated region
  $region30: #{policy_value_net.1} parent=0 // pred_check
    _
  $region31: #{policy_value_net.1} parent=0 // pred_check_branch
    %38 = sbr.rel (0) target = $region33
  $region32: #{policy_value_net.1} parent=0 // pred_region
    _
  $region33: #{policy_value_net.1} parent=0 // pred_fallthru
    _
  // Predicated region
  $region34: #{policy_value_net.1} parent=0 // pred_check
    _
  $region35: #{policy_value_net.1} parent=0 // pred_check_branch
    %40 = sbr.rel (0) target = $region37
  $region36: #{policy_value_net.1} parent=0 // pred_region
    _
  $region37: #{policy_value_net.1} parent=0 // pred_fallthru
    _
  // Predicated region
  $region38: #{policy_value_net.1} parent=0 // pred_check
    _
  $region39: #{policy_value_net.1} parent=0 // pred_check_branch
    %42 = sbr.rel (0) target = $region41
  $region40: #{policy_value_net.1} parent=0 // pred_region
    _
  $region41: #{policy_value_net.1} parent=0 // pred_fallthru
    _
  // Predicated region
  $region42: #{policy_value_net.1} parent=0 // pred_check
    _
  $region43: #{policy_value_net.1} parent=0 // pred_check_branch
    %44 = sbr.rel (0) target = $region45
  $region44: #{policy_value_net.1} parent=0 // pred_region
    _
  $region45: #{policy_value_net.1} parent=0 // pred_fallthru
    _
  // Predicated region
  $region46: #{policy_value_net.1} parent=0 // pred_check
    _
  $region47: #{policy_value_net.1} parent=0 // pred_check_branch
    %46 = sbr.rel (0) target = $region49
  $region48: #{policy_value_net.1} parent=0 // pred_region
    _
  $region49: #{policy_value_net.1} parent=0 // pred_fallthru
    _
  // Predicated region
  $region50: #{policy_value_net.1} parent=0 // pred_check
    _
  $region51: #{policy_value_net.1} parent=0 // pred_check_branch
    %48 = sbr.rel (0) target = $region53
  $region52: #{policy_value_net.1} parent=0 // pred_region
    _
  $region53: #{policy_value_net.1} parent=0 // pred_fallthru
    _
  // Predicated region
  $region54: #{policy_value_net.1} parent=0 // pred_check
    _
  $region55: #{policy_value_net.1} parent=0 // pred_check_branch
    %50 = sbr.rel (0) target = $region57
  $region56: #{policy_value_net.1} parent=0 // pred_region
    _
  $region57: #{policy_value_net.1} parent=0 // pred_fallthru
    _
  // Predicated region
  $region58: #{policy_value_net.1} parent=0 // pred_check
    _
  $region59: #{policy_value_net.1} parent=0 // pred_check_branch
    %52 = sbr.rel (0) target = $region61
  $region60: #{policy_value_net.1} parent=0 // pred_region
    _
  $region61: #{policy_value_net.1} parent=0 // pred_fallthru
    _
  // Predicated region
  $region62: #{policy_value_net.1} parent=0 // pred_check
    _
  $region63: #{policy_value_net.1} parent=0 // pred_check_branch
    %54 = sbr.rel (0) target = $region65
  $region64: #{policy_value_net.1} parent=0 // pred_region
    _
  $region65: #{policy_value_net.1} parent=0 // pred_fallthru
    _
  %v56 = vld [vmem:[%s0] sm:$0xff]
  %v57 = vld [vmem:[%s0 + $0x8] sm:$0xff]
  %v58 = vld [vmem:[%s0 + $0x10] sm:$0xff]
  %v59 = vld [vmem:[%s0 + $0x18] sm:$0xff]
  %v60 = vld [vmem:[%s0 + $0x20] sm:$0xff]
  %v61 = vld [vmem:[%s0 + $0x28] sm:$0xff]
  %v62 = vld [vmem:[%s0 + $0x30] sm:$0xff]
  %v63 = vld [vmem:[%s0 + $0x38] sm:$0xff]
  %v64 = vld [vmem:[%s2] sm:$0xff]
  %v65 = vld [vmem:[%s2 + $0x8] sm:$0xff]
  %v66 = vld [vmem:[%s2 + $0x10] sm:$0xff]
  %v67 = vld [vmem:[%s2 + $0x18] sm:$0xff]
  %v68 = vld [vmem:[%s2 + $0x20] sm:$0xff]
  %v69 = vld [vmem:[%s2 + $0x28] sm:$0xff]
  %v70 = vld [vmem:[%s2 + $0x30] sm:$0xff]
  %v71 = vld [vmem:[%s2 + $0x38] sm:$0xff]
  %v72 = vld [vmem:[%s2 + $0x40] sm:$0xff]
  %v73 = vld [vmem:[%s2 + $0x48] sm:$0xff]
  %v74 = vld [vmem:[%s2 + $0x50] sm:$0xff]
  %v75 = vld [vmem:[%s2 + $0x58] sm:$0xff]
  %v76 = vld [vmem:[%s2 + $0x60] sm:$0xff]
  %v77 = vld [vmem:[%s2 + $0x68] sm:$0xff]
  %v78 = vld [vmem:[%s2 + $0x70] sm:$0xff]
  %v79 = vld [vmem:[%s2 + $0x78] sm:$0xff]
  %v80 = vld [vmem:[%s4] sm:$0x1]
  %v82 = vlaneseq
  %v83 = vshrl.u32 %v82, 7
  %v84 = vsub.s32 0, %v83
  %v85 = vrot.slane %v80, %v84
  %87 = vmatprep.subr.mxu0 0.0
  %88 = vmatpush1.msra.mxu0 %v64
  %89 = vmatprep.subr.mxu0 0.0
  %90 = vmatpush1.msra.mxu0 %v65
  %91 = vmatprep.subr.mxu0 0.0
  %92 = vmatpush1.msra.mxu0 %v66
  %93 = vmatprep.subr.mxu0 0.0
  %94 = vmatpush1.msra.mxu0 %v67
  %95 = vmatprep.subr.mxu0 0.0
  %96 = vmatpush1.msra.mxu0 %v68
  %97 = vmatprep.subr.mxu0 0.0
  %98 = vmatpush1.msra.mxu0 %v69
  %99 = vmatprep.subr.mxu0 0.0
  %100 = vmatpush1.msra.mxu0 %v70
  %101 = vmatprep.subr.mxu0 0.0
  %102 = vmatpush1.msra.mxu0 %v71
  %103 = vmatprep.subr.mxu0 0.0
  %104 = vmatpush1.msra.mxu0 %v72
  %105 = vmatprep.subr.mxu0 0.0
  %106 = vmatpush1.msra.mxu0 %v73
  %107 = vmatprep.subr.mxu0 0.0
  %108 = vmatpush1.msra.mxu0 %v74
  %109 = vmatprep.subr.mxu0 0.0
  %110 = vmatpush1.msra.mxu0 %v75
  %111 = vmatprep.subr.mxu0 0.0
  %112 = vmatpush1.msra.mxu0 %v76
  %113 = vmatprep.subr.mxu0 0.0
  %114 = vmatpush1.msra.mxu0 %v77
  %115 = vmatprep.subr.mxu0 0.0
  %116 = vmatpush1.msra.mxu0 %v78
  %117 = vmatprep.subr.mxu0 0.0
  %118 = vmatpush1.msra.mxu0 %v79
  %119 = vmatprep.subr.mxu0 0.0
  %120 = vmatpush1.msra.mxu0 0.0
  %121 = vmatprep.subr.mxu0 0.0
  %122 = vmatpush1.msra.mxu0 0.0
  %123 = vmatprep.subr.mxu0 0.0
  %124 = vmatpush1.msra.mxu0 0.0
  %125 = vmatprep.subr.mxu0 0.0
  %126 = vmatpush1.msra.mxu0 0.0
  %127 = vmatprep.subr.mxu0 0.0
  %128 = vmatpush1.msra.mxu0 0.0
  %129 = vmatprep.subr.mxu0 0.0
  %130 = vmatpush1.msra.mxu0 0.0
  %131 = vmatprep.subr.mxu0 0.0
  %132 = vmatpush1.msra.mxu0 0.0
  %133 = vmatprep.subr.mxu0 0.0
  %134 = vmatpush1.msra.mxu0 0.0
  %135 = vmatprep.subr.mxu0 0.0
  %136 = vmatpush1.msra.mxu0 0.0
  %137 = vmatprep.subr.mxu0 0.0
  %138 = vmatpush1.msra.mxu0 0.0
  %139 = vmatprep.subr.mxu0 0.0
  %140 = vmatpush1.msra.mxu0 0.0
  %141 = vmatprep.subr.mxu0 0.0
  %142 = vmatpush1.msra.mxu0 0.0
  %143 = vmatprep.subr.mxu0 0.0
  %144 = vmatpush1.msra.mxu0 0.0
  %145 = vmatprep.subr.mxu0 0.0
  %146 = vmatpush1.msra.mxu0 0.0
  %147 = vmatprep.subr.mxu0 0.0
  %148 = vmatpush1.msra.mxu0 0.0
  %149 = vmatprep.subr.mxu0 0.0
  %150 = vmatpush1.msra.mxu0 0.0
  %151 = vmatprep.mubr.f32.mxu0 0.0
  %152 = vmatmul.mubr.f32.gmra.mrb[0].mxu0 %v56
  %v153 = vpop.f32.mrb[0].mxu0
  %v154 = vadd.f32 %v85, %v153
  %v155 = vpop.f32.mrb[0].mxu0
  %156 = vmatprep.mubr.f32.mxu0 0.0
  %157 = vmatmul.mubr.f32.gmra.mrb[0].mxu0 %v57
  %v158 = vpop.f32.mrb[0].mxu0
  %v159 = vadd.f32 %v85, %v158
  %v160 = vpop.f32.mrb[0].mxu0
  %161 = vmatprep.mubr.f32.mxu0 0.0
  %162 = vmatmul.mubr.f32.gmra.mrb[0].mxu0 %v58
  %v163 = vpop.f32.mrb[0].mxu0
  %v164 = vadd.f32 %v85, %v163
  %v165 = vpop.f32.mrb[0].mxu0
  %166 = vmatprep.mubr.f32.mxu0 0.0
  %167 = vmatmul.mubr.f32.gmra.mrb[0].mxu0 %v59
  %v168 = vpop.f32.mrb[0].mxu0
  %v169 = vadd.f32 %v85, %v168
  %v170 = vpop.f32.mrb[0].mxu0
  %171 = vmatprep.mubr.f32.mxu0 0.0
  %172 = vmatmul.mubr.f32.gmra.mrb[0].mxu0 %v60
  %v173 = vpop.f32.mrb[0].mxu0
  %v174 = vadd.f32 %v85, %v173
  %v175 = vpop.f32.mrb[0].mxu0
  %176 = vmatprep.mubr.f32.mxu0 0.0
  %177 = vmatmul.mubr.f32.gmra.mrb[0].mxu0 %v61
  %v178 = vpop.f32.mrb[0].mxu0
  %v179 = vadd.f32 %v85, %v178
  %v180 = vpop.f32.mrb[0].mxu0
  %181 = vmatprep.mubr.f32.mxu0 0.0
  %182 = vmatmul.mubr.f32.gmra.mrb[0].mxu0 %v62
  %v183 = vpop.f32.mrb[0].mxu0
  %v184 = vadd.f32 %v85, %v183
  %v185 = vpop.f32.mrb[0].mxu0
  %186 = vmatprep.mubr.f32.mxu0 0.0
  %187 = vmatmul.mubr.f32.gmra.mrb[0].mxu0 %v63
  %v188 = vpop.f32.mrb[0].mxu0
  %v189 = vadd.f32 %v85, %v188
  %v190 = vpop.f32.mrb[0].mxu0
  %191 = vdwg.mxu0
  %v192 = vld [vmem:[%s3] sm:$0xff]
  %v193 = vld [vmem:[%s3 + $0x8] sm:$0xff]
  %v194 = vld [vmem:[%s3 + $0x10] sm:$0xff]
  %v195 = vld [vmem:[%s3 + $0x18] sm:$0xff]
  %v196 = vld [vmem:[%s3 + $0x20] sm:$0xff]
  %v197 = vld [vmem:[%s3 + $0x28] sm:$0xff]
  %v198 = vld [vmem:[%s3 + $0x30] sm:$0xff]
  %v199 = vld [vmem:[%s3 + $0x38] sm:$0xff]
  %v200 = vld [vmem:[%s3 + $0x40] sm:$0xff]
  %v201 = vld [vmem:[%s3 + $0x48] sm:$0xff]
  %v202 = vld [vmem:[%s3 + $0x50] sm:$0xff]
  %v203 = vld [vmem:[%s3 + $0x58] sm:$0xff]
  %v204 = vld [vmem:[%s3 + $0x60] sm:$0xff]
  %v205 = vld [vmem:[%s3 + $0x68] sm:$0xff]
  %v206 = vld [vmem:[%s3 + $0x70] sm:$0xff]
  %v207 = vld [vmem:[%s3 + $0x78] sm:$0xff]
  %208 = vmatprep.subr.mxu0 0.0
  %209 = vmatpush1.msra.mxu0 %v192
  %210 = vmatprep.subr.mxu0 0.0
  %211 = vmatpush1.msra.mxu0 %v193
  %212 = vmatprep.subr.mxu0 0.0
  %213 = vmatpush1.msra.mxu0 %v194
  %214 = vmatprep.subr.mxu0 0.0
  %215 = vmatpush1.msra.mxu0 %v195
  %216 = vmatprep.subr.mxu0 0.0
  %217 = vmatpush1.msra.mxu0 %v196
  %218 = vmatprep.subr.mxu0 0.0
  %219 = vmatpush1.msra.mxu0 %v197
  %220 = vmatprep.subr.mxu0 0.0
  %221 = vmatpush1.msra.mxu0 %v198
  %222 = vmatprep.subr.mxu0 0.0
  %223 = vmatpush1.msra.mxu0 %v199
  %224 = vmatprep.subr.mxu0 0.0
  %225 = vmatpush1.msra.mxu0 %v200
  %226 = vmatprep.subr.mxu0 0.0
  %227 = vmatpush1.msra.mxu0 %v201
  %228 = vmatprep.subr.mxu0 0.0
  %229 = vmatpush1.msra.mxu0 %v202
  %230 = vmatprep.subr.mxu0 0.0
  %231 = vmatpush1.msra.mxu0 %v203
  %232 = vmatprep.subr.mxu0 0.0
  %233 = vmatpush1.msra.mxu0 %v204
  %234 = vmatprep.subr.mxu0 0.0
  %235 = vmatpush1.msra.mxu0 %v205
  %236 = vmatprep.subr.mxu0 0.0
  %237 = vmatpush1.msra.mxu0 %v206
  %238 = vmatprep.subr.mxu0 0.0
  %239 = vmatpush1.msra.mxu0 %v207
  %240 = vmatprep.subr.mxu0 0.0
  %241 = vmatpush1.msra.mxu0 0.0
  %242 = vmatprep.subr.mxu0 0.0
  %243 = vmatpush1.msra.mxu0 0.0
  %244 = vmatprep.subr.mxu0 0.0
  %245 = vmatpush1.msra.mxu0 0.0
  %246 = vmatprep.subr.mxu0 0.0
  %247 = vmatpush1.msra.mxu0 0.0
  %248 = vmatprep.subr.mxu0 0.0
  %249 = vmatpush1.msra.mxu0 0.0
  %250 = vmatprep.subr.mxu0 0.0
  %251 = vmatpush1.msra.mxu0 0.0
  %252 = vmatprep.subr.mxu0 0.0
  %253 = vmatpush1.msra.mxu0 0.0
  %254 = vmatprep.subr.mxu0 0.0
  %255 = vmatpush1.msra.mxu0 0.0
  %256 = vmatprep.subr.mxu0 0.0
  %257 = vmatpush1.msra.mxu0 0.0
  %258 = vmatprep.subr.mxu0 0.0
  %259 = vmatpush1.msra.mxu0 0.0
  %260 = vmatprep.subr.mxu0 0.0
  %261 = vmatpush1.msra.mxu0 0.0
  %262 = vmatprep.subr.mxu0 0.0
  %263 = vmatpush1.msra.mxu0 0.0
  %264 = vmatprep.subr.mxu0 0.0
  %265 = vmatpush1.msra.mxu0 0.0
  %266 = vmatprep.subr.mxu0 0.0
  %267 = vmatpush1.msra.mxu0 0.0
  %268 = vmatprep.subr.mxu0 0.0
  %269 = vmatpush1.msra.mxu0 0.0
  %270 = vmatprep.subr.mxu0 0.0
  %271 = vmatpush1.msra.mxu0 0.0
  %272 = vmatprep.mubr.f32.mxu0 0.0
  %273 = vmatmul.mubr.f32.gmra.mrb[0].mxu0 0.0
  %v274 = vpop.f32.mrb[0].mxu0
  %v275 = vadd.f32 0.0, %v274
  %v276 = vpop.f32.mrb[0].mxu0
  %277 = vdwg.mxu0
  %v278 = vadd.f32 %v154, %v275
  %v279 = vmax.f32 %v278, 0.0
  %280 = vmatprep.subr.mxu0 0.0
  %281 = vmatpush1.msra.mxu0 %v192
  %282 = vmatprep.subr.mxu0 0.0
  %283 = vmatpush1.msra.mxu0 %v193
  %284 = vmatprep.subr.mxu0 0.0
  %285 = vmatpush1.msra.mxu0 %v194
  %286 = vmatprep.subr.mxu0 0.0
  %287 = vmatpush1.msra.mxu0 %v195
  %288 = vmatprep.subr.mxu0 0.0
  %289 = vmatpush1.msra.mxu0 %v196
  %290 = vmatprep.subr.mxu0 0.0
  %291 = vmatpush1.msra.mxu0 %v197
  %292 = vmatprep.subr.mxu0 0.0
  %293 = vmatpush1.msra.mxu0 %v198
  %294 = vmatprep.subr.mxu0 0.0
  %295 = vmatpush1.msra.mxu0 %v199
  %296 = vmatprep.subr.mxu0 0.0
  %297 = vmatpush1.msra.mxu0 %v200
  %298 = vmatprep.subr.mxu0 0.0
  %299 = vmatpush1.msra.mxu0 %v201
  %300 = vmatprep.subr.mxu0 0.0
  %301 = vmatpush1.msra.mxu0 %v202
  %302 = vmatprep.subr.mxu0 0.0
  %303 = vmatpush1.msra.mxu0 %v203
  %304 = vmatprep.subr.mxu0 0.0
  %305 = vmatpush1.msra.mxu0 %v204
  %306 = vmatprep.subr.mxu0 0.0
  %307 = vmatpush1.msra.mxu0 %v205
  %308 = vmatprep.subr.mxu0 0.0
  %309 = vmatpush1.msra.mxu0 %v206
  %310 = vmatprep.subr.mxu0 0.0
  %311 = vmatpush1.msra.mxu0 %v207
  %312 = vmatprep.subr.mxu0 0.0
  %313 = vmatpush1.msra.mxu0 0.0
  %314 = vmatprep.subr.mxu0 0.0
  %315 = vmatpush1.msra.mxu0 0.0
  %316 = vmatprep.subr.mxu0 0.0
  %317 = vmatpush1.msra.mxu0 0.0
  %318 = vmatprep.subr.mxu0 0.0
  %319 = vmatpush1.msra.mxu0 0.0
  %320 = vmatprep.subr.mxu0 0.0
  %321 = vmatpush1.msra.mxu0 0.0
  %322 = vmatprep.subr.mxu0 0.0
  %323 = vmatpush1.msra.mxu0 0.0
  %324 = vmatprep.subr.mxu0 0.0
  %325 = vmatpush1.msra.mxu0 0.0
  %326 = vmatprep.subr.mxu0 0.0
  %327 = vmatpush1.msra.mxu0 0.0
  %328 = vmatprep.subr.mxu0 0.0
  %329 = vmatpush1.msra.mxu0 0.0
  %330 = vmatprep.subr.mxu0 0.0
  %331 = vmatpush1.msra.mxu0 0.0
  %332 = vmatprep.subr.mxu0 0.0
  %333 = vmatpush1.msra.mxu0 0.0
  %334 = vmatprep.subr.mxu0 0.0
  %335 = vmatpush1.msra.mxu0 0.0
  %336 = vmatprep.subr.mxu0 0.0
  %337 = vmatpush1.msra.mxu0 0.0
  %338 = vmatprep.subr.mxu0 0.0
  %339 = vmatpush1.msra.mxu0 0.0
  %340 = vmatprep.subr.mxu0 0.0
  %341 = vmatpush1.msra.mxu0 0.0
  %342 = vmatprep.subr.mxu0 0.0
  %343 = vmatpush1.msra.mxu0 0.0
  %344 = vmatprep.mubr.f32.mxu0 0.0
  %345 = vmatmul.mubr.f32.gmra.mrb[0].mxu0 %v279
  %v346 = vpop.f32.mrb[0].mxu0
  %v347 = vadd.f32 0.0, %v346
  %v348 = vpop.f32.mrb[0].mxu0
  %349 = vdwg.mxu0
  %v350 = vadd.f32 %v159, %v347
  %v351 = vmax.f32 %v350, 0.0
  %352 = vmatprep.subr.mxu0 0.0
  %353 = vmatpush1.msra.mxu0 %v192
  %354 = vmatprep.subr.mxu0 0.0
  %355 = vmatpush1.msra.mxu0 %v193
  %356 = vmatprep.subr.mxu0 0.0
  %357 = vmatpush1.msra.mxu0 %v194
  %358 = vmatprep.subr.mxu0 0.0
  %359 = vmatpush1.msra.mxu0 %v195
  %360 = vmatprep.subr.mxu0 0.0
  %361 = vmatpush1.msra.mxu0 %v196
  %362 = vmatprep.subr.mxu0 0.0
  %363 = vmatpush1.msra.mxu0 %v197
  %364 = vmatprep.subr.mxu0 0.0
  %365 = vmatpush1.msra.mxu0 %v198
  %366 = vmatprep.subr.mxu0 0.0
  %367 = vmatpush1.msra.mxu0 %v199
  %368 = vmatprep.subr.mxu0 0.0
  %369 = vmatpush1.msra.mxu0 %v200
  %370 = vmatprep.subr.mxu0 0.0
  %371 = vmatpush1.msra.mxu0 %v201
  %372 = vmatprep.subr.mxu0 0.0
  %373 = vmatpush1.msra.mxu0 %v202
  %374 = vmatprep.subr.mxu0 0.0
  %375 = vmatpush1.msra.mxu0 %v203
  %376 = vmatprep.subr.mxu0 0.0
  %377 = vmatpush1.msra.mxu0 %v204
  %378 = vmatprep.subr.mxu0 0.0
  %379 = vmatpush1.msra.mxu0 %v205
  %380 = vmatprep.subr.mxu0 0.0
  %381 = vmatpush1.msra.mxu0 %v206
  %382 = vmatprep.subr.mxu0 0.0
  %383 = vmatpush1.msra.mxu0 %v207
  %384 = vmatprep.subr.mxu0 0.0
  %385 = vmatpush1.msra.mxu0 0.0
  %386 = vmatprep.subr.mxu0 0.0
  %387 = vmatpush1.msra.mxu0 0.0
  %388 = vmatprep.subr.mxu0 0.0
  %389 = vmatpush1.msra.mxu0 0.0
  %390 = vmatprep.subr.mxu0 0.0
  %391 = vmatpush1.msra.mxu0 0.0
  %392 = vmatprep.subr.mxu0 0.0
  %393 = vmatpush1.msra.mxu0 0.0
  %394 = vmatprep.subr.mxu0 0.0
  %395 = vmatpush1.msra.mxu0 0.0
  %396 = vmatprep.subr.mxu0 0.0
  %397 = vmatpush1.msra.mxu0 0.0
  %398 = vmatprep.subr.mxu0 0.0
  %399 = vmatpush1.msra.mxu0 0.0
  %400 = vmatprep.subr.mxu0 0.0
  %401 = vmatpush1.msra.mxu0 0.0
  %402 = vmatprep.subr.mxu0 0.0
  %403 = vmatpush1.msra.mxu0 0.0
  %404 = vmatprep.subr.mxu0 0.0
  %405 = vmatpush1.msra.mxu0 0.0
  %406 = vmatprep.subr.mxu0 0.0
  %407 = vmatpush1.msra.mxu0 0.0
  %408 = vmatprep.subr.mxu0 0.0
  %409 = vmatpush1.msra.mxu0 0.0
  %410 = vmatprep.subr.mxu0 0.0
  %411 = vmatpush1.msra.mxu0 0.0
  %412 = vmatprep.subr.mxu0 0.0
  %413 = vmatpush1.msra.mxu0 0.0
  %414 = vmatprep.subr.mxu0 0.0
  %415 = vmatpush1.msra.mxu0 0.0
  %416 = vmatprep.mubr.f32.mxu0 0.0
  %417 = vmatmul.mubr.f32.gmra.mrb[0].mxu0 %v351
  %v418 = vpop.f32.mrb[0].mxu0
  %v419 = vadd.f32 0.0, %v418
  %v420 = vpop.f32.mrb[0].mxu0
  %421 = vdwg.mxu0
  %v422 = vadd.f32 %v164, %v419
  %v423 = vmax.f32 %v422, 0.0
  %424 = vmatprep.subr.mxu0 0.0
  %425 = vmatpush1.msra.mxu0 %v192
  %426 = vmatprep.subr.mxu0 0.0
  %427 = vmatpush1.msra.mxu0 %v193
  %428 = vmatprep.subr.mxu0 0.0
  %429 = vmatpush1.msra.mxu0 %v194
  %430 = vmatprep.subr.mxu0 0.0
  %431 = vmatpush1.msra.mxu0 %v195
  %432 = vmatprep.subr.mxu0 0.0
  %433 = vmatpush1.msra.mxu0 %v196
  %434 = vmatprep.subr.mxu0 0.0
  %435 = vmatpush1.msra.mxu0 %v197
  %436 = vmatprep.subr.mxu0 0.0
  %437 = vmatpush1.msra.mxu0 %v198
  %438 = vmatprep.subr.mxu0 0.0
  %439 = vmatpush1.msra.mxu0 %v199
  %440 = vmatprep.subr.mxu0 0.0
  %441 = vmatpush1.msra.mxu0 %v200
  %442 = vmatprep.subr.mxu0 0.0
  %443 = vmatpush1.msra.mxu0 %v201
  %444 = vmatprep.subr.mxu0 0.0
  %445 = vmatpush1.msra.mxu0 %v202
  %446 = vmatprep.subr.mxu0 0.0
  %447 = vmatpush1.msra.mxu0 %v203
  %448 = vmatprep.subr.mxu0 0.0
  %449 = vmatpush1.msra.mxu0 %v204
  %450 = vmatprep.subr.mxu0 0.0
  %451 = vmatpush1.msra.mxu0 %v205
  %452 = vmatprep.subr.mxu0 0.0
  %453 = vmatpush1.msra.mxu0 %v206
  %454 = vmatprep.subr.mxu0 0.0
  %455 = vmatpush1.msra.mxu0 %v207
  %456 = vmatprep.subr.mxu0 0.0
  %457 = vmatpush1.msra.mxu0 0.0
  %458 = vmatprep.subr.mxu0 0.0
  %459 = vmatpush1.msra.mxu0 0.0
  %460 = vmatprep.subr.mxu0 0.0
  %461 = vmatpush1.msra.mxu0 0.0
  %462 = vmatprep.subr.mxu0 0.0
  %463 = vmatpush1.msra.mxu0 0.0
  %464 = vmatprep.subr.mxu0 0.0
  %465 = vmatpush1.msra.mxu0 0.0
  %466 = vmatprep.subr.mxu0 0.0
  %467 = vmatpush1.msra.mxu0 0.0
  %468 = vmatprep.subr.mxu0 0.0
  %469 = vmatpush1.msra.mxu0 0.0
  %470 = vmatprep.subr.mxu0 0.0
  %471 = vmatpush1.msra.mxu0 0.0
  %472 = vmatprep.subr.mxu0 0.0
  %473 = vmatpush1.msra.mxu0 0.0
  %474 = vmatprep.subr.mxu0 0.0
  %475 = vmatpush1.msra.mxu0 0.0
  %476 = vmatprep.subr.mxu0 0.0
  %477 = vmatpush1.msra.mxu0 0.0
  %478 = vmatprep.subr.mxu0 0.0
  %479 = vmatpush1.msra.mxu0 0.0
  %480 = vmatprep.subr.mxu0 0.0
  %481 = vmatpush1.msra.mxu0 0.0
  %482 = vmatprep.subr.mxu0 0.0
  %483 = vmatpush1.msra.mxu0 0.0
  %484 = vmatprep.subr.mxu0 0.0
  %485 = vmatpush1.msra.mxu0 0.0
  %486 = vmatprep.subr.mxu0 0.0
  %487 = vmatpush1.msra.mxu0 0.0
  %488 = vmatprep.mubr.f32.mxu0 0.0
  %489 = vmatmul.mubr.f32.gmra.mrb[0].mxu0 %v423
  %v490 = vpop.f32.mrb[0].mxu0
  %v491 = vadd.f32 0.0, %v490
  %v492 = vpop.f32.mrb[0].mxu0
  %493 = vdwg.mxu0
  %v494 = vadd.f32 %v169, %v491
  %v495 = vmax.f32 %v494, 0.0
  %496 = vmatprep.subr.mxu0 0.0
  %497 = vmatpush1.msra.mxu0 %v192
  %498 = vmatprep.subr.mxu0 0.0
  %499 = vmatpush1.msra.mxu0 %v193
  %500 = vmatprep.subr.mxu0 0.0
  %501 = vmatpush1.msra.mxu0 %v194
  %502 = vmatprep.subr.mxu0 0.0
  %503 = vmatpush1.msra.mxu0 %v195
  %504 = vmatprep.subr.mxu0 0.0
  %505 = vmatpush1.msra.mxu0 %v196
  %506 = vmatprep.subr.mxu0 0.0
  %507 = vmatpush1.msra.mxu0 %v197
  %508 = vmatprep.subr.mxu0 0.0
  %509 = vmatpush1.msra.mxu0 %v198
  %510 = vmatprep.subr.mxu0 0.0
  %511 = vmatpush1.msra.mxu0 %v199
  %512 = vmatprep.subr.mxu0 0.0
  %513 = vmatpush1.msra.mxu0 %v200
  %514 = vmatprep.subr.mxu0 0.0
  %515 = vmatpush1.msra.mxu0 %v201
  %516 = vmatprep.subr.mxu0 0.0
  %517 = vmatpush1.msra.mxu0 %v202
  %518 = vmatprep.subr.mxu0 0.0
  %519 = vmatpush1.msra.mxu0 %v203
  %520 = vmatprep.subr.mxu0 0.0
  %521 = vmatpush1.msra.mxu0 %v204
  %522 = vmatprep.subr.mxu0 0.0
  %523 = vmatpush1.msra.mxu0 %v205
  %524 = vmatprep.subr.mxu0 0.0
  %525 = vmatpush1.msra.mxu0 %v206
  %526 = vmatprep.subr.mxu0 0.0
  %527 = vmatpush1.msra.mxu0 %v207
  %528 = vmatprep.subr.mxu0 0.0
  %529 = vmatpush1.msra.mxu0 0.0
  %530 = vmatprep.subr.mxu0 0.0
  %531 = vmatpush1.msra.mxu0 0.0
  %532 = vmatprep.subr.mxu0 0.0
  %533 = vmatpush1.msra.mxu0 0.0
  %534 = vmatprep.subr.mxu0 0.0
  %535 = vmatpush1.msra.mxu0 0.0
  %536 = vmatprep.subr.mxu0 0.0
  %537 = vmatpush1.msra.mxu0 0.0
  %538 = vmatprep.subr.mxu0 0.0
  %539 = vmatpush1.msra.mxu0 0.0
  %540 = vmatprep.subr.mxu0 0.0
  %541 = vmatpush1.msra.mxu0 0.0
  %542 = vmatprep.subr.mxu0 0.0
  %543 = vmatpush1.msra.mxu0 0.0
  %544 = vmatprep.subr.mxu0 0.0
  %545 = vmatpush1.msra.mxu0 0.0
  %546 = vmatprep.subr.mxu0 0.0
  %547 = vmatpush1.msra.mxu0 0.0
  %548 = vmatprep.subr.mxu0 0.0
  %549 = vmatpush1.msra.mxu0 0.0
  %550 = vmatprep.subr.mxu0 0.0
  %551 = vmatpush1.msra.mxu0 0.0
  %552 = vmatprep.subr.mxu0 0.0
  %553 = vmatpush1.msra.mxu0 0.0
  %554 = vmatprep.subr.mxu0 0.0
  %555 = vmatpush1.msra.mxu0 0.0
  %556 = vmatprep.subr.mxu0 0.0
  %557 = vmatpush1.msra.mxu0 0.0
  %558 = vmatprep.subr.mxu0 0.0
  %559 = vmatpush1.msra.mxu0 0.0
  %560 = vmatprep.mubr.f32.mxu0 0.0
  %561 = vmatmul.mubr.f32.gmra.mrb[0].mxu0 %v495
  %v562 = vpop.f32.mrb[0].mxu0
  %v563 = vadd.f32 0.0, %v562
  %v564 = vpop.f32.mrb[0].mxu0
  %565 = vdwg.mxu0
  %v566 = vadd.f32 %v174, %v563
  %v567 = vmax.f32 %v566, 0.0
  %568 = vmatprep.subr.mxu0 0.0
  %569 = vmatpush1.msra.mxu0 %v192
  %570 = vmatprep.subr.mxu0 0.0
  %571 = vmatpush1.msra.mxu0 %v193
  %572 = vmatprep.subr.mxu0 0.0
  %573 = vmatpush1.msra.mxu0 %v194
  %574 = vmatprep.subr.mxu0 0.0
  %575 = vmatpush1.msra.mxu0 %v195
  %576 = vmatprep.subr.mxu0 0.0
  %577 = vmatpush1.msra.mxu0 %v196
  %578 = vmatprep.subr.mxu0 0.0
  %579 = vmatpush1.msra.mxu0 %v197
  %580 = vmatprep.subr.mxu0 0.0
  %581 = vmatpush1.msra.mxu0 %v198
  %582 = vmatprep.subr.mxu0 0.0
  %583 = vmatpush1.msra.mxu0 %v199
  %584 = vmatprep.subr.mxu0 0.0
  %585 = vmatpush1.msra.mxu0 %v200
  %586 = vmatprep.subr.mxu0 0.0
  %587 = vmatpush1.msra.mxu0 %v201
  %588 = vmatprep.subr.mxu0 0.0
  %589 = vmatpush1.msra.mxu0 %v202
  %590 = vmatprep.subr.mxu0 0.0
  %591 = vmatpush1.msra.mxu0 %v203
  %592 = vmatprep.subr.mxu0 0.0
  %593 = vmatpush1.msra.mxu0 %v204
  %594 = vmatprep.subr.mxu0 0.0
  %595 = vmatpush1.msra.mxu0 %v205
  %596 = vmatprep.subr.mxu0 0.0
  %597 = vmatpush1.msra.mxu0 %v206
  %598 = vmatprep.subr.mxu0 0.0
  %599 = vmatpush1.msra.mxu0 %v207
  %600 = vmatprep.subr.mxu0 0.0
  %601 = vmatpush1.msra.mxu0 0.0
  %602 = vmatprep.subr.mxu0 0.0
  %603 = vmatpush1.msra.mxu0 0.0
  %604 = vmatprep.subr.mxu0 0.0
  %605 = vmatpush1.msra.mxu0 0.0
  %606 = vmatprep.subr.mxu0 0.0
  %607 = vmatpush1.msra.mxu0 0.0
  %608 = vmatprep.subr.mxu0 0.0
  %609 = vmatpush1.msra.mxu0 0.0
  %610 = vmatprep.subr.mxu0 0.0
  %611 = vmatpush1.msra.mxu0 0.0
  %612 = vmatprep.subr.mxu0 0.0
  %613 = vmatpush1.msra.mxu0 0.0
  %614 = vmatprep.subr.mxu0 0.0
  %615 = vmatpush1.msra.mxu0 0.0
  %616 = vmatprep.subr.mxu0 0.0
  %617 = vmatpush1.msra.mxu0 0.0
  %618 = vmatprep.subr.mxu0 0.0
  %619 = vmatpush1.msra.mxu0 0.0
  %620 = vmatprep.subr.mxu0 0.0
  %621 = vmatpush1.msra.mxu0 0.0
  %622 = vmatprep.subr.mxu0 0.0
  %623 = vmatpush1.msra.mxu0 0.0
  %624 = vmatprep.subr.mxu0 0.0
  %625 = vmatpush1.msra.mxu0 0.0
  %626 = vmatprep.subr.mxu0 0.0
  %627 = vmatpush1.msra.mxu0 0.0
  %628 = vmatprep.subr.mxu0 0.0
  %629 = vmatpush1.msra.mxu0 0.0
  %630 = vmatprep.subr.mxu0 0.0
  %631 = vmatpush1.msra.mxu0 0.0
  %632 = vmatprep.mubr.f32.mxu0 0.0
  %633 = vmatmul.mubr.f32.gmra.mrb[0].mxu0 %v567
  %v634 = vpop.f32.mrb[0].mxu0
  %v635 = vadd.f32 0.0, %v634
  %v636 = vpop.f32.mrb[0].mxu0
  %637 = vdwg.mxu0
  %v638 = vadd.f32 %v179, %v635
  %v639 = vmax.f32 %v638, 0.0
  %640 = vmatprep.subr.mxu0 0.0
  %641 = vmatpush1.msra.mxu0 %v192
  %642 = vmatprep.subr.mxu0 0.0
  %643 = vmatpush1.msra.mxu0 %v193
  %644 = vmatprep.subr.mxu0 0.0
  %645 = vmatpush1.msra.mxu0 %v194
  %646 = vmatprep.subr.mxu0 0.0
  %647 = vmatpush1.msra.mxu0 %v195
  %648 = vmatprep.subr.mxu0 0.0
  %649 = vmatpush1.msra.mxu0 %v196
  %650 = vmatprep.subr.mxu0 0.0
  %651 = vmatpush1.msra.mxu0 %v197
  %652 = vmatprep.subr.mxu0 0.0
  %653 = vmatpush1.msra.mxu0 %v198
  %654 = vmatprep.subr.mxu0 0.0
  %655 = vmatpush1.msra.mxu0 %v199
  %656 = vmatprep.subr.mxu0 0.0
  %657 = vmatpush1.msra.mxu0 %v200
  %658 = vmatprep.subr.mxu0 0.0
  %659 = vmatpush1.msra.mxu0 %v201
  %660 = vmatprep.subr.mxu0 0.0
  %661 = vmatpush1.msra.mxu0 %v202
  %662 = vmatprep.subr.mxu0 0.0
  %663 = vmatpush1.msra.mxu0 %v203
  %664 = vmatprep.subr.mxu0 0.0
  %665 = vmatpush1.msra.mxu0 %v204
  %666 = vmatprep.subr.mxu0 0.0
  %667 = vmatpush1.msra.mxu0 %v205
  %668 = vmatprep.subr.mxu0 0.0
  %669 = vmatpush1.msra.mxu0 %v206
  %670 = vmatprep.subr.mxu0 0.0
  %671 = vmatpush1.msra.mxu0 %v207
  %672 = vmatprep.subr.mxu0 0.0
  %673 = vmatpush1.msra.mxu0 0.0
  %674 = vmatprep.subr.mxu0 0.0
  %675 = vmatpush1.msra.mxu0 0.0
  %676 = vmatprep.subr.mxu0 0.0
  %677 = vmatpush1.msra.mxu0 0.0
  %678 = vmatprep.subr.mxu0 0.0
  %679 = vmatpush1.msra.mxu0 0.0
  %680 = vmatprep.subr.mxu0 0.0
  %681 = vmatpush1.msra.mxu0 0.0
  %682 = vmatprep.subr.mxu0 0.0
  %683 = vmatpush1.msra.mxu0 0.0
  %684 = vmatprep.subr.mxu0 0.0
  %685 = vmatpush1.msra.mxu0 0.0
  %686 = vmatprep.subr.mxu0 0.0
  %687 = vmatpush1.msra.mxu0 0.0
  %688 = vmatprep.subr.mxu0 0.0
  %689 = vmatpush1.msra.mxu0 0.0
  %690 = vmatprep.subr.mxu0 0.0
  %691 = vmatpush1.msra.mxu0 0.0
  %692 = vmatprep.subr.mxu0 0.0
  %693 = vmatpush1.msra.mxu0 0.0
  %694 = vmatprep.subr.mxu0 0.0
  %695 = vmatpush1.msra.mxu0 0.0
  %696 = vmatprep.subr.mxu0 0.0
  %697 = vmatpush1.msra.mxu0 0.0
  %698 = vmatprep.subr.mxu0 0.0
  %699 = vmatpush1.msra.mxu0 0.0
  %700 = vmatprep.subr.mxu0 0.0
  %701 = vmatpush1.msra.mxu0 0.0
  %702 = vmatprep.subr.mxu0 0.0
  %703 = vmatpush1.msra.mxu0 0.0
  %704 = vmatprep.mubr.f32.mxu0 0.0
  %705 = vmatmul.mubr.f32.gmra.mrb[0].mxu0 %v639
  %v706 = vpop.f32.mrb[0].mxu0
  %v707 = vadd.f32 0.0, %v706
  %v708 = vpop.f32.mrb[0].mxu0
  %709 = vdwg.mxu0
  %v710 = vadd.f32 %v184, %v707
  %v711 = vmax.f32 %v710, 0.0
  %712 = vmatprep.subr.mxu0 0.0
  %713 = vmatpush1.msra.mxu0 %v192
  %714 = vmatprep.subr.mxu0 0.0
  %715 = vmatpush1.msra.mxu0 %v193
  %716 = vmatprep.subr.mxu0 0.0
  %717 = vmatpush1.msra.mxu0 %v194
  %718 = vmatprep.subr.mxu0 0.0
  %719 = vmatpush1.msra.mxu0 %v195
  %720 = vmatprep.subr.mxu0 0.0
  %721 = vmatpush1.msra.mxu0 %v196
  %722 = vmatprep.subr.mxu0 0.0
  %723 = vmatpush1.msra.mxu0 %v197
  %724 = vmatprep.subr.mxu0 0.0
  %725 = vmatpush1.msra.mxu0 %v198
  %726 = vmatprep.subr.mxu0 0.0
  %727 = vmatpush1.msra.mxu0 %v199
  %728 = vmatprep.subr.mxu0 0.0
  %729 = vmatpush1.msra.mxu0 %v200
  %730 = vmatprep.subr.mxu0 0.0
  %731 = vmatpush1.msra.mxu0 %v201
  %732 = vmatprep.subr.mxu0 0.0
  %733 = vmatpush1.msra.mxu0 %v202
  %734 = vmatprep.subr.mxu0 0.0
  %735 = vmatpush1.msra.mxu0 %v203
  %736 = vmatprep.subr.mxu0 0.0
  %737 = vmatpush1.msra.mxu0 %v204
  %738 = vmatprep.subr.mxu0 0.0
  %739 = vmatpush1.msra.mxu0 %v205
  %740 = vmatprep.subr.mxu0 0.0
  %741 = vmatpush1.msra.mxu0 %v206
  %742 = vmatprep.subr.mxu0 0.0
  %743 = vmatpush1.msra.mxu0 %v207
  %744 = vmatprep.subr.mxu0 0.0
  %745 = vmatpush1.msra.mxu0 0.0
  %746 = vmatprep.subr.mxu0 0.0
  %747 = vmatpush1.msra.mxu0 0.0
  %748 = vmatprep.subr.mxu0 0.0
  %749 = vmatpush1.msra.mxu0 0.0
  %750 = vmatprep.subr.mxu0 0.0
  %751 = vmatpush1.msra.mxu0 0.0
  %752 = vmatprep.subr.mxu0 0.0
  %753 = vmatpush1.msra.mxu0 0.0
  %754 = vmatprep.subr.mxu0 0.0
  %755 = vmatpush1.msra.mxu0 0.0
  %756 = vmatprep.subr.mxu0 0.0
  %757 = vmatpush1.msra.mxu0 0.0
  %758 = vmatprep.subr.mxu0 0.0
  %759 = vmatpush1.msra.mxu0 0.0
  %760 = vmatprep.subr.mxu0 0.0
  %761 = vmatpush1.msra.mxu0 0.0
  %762 = vmatprep.subr.mxu0 0.0
  %763 = vmatpush1.msra.mxu0 0.0
  %764 = vmatprep.subr.mxu0 0.0
  %765 = vmatpush1.msra.mxu0 0.0
  %766 = vmatprep.subr.mxu0 0.0
  %767 = vmatpush1.msra.mxu0 0.0
  %768 = vmatprep.subr.mxu0 0.0
  %769 = vmatpush1.msra.mxu0 0.0
  %770 = vmatprep.subr.mxu0 0.0
  %771 = vmatpush1.msra.mxu0 0.0
  %772 = vmatprep.subr.mxu0 0.0
  %773 = vmatpush1.msra.mxu0 0.0
  %774 = vmatprep.subr.mxu0 0.0
  %775 = vmatpush1.msra.mxu0 0.0
  %776 = vmatprep.mubr.f32.mxu0 0.0
  %777 = vmatmul.mubr.f32.gmra.mrb[0].mxu0 %v711
  %v778 = vpop.f32.mrb[0].mxu0
  %v779 = vadd.f32 0.0, %v778
  %v780 = vpop.f32.mrb[0].mxu0
  %781 = vdwg.mxu0
  %v782 = vadd.f32 %v189, %v779
  %v783 = vmax.f32 %v782, 0.0
  %v784 = vpack.c.bf16 %v783, %v783
  %v785 = vld [vmem:[%s5] sm:$0xff]
  %v786 = vld [vmem:[%s5 + $0x8] sm:$0xff]
  %v787 = vld [vmem:[%s5 + $0x10] sm:$0xff]
  %v788 = vld [vmem:[%s5 + $0x18] sm:$0xff]
  %v789 = vld [vmem:[%s5 + $0x20] sm:$0xff]
  %v790 = vld [vmem:[%s5 + $0x28] sm:$0xff]
  %v791 = vld [vmem:[%s5 + $0x30] sm:$0xff]
  %v792 = vld [vmem:[%s5 + $0x38] sm:$0xff]
  %v793 = vld [vmem:[%s5 + $0x40] sm:$0xff]
  %v794 = vld [vmem:[%s5 + $0x48] sm:$0xff]
  %v795 = vld [vmem:[%s5 + $0x50] sm:$0xff]
  %v796 = vld [vmem:[%s5 + $0x58] sm:$0xff]
  %v797 = vld [vmem:[%s5 + $0x60] sm:$0xff]
  %v798 = vld [vmem:[%s5 + $0x68] sm:$0xff]
  %v799 = vld [vmem:[%s5 + $0x70] sm:$0xff]
  %v800 = vld [vmem:[%s5 + $0x78] sm:$0xff]
  %v801 = vld [vmem:[%s5 + $0x80] sm:$0xff]
  %v802 = vld [vmem:[%s5 + $0x88] sm:$0xff]
  %v803 = vld [vmem:[%s5 + $0x90] sm:$0xff]
  %v804 = vld [vmem:[%s5 + $0x98] sm:$0xff]
  %v805 = vld [vmem:[%s5 + $0xa0] sm:$0xff]
  %v806 = vld [vmem:[%s5 + $0xa8] sm:$0xff]
  %v807 = vld [vmem:[%s5 + $0xb0] sm:$0xff]
  %v808 = vld [vmem:[%s5 + $0xb8] sm:$0xff]
  %v809 = vld [vmem:[%s5 + $0xc0] sm:$0xff]
  %v810 = vld [vmem:[%s5 + $0xc8] sm:$0xff]
  %v811 = vld [vmem:[%s5 + $0xd0] sm:$0xff]
  %v812 = vld [vmem:[%s5 + $0xd8] sm:$0xff]
  %v813 = vld [vmem:[%s5 + $0xe0] sm:$0xff]
  %v814 = vld [vmem:[%s5 + $0xe8] sm:$0xff]
  %v815 = vld [vmem:[%s5 + $0xf0] sm:$0xff]
  %v816 = vld [vmem:[%s5 + $0xf8] sm:$0xff]
  %v817 = vld [vmem:[%s5 + $0x100] sm:$0xff]
  %v818 = vld [vmem:[%s5 + $0x108] sm:$0xff]
  %v819 = vld [vmem:[%s5 + $0x110] sm:$0xff]
  %v820 = vld [vmem:[%s5 + $0x118] sm:$0xff]
  %v821 = vld [vmem:[%s5 + $0x120] sm:$0xff]
  %v822 = vld [vmem:[%s5 + $0x128] sm:$0xff]
  %v823 = vld [vmem:[%s5 + $0x130] sm:$0xff]
  %v824 = vld [vmem:[%s5 + $0x138] sm:$0xff]
  %v825 = vld [vmem:[%s5 + $0x140] sm:$0xff]
  %v826 = vld [vmem:[%s5 + $0x148] sm:$0xff]
  %v827 = vld [vmem:[%s5 + $0x150] sm:$0xff]
  %v828 = vld [vmem:[%s5 + $0x158] sm:$0xff]
  %v829 = vld [vmem:[%s5 + $0x160] sm:$0xff]
  %v830 = vld [vmem:[%s5 + $0x168] sm:$0xff]
  %v831 = vld [vmem:[%s5 + $0x170] sm:$0xff]
  %v832 = vld [vmem:[%s5 + $0x178] sm:$0xff]
  %v833 = vld [vmem:[%s5 + $0x180] sm:$0xff]
  %v834 = vld [vmem:[%s5 + $0x188] sm:$0xff]
  %v835 = vld [vmem:[%s5 + $0x190] sm:$0xff]
  %v836 = vld [vmem:[%s5 + $0x198] sm:$0xff]
  %v837 = vld [vmem:[%s5 + $0x1a0] sm:$0xff]
  %v838 = vld [vmem:[%s5 + $0x1a8] sm:$0xff]
  %v839 = vld [vmem:[%s5 + $0x1b0] sm:$0xff]
  %v840 = vld [vmem:[%s5 + $0x1b8] sm:$0xff]
  %v841 = vld [vmem:[%s5 + $0x1c0] sm:$0xff]
  %v842 = vld [vmem:[%s5 + $0x1c8] sm:$0xff]
  %v843 = vld [vmem:[%s5 + $0x1d0] sm:$0xff]
  %v844 = vld [vmem:[%s5 + $0x1d8] sm:$0xff]
  %v845 = vld [vmem:[%s5 + $0x1e0] sm:$0xff]
  %v846 = vld [vmem:[%s5 + $0x1e8] sm:$0xff]
  %v847 = vld [vmem:[%s5 + $0x1f0] sm:$0xff]
  %v848 = vld [vmem:[%s5 + $0x1f8] sm:$0xff]
  %v849 = vld [vmem:[%s6] sm:$0xff]
  %v851 = vlaneseq
  %v852 = vshrl.u32 %v851, 7
  %v853 = vsub.s32 0, %v852
  %v854 = vrot.slane %v849, %v853
  %v855 = vlaneseq
  %v856 = vshrl.u32 %v855, 7
  %v857 = vsub.s32 1, %v856
  %v858 = vrot.slane %v849, %v857
  %v859 = vlaneseq
  %v860 = vshrl.u32 %v859, 7
  %v861 = vsub.s32 2, %v860
  %v862 = vrot.slane %v849, %v861
  %v863 = vlaneseq
  %v864 = vshrl.u32 %v863, 7
  %v865 = vsub.s32 3, %v864
  %v866 = vrot.slane %v849, %v865
  %v867 = vlaneseq
  %v868 = vshrl.u32 %v867, 7
  %v869 = vsub.s32 4, %v868
  %v870 = vrot.slane %v849, %v869
  %v871 = vlaneseq
  %v872 = vshrl.u32 %v871, 7
  %v873 = vsub.s32 5, %v872
  %v874 = vrot.slane %v849, %v873
  %v875 = vlaneseq
  %v876 = vshrl.u32 %v875, 7
  %v877 = vsub.s32 6, %v876
  %v878 = vrot.slane %v849, %v877
  %v879 = vlaneseq
  %v880 = vshrl.u32 %v879, 7
  %v881 = vsub.s32 7, %v880
  %v882 = vrot.slane %v849, %v881
  %v955 = vunpack.c.l.b16 %v785
  %v956 = vunpack.c.h.b16 %v785
  %v957 = vunpack.c.l.b16 %v786
  %v958 = vunpack.c.h.b16 %v786
  %v959 = vunpack.c.l.b16 %v787
  %v960 = vunpack.c.h.b16 %v787
  %v961 = vunpack.c.l.b16 %v788
  %v962 = vunpack.c.h.b16 %v788
  %v963 = vunpack.c.l.b16 %v789
  %v964 = vunpack.c.h.b16 %v789
  %v965 = vunpack.c.l.b16 %v790
  %v966 = vunpack.c.h.b16 %v790
  %v967 = vunpack.c.l.b16 %v791
  %v968 = vunpack.c.h.b16 %v791
  %v969 = vunpack.c.l.b16 %v792
  %v970 = vunpack.c.h.b16 %v792
  %v971 = vunpack.c.l.b16 %v793
  %v972 = vunpack.c.h.b16 %v793
  %v973 = vunpack.c.l.b16 %v794
  %v974 = vunpack.c.h.b16 %v794
  %v975 = vunpack.c.l.b16 %v795
  %v976 = vunpack.c.h.b16 %v795
  %v977 = vunpack.c.l.b16 %v796
  %v978 = vunpack.c.h.b16 %v796
  %v979 = vunpack.c.l.b16 %v797
  %v980 = vunpack.c.h.b16 %v797
  %v981 = vunpack.c.l.b16 %v798
  %v982 = vunpack.c.h.b16 %v798
  %v983 = vunpack.c.l.b16 %v799
  %v984 = vunpack.c.h.b16 %v799
  %v985 = vunpack.c.l.b16 %v800
  %v986 = vunpack.c.h.b16 %v800
  %v987 = vunpack.c.l.b16 %v801
  %v988 = vunpack.c.h.b16 %v801
  %v989 = vunpack.c.l.b16 %v802
  %v990 = vunpack.c.h.b16 %v802
  %v991 = vunpack.c.l.b16 %v803
  %v992 = vunpack.c.h.b16 %v803
  %v993 = vunpack.c.l.b16 %v804
  %v994 = vunpack.c.h.b16 %v804
  %v995 = vunpack.c.l.b16 %v805
  %v996 = vunpack.c.h.b16 %v805
  %v997 = vunpack.c.l.b16 %v806
  %v998 = vunpack.c.h.b16 %v806
  %v999 = vunpack.c.l.b16 %v807
  %v1000 = vunpack.c.h.b16 %v807
  %v1001 = vunpack.c.l.b16 %v808
  %v1002 = vunpack.c.h.b16 %v808
  %v1003 = vunpack.c.l.b16 %v809
  %v1004 = vunpack.c.h.b16 %v809
  %v1005 = vunpack.c.l.b16 %v810
  %v1006 = vunpack.c.h.b16 %v810
  %v1007 = vunpack.c.l.b16 %v811
  %v1008 = vunpack.c.h.b16 %v811
  %v1009 = vunpack.c.l.b16 %v812
  %v1010 = vunpack.c.h.b16 %v812
  %v1011 = vunpack.c.l.b16 %v813
  %v1012 = vunpack.c.h.b16 %v813
  %v1013 = vunpack.c.l.b16 %v814
  %v1014 = vunpack.c.h.b16 %v814
  %v1015 = vunpack.c.l.b16 %v815
  %v1016 = vunpack.c.h.b16 %v815
  %v1017 = vunpack.c.l.b16 %v816
  %v1018 = vunpack.c.h.b16 %v816
  %v1019 = vunpack.c.l.b16 %v817
  %v1020 = vunpack.c.h.b16 %v817
  %v1021 = vunpack.c.l.b16 %v818
  %v1022 = vunpack.c.h.b16 %v818
  %v1023 = vunpack.c.l.b16 %v819
  %v1024 = vunpack.c.h.b16 %v819
  %v1025 = vunpack.c.l.b16 %v820
  %v1026 = vunpack.c.h.b16 %v820
  %v1027 = vunpack.c.l.b16 %v821
  %v1028 = vunpack.c.h.b16 %v821
  %v1029 = vunpack.c.l.b16 %v822
  %v1030 = vunpack.c.h.b16 %v822
  %v1031 = vunpack.c.l.b16 %v823
  %v1032 = vunpack.c.h.b16 %v823
  %v1033 = vunpack.c.l.b16 %v824
  %v1034 = vunpack.c.h.b16 %v824
  %v1035 = vunpack.c.l.b16 %v825
  %v1036 = vunpack.c.h.b16 %v825
  %v1037 = vunpack.c.l.b16 %v826
  %v1038 = vunpack.c.h.b16 %v826
  %v1039 = vunpack.c.l.b16 %v827
  %v1040 = vunpack.c.h.b16 %v827
  %v1041 = vunpack.c.l.b16 %v828
  %v1042 = vunpack.c.h.b16 %v828
  %v1043 = vunpack.c.l.b16 %v829
  %v1044 = vunpack.c.h.b16 %v829
  %v1045 = vunpack.c.l.b16 %v830
  %v1046 = vunpack.c.h.b16 %v830
  %v1047 = vunpack.c.l.b16 %v831
  %v1048 = vunpack.c.h.b16 %v831
  %v1049 = vunpack.c.l.b16 %v832
  %v1050 = vunpack.c.h.b16 %v832
  %v1051 = vunpack.c.l.b16 %v833
  %v1052 = vunpack.c.h.b16 %v833
  %v1053 = vunpack.c.l.b16 %v834
  %v1054 = vunpack.c.h.b16 %v834
  %v1055 = vunpack.c.l.b16 %v835
  %v1056 = vunpack.c.h.b16 %v835
  %v1057 = vunpack.c.l.b16 %v836
  %v1058 = vunpack.c.h.b16 %v836
  %v1059 = vunpack.c.l.b16 %v837
  %v1060 = vunpack.c.h.b16 %v837
  %v1061 = vunpack.c.l.b16 %v838
  %v1062 = vunpack.c.h.b16 %v838
  %v1063 = vunpack.c.l.b16 %v839
  %v1064 = vunpack.c.h.b16 %v839
  %v1065 = vunpack.c.l.b16 %v840
  %v1066 = vunpack.c.h.b16 %v840
  %v1067 = vunpack.c.l.b16 %v841
  %v1068 = vunpack.c.h.b16 %v841
  %v1069 = vunpack.c.l.b16 %v842
  %v1070 = vunpack.c.h.b16 %v842
  %v1071 = vunpack.c.l.b16 %v843
  %v1072 = vunpack.c.h.b16 %v843
  %v1073 = vunpack.c.l.b16 %v844
  %v1074 = vunpack.c.h.b16 %v844
  %v1075 = vunpack.c.l.b16 %v845
  %v1076 = vunpack.c.h.b16 %v845
  %v1077 = vunpack.c.l.b16 %v846
  %v1078 = vunpack.c.h.b16 %v846
  %v1079 = vunpack.c.l.b16 %v847
  %v1080 = vunpack.c.h.b16 %v847
  %v1081 = vunpack.c.l.b16 %v848
  %v1082 = vunpack.c.h.b16 %v848
  %v1083 = vpack.c.b16 %v963, %v955
  %v1084 = vpack.c.b16 %v964, %v956
  %v1085 = vpack.c.b16 %v965, %v957
  %v1086 = vpack.c.b16 %v966, %v958
  %v1087 = vpack.c.b16 %v967, %v959
  %v1088 = vpack.c.b16 %v968, %v960
  %v1089 = vpack.c.b16 %v969, %v961
  %v1090 = vpack.c.b16 %v970, %v962
  %v1091 = vpack.c.b16 %v979, %v971
  %v1092 = vpack.c.b16 %v980, %v972
  %v1093 = vpack.c.b16 %v981, %v973
  %v1094 = vpack.c.b16 %v982, %v974
  %v1095 = vpack.c.b16 %v983, %v975
  %v1096 = vpack.c.b16 %v984, %v976
  %v1097 = vpack.c.b16 %v985, %v977
  %v1098 = vpack.c.b16 %v986, %v978
  %v1099 = vpack.c.b16 %v995, %v987
  %v1100 = vpack.c.b16 %v996, %v988
  %v1101 = vpack.c.b16 %v997, %v989
  %v1102 = vpack.c.b16 %v998, %v990
  %v1103 = vpack.c.b16 %v999, %v991
  %v1104 = vpack.c.b16 %v1000, %v992
  %v1105 = vpack.c.b16 %v1001, %v993
  %v1106 = vpack.c.b16 %v1002, %v994
  %v1107 = vpack.c.b16 %v1011, %v1003
  %v1108 = vpack.c.b16 %v1012, %v1004
  %v1109 = vpack.c.b16 %v1013, %v1005
  %v1110 = vpack.c.b16 %v1014, %v1006
  %v1111 = vpack.c.b16 %v1015, %v1007
  %v1112 = vpack.c.b16 %v1016, %v1008
  %v1113 = vpack.c.b16 %v1017, %v1009
  %v1114 = vpack.c.b16 %v1018, %v1010
  %v1115 = vpack.c.b16 %v1027, %v1019
  %v1116 = vpack.c.b16 %v1028, %v1020
  %v1117 = vpack.c.b16 %v1029, %v1021
  %v1118 = vpack.c.b16 %v1030, %v1022
  %v1119 = vpack.c.b16 %v1031, %v1023
  %v1120 = vpack.c.b16 %v1032, %v1024
  %v1121 = vpack.c.b16 %v1033, %v1025
  %v1122 = vpack.c.b16 %v1034, %v1026
  %v1123 = vpack.c.b16 %v1043, %v1035
  %v1124 = vpack.c.b16 %v1044, %v1036
  %v1125 = vpack.c.b16 %v1045, %v1037
  %v1126 = vpack.c.b16 %v1046, %v1038
  %v1127 = vpack.c.b16 %v1047, %v1039
  %v1128 = vpack.c.b16 %v1048, %v1040
  %v1129 = vpack.c.b16 %v1049, %v1041
  %v1130 = vpack.c.b16 %v1050, %v1042
  %v1131 = vpack.c.b16 %v1059, %v1051
  %v1132 = vpack.c.b16 %v1060, %v1052
  %v1133 = vpack.c.b16 %v1061, %v1053
  %v1134 = vpack.c.b16 %v1062, %v1054
  %v1135 = vpack.c.b16 %v1063, %v1055
  %v1136 = vpack.c.b16 %v1064, %v1056
  %v1137 = vpack.c.b16 %v1065, %v1057
  %v1138 = vpack.c.b16 %v1066, %v1058
  %v1139 = vpack.c.b16 %v1075, %v1067
  %v1140 = vpack.c.b16 %v1076, %v1068
  %v1141 = vpack.c.b16 %v1077, %v1069
  %v1142 = vpack.c.b16 %v1078, %v1070
  %v1143 = vpack.c.b16 %v1079, %v1071
  %v1144 = vpack.c.b16 %v1080, %v1072
  %v1145 = vpack.c.b16 %v1081, %v1073
  %v1146 = vpack.c.b16 %v1082, %v1074
  %1211 = vmatprep.subr.bf16.mxu0 %v1084
  %1212 = vmatpush1.bf16.msra.mxu0 %v1083
  %1213 = vmatprep.subr.bf16.mxu0 %v1092
  %1214 = vmatpush1.bf16.msra.mxu0 %v1091
  %1215 = vmatprep.subr.bf16.mxu0 %v1100
  %1216 = vmatpush1.bf16.msra.mxu0 %v1099
  %1217 = vmatprep.subr.bf16.mxu0 %v1108
  %1218 = vmatpush1.bf16.msra.mxu0 %v1107
  %1219 = vmatprep.subr.bf16.mxu0 %v1116
  %1220 = vmatpush1.bf16.msra.mxu0 %v1115
  %1221 = vmatprep.subr.bf16.mxu0 %v1124
  %1222 = vmatpush1.bf16.msra.mxu0 %v1123
  %1223 = vmatprep.subr.bf16.mxu0 %v1132
  %1224 = vmatpush1.bf16.msra.mxu0 %v1131
  %1225 = vmatprep.subr.bf16.mxu0 %v1140
  %1226 = vmatpush1.bf16.msra.mxu0 %v1139
  %1227 = vmatprep.subr.bf16.mxu0 0
  %1228 = vmatpush1.bf16.msra.mxu0 0
  %1229 = vmatprep.subr.bf16.mxu0 0
  %1230 = vmatpush1.bf16.msra.mxu0 0
  %1231 = vmatprep.subr.bf16.mxu0 0
  %1232 = vmatpush1.bf16.msra.mxu0 0
  %1233 = vmatprep.subr.bf16.mxu0 0
  %1234 = vmatpush1.bf16.msra.mxu0 0
  %1235 = vmatprep.subr.bf16.mxu0 0
  %1236 = vmatpush1.bf16.msra.mxu0 0
  %1237 = vmatprep.subr.bf16.mxu0 0
  %1238 = vmatpush1.bf16.msra.mxu0 0
  %1239 = vmatprep.subr.bf16.mxu0 0
  %1240 = vmatpush1.bf16.msra.mxu0 0
  %1241 = vmatprep.subr.bf16.mxu0 0
  %1242 = vmatpush1.bf16.msra.mxu0 0
  %1243 = vmatprep.mubr.bf16.mxu0 0
  %1244 = vmatmul.mubr.bf16.gmra.mrb[0].mxu0 %v784
  %v1245 = vpop.f32.mrb[0].mxu0
  %v1246 = vadd.f32 %v854, %v1245
  %v1247 = vpop.f32.mrb[0].mxu0
  %v1248 = vadd.f32 %v858, %v1247
  %v1249 = vpop.f32.mrb[0].mxu0
  %v1250 = vpop.f32.mrb[0].mxu0
  %1251 = vdwg.mxu0
  %1252 = vmatprep.subr.bf16.mxu0 %v1086
  %1253 = vmatpush1.bf16.msra.mxu0 %v1085
  %1254 = vmatprep.subr.bf16.mxu0 %v1094
  %1255 = vmatpush1.bf16.msra.mxu0 %v1093
  %1256 = vmatprep.subr.bf16.mxu0 %v1102
  %1257 = vmatpush1.bf16.msra.mxu0 %v1101
  %1258 = vmatprep.subr.bf16.mxu0 %v1110
  %1259 = vmatpush1.bf16.msra.mxu0 %v1109
  %1260 = vmatprep.subr.bf16.mxu0 %v1118
  %1261 = vmatpush1.bf16.msra.mxu0 %v1117
  %1262 = vmatprep.subr.bf16.mxu0 %v1126
  %1263 = vmatpush1.bf16.msra.mxu0 %v1125
  %1264 = vmatprep.subr.bf16.mxu0 %v1134
  %1265 = vmatpush1.bf16.msra.mxu0 %v1133
  %1266 = vmatprep.subr.bf16.mxu0 %v1142
  %1267 = vmatpush1.bf16.msra.mxu0 %v1141
  %1268 = vmatprep.subr.bf16.mxu0 0
  %1269 = vmatpush1.bf16.msra.mxu0 0
  %1270 = vmatprep.subr.bf16.mxu0 0
  %1271 = vmatpush1.bf16.msra.mxu0 0
  %1272 = vmatprep.subr.bf16.mxu0 0
  %1273 = vmatpush1.bf16.msra.mxu0 0
  %1274 = vmatprep.subr.bf16.mxu0 0
  %1275 = vmatpush1.bf16.msra.mxu0 0
  %1276 = vmatprep.subr.bf16.mxu0 0
  %1277 = vmatpush1.bf16.msra.mxu0 0
  %1278 = vmatprep.subr.bf16.mxu0 0
  %1279 = vmatpush1.bf16.msra.mxu0 0
  %1280 = vmatprep.subr.bf16.mxu0 0
  %1281 = vmatpush1.bf16.msra.mxu0 0
  %1282 = vmatprep.subr.bf16.mxu0 0
  %1283 = vmatpush1.bf16.msra.mxu0 0
  %1284 = vmatprep.mubr.bf16.mxu0 0
  %1285 = vmatmul.mubr.bf16.gmra.mrb[0].mxu0 %v784
  %v1286 = vpop.f32.mrb[0].mxu0
  %v1287 = vadd.f32 %v862, %v1286
  %v1288 = vpop.f32.mrb[0].mxu0
  %v1289 = vadd.f32 %v866, %v1288
  %v1290 = vpop.f32.mrb[0].mxu0
  %v1291 = vpop.f32.mrb[0].mxu0
  %1292 = vdwg.mxu0
  %1293 = vmatprep.subr.bf16.mxu0 %v1088
  %1294 = vmatpush1.bf16.msra.mxu0 %v1087
  %1295 = vmatprep.subr.bf16.mxu0 %v1096
  %1296 = vmatpush1.bf16.msra.mxu0 %v1095
  %1297 = vmatprep.subr.bf16.mxu0 %v1104
  %1298 = vmatpush1.bf16.msra.mxu0 %v1103
  %1299 = vmatprep.subr.bf16.mxu0 %v1112
  %1300 = vmatpush1.bf16.msra.mxu0 %v1111
  %1301 = vmatprep.subr.bf16.mxu0 %v1120
  %1302 = vmatpush1.bf16.msra.mxu0 %v1119
  %1303 = vmatprep.subr.bf16.mxu0 %v1128
  %1304 = vmatpush1.bf16.msra.mxu0 %v1127
  %1305 = vmatprep.subr.bf16.mxu0 %v1136
  %1306 = vmatpush1.bf16.msra.mxu0 %v1135
  %1307 = vmatprep.subr.bf16.mxu0 %v1144
  %1308 = vmatpush1.bf16.msra.mxu0 %v1143
  %1309 = vmatprep.subr.bf16.mxu0 0
  %1310 = vmatpush1.bf16.msra.mxu0 0
  %1311 = vmatprep.subr.bf16.mxu0 0
  %1312 = vmatpush1.bf16.msra.mxu0 0
  %1313 = vmatprep.subr.bf16.mxu0 0
  %1314 = vmatpush1.bf16.msra.mxu0 0
  %1315 = vmatprep.subr.bf16.mxu0 0
  %1316 = vmatpush1.bf16.msra.mxu0 0
  %1317 = vmatprep.subr.bf16.mxu0 0
  %1318 = vmatpush1.bf16.msra.mxu0 0
  %1319 = vmatprep.subr.bf16.mxu0 0
  %1320 = vmatpush1.bf16.msra.mxu0 0
  %1321 = vmatprep.subr.bf16.mxu0 0
  %1322 = vmatpush1.bf16.msra.mxu0 0
  %1323 = vmatprep.subr.bf16.mxu0 0
  %1324 = vmatpush1.bf16.msra.mxu0 0
  %1325 = vmatprep.mubr.bf16.mxu0 0
  %1326 = vmatmul.mubr.bf16.gmra.mrb[0].mxu0 %v784
  %v1327 = vpop.f32.mrb[0].mxu0
  %v1328 = vadd.f32 %v870, %v1327
  %v1329 = vpop.f32.mrb[0].mxu0
  %v1330 = vadd.f32 %v874, %v1329
  %v1331 = vpop.f32.mrb[0].mxu0
  %v1332 = vpop.f32.mrb[0].mxu0
  %1333 = vdwg.mxu0
  %1334 = vmatprep.subr.bf16.mxu0 %v1090
  %1335 = vmatpush1.bf16.msra.mxu0 %v1089
  %1336 = vmatprep.subr.bf16.mxu0 %v1098
  %1337 = vmatpush1.bf16.msra.mxu0 %v1097
  %1338 = vmatprep.subr.bf16.mxu0 %v1106
  %1339 = vmatpush1.bf16.msra.mxu0 %v1105
  %1340 = vmatprep.subr.bf16.mxu0 %v1114
  %1341 = vmatpush1.bf16.msra.mxu0 %v1113
  %1342 = vmatprep.subr.bf16.mxu0 %v1122
  %1343 = vmatpush1.bf16.msra.mxu0 %v1121
  %1344 = vmatprep.subr.bf16.mxu0 %v1130
  %1345 = vmatpush1.bf16.msra.mxu0 %v1129
  %1346 = vmatprep.subr.bf16.mxu0 %v1138
  %1347 = vmatpush1.bf16.msra.mxu0 %v1137
  %1348 = vmatprep.subr.bf16.mxu0 %v1146
  %1349 = vmatpush1.bf16.msra.mxu0 %v1145
  %1350 = vmatprep.subr.bf16.mxu0 0
  %1351 = vmatpush1.bf16.msra.mxu0 0
  %1352 = vmatprep.subr.bf16.mxu0 0
  %1353 = vmatpush1.bf16.msra.mxu0 0
  %1354 = vmatprep.subr.bf16.mxu0 0
  %1355 = vmatpush1.bf16.msra.mxu0 0
  %1356 = vmatprep.subr.bf16.mxu0 0
  %1357 = vmatpush1.bf16.msra.mxu0 0
  %1358 = vmatprep.subr.bf16.mxu0 0
  %1359 = vmatpush1.bf16.msra.mxu0 0
  %1360 = vmatprep.subr.bf16.mxu0 0
  %1361 = vmatpush1.bf16.msra.mxu0 0
  %1362 = vmatprep.subr.bf16.mxu0 0
  %1363 = vmatpush1.bf16.msra.mxu0 0
  %1364 = vmatprep.subr.bf16.mxu0 0
  %1365 = vmatpush1.bf16.msra.mxu0 0
  %1366 = vmatprep.mubr.bf16.mxu0 0
  %1367 = vmatmul.mubr.bf16.gmra.mrb[0].mxu0 %v784
  %v1368 = vpop.f32.mrb[0].mxu0
  %v1369 = vadd.f32 %v878, %v1368
  %v1370 = vpop.f32.mrb[0].mxu0
  %v1371 = vadd.f32 %v882, %v1370
  %v1372 = vpop.f32.mrb[0].mxu0
  %v1373 = vpop.f32.mrb[0].mxu0
  %1374 = vdwg.mxu0
  %v1375 = vmax.f32 %v1246, 0.0
  %v1376 = vmax.f32 %v1248, 0.0
  %v1377 = vmax.f32 %v1287, 0.0
  %v1378 = vmax.f32 %v1289, 0.0
  %v1379 = vmax.f32 %v1328, 0.0
  %v1380 = vmax.f32 %v1330, 0.0
  %v1381 = vmax.f32 %v1369, 0.0
  %v1382 = vmax.f32 %v1371, 0.0
  %v1383 = vld [vmem:[%s1] sm:$0xff]
  %v1384 = vpack.c.bf16 %v1383, %v1383
  %v1385 = vld [vmem:[%s7] sm:$0xff]
  %v1386 = vld [vmem:[%s7 + $0x8] sm:$0xff]
  %v1387 = vld [vmem:[%s7 + $0x10] sm:$0xff]
  %v1388 = vld [vmem:[%s7 + $0x18] sm:$0xff]
  %v1389 = vld [vmem:[%s7 + $0x20] sm:$0xff]
  %v1390 = vld [vmem:[%s7 + $0x28] sm:$0xff]
  %v1391 = vld [vmem:[%s7 + $0x30] sm:$0xff]
  %v1392 = vld [vmem:[%s7 + $0x38] sm:$0xff]
  %v1393 = vld [vmem:[%s7 + $0x40] sm:$0xff]
  %v1394 = vld [vmem:[%s7 + $0x48] sm:$0xff]
  %v1395 = vld [vmem:[%s7 + $0x50] sm:$0xff]
  %v1396 = vld [vmem:[%s7 + $0x58] sm:$0xff]
  %v1397 = vld [vmem:[%s7 + $0x60] sm:$0xff]
  %v1398 = vld [vmem:[%s7 + $0x68] sm:$0xff]
  %v1399 = vld [vmem:[%s7 + $0x70] sm:$0xff]
  %v1400 = vld [vmem:[%s7 + $0x78] sm:$0xff]
  %v1401 = vld [vmem:[%s7 + $0x80] sm:$0xff]
  %v1402 = vld [vmem:[%s7 + $0x88] sm:$0xff]
  %v1403 = vld [vmem:[%s7 + $0x90] sm:$0xff]
  %v1404 = vld [vmem:[%s7 + $0x98] sm:$0xff]
  %v1405 = vld [vmem:[%s7 + $0xa0] sm:$0xff]
  %v1406 = vld [vmem:[%s7 + $0xa8] sm:$0xff]
  %v1407 = vld [vmem:[%s7 + $0xb0] sm:$0xff]
  %v1408 = vld [vmem:[%s7 + $0xb8] sm:$0xff]
  %v1409 = vld [vmem:[%s7 + $0xc0] sm:$0xff]
  %v1410 = vld [vmem:[%s7 + $0xc8] sm:$0xff]
  %v1411 = vld [vmem:[%s7 + $0xd0] sm:$0xff]
  %v1412 = vld [vmem:[%s7 + $0xd8] sm:$0xff]
  %v1413 = vld [vmem:[%s7 + $0xe0] sm:$0xff]
  %v1414 = vld [vmem:[%s7 + $0xe8] sm:$0xff]
  %v1415 = vld [vmem:[%s7 + $0xf0] sm:$0xff]
  %v1416 = vld [vmem:[%s7 + $0xf8] sm:$0xff]
  %v1417 = vld [vmem:[%s7 + $0x100] sm:$0xff]
  %v1418 = vld [vmem:[%s7 + $0x108] sm:$0xff]
  %v1419 = vld [vmem:[%s7 + $0x110] sm:$0xff]
  %v1420 = vld [vmem:[%s7 + $0x118] sm:$0xff]
  %v1421 = vld [vmem:[%s7 + $0x120] sm:$0xff]
  %v1422 = vld [vmem:[%s7 + $0x128] sm:$0xff]
  %v1423 = vld [vmem:[%s7 + $0x130] sm:$0xff]
  %v1424 = vld [vmem:[%s7 + $0x138] sm:$0xff]
  %v1425 = vld [vmem:[%s7 + $0x140] sm:$0xff]
  %v1426 = vld [vmem:[%s7 + $0x148] sm:$0xff]
  %v1427 = vld [vmem:[%s7 + $0x150] sm:$0xff]
  %v1428 = vld [vmem:[%s7 + $0x158] sm:$0xff]
  %v1429 = vld [vmem:[%s7 + $0x160] sm:$0xff]
  %v1430 = vld [vmem:[%s7 + $0x168] sm:$0xff]
  %v1431 = vld [vmem:[%s7 + $0x170] sm:$0xff]
  %v1432 = vld [vmem:[%s7 + $0x178] sm:$0xff]
  %v1433 = vld [vmem:[%s7 + $0x180] sm:$0xff]
  %v1434 = vld [vmem:[%s7 + $0x188] sm:$0xff]
  %v1435 = vld [vmem:[%s7 + $0x190] sm:$0xff]
  %v1436 = vld [vmem:[%s7 + $0x198] sm:$0xff]
  %v1437 = vld [vmem:[%s7 + $0x1a0] sm:$0xff]
  %v1438 = vld [vmem:[%s7 + $0x1a8] sm:$0xff]
  %v1439 = vld [vmem:[%s7 + $0x1b0] sm:$0xff]
  %v1440 = vld [vmem:[%s7 + $0x1b8] sm:$0xff]
  %v1441 = vld [vmem:[%s7 + $0x1c0] sm:$0xff]
  %v1442 = vld [vmem:[%s7 + $0x1c8] sm:$0xff]
  %v1443 = vld [vmem:[%s7 + $0x1d0] sm:$0xff]
  %v1444 = vld [vmem:[%s7 + $0x1d8] sm:$0xff]
  %v1445 = vld [vmem:[%s7 + $0x1e0] sm:$0xff]
  %v1446 = vld [vmem:[%s7 + $0x1e8] sm:$0xff]
  %v1447 = vld [vmem:[%s7 + $0x1f0] sm:$0xff]
  %v1448 = vld [vmem:[%s7 + $0x1f8] sm:$0xff]
  %v1449 = vld [vmem:[%s8] sm:$0xff]
  %v1451 = vlaneseq
  %v1452 = vshrl.u32 %v1451, 7
  %v1453 = vsub.s32 0, %v1452
  %v1454 = vrot.slane %v1449, %v1453
  %v1455 = vlaneseq
  %v1456 = vshrl.u32 %v1455, 7
  %v1457 = vsub.s32 1, %v1456
  %v1458 = vrot.slane %v1449, %v1457
  %v1459 = vlaneseq
  %v1460 = vshrl.u32 %v1459, 7
  %v1461 = vsub.s32 2, %v1460
  %v1462 = vrot.slane %v1449, %v1461
  %v1463 = vlaneseq
  %v1464 = vshrl.u32 %v1463, 7
  %v1465 = vsub.s32 3, %v1464
  %v1466 = vrot.slane %v1449, %v1465
  %v1467 = vlaneseq
  %v1468 = vshrl.u32 %v1467, 7
  %v1469 = vsub.s32 4, %v1468
  %v1470 = vrot.slane %v1449, %v1469
  %v1471 = vlaneseq
  %v1472 = vshrl.u32 %v1471, 7
  %v1473 = vsub.s32 5, %v1472
  %v1474 = vrot.slane %v1449, %v1473
  %v1475 = vlaneseq
  %v1476 = vshrl.u32 %v1475, 7
  %v1477 = vsub.s32 6, %v1476
  %v1478 = vrot.slane %v1449, %v1477
  %v1479 = vlaneseq
  %v1480 = vshrl.u32 %v1479, 7
  %v1481 = vsub.s32 7, %v1480
  %v1482 = vrot.slane %v1449, %v1481
  %v1555 = vunpack.c.l.b16 %v1385
  %v1556 = vunpack.c.h.b16 %v1385
  %v1557 = vunpack.c.l.b16 %v1386
  %v1558 = vunpack.c.h.b16 %v1386
  %v1559 = vunpack.c.l.b16 %v1387
  %v1560 = vunpack.c.h.b16 %v1387
  %v1561 = vunpack.c.l.b16 %v1388
  %v1562 = vunpack.c.h.b16 %v1388
  %v1563 = vunpack.c.l.b16 %v1389
  %v1564 = vunpack.c.h.b16 %v1389
  %v1565 = vunpack.c.l.b16 %v1390
  %v1566 = vunpack.c.h.b16 %v1390
  %v1567 = vunpack.c.l.b16 %v1391
  %v1568 = vunpack.c.h.b16 %v1391
  %v1569 = vunpack.c.l.b16 %v1392
  %v1570 = vunpack.c.h.b16 %v1392
  %v1571 = vunpack.c.l.b16 %v1393
  %v1572 = vunpack.c.h.b16 %v1393
  %v1573 = vunpack.c.l.b16 %v1394
  %v1574 = vunpack.c.h.b16 %v1394
  %v1575 = vunpack.c.l.b16 %v1395
  %v1576 = vunpack.c.h.b16 %v1395
  %v1577 = vunpack.c.l.b16 %v1396
  %v1578 = vunpack.c.h.b16 %v1396
  %v1579 = vunpack.c.l.b16 %v1397
  %v1580 = vunpack.c.h.b16 %v1397
  %v1581 = vunpack.c.l.b16 %v1398
  %v1582 = vunpack.c.h.b16 %v1398
  %v1583 = vunpack.c.l.b16 %v1399
  %v1584 = vunpack.c.h.b16 %v1399
  %v1585 = vunpack.c.l.b16 %v1400
  %v1586 = vunpack.c.h.b16 %v1400
  %v1587 = vunpack.c.l.b16 %v1401
  %v1588 = vunpack.c.h.b16 %v1401
  %v1589 = vunpack.c.l.b16 %v1402
  %v1590 = vunpack.c.h.b16 %v1402
  %v1591 = vunpack.c.l.b16 %v1403
  %v1592 = vunpack.c.h.b16 %v1403
  %v1593 = vunpack.c.l.b16 %v1404
  %v1594 = vunpack.c.h.b16 %v1404
  %v1595 = vunpack.c.l.b16 %v1405
  %v1596 = vunpack.c.h.b16 %v1405
  %v1597 = vunpack.c.l.b16 %v1406
  %v1598 = vunpack.c.h.b16 %v1406
  %v1599 = vunpack.c.l.b16 %v1407
  %v1600 = vunpack.c.h.b16 %v1407
  %v1601 = vunpack.c.l.b16 %v1408
  %v1602 = vunpack.c.h.b16 %v1408
  %v1603 = vunpack.c.l.b16 %v1409
  %v1604 = vunpack.c.h.b16 %v1409
  %v1605 = vunpack.c.l.b16 %v1410
  %v1606 = vunpack.c.h.b16 %v1410
  %v1607 = vunpack.c.l.b16 %v1411
  %v1608 = vunpack.c.h.b16 %v1411
  %v1609 = vunpack.c.l.b16 %v1412
  %v1610 = vunpack.c.h.b16 %v1412
  %v1611 = vunpack.c.l.b16 %v1413
  %v1612 = vunpack.c.h.b16 %v1413
  %v1613 = vunpack.c.l.b16 %v1414
  %v1614 = vunpack.c.h.b16 %v1414
  %v1615 = vunpack.c.l.b16 %v1415
  %v1616 = vunpack.c.h.b16 %v1415
  %v1617 = vunpack.c.l.b16 %v1416
  %v1618 = vunpack.c.h.b16 %v1416
  %v1619 = vunpack.c.l.b16 %v1417
  %v1620 = vunpack.c.h.b16 %v1417
  %v1621 = vunpack.c.l.b16 %v1418
  %v1622 = vunpack.c.h.b16 %v1418
  %v1623 = vunpack.c.l.b16 %v1419
  %v1624 = vunpack.c.h.b16 %v1419
  %v1625 = vunpack.c.l.b16 %v1420
  %v1626 = vunpack.c.h.b16 %v1420
  %v1627 = vunpack.c.l.b16 %v1421
  %v1628 = vunpack.c.h.b16 %v1421
  %v1629 = vunpack.c.l.b16 %v1422
  %v1630 = vunpack.c.h.b16 %v1422
  %v1631 = vunpack.c.l.b16 %v1423
  %v1632 = vunpack.c.h.b16 %v1423
  %v1633 = vunpack.c.l.b16 %v1424
  %v1634 = vunpack.c.h.b16 %v1424
  %v1635 = vunpack.c.l.b16 %v1425
  %v1636 = vunpack.c.h.b16 %v1425
  %v1637 = vunpack.c.l.b16 %v1426
  %v1638 = vunpack.c.h.b16 %v1426
  %v1639 = vunpack.c.l.b16 %v1427
  %v1640 = vunpack.c.h.b16 %v1427
  %v1641 = vunpack.c.l.b16 %v1428
  %v1642 = vunpack.c.h.b16 %v1428
  %v1643 = vunpack.c.l.b16 %v1429
  %v1644 = vunpack.c.h.b16 %v1429
  %v1645 = vunpack.c.l.b16 %v1430
  %v1646 = vunpack.c.h.b16 %v1430
  %v1647 = vunpack.c.l.b16 %v1431
  %v1648 = vunpack.c.h.b16 %v1431
  %v1649 = vunpack.c.l.b16 %v1432
  %v1650 = vunpack.c.h.b16 %v1432
  %v1651 = vunpack.c.l.b16 %v1433
  %v1652 = vunpack.c.h.b16 %v1433
  %v1653 = vunpack.c.l.b16 %v1434
  %v1654 = vunpack.c.h.b16 %v1434
  %v1655 = vunpack.c.l.b16 %v1435
  %v1656 = vunpack.c.h.b16 %v1435
  %v1657 = vunpack.c.l.b16 %v1436
  %v1658 = vunpack.c.h.b16 %v1436
  %v1659 = vunpack.c.l.b16 %v1437
  %v1660 = vunpack.c.h.b16 %v1437
  %v1661 = vunpack.c.l.b16 %v1438
  %v1662 = vunpack.c.h.b16 %v1438
  %v1663 = vunpack.c.l.b16 %v1439
  %v1664 = vunpack.c.h.b16 %v1439
  %v1665 = vunpack.c.l.b16 %v1440
  %v1666 = vunpack.c.h.b16 %v1440
  %v1667 = vunpack.c.l.b16 %v1441
  %v1668 = vunpack.c.h.b16 %v1441
  %v1669 = vunpack.c.l.b16 %v1442
  %v1670 = vunpack.c.h.b16 %v1442
  %v1671 = vunpack.c.l.b16 %v1443
  %v1672 = vunpack.c.h.b16 %v1443
  %v1673 = vunpack.c.l.b16 %v1444
  %v1674 = vunpack.c.h.b16 %v1444
  %v1675 = vunpack.c.l.b16 %v1445
  %v1676 = vunpack.c.h.b16 %v1445
  %v1677 = vunpack.c.l.b16 %v1446
  %v1678 = vunpack.c.h.b16 %v1446
  %v1679 = vunpack.c.l.b16 %v1447
  %v1680 = vunpack.c.h.b16 %v1447
  %v1681 = vunpack.c.l.b16 %v1448
  %v1682 = vunpack.c.h.b16 %v1448
  %v1683 = vpack.c.b16 %v1563, %v1555
  %v1684 = vpack.c.b16 %v1564, %v1556
  %v1685 = vpack.c.b16 %v1565, %v1557
  %v1686 = vpack.c.b16 %v1566, %v1558
  %v1687 = vpack.c.b16 %v1567, %v1559
  %v1688 = vpack.c.b16 %v1568, %v1560
  %v1689 = vpack.c.b16 %v1569, %v1561
  %v1690 = vpack.c.b16 %v1570, %v1562
  %v1691 = vpack.c.b16 %v1579, %v1571
  %v1692 = vpack.c.b16 %v1580, %v1572
  %v1693 = vpack.c.b16 %v1581, %v1573
  %v1694 = vpack.c.b16 %v1582, %v1574
  %v1695 = vpack.c.b16 %v1583, %v1575
  %v1696 = vpack.c.b16 %v1584, %v1576
  %v1697 = vpack.c.b16 %v1585, %v1577
  %v1698 = vpack.c.b16 %v1586, %v1578
  %v1699 = vpack.c.b16 %v1595, %v1587
  %v1700 = vpack.c.b16 %v1596, %v1588
  %v1701 = vpack.c.b16 %v1597, %v1589
  %v1702 = vpack.c.b16 %v1598, %v1590
  %v1703 = vpack.c.b16 %v1599, %v1591
  %v1704 = vpack.c.b16 %v1600, %v1592
  %v1705 = vpack.c.b16 %v1601, %v1593
  %v1706 = vpack.c.b16 %v1602, %v1594
  %v1707 = vpack.c.b16 %v1611, %v1603
  %v1708 = vpack.c.b16 %v1612, %v1604
  %v1709 = vpack.c.b16 %v1613, %v1605
  %v1710 = vpack.c.b16 %v1614, %v1606
  %v1711 = vpack.c.b16 %v1615, %v1607
  %v1712 = vpack.c.b16 %v1616, %v1608
  %v1713 = vpack.c.b16 %v1617, %v1609
  %v1714 = vpack.c.b16 %v1618, %v1610
  %v1715 = vpack.c.b16 %v1627, %v1619
  %v1716 = vpack.c.b16 %v1628, %v1620
  %v1717 = vpack.c.b16 %v1629, %v1621
  %v1718 = vpack.c.b16 %v1630, %v1622
  %v1719 = vpack.c.b16 %v1631, %v1623
  %v1720 = vpack.c.b16 %v1632, %v1624
  %v1721 = vpack.c.b16 %v1633, %v1625
  %v1722 = vpack.c.b16 %v1634, %v1626
  %v1723 = vpack.c.b16 %v1643, %v1635
  %v1724 = vpack.c.b16 %v1644, %v1636
  %v1725 = vpack.c.b16 %v1645, %v1637
  %v1726 = vpack.c.b16 %v1646, %v1638
  %v1727 = vpack.c.b16 %v1647, %v1639
  %v1728 = vpack.c.b16 %v1648, %v1640
  %v1729 = vpack.c.b16 %v1649, %v1641
  %v1730 = vpack.c.b16 %v1650, %v1642
  %v1731 = vpack.c.b16 %v1659, %v1651
  %v1732 = vpack.c.b16 %v1660, %v1652
  %v1733 = vpack.c.b16 %v1661, %v1653
  %v1734 = vpack.c.b16 %v1662, %v1654
  %v1735 = vpack.c.b16 %v1663, %v1655
  %v1736 = vpack.c.b16 %v1664, %v1656
  %v1737 = vpack.c.b16 %v1665, %v1657
  %v1738 = vpack.c.b16 %v1666, %v1658
  %v1739 = vpack.c.b16 %v1675, %v1667
  %v1740 = vpack.c.b16 %v1676, %v1668
  %v1741 = vpack.c.b16 %v1677, %v1669
  %v1742 = vpack.c.b16 %v1678, %v1670
  %v1743 = vpack.c.b16 %v1679, %v1671
  %v1744 = vpack.c.b16 %v1680, %v1672
  %v1745 = vpack.c.b16 %v1681, %v1673
  %v1746 = vpack.c.b16 %v1682, %v1674
  %1811 = vmatprep.subr.bf16.mxu0 %v1684
  %1812 = vmatpush1.bf16.msra.mxu0 %v1683
  %1813 = vmatprep.subr.bf16.mxu0 %v1692
  %1814 = vmatpush1.bf16.msra.mxu0 %v1691
  %1815 = vmatprep.subr.bf16.mxu0 %v1700
  %1816 = vmatpush1.bf16.msra.mxu0 %v1699
  %1817 = vmatprep.subr.bf16.mxu0 %v1708
  %1818 = vmatpush1.bf16.msra.mxu0 %v1707
  %1819 = vmatprep.subr.bf16.mxu0 %v1716
  %1820 = vmatpush1.bf16.msra.mxu0 %v1715
  %1821 = vmatprep.subr.bf16.mxu0 %v1724
  %1822 = vmatpush1.bf16.msra.mxu0 %v1723
  %1823 = vmatprep.subr.bf16.mxu0 %v1732
  %1824 = vmatpush1.bf16.msra.mxu0 %v1731
  %1825 = vmatprep.subr.bf16.mxu0 %v1740
  %1826 = vmatpush1.bf16.msra.mxu0 %v1739
  %1827 = vmatprep.subr.bf16.mxu0 0
  %1828 = vmatpush1.bf16.msra.mxu0 0
  %1829 = vmatprep.subr.bf16.mxu0 0
  %1830 = vmatpush1.bf16.msra.mxu0 0
  %1831 = vmatprep.subr.bf16.mxu0 0
  %1832 = vmatpush1.bf16.msra.mxu0 0
  %1833 = vmatprep.subr.bf16.mxu0 0
  %1834 = vmatpush1.bf16.msra.mxu0 0
  %1835 = vmatprep.subr.bf16.mxu0 0
  %1836 = vmatpush1.bf16.msra.mxu0 0
  %1837 = vmatprep.subr.bf16.mxu0 0
  %1838 = vmatpush1.bf16.msra.mxu0 0
  %1839 = vmatprep.subr.bf16.mxu0 0
  %1840 = vmatpush1.bf16.msra.mxu0 0
  %1841 = vmatprep.subr.bf16.mxu0 0
  %1842 = vmatpush1.bf16.msra.mxu0 0
  %1843 = vmatprep.mubr.bf16.mxu0 0
  %1844 = vmatmul.mubr.bf16.gmra.mrb[0].mxu0 %v1384
  %v1845 = vpop.f32.mrb[0].mxu0
  %v1846 = vadd.f32 %v1454, %v1845
  %v1847 = vpop.f32.mrb[0].mxu0
  %v1848 = vadd.f32 %v1458, %v1847
  %v1849 = vpop.f32.mrb[0].mxu0
  %v1850 = vpop.f32.mrb[0].mxu0
  %1851 = vdwg.mxu0
  %1852 = vmatprep.subr.bf16.mxu0 %v1686
  %1853 = vmatpush1.bf16.msra.mxu0 %v1685
  %1854 = vmatprep.subr.bf16.mxu0 %v1694
  %1855 = vmatpush1.bf16.msra.mxu0 %v1693
  %1856 = vmatprep.subr.bf16.mxu0 %v1702
  %1857 = vmatpush1.bf16.msra.mxu0 %v1701
  %1858 = vmatprep.subr.bf16.mxu0 %v1710
  %1859 = vmatpush1.bf16.msra.mxu0 %v1709
  %1860 = vmatprep.subr.bf16.mxu0 %v1718
  %1861 = vmatpush1.bf16.msra.mxu0 %v1717
  %1862 = vmatprep.subr.bf16.mxu0 %v1726
  %1863 = vmatpush1.bf16.msra.mxu0 %v1725
  %1864 = vmatprep.subr.bf16.mxu0 %v1734
  %1865 = vmatpush1.bf16.msra.mxu0 %v1733
  %1866 = vmatprep.subr.bf16.mxu0 %v1742
  %1867 = vmatpush1.bf16.msra.mxu0 %v1741
  %1868 = vmatprep.subr.bf16.mxu0 0
  %1869 = vmatpush1.bf16.msra.mxu0 0
  %1870 = vmatprep.subr.bf16.mxu0 0
  %1871 = vmatpush1.bf16.msra.mxu0 0
  %1872 = vmatprep.subr.bf16.mxu0 0
  %1873 = vmatpush1.bf16.msra.mxu0 0
  %1874 = vmatprep.subr.bf16.mxu0 0
  %1875 = vmatpush1.bf16.msra.mxu0 0
  %1876 = vmatprep.subr.bf16.mxu0 0
  %1877 = vmatpush1.bf16.msra.mxu0 0
  %1878 = vmatprep.subr.bf16.mxu0 0
  %1879 = vmatpush1.bf16.msra.mxu0 0
  %1880 = vmatprep.subr.bf16.mxu0 0
  %1881 = vmatpush1.bf16.msra.mxu0 0
  %1882 = vmatprep.subr.bf16.mxu0 0
  %1883 = vmatpush1.bf16.msra.mxu0 0
  %1884 = vmatprep.mubr.bf16.mxu0 0
  %1885 = vmatmul.mubr.bf16.gmra.mrb[0].mxu0 %v1384
  %v1886 = vpop.f32.mrb[0].mxu0
  %v1887 = vadd.f32 %v1462, %v1886
  %v1888 = vpop.f32.mrb[0].mxu0
  %v1889 = vadd.f32 %v1466, %v1888
  %v1890 = vpop.f32.mrb[0].mxu0
  %v1891 = vpop.f32.mrb[0].mxu0
  %1892 = vdwg.mxu0
  %1893 = vmatprep.subr.bf16.mxu0 %v1688
  %1894 = vmatpush1.bf16.msra.mxu0 %v1687
  %1895 = vmatprep.subr.bf16.mxu0 %v1696
  %1896 = vmatpush1.bf16.msra.mxu0 %v1695
  %1897 = vmatprep.subr.bf16.mxu0 %v1704
  %1898 = vmatpush1.bf16.msra.mxu0 %v1703
  %1899 = vmatprep.subr.bf16.mxu0 %v1712
  %1900 = vmatpush1.bf16.msra.mxu0 %v1711
  %1901 = vmatprep.subr.bf16.mxu0 %v1720
  %1902 = vmatpush1.bf16.msra.mxu0 %v1719
  %1903 = vmatprep.subr.bf16.mxu0 %v1728
  %1904 = vmatpush1.bf16.msra.mxu0 %v1727
  %1905 = vmatprep.subr.bf16.mxu0 %v1736
  %1906 = vmatpush1.bf16.msra.mxu0 %v1735
  %1907 = vmatprep.subr.bf16.mxu0 %v1744
  %1908 = vmatpush1.bf16.msra.mxu0 %v1743
  %1909 = vmatprep.subr.bf16.mxu0 0
  %1910 = vmatpush1.bf16.msra.mxu0 0
  %1911 = vmatprep.subr.bf16.mxu0 0
  %1912 = vmatpush1.bf16.msra.mxu0 0
  %1913 = vmatprep.subr.bf16.mxu0 0
  %1914 = vmatpush1.bf16.msra.mxu0 0
  %1915 = vmatprep.subr.bf16.mxu0 0
  %1916 = vmatpush1.bf16.msra.mxu0 0
  %1917 = vmatprep.subr.bf16.mxu0 0
  %1918 = vmatpush1.bf16.msra.mxu0 0
  %1919 = vmatprep.subr.bf16.mxu0 0
  %1920 = vmatpush1.bf16.msra.mxu0 0
  %1921 = vmatprep.subr.bf16.mxu0 0
  %1922 = vmatpush1.bf16.msra.mxu0 0
  %1923 = vmatprep.subr.bf16.mxu0 0
  %1924 = vmatpush1.bf16.msra.mxu0 0
  %1925 = vmatprep.mubr.bf16.mxu0 0
  %1926 = vmatmul.mubr.bf16.gmra.mrb[0].mxu0 %v1384
  %v1927 = vpop.f32.mrb[0].mxu0
  %v1928 = vadd.f32 %v1470, %v1927
  %v1929 = vpop.f32.mrb[0].mxu0
  %v1930 = vadd.f32 %v1474, %v1929
  %v1931 = vpop.f32.mrb[0].mxu0
  %v1932 = vpop.f32.mrb[0].mxu0
  %1933 = vdwg.mxu0
  %1934 = vmatprep.subr.bf16.mxu0 %v1690
  %1935 = vmatpush1.bf16.msra.mxu0 %v1689
  %1936 = vmatprep.subr.bf16.mxu0 %v1698
  %1937 = vmatpush1.bf16.msra.mxu0 %v1697
  %1938 = vmatprep.subr.bf16.mxu0 %v1706
  %1939 = vmatpush1.bf16.msra.mxu0 %v1705
  %1940 = vmatprep.subr.bf16.mxu0 %v1714
  %1941 = vmatpush1.bf16.msra.mxu0 %v1713
  %1942 = vmatprep.subr.bf16.mxu0 %v1722
  %1943 = vmatpush1.bf16.msra.mxu0 %v1721
  %1944 = vmatprep.subr.bf16.mxu0 %v1730
  %1945 = vmatpush1.bf16.msra.mxu0 %v1729
  %1946 = vmatprep.subr.bf16.mxu0 %v1738
  %1947 = vmatpush1.bf16.msra.mxu0 %v1737
  %1948 = vmatprep.subr.bf16.mxu0 %v1746
  %1949 = vmatpush1.bf16.msra.mxu0 %v1745
  %1950 = vmatprep.subr.bf16.mxu0 0
  %1951 = vmatpush1.bf16.msra.mxu0 0
  %1952 = vmatprep.subr.bf16.mxu0 0
  %1953 = vmatpush1.bf16.msra.mxu0 0
  %1954 = vmatprep.subr.bf16.mxu0 0
  %1955 = vmatpush1.bf16.msra.mxu0 0
  %1956 = vmatprep.subr.bf16.mxu0 0
  %1957 = vmatpush1.bf16.msra.mxu0 0
  %1958 = vmatprep.subr.bf16.mxu0 0
  %1959 = vmatpush1.bf16.msra.mxu0 0
  %1960 = vmatprep.subr.bf16.mxu0 0
  %1961 = vmatpush1.bf16.msra.mxu0 0
  %1962 = vmatprep.subr.bf16.mxu0 0
  %1963 = vmatpush1.bf16.msra.mxu0 0
  %1964 = vmatprep.subr.bf16.mxu0 0
  %1965 = vmatpush1.bf16.msra.mxu0 0
  %1966 = vmatprep.mubr.bf16.mxu0 0
  %1967 = vmatmul.mubr.bf16.gmra.mrb[0].mxu0 %v1384
  %v1968 = vpop.f32.mrb[0].mxu0
  %v1969 = vadd.f32 %v1478, %v1968
  %v1970 = vpop.f32.mrb[0].mxu0
  %v1971 = vadd.f32 %v1482, %v1970
  %v1972 = vpop.f32.mrb[0].mxu0
  %v1973 = vpop.f32.mrb[0].mxu0
  %1974 = vdwg.mxu0
  %v1975 = vmax.f32 %v1846, 0.0
  %v1976 = vmax.f32 %v1848, 0.0
  %v1977 = vmax.f32 %v1887, 0.0
  %v1978 = vmax.f32 %v1889, 0.0
  %v1979 = vmax.f32 %v1928, 0.0
  %v1980 = vmax.f32 %v1930, 0.0
  %v1981 = vmax.f32 %v1969, 0.0
  %v1982 = vmax.f32 %v1971, 0.0
  %v1983 = vpack.c.bf16 %v1375, %v1375
  %v1984 = vpack.c.bf16 %v1376, %v1376
  %v1985 = vpack.c.bf16 %v1377, %v1377
  %v1986 = vpack.c.bf16 %v1378, %v1378
  %v1987 = vpack.c.bf16 %v1379, %v1379
  %v1988 = vpack.c.bf16 %v1380, %v1380
  %v1989 = vpack.c.bf16 %v1381, %v1381
  %v1990 = vpack.c.bf16 %v1382, %v1382
  %v1991 = vld [vmem:[%s9] sm:$0xff]
  %v1992 = vld [vmem:[%s9 + $0x8] sm:$0xff]
  %v1993 = vld [vmem:[%s9 + $0x10] sm:$0xff]
  %v1994 = vld [vmem:[%s9 + $0x18] sm:$0xff]
  %v1995 = vld [vmem:[%s9 + $0x20] sm:$0xff]
  %v1996 = vld [vmem:[%s9 + $0x28] sm:$0xff]
  %v1997 = vld [vmem:[%s9 + $0x30] sm:$0xff]
  %v1998 = vld [vmem:[%s9 + $0x38] sm:$0xff]
  %v1999 = vld [vmem:[%s9 + $0x40] sm:$0xff]
  %v2000 = vld [vmem:[%s9 + $0x48] sm:$0xff]
  %v2001 = vld [vmem:[%s9 + $0x50] sm:$0xff]
  %v2002 = vld [vmem:[%s9 + $0x58] sm:$0xff]
  %v2003 = vld [vmem:[%s9 + $0x60] sm:$0xff]
  %v2004 = vld [vmem:[%s9 + $0x68] sm:$0xff]
  %v2005 = vld [vmem:[%s9 + $0x70] sm:$0xff]
  %v2006 = vld [vmem:[%s9 + $0x78] sm:$0xff]
  %v2007 = vld [vmem:[%s9 + $0x80] sm:$0xff]
  %v2008 = vld [vmem:[%s9 + $0x88] sm:$0xff]
  %v2009 = vld [vmem:[%s9 + $0x90] sm:$0xff]
  %v2010 = vld [vmem:[%s9 + $0x98] sm:$0xff]
  %v2011 = vld [vmem:[%s9 + $0xa0] sm:$0xff]
  %v2012 = vld [vmem:[%s9 + $0xa8] sm:$0xff]
  %v2013 = vld [vmem:[%s9 + $0xb0] sm:$0xff]
  %v2014 = vld [vmem:[%s9 + $0xb8] sm:$0xff]
  %v2015 = vld [vmem:[%s9 + $0xc0] sm:$0xff]
  %v2016 = vld [vmem:[%s9 + $0xc8] sm:$0xff]
  %v2017 = vld [vmem:[%s9 + $0xd0] sm:$0xff]
  %v2018 = vld [vmem:[%s9 + $0xd8] sm:$0xff]
  %v2019 = vld [vmem:[%s9 + $0xe0] sm:$0xff]
  %v2020 = vld [vmem:[%s9 + $0xe8] sm:$0xff]
  %v2021 = vld [vmem:[%s9 + $0xf0] sm:$0xff]
  %v2022 = vld [vmem:[%s9 + $0xf8] sm:$0xff]
  %v2023 = vld [vmem:[%s9 + $0x100] sm:$0xff]
  %v2024 = vld [vmem:[%s9 + $0x108] sm:$0xff]
  %v2025 = vld [vmem:[%s9 + $0x110] sm:$0xff]
  %v2026 = vld [vmem:[%s9 + $0x118] sm:$0xff]
  %v2027 = vld [vmem:[%s9 + $0x120] sm:$0xff]
  %v2028 = vld [vmem:[%s9 + $0x128] sm:$0xff]
  %v2029 = vld [vmem:[%s9 + $0x130] sm:$0xff]
  %v2030 = vld [vmem:[%s9 + $0x138] sm:$0xff]
  %v2031 = vld [vmem:[%s9 + $0x140] sm:$0xff]
  %v2032 = vld [vmem:[%s9 + $0x148] sm:$0xff]
  %v2033 = vld [vmem:[%s9 + $0x150] sm:$0xff]
  %v2034 = vld [vmem:[%s9 + $0x158] sm:$0xff]
  %v2035 = vld [vmem:[%s9 + $0x160] sm:$0xff]
  %v2036 = vld [vmem:[%s9 + $0x168] sm:$0xff]
  %v2037 = vld [vmem:[%s9 + $0x170] sm:$0xff]
  %v2038 = vld [vmem:[%s9 + $0x178] sm:$0xff]
  %v2039 = vld [vmem:[%s9 + $0x180] sm:$0xff]
  %v2040 = vld [vmem:[%s9 + $0x188] sm:$0xff]
  %v2041 = vld [vmem:[%s9 + $0x190] sm:$0xff]
  %v2042 = vld [vmem:[%s9 + $0x198] sm:$0xff]
  %v2043 = vld [vmem:[%s9 + $0x1a0] sm:$0xff]
  %v2044 = vld [vmem:[%s9 + $0x1a8] sm:$0xff]
  %v2045 = vld [vmem:[%s9 + $0x1b0] sm:$0xff]
  %v2046 = vld [vmem:[%s9 + $0x1b8] sm:$0xff]
  %v2047 = vld [vmem:[%s9 + $0x1c0] sm:$0xff]
  %v2048 = vld [vmem:[%s9 + $0x1c8] sm:$0xff]
  %v2049 = vld [vmem:[%s9 + $0x1d0] sm:$0xff]
  %v2050 = vld [vmem:[%s9 + $0x1d8] sm:$0xff]
  %v2051 = vld [vmem:[%s9 + $0x1e0] sm:$0xff]
  %v2052 = vld [vmem:[%s9 + $0x1e8] sm:$0xff]
  %v2053 = vld [vmem:[%s9 + $0x1f0] sm:$0xff]
  %v2054 = vld [vmem:[%s9 + $0x1f8] sm:$0xff]
  %v2055 = vld [vmem:[%s9 + $0x200] sm:$0xff]
  %v2056 = vld [vmem:[%s9 + $0x208] sm:$0xff]
  %v2057 = vld [vmem:[%s9 + $0x210] sm:$0xff]
  %v2058 = vld [vmem:[%s9 + $0x218] sm:$0xff]
  %v2059 = vld [vmem:[%s9 + $0x220] sm:$0xff]
  %v2060 = vld [vmem:[%s9 + $0x228] sm:$0xff]
  %v2061 = vld [vmem:[%s9 + $0x230] sm:$0xff]
  %v2062 = vld [vmem:[%s9 + $0x238] sm:$0xff]
  %v2063 = vld [vmem:[%s9 + $0x240] sm:$0xff]
  %v2064 = vld [vmem:[%s9 + $0x248] sm:$0xff]
  %v2065 = vld [vmem:[%s9 + $0x250] sm:$0xff]
  %v2066 = vld [vmem:[%s9 + $0x258] sm:$0xff]
  %v2067 = vld [vmem:[%s9 + $0x260] sm:$0xff]
  %v2068 = vld [vmem:[%s9 + $0x268] sm:$0xff]
  %v2069 = vld [vmem:[%s9 + $0x270] sm:$0xff]
  %v2070 = vld [vmem:[%s9 + $0x278] sm:$0xff]
  %v2071 = vld [vmem:[%s9 + $0x280] sm:$0xff]
  %v2072 = vld [vmem:[%s9 + $0x288] sm:$0xff]
  %v2073 = vld [vmem:[%s9 + $0x290] sm:$0xff]
  %v2074 = vld [vmem:[%s9 + $0x298] sm:$0xff]
  %v2075 = vld [vmem:[%s9 + $0x2a0] sm:$0xff]
  %v2076 = vld [vmem:[%s9 + $0x2a8] sm:$0xff]
  %v2077 = vld [vmem:[%s9 + $0x2b0] sm:$0xff]
  %v2078 = vld [vmem:[%s9 + $0x2b8] sm:$0xff]
  %v2079 = vld [vmem:[%s9 + $0x2c0] sm:$0xff]
  %v2080 = vld [vmem:[%s9 + $0x2c8] sm:$0xff]
  %v2081 = vld [vmem:[%s9 + $0x2d0] sm:$0xff]
  %v2082 = vld [vmem:[%s9 + $0x2d8] sm:$0xff]
  %v2083 = vld [vmem:[%s9 + $0x2e0] sm:$0xff]
  %v2084 = vld [vmem:[%s9 + $0x2e8] sm:$0xff]
  %v2085 = vld [vmem:[%s9 + $0x2f0] sm:$0xff]
  %v2086 = vld [vmem:[%s9 + $0x2f8] sm:$0xff]
  %v2087 = vld [vmem:[%s9 + $0x300] sm:$0xff]
  %v2088 = vld [vmem:[%s9 + $0x308] sm:$0xff]
  %v2089 = vld [vmem:[%s9 + $0x310] sm:$0xff]
  %v2090 = vld [vmem:[%s9 + $0x318] sm:$0xff]
  %v2091 = vld [vmem:[%s9 + $0x320] sm:$0xff]
  %v2092 = vld [vmem:[%s9 + $0x328] sm:$0xff]
  %v2093 = vld [vmem:[%s9 + $0x330] sm:$0xff]
  %v2094 = vld [vmem:[%s9 + $0x338] sm:$0xff]
  %v2095 = vld [vmem:[%s9 + $0x340] sm:$0xff]
  %v2096 = vld [vmem:[%s9 + $0x348] sm:$0xff]
  %v2097 = vld [vmem:[%s9 + $0x350] sm:$0xff]
  %v2098 = vld [vmem:[%s9 + $0x358] sm:$0xff]
  %v2099 = vld [vmem:[%s9 + $0x360] sm:$0xff]
  %v2100 = vld [vmem:[%s9 + $0x368] sm:$0xff]
  %v2101 = vld [vmem:[%s9 + $0x370] sm:$0xff]
  %v2102 = vld [vmem:[%s9 + $0x378] sm:$0xff]
  %v2103 = vld [vmem:[%s9 + $0x380] sm:$0xff]
  %v2104 = vld [vmem:[%s9 + $0x388] sm:$0xff]
  %v2105 = vld [vmem:[%s9 + $0x390] sm:$0xff]
  %v2106 = vld [vmem:[%s9 + $0x398] sm:$0xff]
  %v2107 = vld [vmem:[%s9 + $0x3a0] sm:$0xff]
  %v2108 = vld [vmem:[%s9 + $0x3a8] sm:$0xff]
  %v2109 = vld [vmem:[%s9 + $0x3b0] sm:$0xff]
  %v2110 = vld [vmem:[%s9 + $0x3b8] sm:$0xff]
  %v2111 = vld [vmem:[%s9 + $0x3c0] sm:$0xff]
  %v2112 = vld [vmem:[%s9 + $0x3c8] sm:$0xff]
  %v2113 = vld [vmem:[%s9 + $0x3d0] sm:$0xff]
  %v2114 = vld [vmem:[%s9 + $0x3d8] sm:$0xff]
  %v2115 = vld [vmem:[%s9 + $0x3e0] sm:$0xff]
  %v2116 = vld [vmem:[%s9 + $0x3e8] sm:$0xff]
  %v2117 = vld [vmem:[%s9 + $0x3f0] sm:$0xff]
  %v2118 = vld [vmem:[%s9 + $0x3f8] sm:$0xff]
  %v2119 = vld [vmem:[%s9 + $0x400] sm:$0xff]
  %v2120 = vld [vmem:[%s9 + $0x408] sm:$0xff]
  %v2121 = vld [vmem:[%s9 + $0x410] sm:$0xff]
  %v2122 = vld [vmem:[%s9 + $0x418] sm:$0xff]
  %v2123 = vld [vmem:[%s9 + $0x420] sm:$0xff]
  %v2124 = vld [vmem:[%s9 + $0x428] sm:$0xff]
  %v2125 = vld [vmem:[%s9 + $0x430] sm:$0xff]
  %v2126 = vld [vmem:[%s9 + $0x438] sm:$0xff]
  %v2127 = vld [vmem:[%s9 + $0x440] sm:$0xff]
  %v2128 = vld [vmem:[%s9 + $0x448] sm:$0xff]
  %v2129 = vld [vmem:[%s9 + $0x450] sm:$0xff]
  %v2130 = vld [vmem:[%s9 + $0x458] sm:$0xff]
  %v2131 = vld [vmem:[%s9 + $0x460] sm:$0xff]
  %v2132 = vld [vmem:[%s9 + $0x468] sm:$0xff]
  %v2133 = vld [vmem:[%s9 + $0x470] sm:$0xff]
  %v2134 = vld [vmem:[%s9 + $0x478] sm:$0xff]
  %v2135 = vld [vmem:[%s9 + $0x480] sm:$0xff]
  %v2136 = vld [vmem:[%s9 + $0x488] sm:$0xff]
  %v2137 = vld [vmem:[%s9 + $0x490] sm:$0xff]
  %v2138 = vld [vmem:[%s9 + $0x498] sm:$0xff]
  %v2139 = vld [vmem:[%s9 + $0x4a0] sm:$0xff]
  %v2140 = vld [vmem:[%s9 + $0x4a8] sm:$0xff]
  %v2141 = vld [vmem:[%s9 + $0x4b0] sm:$0xff]
  %v2142 = vld [vmem:[%s9 + $0x4b8] sm:$0xff]
  %v2143 = vld [vmem:[%s9 + $0x4c0] sm:$0xff]
  %v2144 = vld [vmem:[%s9 + $0x4c8] sm:$0xff]
  %v2145 = vld [vmem:[%s9 + $0x4d0] sm:$0xff]
  %v2146 = vld [vmem:[%s9 + $0x4d8] sm:$0xff]
  %v2147 = vld [vmem:[%s9 + $0x4e0] sm:$0xff]
  %v2148 = vld [vmem:[%s9 + $0x4e8] sm:$0xff]
  %v2149 = vld [vmem:[%s9 + $0x4f0] sm:$0xff]
  %v2150 = vld [vmem:[%s9 + $0x4f8] sm:$0xff]
  %v2151 = vld [vmem:[%s9 + $0x500] sm:$0xff]
  %v2152 = vld [vmem:[%s9 + $0x508] sm:$0xff]
  %v2153 = vld [vmem:[%s9 + $0x510] sm:$0xff]
  %v2154 = vld [vmem:[%s9 + $0x518] sm:$0xff]
  %v2155 = vld [vmem:[%s9 + $0x520] sm:$0xff]
  %v2156 = vld [vmem:[%s9 + $0x528] sm:$0xff]
  %v2157 = vld [vmem:[%s9 + $0x530] sm:$0xff]
  %v2158 = vld [vmem:[%s9 + $0x538] sm:$0xff]
  %v2159 = vld [vmem:[%s9 + $0x540] sm:$0xff]
  %v2160 = vld [vmem:[%s9 + $0x548] sm:$0xff]
  %v2161 = vld [vmem:[%s9 + $0x550] sm:$0xff]
  %v2162 = vld [vmem:[%s9 + $0x558] sm:$0xff]
  %v2163 = vld [vmem:[%s9 + $0x560] sm:$0xff]
  %v2164 = vld [vmem:[%s9 + $0x568] sm:$0xff]
  %v2165 = vld [vmem:[%s9 + $0x570] sm:$0xff]
  %v2166 = vld [vmem:[%s9 + $0x578] sm:$0xff]
  %v2167 = vld [vmem:[%s9 + $0x580] sm:$0xff]
  %v2168 = vld [vmem:[%s9 + $0x588] sm:$0xff]
  %v2169 = vld [vmem:[%s9 + $0x590] sm:$0xff]
  %v2170 = vld [vmem:[%s9 + $0x598] sm:$0xff]
  %v2171 = vld [vmem:[%s9 + $0x5a0] sm:$0xff]
  %v2172 = vld [vmem:[%s9 + $0x5a8] sm:$0xff]
  %v2173 = vld [vmem:[%s9 + $0x5b0] sm:$0xff]
  %v2174 = vld [vmem:[%s9 + $0x5b8] sm:$0xff]
  %v2175 = vld [vmem:[%s9 + $0x5c0] sm:$0xff]
  %v2176 = vld [vmem:[%s9 + $0x5c8] sm:$0xff]
  %v2177 = vld [vmem:[%s9 + $0x5d0] sm:$0xff]
  %v2178 = vld [vmem:[%s9 + $0x5d8] sm:$0xff]
  %v2179 = vld [vmem:[%s9 + $0x5e0] sm:$0xff]
  %v2180 = vld [vmem:[%s9 + $0x5e8] sm:$0xff]
  %v2181 = vld [vmem:[%s9 + $0x5f0] sm:$0xff]
  %v2182 = vld [vmem:[%s9 + $0x5f8] sm:$0xff]
  %v2183 = vld [vmem:[%s9 + $0x600] sm:$0xff]
  %v2184 = vld [vmem:[%s9 + $0x608] sm:$0xff]
  %v2185 = vld [vmem:[%s9 + $0x610] sm:$0xff]
  %v2186 = vld [vmem:[%s9 + $0x618] sm:$0xff]
  %v2187 = vld [vmem:[%s9 + $0x620] sm:$0xff]
  %v2188 = vld [vmem:[%s9 + $0x628] sm:$0xff]
  %v2189 = vld [vmem:[%s9 + $0x630] sm:$0xff]
  %v2190 = vld [vmem:[%s9 + $0x638] sm:$0xff]
  %v2191 = vld [vmem:[%s9 + $0x640] sm:$0xff]
  %v2192 = vld [vmem:[%s9 + $0x648] sm:$0xff]
  %v2193 = vld [vmem:[%s9 + $0x650] sm:$0xff]
  %v2194 = vld [vmem:[%s9 + $0x658] sm:$0xff]
  %v2195 = vld [vmem:[%s9 + $0x660] sm:$0xff]
  %v2196 = vld [vmem:[%s9 + $0x668] sm:$0xff]
  %v2197 = vld [vmem:[%s9 + $0x670] sm:$0xff]
  %v2198 = vld [vmem:[%s9 + $0x678] sm:$0xff]
  %v2199 = vld [vmem:[%s9 + $0x680] sm:$0xff]
  %v2200 = vld [vmem:[%s9 + $0x688] sm:$0xff]
  %v2201 = vld [vmem:[%s9 + $0x690] sm:$0xff]
  %v2202 = vld [vmem:[%s9 + $0x698] sm:$0xff]
  %v2203 = vld [vmem:[%s9 + $0x6a0] sm:$0xff]
  %v2204 = vld [vmem:[%s9 + $0x6a8] sm:$0xff]
  %v2205 = vld [vmem:[%s9 + $0x6b0] sm:$0xff]
  %v2206 = vld [vmem:[%s9 + $0x6b8] sm:$0xff]
  %v2207 = vld [vmem:[%s9 + $0x6c0] sm:$0xff]
  %v2208 = vld [vmem:[%s9 + $0x6c8] sm:$0xff]
  %v2209 = vld [vmem:[%s9 + $0x6d0] sm:$0xff]
  %v2210 = vld [vmem:[%s9 + $0x6d8] sm:$0xff]
  %v2211 = vld [vmem:[%s9 + $0x6e0] sm:$0xff]
  %v2212 = vld [vmem:[%s9 + $0x6e8] sm:$0xff]
  %v2213 = vld [vmem:[%s9 + $0x6f0] sm:$0xff]
  %v2214 = vld [vmem:[%s9 + $0x6f8] sm:$0xff]
  %v2215 = vld [vmem:[%s9 + $0x700] sm:$0xff]
  %v2216 = vld [vmem:[%s9 + $0x708] sm:$0xff]
  %v2217 = vld [vmem:[%s9 + $0x710] sm:$0xff]
  %v2218 = vld [vmem:[%s9 + $0x718] sm:$0xff]
  %v2219 = vld [vmem:[%s9 + $0x720] sm:$0xff]
  %v2220 = vld [vmem:[%s9 + $0x728] sm:$0xff]
  %v2221 = vld [vmem:[%s9 + $0x730] sm:$0xff]
  %v2222 = vld [vmem:[%s9 + $0x738] sm:$0xff]
  %v2223 = vld [vmem:[%s9 + $0x740] sm:$0xff]
  %v2224 = vld [vmem:[%s9 + $0x748] sm:$0xff]
  %v2225 = vld [vmem:[%s9 + $0x750] sm:$0xff]
  %v2226 = vld [vmem:[%s9 + $0x758] sm:$0xff]
  %v2227 = vld [vmem:[%s9 + $0x760] sm:$0xff]
  %v2228 = vld [vmem:[%s9 + $0x768] sm:$0xff]
  %v2229 = vld [vmem:[%s9 + $0x770] sm:$0xff]
  %v2230 = vld [vmem:[%s9 + $0x778] sm:$0xff]
  %v2231 = vld [vmem:[%s9 + $0x780] sm:$0xff]
  %v2232 = vld [vmem:[%s9 + $0x788] sm:$0xff]
  %v2233 = vld [vmem:[%s9 + $0x790] sm:$0xff]
  %v2234 = vld [vmem:[%s9 + $0x798] sm:$0xff]
  %v2235 = vld [vmem:[%s9 + $0x7a0] sm:$0xff]
  %v2236 = vld [vmem:[%s9 + $0x7a8] sm:$0xff]
  %v2237 = vld [vmem:[%s9 + $0x7b0] sm:$0xff]
  %v2238 = vld [vmem:[%s9 + $0x7b8] sm:$0xff]
  %v2239 = vld [vmem:[%s9 + $0x7c0] sm:$0xff]
  %v2240 = vld [vmem:[%s9 + $0x7c8] sm:$0xff]
  %v2241 = vld [vmem:[%s9 + $0x7d0] sm:$0xff]
  %v2242 = vld [vmem:[%s9 + $0x7d8] sm:$0xff]
  %v2243 = vld [vmem:[%s9 + $0x7e0] sm:$0xff]
  %v2244 = vld [vmem:[%s9 + $0x7e8] sm:$0xff]
  %v2245 = vld [vmem:[%s9 + $0x7f0] sm:$0xff]
  %v2246 = vld [vmem:[%s9 + $0x7f8] sm:$0xff]
  %v2247 = vld [vmem:[%s9 + $0x800] sm:$0xff]
  %v2248 = vld [vmem:[%s9 + $0x808] sm:$0xff]
  %v2249 = vld [vmem:[%s9 + $0x810] sm:$0xff]
  %v2250 = vld [vmem:[%s9 + $0x818] sm:$0xff]
  %v2251 = vld [vmem:[%s9 + $0x820] sm:$0xff]
  %v2252 = vld [vmem:[%s9 + $0x828] sm:$0xff]
  %v2253 = vld [vmem:[%s9 + $0x830] sm:$0xff]
  %v2254 = vld [vmem:[%s9 + $0x838] sm:$0xff]
  %v2255 = vld [vmem:[%s9 + $0x840] sm:$0xff]
  %v2256 = vld [vmem:[%s9 + $0x848] sm:$0xff]
  %v2257 = vld [vmem:[%s9 + $0x850] sm:$0xff]
  %v2258 = vld [vmem:[%s9 + $0x858] sm:$0xff]
  %v2259 = vld [vmem:[%s9 + $0x860] sm:$0xff]
  %v2260 = vld [vmem:[%s9 + $0x868] sm:$0xff]
  %v2261 = vld [vmem:[%s9 + $0x870] sm:$0xff]
  %v2262 = vld [vmem:[%s9 + $0x878] sm:$0xff]
  %v2263 = vld [vmem:[%s9 + $0x880] sm:$0xff]
  %v2264 = vld [vmem:[%s9 + $0x888] sm:$0xff]
  %v2265 = vld [vmem:[%s9 + $0x890] sm:$0xff]
  %v2266 = vld [vmem:[%s9 + $0x898] sm:$0xff]
  %v2267 = vld [vmem:[%s9 + $0x8a0] sm:$0xff]
  %v2268 = vld [vmem:[%s9 + $0x8a8] sm:$0xff]
  %v2269 = vld [vmem:[%s9 + $0x8b0] sm:$0xff]
  %v2270 = vld [vmem:[%s9 + $0x8b8] sm:$0xff]
  %v2271 = vld [vmem:[%s9 + $0x8c0] sm:$0xff]
  %v2272 = vld [vmem:[%s9 + $0x8c8] sm:$0xff]
  %v2273 = vld [vmem:[%s9 + $0x8d0] sm:$0xff]
  %v2274 = vld [vmem:[%s9 + $0x8d8] sm:$0xff]
  %v2275 = vld [vmem:[%s9 + $0x8e0] sm:$0xff]
  %v2276 = vld [vmem:[%s9 + $0x8e8] sm:$0xff]
  %v2277 = vld [vmem:[%s9 + $0x8f0] sm:$0xff]
  %v2278 = vld [vmem:[%s9 + $0x8f8] sm:$0xff]
  %v2279 = vld [vmem:[%s9 + $0x900] sm:$0xff]
  %v2280 = vld [vmem:[%s9 + $0x908] sm:$0xff]
  %v2281 = vld [vmem:[%s9 + $0x910] sm:$0xff]
  %v2282 = vld [vmem:[%s9 + $0x918] sm:$0xff]
  %v2283 = vld [vmem:[%s9 + $0x920] sm:$0xff]
  %v2284 = vld [vmem:[%s9 + $0x928] sm:$0xff]
  %v2285 = vld [vmem:[%s9 + $0x930] sm:$0xff]
  %v2286 = vld [vmem:[%s9 + $0x938] sm:$0xff]
  %v2287 = vld [vmem:[%s9 + $0x940] sm:$0xff]
  %v2288 = vld [vmem:[%s9 + $0x948] sm:$0xff]
  %v2289 = vld [vmem:[%s9 + $0x950] sm:$0xff]
  %v2290 = vld [vmem:[%s9 + $0x958] sm:$0xff]
  %v2291 = vld [vmem:[%s9 + $0x960] sm:$0xff]
  %v2292 = vld [vmem:[%s9 + $0x968] sm:$0xff]
  %v2293 = vld [vmem:[%s9 + $0x970] sm:$0xff]
  %v2294 = vld [vmem:[%s9 + $0x978] sm:$0xff]
  %v2295 = vld [vmem:[%s9 + $0x980] sm:$0xff]
  %v2296 = vld [vmem:[%s9 + $0x988] sm:$0xff]
  %v2297 = vld [vmem:[%s9 + $0x990] sm:$0xff]
  %v2298 = vld [vmem:[%s9 + $0x998] sm:$0xff]
  %v2299 = vld [vmem:[%s9 + $0x9a0] sm:$0xff]
  %v2300 = vld [vmem:[%s9 + $0x9a8] sm:$0xff]
  %v2301 = vld [vmem:[%s9 + $0x9b0] sm:$0xff]
  %v2302 = vld [vmem:[%s9 + $0x9b8] sm:$0xff]
  %v2303 = vld [vmem:[%s9 + $0x9c0] sm:$0xff]
  %v2304 = vld [vmem:[%s9 + $0x9c8] sm:$0xff]
  %v2305 = vld [vmem:[%s9 + $0x9d0] sm:$0xff]
  %v2306 = vld [vmem:[%s9 + $0x9d8] sm:$0xff]
  %v2307 = vld [vmem:[%s9 + $0x9e0] sm:$0xff]
  %v2308 = vld [vmem:[%s9 + $0x9e8] sm:$0xff]
  %v2309 = vld [vmem:[%s9 + $0x9f0] sm:$0xff]
  %v2310 = vld [vmem:[%s9 + $0x9f8] sm:$0xff]
  %v2311 = vld [vmem:[%s9 + $0xa00] sm:$0xff]
  %v2312 = vld [vmem:[%s9 + $0xa08] sm:$0xff]
  %v2313 = vld [vmem:[%s9 + $0xa10] sm:$0xff]
  %v2314 = vld [vmem:[%s9 + $0xa18] sm:$0xff]
  %v2315 = vld [vmem:[%s9 + $0xa20] sm:$0xff]
  %v2316 = vld [vmem:[%s9 + $0xa28] sm:$0xff]
  %v2317 = vld [vmem:[%s9 + $0xa30] sm:$0xff]
  %v2318 = vld [vmem:[%s9 + $0xa38] sm:$0xff]
  %v2319 = vld [vmem:[%s9 + $0xa40] sm:$0xff]
  %v2320 = vld [vmem:[%s9 + $0xa48] sm:$0xff]
  %v2321 = vld [vmem:[%s9 + $0xa50] sm:$0xff]
  %v2322 = vld [vmem:[%s9 + $0xa58] sm:$0xff]
  %v2323 = vld [vmem:[%s9 + $0xa60] sm:$0xff]
  %v2324 = vld [vmem:[%s9 + $0xa68] sm:$0xff]
  %v2325 = vld [vmem:[%s9 + $0xa70] sm:$0xff]
  %v2326 = vld [vmem:[%s9 + $0xa78] sm:$0xff]
  %v2327 = vld [vmem:[%s9 + $0xa80] sm:$0xff]
  %v2328 = vld [vmem:[%s9 + $0xa88] sm:$0xff]
  %v2329 = vld [vmem:[%s9 + $0xa90] sm:$0xff]
  %v2330 = vld [vmem:[%s9 + $0xa98] sm:$0xff]
  %v2331 = vld [vmem:[%s9 + $0xaa0] sm:$0xff]
  %v2332 = vld [vmem:[%s9 + $0xaa8] sm:$0xff]
  %v2333 = vld [vmem:[%s9 + $0xab0] sm:$0xff]
  %v2334 = vld [vmem:[%s9 + $0xab8] sm:$0xff]
  %v2335 = vld [vmem:[%s9 + $0xac0] sm:$0xff]
  %v2336 = vld [vmem:[%s9 + $0xac8] sm:$0xff]
  %v2337 = vld [vmem:[%s9 + $0xad0] sm:$0xff]
  %v2338 = vld [vmem:[%s9 + $0xad8] sm:$0xff]
  %v2339 = vld [vmem:[%s9 + $0xae0] sm:$0xff]
  %v2340 = vld [vmem:[%s9 + $0xae8] sm:$0xff]
  %v2341 = vld [vmem:[%s9 + $0xaf0] sm:$0xff]
  %v2342 = vld [vmem:[%s9 + $0xaf8] sm:$0xff]
  %v2343 = vld [vmem:[%s9 + $0xb00] sm:$0xff]
  %v2344 = vld [vmem:[%s9 + $0xb08] sm:$0xff]
  %v2345 = vld [vmem:[%s9 + $0xb10] sm:$0xff]
  %v2346 = vld [vmem:[%s9 + $0xb18] sm:$0xff]
  %v2347 = vld [vmem:[%s9 + $0xb20] sm:$0xff]
  %v2348 = vld [vmem:[%s9 + $0xb28] sm:$0xff]
  %v2349 = vld [vmem:[%s9 + $0xb30] sm:$0xff]
  %v2350 = vld [vmem:[%s9 + $0xb38] sm:$0xff]
  %v2351 = vld [vmem:[%s9 + $0xb40] sm:$0xff]
  %v2352 = vld [vmem:[%s9 + $0xb48] sm:$0xff]
  %v2353 = vld [vmem:[%s9 + $0xb50] sm:$0xff]
  %v2354 = vld [vmem:[%s9 + $0xb58] sm:$0xff]
  %v2355 = vld [vmem:[%s9 + $0xb60] sm:$0xff]
  %v2356 = vld [vmem:[%s9 + $0xb68] sm:$0xff]
  %v2357 = vld [vmem:[%s9 + $0xb70] sm:$0xff]
  %v2358 = vld [vmem:[%s9 + $0xb78] sm:$0xff]
  %v2359 = vld [vmem:[%s9 + $0xb80] sm:$0xff]
  %v2360 = vld [vmem:[%s9 + $0xb88] sm:$0xff]
  %v2361 = vld [vmem:[%s9 + $0xb90] sm:$0xff]
  %v2362 = vld [vmem:[%s9 + $0xb98] sm:$0xff]
  %v2363 = vld [vmem:[%s9 + $0xba0] sm:$0xff]
  %v2364 = vld [vmem:[%s9 + $0xba8] sm:$0xff]
  %v2365 = vld [vmem:[%s9 + $0xbb0] sm:$0xff]
  %v2366 = vld [vmem:[%s9 + $0xbb8] sm:$0xff]
  %v2367 = vld [vmem:[%s9 + $0xbc0] sm:$0xff]
  %v2368 = vld [vmem:[%s9 + $0xbc8] sm:$0xff]
  %v2369 = vld [vmem:[%s9 + $0xbd0] sm:$0xff]
  %v2370 = vld [vmem:[%s9 + $0xbd8] sm:$0xff]
  %v2371 = vld [vmem:[%s9 + $0xbe0] sm:$0xff]
  %v2372 = vld [vmem:[%s9 + $0xbe8] sm:$0xff]
  %v2373 = vld [vmem:[%s9 + $0xbf0] sm:$0xff]
  %v2374 = vld [vmem:[%s9 + $0xbf8] sm:$0xff]
  %v2375 = vld [vmem:[%s9 + $0xc00] sm:$0xff]
  %v2376 = vld [vmem:[%s9 + $0xc08] sm:$0xff]
  %v2377 = vld [vmem:[%s9 + $0xc10] sm:$0xff]
  %v2378 = vld [vmem:[%s9 + $0xc18] sm:$0xff]
  %v2379 = vld [vmem:[%s9 + $0xc20] sm:$0xff]
  %v2380 = vld [vmem:[%s9 + $0xc28] sm:$0xff]
  %v2381 = vld [vmem:[%s9 + $0xc30] sm:$0xff]
  %v2382 = vld [vmem:[%s9 + $0xc38] sm:$0xff]
  %v2383 = vld [vmem:[%s9 + $0xc40] sm:$0xff]
  %v2384 = vld [vmem:[%s9 + $0xc48] sm:$0xff]
  %v2385 = vld [vmem:[%s9 + $0xc50] sm:$0xff]
  %v2386 = vld [vmem:[%s9 + $0xc58] sm:$0xff]
  %v2387 = vld [vmem:[%s9 + $0xc60] sm:$0xff]
  %v2388 = vld [vmem:[%s9 + $0xc68] sm:$0xff]
  %v2389 = vld [vmem:[%s9 + $0xc70] sm:$0xff]
  %v2390 = vld [vmem:[%s9 + $0xc78] sm:$0xff]
  %v2391 = vld [vmem:[%s9 + $0xc80] sm:$0xff]
  %v2392 = vld [vmem:[%s9 + $0xc88] sm:$0xff]
  %v2393 = vld [vmem:[%s9 + $0xc90] sm:$0xff]
  %v2394 = vld [vmem:[%s9 + $0xc98] sm:$0xff]
  %v2395 = vld [vmem:[%s9 + $0xca0] sm:$0xff]
  %v2396 = vld [vmem:[%s9 + $0xca8] sm:$0xff]
  %v2397 = vld [vmem:[%s9 + $0xcb0] sm:$0xff]
  %v2398 = vld [vmem:[%s9 + $0xcb8] sm:$0xff]
  %v2399 = vld [vmem:[%s9 + $0xcc0] sm:$0xff]
  %v2400 = vld [vmem:[%s9 + $0xcc8] sm:$0xff]
  %v2401 = vld [vmem:[%s9 + $0xcd0] sm:$0xff]
  %v2402 = vld [vmem:[%s9 + $0xcd8] sm:$0xff]
  %v2403 = vld [vmem:[%s9 + $0xce0] sm:$0xff]
  %v2404 = vld [vmem:[%s9 + $0xce8] sm:$0xff]
  %v2405 = vld [vmem:[%s9 + $0xcf0] sm:$0xff]
  %v2406 = vld [vmem:[%s9 + $0xcf8] sm:$0xff]
  %v2407 = vld [vmem:[%s9 + $0xd00] sm:$0xff]
  %v2408 = vld [vmem:[%s9 + $0xd08] sm:$0xff]
  %v2409 = vld [vmem:[%s9 + $0xd10] sm:$0xff]
  %v2410 = vld [vmem:[%s9 + $0xd18] sm:$0xff]
  %v2411 = vld [vmem:[%s9 + $0xd20] sm:$0xff]
  %v2412 = vld [vmem:[%s9 + $0xd28] sm:$0xff]
  %v2413 = vld [vmem:[%s9 + $0xd30] sm:$0xff]
  %v2414 = vld [vmem:[%s9 + $0xd38] sm:$0xff]
  %v2415 = vld [vmem:[%s9 + $0xd40] sm:$0xff]
  %v2416 = vld [vmem:[%s9 + $0xd48] sm:$0xff]
  %v2417 = vld [vmem:[%s9 + $0xd50] sm:$0xff]
  %v2418 = vld [vmem:[%s9 + $0xd58] sm:$0xff]
  %v2419 = vld [vmem:[%s9 + $0xd60] sm:$0xff]
  %v2420 = vld [vmem:[%s9 + $0xd68] sm:$0xff]
  %v2421 = vld [vmem:[%s9 + $0xd70] sm:$0xff]
  %v2422 = vld [vmem:[%s9 + $0xd78] sm:$0xff]
  %v2423 = vld [vmem:[%s9 + $0xd80] sm:$0xff]
  %v2424 = vld [vmem:[%s9 + $0xd88] sm:$0xff]
  %v2425 = vld [vmem:[%s9 + $0xd90] sm:$0xff]
  %v2426 = vld [vmem:[%s9 + $0xd98] sm:$0xff]
  %v2427 = vld [vmem:[%s9 + $0xda0] sm:$0xff]
  %v2428 = vld [vmem:[%s9 + $0xda8] sm:$0xff]
  %v2429 = vld [vmem:[%s9 + $0xdb0] sm:$0xff]
  %v2430 = vld [vmem:[%s9 + $0xdb8] sm:$0xff]
  %v2431 = vld [vmem:[%s9 + $0xdc0] sm:$0xff]
  %v2432 = vld [vmem:[%s9 + $0xdc8] sm:$0xff]
  %v2433 = vld [vmem:[%s9 + $0xdd0] sm:$0xff]
  %v2434 = vld [vmem:[%s9 + $0xdd8] sm:$0xff]
  %v2435 = vld [vmem:[%s9 + $0xde0] sm:$0xff]
  %v2436 = vld [vmem:[%s9 + $0xde8] sm:$0xff]
  %v2437 = vld [vmem:[%s9 + $0xdf0] sm:$0xff]
  %v2438 = vld [vmem:[%s9 + $0xdf8] sm:$0xff]
  %v2439 = vld [vmem:[%s9 + $0xe00] sm:$0xff]
  %v2440 = vld [vmem:[%s9 + $0xe08] sm:$0xff]
  %v2441 = vld [vmem:[%s9 + $0xe10] sm:$0xff]
  %v2442 = vld [vmem:[%s9 + $0xe18] sm:$0xff]
  %v2443 = vld [vmem:[%s9 + $0xe20] sm:$0xff]
  %v2444 = vld [vmem:[%s9 + $0xe28] sm:$0xff]
  %v2445 = vld [vmem:[%s9 + $0xe30] sm:$0xff]
  %v2446 = vld [vmem:[%s9 + $0xe38] sm:$0xff]
  %v2447 = vld [vmem:[%s9 + $0xe40] sm:$0xff]
  %v2448 = vld [vmem:[%s9 + $0xe48] sm:$0xff]
  %v2449 = vld [vmem:[%s9 + $0xe50] sm:$0xff]
  %v2450 = vld [vmem:[%s9 + $0xe58] sm:$0xff]
  %v2451 = vld [vmem:[%s9 + $0xe60] sm:$0xff]
  %v2452 = vld [vmem:[%s9 + $0xe68] sm:$0xff]
  %v2453 = vld [vmem:[%s9 + $0xe70] sm:$0xff]
  %v2454 = vld [vmem:[%s9 + $0xe78] sm:$0xff]
  %v2455 = vld [vmem:[%s9 + $0xe80] sm:$0xff]
  %v2456 = vld [vmem:[%s9 + $0xe88] sm:$0xff]
  %v2457 = vld [vmem:[%s9 + $0xe90] sm:$0xff]
  %v2458 = vld [vmem:[%s9 + $0xe98] sm:$0xff]
  %v2459 = vld [vmem:[%s9 + $0xea0] sm:$0xff]
  %v2460 = vld [vmem:[%s9 + $0xea8] sm:$0xff]
  %v2461 = vld [vmem:[%s9 + $0xeb0] sm:$0xff]
  %v2462 = vld [vmem:[%s9 + $0xeb8] sm:$0xff]
  %v2463 = vld [vmem:[%s9 + $0xec0] sm:$0xff]
  %v2464 = vld [vmem:[%s9 + $0xec8] sm:$0xff]
  %v2465 = vld [vmem:[%s9 + $0xed0] sm:$0xff]
  %v2466 = vld [vmem:[%s9 + $0xed8] sm:$0xff]
  %v2467 = vld [vmem:[%s9 + $0xee0] sm:$0xff]
  %v2468 = vld [vmem:[%s9 + $0xee8] sm:$0xff]
  %v2469 = vld [vmem:[%s9 + $0xef0] sm:$0xff]
  %v2470 = vld [vmem:[%s9 + $0xef8] sm:$0xff]
  %v2471 = vld [vmem:[%s9 + $0xf00] sm:$0xff]
  %v2472 = vld [vmem:[%s9 + $0xf08] sm:$0xff]
  %v2473 = vld [vmem:[%s9 + $0xf10] sm:$0xff]
  %v2474 = vld [vmem:[%s9 + $0xf18] sm:$0xff]
  %v2475 = vld [vmem:[%s9 + $0xf20] sm:$0xff]
  %v2476 = vld [vmem:[%s9 + $0xf28] sm:$0xff]
  %v2477 = vld [vmem:[%s9 + $0xf30] sm:$0xff]
  %v2478 = vld [vmem:[%s9 + $0xf38] sm:$0xff]
  %v2479 = vld [vmem:[%s9 + $0xf40] sm:$0xff]
  %v2480 = vld [vmem:[%s9 + $0xf48] sm:$0xff]
  %v2481 = vld [vmem:[%s9 + $0xf50] sm:$0xff]
  %v2482 = vld [vmem:[%s9 + $0xf58] sm:$0xff]
  %v2483 = vld [vmem:[%s9 + $0xf60] sm:$0xff]
  %v2484 = vld [vmem:[%s9 + $0xf68] sm:$0xff]
  %v2485 = vld [vmem:[%s9 + $0xf70] sm:$0xff]
  %v2486 = vld [vmem:[%s9 + $0xf78] sm:$0xff]
  %v2487 = vld [vmem:[%s9 + $0xf80] sm:$0xff]
  %v2488 = vld [vmem:[%s9 + $0xf88] sm:$0xff]
  %v2489 = vld [vmem:[%s9 + $0xf90] sm:$0xff]
  %v2490 = vld [vmem:[%s9 + $0xf98] sm:$0xff]
  %v2491 = vld [vmem:[%s9 + $0xfa0] sm:$0xff]
  %v2492 = vld [vmem:[%s9 + $0xfa8] sm:$0xff]
  %v2493 = vld [vmem:[%s9 + $0xfb0] sm:$0xff]
  %v2494 = vld [vmem:[%s9 + $0xfb8] sm:$0xff]
  %v2495 = vld [vmem:[%s9 + $0xfc0] sm:$0xff]
  %v2496 = vld [vmem:[%s9 + $0xfc8] sm:$0xff]
  %v2497 = vld [vmem:[%s9 + $0xfd0] sm:$0xff]
  %v2498 = vld [vmem:[%s9 + $0xfd8] sm:$0xff]
  %v2499 = vld [vmem:[%s9 + $0xfe0] sm:$0xff]
  %v2500 = vld [vmem:[%s9 + $0xfe8] sm:$0xff]
  %v2501 = vld [vmem:[%s9 + $0xff0] sm:$0xff]
  %v2502 = vld [vmem:[%s9 + $0xff8] sm:$0xff]
  %v2503 = vpack.c.bf16 %v1975, %v1975
  %v2504 = vpack.c.bf16 %v1976, %v1976
  %v2505 = vpack.c.bf16 %v1977, %v1977
  %v2506 = vpack.c.bf16 %v1978, %v1978
  %v2507 = vpack.c.bf16 %v1979, %v1979
  %v2508 = vpack.c.bf16 %v1980, %v1980
  %v2509 = vpack.c.bf16 %v1981, %v1981
  %v2510 = vpack.c.bf16 %v1982, %v1982
  %v2511 = vld [vmem:[%s10] sm:$0xff]
  %v2512 = vld [vmem:[%s10 + $0x8] sm:$0xff]
  %v2513 = vld [vmem:[%s10 + $0x10] sm:$0xff]
  %v2514 = vld [vmem:[%s10 + $0x18] sm:$0xff]
  %v2515 = vld [vmem:[%s10 + $0x20] sm:$0xff]
  %v2516 = vld [vmem:[%s10 + $0x28] sm:$0xff]
  %v2517 = vld [vmem:[%s10 + $0x30] sm:$0xff]
  %v2518 = vld [vmem:[%s10 + $0x38] sm:$0xff]
  %v2519 = vld [vmem:[%s10 + $0x40] sm:$0xff]
  %v2520 = vld [vmem:[%s10 + $0x48] sm:$0xff]
  %v2521 = vld [vmem:[%s10 + $0x50] sm:$0xff]
  %v2522 = vld [vmem:[%s10 + $0x58] sm:$0xff]
  %v2523 = vld [vmem:[%s10 + $0x60] sm:$0xff]
  %v2524 = vld [vmem:[%s10 + $0x68] sm:$0xff]
  %v2525 = vld [vmem:[%s10 + $0x70] sm:$0xff]
  %v2526 = vld [vmem:[%s10 + $0x78] sm:$0xff]
  %v2527 = vld [vmem:[%s10 + $0x80] sm:$0xff]
  %v2528 = vld [vmem:[%s10 + $0x88] sm:$0xff]
  %v2529 = vld [vmem:[%s10 + $0x90] sm:$0xff]
  %v2530 = vld [vmem:[%s10 + $0x98] sm:$0xff]
  %v2531 = vld [vmem:[%s10 + $0xa0] sm:$0xff]
  %v2532 = vld [vmem:[%s10 + $0xa8] sm:$0xff]
  %v2533 = vld [vmem:[%s10 + $0xb0] sm:$0xff]
  %v2534 = vld [vmem:[%s10 + $0xb8] sm:$0xff]
  %v2535 = vld [vmem:[%s10 + $0xc0] sm:$0xff]
  %v2536 = vld [vmem:[%s10 + $0xc8] sm:$0xff]
  %v2537 = vld [vmem:[%s10 + $0xd0] sm:$0xff]
  %v2538 = vld [vmem:[%s10 + $0xd8] sm:$0xff]
  %v2539 = vld [vmem:[%s10 + $0xe0] sm:$0xff]
  %v2540 = vld [vmem:[%s10 + $0xe8] sm:$0xff]
  %v2541 = vld [vmem:[%s10 + $0xf0] sm:$0xff]
  %v2542 = vld [vmem:[%s10 + $0xf8] sm:$0xff]
  %v2543 = vld [vmem:[%s10 + $0x100] sm:$0xff]
  %v2544 = vld [vmem:[%s10 + $0x108] sm:$0xff]
  %v2545 = vld [vmem:[%s10 + $0x110] sm:$0xff]
  %v2546 = vld [vmem:[%s10 + $0x118] sm:$0xff]
  %v2547 = vld [vmem:[%s10 + $0x120] sm:$0xff]
  %v2548 = vld [vmem:[%s10 + $0x128] sm:$0xff]
  %v2549 = vld [vmem:[%s10 + $0x130] sm:$0xff]
  %v2550 = vld [vmem:[%s10 + $0x138] sm:$0xff]
  %v2551 = vld [vmem:[%s10 + $0x140] sm:$0xff]
  %v2552 = vld [vmem:[%s10 + $0x148] sm:$0xff]
  %v2553 = vld [vmem:[%s10 + $0x150] sm:$0xff]
  %v2554 = vld [vmem:[%s10 + $0x158] sm:$0xff]
  %v2555 = vld [vmem:[%s10 + $0x160] sm:$0xff]
  %v2556 = vld [vmem:[%s10 + $0x168] sm:$0xff]
  %v2557 = vld [vmem:[%s10 + $0x170] sm:$0xff]
  %v2558 = vld [vmem:[%s10 + $0x178] sm:$0xff]
  %v2559 = vld [vmem:[%s10 + $0x180] sm:$0xff]
  %v2560 = vld [vmem:[%s10 + $0x188] sm:$0xff]
  %v2561 = vld [vmem:[%s10 + $0x190] sm:$0xff]
  %v2562 = vld [vmem:[%s10 + $0x198] sm:$0xff]
  %v2563 = vld [vmem:[%s10 + $0x1a0] sm:$0xff]
  %v2564 = vld [vmem:[%s10 + $0x1a8] sm:$0xff]
  %v2565 = vld [vmem:[%s10 + $0x1b0] sm:$0xff]
  %v2566 = vld [vmem:[%s10 + $0x1b8] sm:$0xff]
  %v2567 = vld [vmem:[%s10 + $0x1c0] sm:$0xff]
  %v2568 = vld [vmem:[%s10 + $0x1c8] sm:$0xff]
  %v2569 = vld [vmem:[%s10 + $0x1d0] sm:$0xff]
  %v2570 = vld [vmem:[%s10 + $0x1d8] sm:$0xff]
  %v2571 = vld [vmem:[%s10 + $0x1e0] sm:$0xff]
  %v2572 = vld [vmem:[%s10 + $0x1e8] sm:$0xff]
  %v2573 = vld [vmem:[%s10 + $0x1f0] sm:$0xff]
  %v2574 = vld [vmem:[%s10 + $0x1f8] sm:$0xff]
  %v2575 = vld [vmem:[%s10 + $0x200] sm:$0xff]
  %v2576 = vld [vmem:[%s10 + $0x208] sm:$0xff]
  %v2577 = vld [vmem:[%s10 + $0x210] sm:$0xff]
  %v2578 = vld [vmem:[%s10 + $0x218] sm:$0xff]
  %v2579 = vld [vmem:[%s10 + $0x220] sm:$0xff]
  %v2580 = vld [vmem:[%s10 + $0x228] sm:$0xff]
  %v2581 = vld [vmem:[%s10 + $0x230] sm:$0xff]
  %v2582 = vld [vmem:[%s10 + $0x238] sm:$0xff]
  %v2583 = vld [vmem:[%s10 + $0x240] sm:$0xff]
  %v2584 = vld [vmem:[%s10 + $0x248] sm:$0xff]
  %v2585 = vld [vmem:[%s10 + $0x250] sm:$0xff]
  %v2586 = vld [vmem:[%s10 + $0x258] sm:$0xff]
  %v2587 = vld [vmem:[%s10 + $0x260] sm:$0xff]
  %v2588 = vld [vmem:[%s10 + $0x268] sm:$0xff]
  %v2589 = vld [vmem:[%s10 + $0x270] sm:$0xff]
  %v2590 = vld [vmem:[%s10 + $0x278] sm:$0xff]
  %v2591 = vld [vmem:[%s10 + $0x280] sm:$0xff]
  %v2592 = vld [vmem:[%s10 + $0x288] sm:$0xff]
  %v2593 = vld [vmem:[%s10 + $0x290] sm:$0xff]
  %v2594 = vld [vmem:[%s10 + $0x298] sm:$0xff]
  %v2595 = vld [vmem:[%s10 + $0x2a0] sm:$0xff]
  %v2596 = vld [vmem:[%s10 + $0x2a8] sm:$0xff]
  %v2597 = vld [vmem:[%s10 + $0x2b0] sm:$0xff]
  %v2598 = vld [vmem:[%s10 + $0x2b8] sm:$0xff]
  %v2599 = vld [vmem:[%s10 + $0x2c0] sm:$0xff]
  %v2600 = vld [vmem:[%s10 + $0x2c8] sm:$0xff]
  %v2601 = vld [vmem:[%s10 + $0x2d0] sm:$0xff]
  %v2602 = vld [vmem:[%s10 + $0x2d8] sm:$0xff]
  %v2603 = vld [vmem:[%s10 + $0x2e0] sm:$0xff]
  %v2604 = vld [vmem:[%s10 + $0x2e8] sm:$0xff]
  %v2605 = vld [vmem:[%s10 + $0x2f0] sm:$0xff]
  %v2606 = vld [vmem:[%s10 + $0x2f8] sm:$0xff]
  %v2607 = vld [vmem:[%s10 + $0x300] sm:$0xff]
  %v2608 = vld [vmem:[%s10 + $0x308] sm:$0xff]
  %v2609 = vld [vmem:[%s10 + $0x310] sm:$0xff]
  %v2610 = vld [vmem:[%s10 + $0x318] sm:$0xff]
  %v2611 = vld [vmem:[%s10 + $0x320] sm:$0xff]
  %v2612 = vld [vmem:[%s10 + $0x328] sm:$0xff]
  %v2613 = vld [vmem:[%s10 + $0x330] sm:$0xff]
  %v2614 = vld [vmem:[%s10 + $0x338] sm:$0xff]
  %v2615 = vld [vmem:[%s10 + $0x340] sm:$0xff]
  %v2616 = vld [vmem:[%s10 + $0x348] sm:$0xff]
  %v2617 = vld [vmem:[%s10 + $0x350] sm:$0xff]
  %v2618 = vld [vmem:[%s10 + $0x358] sm:$0xff]
  %v2619 = vld [vmem:[%s10 + $0x360] sm:$0xff]
  %v2620 = vld [vmem:[%s10 + $0x368] sm:$0xff]
  %v2621 = vld [vmem:[%s10 + $0x370] sm:$0xff]
  %v2622 = vld [vmem:[%s10 + $0x378] sm:$0xff]
  %v2623 = vld [vmem:[%s10 + $0x380] sm:$0xff]
  %v2624 = vld [vmem:[%s10 + $0x388] sm:$0xff]
  %v2625 = vld [vmem:[%s10 + $0x390] sm:$0xff]
  %v2626 = vld [vmem:[%s10 + $0x398] sm:$0xff]
  %v2627 = vld [vmem:[%s10 + $0x3a0] sm:$0xff]
  %v2628 = vld [vmem:[%s10 + $0x3a8] sm:$0xff]
  %v2629 = vld [vmem:[%s10 + $0x3b0] sm:$0xff]
  %v2630 = vld [vmem:[%s10 + $0x3b8] sm:$0xff]
  %v2631 = vld [vmem:[%s10 + $0x3c0] sm:$0xff]
  %v2632 = vld [vmem:[%s10 + $0x3c8] sm:$0xff]
  %v2633 = vld [vmem:[%s10 + $0x3d0] sm:$0xff]
  %v2634 = vld [vmem:[%s10 + $0x3d8] sm:$0xff]
  %v2635 = vld [vmem:[%s10 + $0x3e0] sm:$0xff]
  %v2636 = vld [vmem:[%s10 + $0x3e8] sm:$0xff]
  %v2637 = vld [vmem:[%s10 + $0x3f0] sm:$0xff]
  %v2638 = vld [vmem:[%s10 + $0x3f8] sm:$0xff]
  %v2639 = vld [vmem:[%s10 + $0x400] sm:$0xff]
  %v2640 = vld [vmem:[%s10 + $0x408] sm:$0xff]
  %v2641 = vld [vmem:[%s10 + $0x410] sm:$0xff]
  %v2642 = vld [vmem:[%s10 + $0x418] sm:$0xff]
  %v2643 = vld [vmem:[%s10 + $0x420] sm:$0xff]
  %v2644 = vld [vmem:[%s10 + $0x428] sm:$0xff]
  %v2645 = vld [vmem:[%s10 + $0x430] sm:$0xff]
  %v2646 = vld [vmem:[%s10 + $0x438] sm:$0xff]
  %v2647 = vld [vmem:[%s10 + $0x440] sm:$0xff]
  %v2648 = vld [vmem:[%s10 + $0x448] sm:$0xff]
  %v2649 = vld [vmem:[%s10 + $0x450] sm:$0xff]
  %v2650 = vld [vmem:[%s10 + $0x458] sm:$0xff]
  %v2651 = vld [vmem:[%s10 + $0x460] sm:$0xff]
  %v2652 = vld [vmem:[%s10 + $0x468] sm:$0xff]
  %v2653 = vld [vmem:[%s10 + $0x470] sm:$0xff]
  %v2654 = vld [vmem:[%s10 + $0x478] sm:$0xff]
  %v2655 = vld [vmem:[%s10 + $0x480] sm:$0xff]
  %v2656 = vld [vmem:[%s10 + $0x488] sm:$0xff]
  %v2657 = vld [vmem:[%s10 + $0x490] sm:$0xff]
  %v2658 = vld [vmem:[%s10 + $0x498] sm:$0xff]
  %v2659 = vld [vmem:[%s10 + $0x4a0] sm:$0xff]
  %v2660 = vld [vmem:[%s10 + $0x4a8] sm:$0xff]
  %v2661 = vld [vmem:[%s10 + $0x4b0] sm:$0xff]
  %v2662 = vld [vmem:[%s10 + $0x4b8] sm:$0xff]
  %v2663 = vld [vmem:[%s10 + $0x4c0] sm:$0xff]
  %v2664 = vld [vmem:[%s10 + $0x4c8] sm:$0xff]
  %v2665 = vld [vmem:[%s10 + $0x4d0] sm:$0xff]
  %v2666 = vld [vmem:[%s10 + $0x4d8] sm:$0xff]
  %v2667 = vld [vmem:[%s10 + $0x4e0] sm:$0xff]
  %v2668 = vld [vmem:[%s10 + $0x4e8] sm:$0xff]
  %v2669 = vld [vmem:[%s10 + $0x4f0] sm:$0xff]
  %v2670 = vld [vmem:[%s10 + $0x4f8] sm:$0xff]
  %v2671 = vld [vmem:[%s10 + $0x500] sm:$0xff]
  %v2672 = vld [vmem:[%s10 + $0x508] sm:$0xff]
  %v2673 = vld [vmem:[%s10 + $0x510] sm:$0xff]
  %v2674 = vld [vmem:[%s10 + $0x518] sm:$0xff]
  %v2675 = vld [vmem:[%s10 + $0x520] sm:$0xff]
  %v2676 = vld [vmem:[%s10 + $0x528] sm:$0xff]
  %v2677 = vld [vmem:[%s10 + $0x530] sm:$0xff]
  %v2678 = vld [vmem:[%s10 + $0x538] sm:$0xff]
  %v2679 = vld [vmem:[%s10 + $0x540] sm:$0xff]
  %v2680 = vld [vmem:[%s10 + $0x548] sm:$0xff]
  %v2681 = vld [vmem:[%s10 + $0x550] sm:$0xff]
  %v2682 = vld [vmem:[%s10 + $0x558] sm:$0xff]
  %v2683 = vld [vmem:[%s10 + $0x560] sm:$0xff]
  %v2684 = vld [vmem:[%s10 + $0x568] sm:$0xff]
  %v2685 = vld [vmem:[%s10 + $0x570] sm:$0xff]
  %v2686 = vld [vmem:[%s10 + $0x578] sm:$0xff]
  %v2687 = vld [vmem:[%s10 + $0x580] sm:$0xff]
  %v2688 = vld [vmem:[%s10 + $0x588] sm:$0xff]
  %v2689 = vld [vmem:[%s10 + $0x590] sm:$0xff]
  %v2690 = vld [vmem:[%s10 + $0x598] sm:$0xff]
  %v2691 = vld [vmem:[%s10 + $0x5a0] sm:$0xff]
  %v2692 = vld [vmem:[%s10 + $0x5a8] sm:$0xff]
  %v2693 = vld [vmem:[%s10 + $0x5b0] sm:$0xff]
  %v2694 = vld [vmem:[%s10 + $0x5b8] sm:$0xff]
  %v2695 = vld [vmem:[%s10 + $0x5c0] sm:$0xff]
  %v2696 = vld [vmem:[%s10 + $0x5c8] sm:$0xff]
  %v2697 = vld [vmem:[%s10 + $0x5d0] sm:$0xff]
  %v2698 = vld [vmem:[%s10 + $0x5d8] sm:$0xff]
  %v2699 = vld [vmem:[%s10 + $0x5e0] sm:$0xff]
  %v2700 = vld [vmem:[%s10 + $0x5e8] sm:$0xff]
  %v2701 = vld [vmem:[%s10 + $0x5f0] sm:$0xff]
  %v2702 = vld [vmem:[%s10 + $0x5f8] sm:$0xff]
  %v2703 = vld [vmem:[%s10 + $0x600] sm:$0xff]
  %v2704 = vld [vmem:[%s10 + $0x608] sm:$0xff]
  %v2705 = vld [vmem:[%s10 + $0x610] sm:$0xff]
  %v2706 = vld [vmem:[%s10 + $0x618] sm:$0xff]
  %v2707 = vld [vmem:[%s10 + $0x620] sm:$0xff]
  %v2708 = vld [vmem:[%s10 + $0x628] sm:$0xff]
  %v2709 = vld [vmem:[%s10 + $0x630] sm:$0xff]
  %v2710 = vld [vmem:[%s10 + $0x638] sm:$0xff]
  %v2711 = vld [vmem:[%s10 + $0x640] sm:$0xff]
  %v2712 = vld [vmem:[%s10 + $0x648] sm:$0xff]
  %v2713 = vld [vmem:[%s10 + $0x650] sm:$0xff]
  %v2714 = vld [vmem:[%s10 + $0x658] sm:$0xff]
  %v2715 = vld [vmem:[%s10 + $0x660] sm:$0xff]
  %v2716 = vld [vmem:[%s10 + $0x668] sm:$0xff]
  %v2717 = vld [vmem:[%s10 + $0x670] sm:$0xff]
  %v2718 = vld [vmem:[%s10 + $0x678] sm:$0xff]
  %v2719 = vld [vmem:[%s10 + $0x680] sm:$0xff]
  %v2720 = vld [vmem:[%s10 + $0x688] sm:$0xff]
  %v2721 = vld [vmem:[%s10 + $0x690] sm:$0xff]
  %v2722 = vld [vmem:[%s10 + $0x698] sm:$0xff]
  %v2723 = vld [vmem:[%s10 + $0x6a0] sm:$0xff]
  %v2724 = vld [vmem:[%s10 + $0x6a8] sm:$0xff]
  %v2725 = vld [vmem:[%s10 + $0x6b0] sm:$0xff]
  %v2726 = vld [vmem:[%s10 + $0x6b8] sm:$0xff]
  %v2727 = vld [vmem:[%s10 + $0x6c0] sm:$0xff]
  %v2728 = vld [vmem:[%s10 + $0x6c8] sm:$0xff]
  %v2729 = vld [vmem:[%s10 + $0x6d0] sm:$0xff]
  %v2730 = vld [vmem:[%s10 + $0x6d8] sm:$0xff]
  %v2731 = vld [vmem:[%s10 + $0x6e0] sm:$0xff]
  %v2732 = vld [vmem:[%s10 + $0x6e8] sm:$0xff]
  %v2733 = vld [vmem:[%s10 + $0x6f0] sm:$0xff]
  %v2734 = vld [vmem:[%s10 + $0x6f8] sm:$0xff]
  %v2735 = vld [vmem:[%s10 + $0x700] sm:$0xff]
  %v2736 = vld [vmem:[%s10 + $0x708] sm:$0xff]
  %v2737 = vld [vmem:[%s10 + $0x710] sm:$0xff]
  %v2738 = vld [vmem:[%s10 + $0x718] sm:$0xff]
  %v2739 = vld [vmem:[%s10 + $0x720] sm:$0xff]
  %v2740 = vld [vmem:[%s10 + $0x728] sm:$0xff]
  %v2741 = vld [vmem:[%s10 + $0x730] sm:$0xff]
  %v2742 = vld [vmem:[%s10 + $0x738] sm:$0xff]
  %v2743 = vld [vmem:[%s10 + $0x740] sm:$0xff]
  %v2744 = vld [vmem:[%s10 + $0x748] sm:$0xff]
  %v2745 = vld [vmem:[%s10 + $0x750] sm:$0xff]
  %v2746 = vld [vmem:[%s10 + $0x758] sm:$0xff]
  %v2747 = vld [vmem:[%s10 + $0x760] sm:$0xff]
  %v2748 = vld [vmem:[%s10 + $0x768] sm:$0xff]
  %v2749 = vld [vmem:[%s10 + $0x770] sm:$0xff]
  %v2750 = vld [vmem:[%s10 + $0x778] sm:$0xff]
  %v2751 = vld [vmem:[%s10 + $0x780] sm:$0xff]
  %v2752 = vld [vmem:[%s10 + $0x788] sm:$0xff]
  %v2753 = vld [vmem:[%s10 + $0x790] sm:$0xff]
  %v2754 = vld [vmem:[%s10 + $0x798] sm:$0xff]
  %v2755 = vld [vmem:[%s10 + $0x7a0] sm:$0xff]
  %v2756 = vld [vmem:[%s10 + $0x7a8] sm:$0xff]
  %v2757 = vld [vmem:[%s10 + $0x7b0] sm:$0xff]
  %v2758 = vld [vmem:[%s10 + $0x7b8] sm:$0xff]
  %v2759 = vld [vmem:[%s10 + $0x7c0] sm:$0xff]
  %v2760 = vld [vmem:[%s10 + $0x7c8] sm:$0xff]
  %v2761 = vld [vmem:[%s10 + $0x7d0] sm:$0xff]
  %v2762 = vld [vmem:[%s10 + $0x7d8] sm:$0xff]
  %v2763 = vld [vmem:[%s10 + $0x7e0] sm:$0xff]
  %v2764 = vld [vmem:[%s10 + $0x7e8] sm:$0xff]
  %v2765 = vld [vmem:[%s10 + $0x7f0] sm:$0xff]
  %v2766 = vld [vmem:[%s10 + $0x7f8] sm:$0xff]
  %v2767 = vld [vmem:[%s10 + $0x800] sm:$0xff]
  %v2768 = vld [vmem:[%s10 + $0x808] sm:$0xff]
  %v2769 = vld [vmem:[%s10 + $0x810] sm:$0xff]
  %v2770 = vld [vmem:[%s10 + $0x818] sm:$0xff]
  %v2771 = vld [vmem:[%s10 + $0x820] sm:$0xff]
  %v2772 = vld [vmem:[%s10 + $0x828] sm:$0xff]
  %v2773 = vld [vmem:[%s10 + $0x830] sm:$0xff]
  %v2774 = vld [vmem:[%s10 + $0x838] sm:$0xff]
  %v2775 = vld [vmem:[%s10 + $0x840] sm:$0xff]
  %v2776 = vld [vmem:[%s10 + $0x848] sm:$0xff]
  %v2777 = vld [vmem:[%s10 + $0x850] sm:$0xff]
  %v2778 = vld [vmem:[%s10 + $0x858] sm:$0xff]
  %v2779 = vld [vmem:[%s10 + $0x860] sm:$0xff]
  %v2780 = vld [vmem:[%s10 + $0x868] sm:$0xff]
  %v2781 = vld [vmem:[%s10 + $0x870] sm:$0xff]
  %v2782 = vld [vmem:[%s10 + $0x878] sm:$0xff]
  %v2783 = vld [vmem:[%s10 + $0x880] sm:$0xff]
  %v2784 = vld [vmem:[%s10 + $0x888] sm:$0xff]
  %v2785 = vld [vmem:[%s10 + $0x890] sm:$0xff]
  %v2786 = vld [vmem:[%s10 + $0x898] sm:$0xff]
  %v2787 = vld [vmem:[%s10 + $0x8a0] sm:$0xff]
  %v2788 = vld [vmem:[%s10 + $0x8a8] sm:$0xff]
  %v2789 = vld [vmem:[%s10 + $0x8b0] sm:$0xff]
  %v2790 = vld [vmem:[%s10 + $0x8b8] sm:$0xff]
  %v2791 = vld [vmem:[%s10 + $0x8c0] sm:$0xff]
  %v2792 = vld [vmem:[%s10 + $0x8c8] sm:$0xff]
  %v2793 = vld [vmem:[%s10 + $0x8d0] sm:$0xff]
  %v2794 = vld [vmem:[%s10 + $0x8d8] sm:$0xff]
  %v2795 = vld [vmem:[%s10 + $0x8e0] sm:$0xff]
  %v2796 = vld [vmem:[%s10 + $0x8e8] sm:$0xff]
  %v2797 = vld [vmem:[%s10 + $0x8f0] sm:$0xff]
  %v2798 = vld [vmem:[%s10 + $0x8f8] sm:$0xff]
  %v2799 = vld [vmem:[%s10 + $0x900] sm:$0xff]
  %v2800 = vld [vmem:[%s10 + $0x908] sm:$0xff]
  %v2801 = vld [vmem:[%s10 + $0x910] sm:$0xff]
  %v2802 = vld [vmem:[%s10 + $0x918] sm:$0xff]
  %v2803 = vld [vmem:[%s10 + $0x920] sm:$0xff]
  %v2804 = vld [vmem:[%s10 + $0x928] sm:$0xff]
  %v2805 = vld [vmem:[%s10 + $0x930] sm:$0xff]
  %v2806 = vld [vmem:[%s10 + $0x938] sm:$0xff]
  %v2807 = vld [vmem:[%s10 + $0x940] sm:$0xff]
  %v2808 = vld [vmem:[%s10 + $0x948] sm:$0xff]
  %v2809 = vld [vmem:[%s10 + $0x950] sm:$0xff]
  %v2810 = vld [vmem:[%s10 + $0x958] sm:$0xff]
  %v2811 = vld [vmem:[%s10 + $0x960] sm:$0xff]
  %v2812 = vld [vmem:[%s10 + $0x968] sm:$0xff]
  %v2813 = vld [vmem:[%s10 + $0x970] sm:$0xff]
  %v2814 = vld [vmem:[%s10 + $0x978] sm:$0xff]
  %v2815 = vld [vmem:[%s10 + $0x980] sm:$0xff]
  %v2816 = vld [vmem:[%s10 + $0x988] sm:$0xff]
  %v2817 = vld [vmem:[%s10 + $0x990] sm:$0xff]
  %v2818 = vld [vmem:[%s10 + $0x998] sm:$0xff]
  %v2819 = vld [vmem:[%s10 + $0x9a0] sm:$0xff]
  %v2820 = vld [vmem:[%s10 + $0x9a8] sm:$0xff]
  %v2821 = vld [vmem:[%s10 + $0x9b0] sm:$0xff]
  %v2822 = vld [vmem:[%s10 + $0x9b8] sm:$0xff]
  %v2823 = vld [vmem:[%s10 + $0x9c0] sm:$0xff]
  %v2824 = vld [vmem:[%s10 + $0x9c8] sm:$0xff]
  %v2825 = vld [vmem:[%s10 + $0x9d0] sm:$0xff]
  %v2826 = vld [vmem:[%s10 + $0x9d8] sm:$0xff]
  %v2827 = vld [vmem:[%s10 + $0x9e0] sm:$0xff]
  %v2828 = vld [vmem:[%s10 + $0x9e8] sm:$0xff]
  %v2829 = vld [vmem:[%s10 + $0x9f0] sm:$0xff]
  %v2830 = vld [vmem:[%s10 + $0x9f8] sm:$0xff]
  %v2831 = vld [vmem:[%s10 + $0xa00] sm:$0xff]
  %v2832 = vld [vmem:[%s10 + $0xa08] sm:$0xff]
  %v2833 = vld [vmem:[%s10 + $0xa10] sm:$0xff]
  %v2834 = vld [vmem:[%s10 + $0xa18] sm:$0xff]
  %v2835 = vld [vmem:[%s10 + $0xa20] sm:$0xff]
  %v2836 = vld [vmem:[%s10 + $0xa28] sm:$0xff]
  %v2837 = vld [vmem:[%s10 + $0xa30] sm:$0xff]
  %v2838 = vld [vmem:[%s10 + $0xa38] sm:$0xff]
  %v2839 = vld [vmem:[%s10 + $0xa40] sm:$0xff]
  %v2840 = vld [vmem:[%s10 + $0xa48] sm:$0xff]
  %v2841 = vld [vmem:[%s10 + $0xa50] sm:$0xff]
  %v2842 = vld [vmem:[%s10 + $0xa58] sm:$0xff]
  %v2843 = vld [vmem:[%s10 + $0xa60] sm:$0xff]
  %v2844 = vld [vmem:[%s10 + $0xa68] sm:$0xff]
  %v2845 = vld [vmem:[%s10 + $0xa70] sm:$0xff]
  %v2846 = vld [vmem:[%s10 + $0xa78] sm:$0xff]
  %v2847 = vld [vmem:[%s10 + $0xa80] sm:$0xff]
  %v2848 = vld [vmem:[%s10 + $0xa88] sm:$0xff]
  %v2849 = vld [vmem:[%s10 + $0xa90] sm:$0xff]
  %v2850 = vld [vmem:[%s10 + $0xa98] sm:$0xff]
  %v2851 = vld [vmem:[%s10 + $0xaa0] sm:$0xff]
  %v2852 = vld [vmem:[%s10 + $0xaa8] sm:$0xff]
  %v2853 = vld [vmem:[%s10 + $0xab0] sm:$0xff]
  %v2854 = vld [vmem:[%s10 + $0xab8] sm:$0xff]
  %v2855 = vld [vmem:[%s10 + $0xac0] sm:$0xff]
  %v2856 = vld [vmem:[%s10 + $0xac8] sm:$0xff]
  %v2857 = vld [vmem:[%s10 + $0xad0] sm:$0xff]
  %v2858 = vld [vmem:[%s10 + $0xad8] sm:$0xff]
  %v2859 = vld [vmem:[%s10 + $0xae0] sm:$0xff]
  %v2860 = vld [vmem:[%s10 + $0xae8] sm:$0xff]
  %v2861 = vld [vmem:[%s10 + $0xaf0] sm:$0xff]
  %v2862 = vld [vmem:[%s10 + $0xaf8] sm:$0xff]
  %v2863 = vld [vmem:[%s10 + $0xb00] sm:$0xff]
  %v2864 = vld [vmem:[%s10 + $0xb08] sm:$0xff]
  %v2865 = vld [vmem:[%s10 + $0xb10] sm:$0xff]
  %v2866 = vld [vmem:[%s10 + $0xb18] sm:$0xff]
  %v2867 = vld [vmem:[%s10 + $0xb20] sm:$0xff]
  %v2868 = vld [vmem:[%s10 + $0xb28] sm:$0xff]
  %v2869 = vld [vmem:[%s10 + $0xb30] sm:$0xff]
  %v2870 = vld [vmem:[%s10 + $0xb38] sm:$0xff]
  %v2871 = vld [vmem:[%s10 + $0xb40] sm:$0xff]
  %v2872 = vld [vmem:[%s10 + $0xb48] sm:$0xff]
  %v2873 = vld [vmem:[%s10 + $0xb50] sm:$0xff]
  %v2874 = vld [vmem:[%s10 + $0xb58] sm:$0xff]
  %v2875 = vld [vmem:[%s10 + $0xb60] sm:$0xff]
  %v2876 = vld [vmem:[%s10 + $0xb68] sm:$0xff]
  %v2877 = vld [vmem:[%s10 + $0xb70] sm:$0xff]
  %v2878 = vld [vmem:[%s10 + $0xb78] sm:$0xff]
  %v2879 = vld [vmem:[%s10 + $0xb80] sm:$0xff]
  %v2880 = vld [vmem:[%s10 + $0xb88] sm:$0xff]
  %v2881 = vld [vmem:[%s10 + $0xb90] sm:$0xff]
  %v2882 = vld [vmem:[%s10 + $0xb98] sm:$0xff]
  %v2883 = vld [vmem:[%s10 + $0xba0] sm:$0xff]
  %v2884 = vld [vmem:[%s10 + $0xba8] sm:$0xff]
  %v2885 = vld [vmem:[%s10 + $0xbb0] sm:$0xff]
  %v2886 = vld [vmem:[%s10 + $0xbb8] sm:$0xff]
  %v2887 = vld [vmem:[%s10 + $0xbc0] sm:$0xff]
  %v2888 = vld [vmem:[%s10 + $0xbc8] sm:$0xff]
  %v2889 = vld [vmem:[%s10 + $0xbd0] sm:$0xff]
  %v2890 = vld [vmem:[%s10 + $0xbd8] sm:$0xff]
  %v2891 = vld [vmem:[%s10 + $0xbe0] sm:$0xff]
  %v2892 = vld [vmem:[%s10 + $0xbe8] sm:$0xff]
  %v2893 = vld [vmem:[%s10 + $0xbf0] sm:$0xff]
  %v2894 = vld [vmem:[%s10 + $0xbf8] sm:$0xff]
  %v2895 = vld [vmem:[%s10 + $0xc00] sm:$0xff]
  %v2896 = vld [vmem:[%s10 + $0xc08] sm:$0xff]
  %v2897 = vld [vmem:[%s10 + $0xc10] sm:$0xff]
  %v2898 = vld [vmem:[%s10 + $0xc18] sm:$0xff]
  %v2899 = vld [vmem:[%s10 + $0xc20] sm:$0xff]
  %v2900 = vld [vmem:[%s10 + $0xc28] sm:$0xff]
  %v2901 = vld [vmem:[%s10 + $0xc30] sm:$0xff]
  %v2902 = vld [vmem:[%s10 + $0xc38] sm:$0xff]
  %v2903 = vld [vmem:[%s10 + $0xc40] sm:$0xff]
  %v2904 = vld [vmem:[%s10 + $0xc48] sm:$0xff]
  %v2905 = vld [vmem:[%s10 + $0xc50] sm:$0xff]
  %v2906 = vld [vmem:[%s10 + $0xc58] sm:$0xff]
  %v2907 = vld [vmem:[%s10 + $0xc60] sm:$0xff]
  %v2908 = vld [vmem:[%s10 + $0xc68] sm:$0xff]
  %v2909 = vld [vmem:[%s10 + $0xc70] sm:$0xff]
  %v2910 = vld [vmem:[%s10 + $0xc78] sm:$0xff]
  %v2911 = vld [vmem:[%s10 + $0xc80] sm:$0xff]
  %v2912 = vld [vmem:[%s10 + $0xc88] sm:$0xff]
  %v2913 = vld [vmem:[%s10 + $0xc90] sm:$0xff]
  %v2914 = vld [vmem:[%s10 + $0xc98] sm:$0xff]
  %v2915 = vld [vmem:[%s10 + $0xca0] sm:$0xff]
  %v2916 = vld [vmem:[%s10 + $0xca8] sm:$0xff]
  %v2917 = vld [vmem:[%s10 + $0xcb0] sm:$0xff]
  %v2918 = vld [vmem:[%s10 + $0xcb8] sm:$0xff]
  %v2919 = vld [vmem:[%s10 + $0xcc0] sm:$0xff]
  %v2920 = vld [vmem:[%s10 + $0xcc8] sm:$0xff]
  %v2921 = vld [vmem:[%s10 + $0xcd0] sm:$0xff]
  %v2922 = vld [vmem:[%s10 + $0xcd8] sm:$0xff]
  %v2923 = vld [vmem:[%s10 + $0xce0] sm:$0xff]
  %v2924 = vld [vmem:[%s10 + $0xce8] sm:$0xff]
  %v2925 = vld [vmem:[%s10 + $0xcf0] sm:$0xff]
  %v2926 = vld [vmem:[%s10 + $0xcf8] sm:$0xff]
  %v2927 = vld [vmem:[%s10 + $0xd00] sm:$0xff]
  %v2928 = vld [vmem:[%s10 + $0xd08] sm:$0xff]
  %v2929 = vld [vmem:[%s10 + $0xd10] sm:$0xff]
  %v2930 = vld [vmem:[%s10 + $0xd18] sm:$0xff]
  %v2931 = vld [vmem:[%s10 + $0xd20] sm:$0xff]
  %v2932 = vld [vmem:[%s10 + $0xd28] sm:$0xff]
  %v2933 = vld [vmem:[%s10 + $0xd30] sm:$0xff]
  %v2934 = vld [vmem:[%s10 + $0xd38] sm:$0xff]
  %v2935 = vld [vmem:[%s10 + $0xd40] sm:$0xff]
  %v2936 = vld [vmem:[%s10 + $0xd48] sm:$0xff]
  %v2937 = vld [vmem:[%s10 + $0xd50] sm:$0xff]
  %v2938 = vld [vmem:[%s10 + $0xd58] sm:$0xff]
  %v2939 = vld [vmem:[%s10 + $0xd60] sm:$0xff]
  %v2940 = vld [vmem:[%s10 + $0xd68] sm:$0xff]
  %v2941 = vld [vmem:[%s10 + $0xd70] sm:$0xff]
  %v2942 = vld [vmem:[%s10 + $0xd78] sm:$0xff]
  %v2943 = vld [vmem:[%s10 + $0xd80] sm:$0xff]
  %v2944 = vld [vmem:[%s10 + $0xd88] sm:$0xff]
  %v2945 = vld [vmem:[%s10 + $0xd90] sm:$0xff]
  %v2946 = vld [vmem:[%s10 + $0xd98] sm:$0xff]
  %v2947 = vld [vmem:[%s10 + $0xda0] sm:$0xff]
  %v2948 = vld [vmem:[%s10 + $0xda8] sm:$0xff]
  %v2949 = vld [vmem:[%s10 + $0xdb0] sm:$0xff]
  %v2950 = vld [vmem:[%s10 + $0xdb8] sm:$0xff]
  %v2951 = vld [vmem:[%s10 + $0xdc0] sm:$0xff]
  %v2952 = vld [vmem:[%s10 + $0xdc8] sm:$0xff]
  %v2953 = vld [vmem:[%s10 + $0xdd0] sm:$0xff]
  %v2954 = vld [vmem:[%s10 + $0xdd8] sm:$0xff]
  %v2955 = vld [vmem:[%s10 + $0xde0] sm:$0xff]
  %v2956 = vld [vmem:[%s10 + $0xde8] sm:$0xff]
  %v2957 = vld [vmem:[%s10 + $0xdf0] sm:$0xff]
  %v2958 = vld [vmem:[%s10 + $0xdf8] sm:$0xff]
  %v2959 = vld [vmem:[%s10 + $0xe00] sm:$0xff]
  %v2960 = vld [vmem:[%s10 + $0xe08] sm:$0xff]
  %v2961 = vld [vmem:[%s10 + $0xe10] sm:$0xff]
  %v2962 = vld [vmem:[%s10 + $0xe18] sm:$0xff]
  %v2963 = vld [vmem:[%s10 + $0xe20] sm:$0xff]
  %v2964 = vld [vmem:[%s10 + $0xe28] sm:$0xff]
  %v2965 = vld [vmem:[%s10 + $0xe30] sm:$0xff]
  %v2966 = vld [vmem:[%s10 + $0xe38] sm:$0xff]
  %v2967 = vld [vmem:[%s10 + $0xe40] sm:$0xff]
  %v2968 = vld [vmem:[%s10 + $0xe48] sm:$0xff]
  %v2969 = vld [vmem:[%s10 + $0xe50] sm:$0xff]
  %v2970 = vld [vmem:[%s10 + $0xe58] sm:$0xff]
  %v2971 = vld [vmem:[%s10 + $0xe60] sm:$0xff]
  %v2972 = vld [vmem:[%s10 + $0xe68] sm:$0xff]
  %v2973 = vld [vmem:[%s10 + $0xe70] sm:$0xff]
  %v2974 = vld [vmem:[%s10 + $0xe78] sm:$0xff]
  %v2975 = vld [vmem:[%s10 + $0xe80] sm:$0xff]
  %v2976 = vld [vmem:[%s10 + $0xe88] sm:$0xff]
  %v2977 = vld [vmem:[%s10 + $0xe90] sm:$0xff]
  %v2978 = vld [vmem:[%s10 + $0xe98] sm:$0xff]
  %v2979 = vld [vmem:[%s10 + $0xea0] sm:$0xff]
  %v2980 = vld [vmem:[%s10 + $0xea8] sm:$0xff]
  %v2981 = vld [vmem:[%s10 + $0xeb0] sm:$0xff]
  %v2982 = vld [vmem:[%s10 + $0xeb8] sm:$0xff]
  %v2983 = vld [vmem:[%s10 + $0xec0] sm:$0xff]
  %v2984 = vld [vmem:[%s10 + $0xec8] sm:$0xff]
  %v2985 = vld [vmem:[%s10 + $0xed0] sm:$0xff]
  %v2986 = vld [vmem:[%s10 + $0xed8] sm:$0xff]
  %v2987 = vld [vmem:[%s10 + $0xee0] sm:$0xff]
  %v2988 = vld [vmem:[%s10 + $0xee8] sm:$0xff]
  %v2989 = vld [vmem:[%s10 + $0xef0] sm:$0xff]
  %v2990 = vld [vmem:[%s10 + $0xef8] sm:$0xff]
  %v2991 = vld [vmem:[%s10 + $0xf00] sm:$0xff]
  %v2992 = vld [vmem:[%s10 + $0xf08] sm:$0xff]
  %v2993 = vld [vmem:[%s10 + $0xf10] sm:$0xff]
  %v2994 = vld [vmem:[%s10 + $0xf18] sm:$0xff]
  %v2995 = vld [vmem:[%s10 + $0xf20] sm:$0xff]
  %v2996 = vld [vmem:[%s10 + $0xf28] sm:$0xff]
  %v2997 = vld [vmem:[%s10 + $0xf30] sm:$0xff]
  %v2998 = vld [vmem:[%s10 + $0xf38] sm:$0xff]
  %v2999 = vld [vmem:[%s10 + $0xf40] sm:$0xff]
  %v3000 = vld [vmem:[%s10 + $0xf48] sm:$0xff]
  %v3001 = vld [vmem:[%s10 + $0xf50] sm:$0xff]
  %v3002 = vld [vmem:[%s10 + $0xf58] sm:$0xff]
  %v3003 = vld [vmem:[%s10 + $0xf60] sm:$0xff]
  %v3004 = vld [vmem:[%s10 + $0xf68] sm:$0xff]
  %v3005 = vld [vmem:[%s10 + $0xf70] sm:$0xff]
  %v3006 = vld [vmem:[%s10 + $0xf78] sm:$0xff]
  %v3007 = vld [vmem:[%s10 + $0xf80] sm:$0xff]
  %v3008 = vld [vmem:[%s10 + $0xf88] sm:$0xff]
  %v3009 = vld [vmem:[%s10 + $0xf90] sm:$0xff]
  %v3010 = vld [vmem:[%s10 + $0xf98] sm:$0xff]
  %v3011 = vld [vmem:[%s10 + $0xfa0] sm:$0xff]
  %v3012 = vld [vmem:[%s10 + $0xfa8] sm:$0xff]
  %v3013 = vld [vmem:[%s10 + $0xfb0] sm:$0xff]
  %v3014 = vld [vmem:[%s10 + $0xfb8] sm:$0xff]
  %v3015 = vld [vmem:[%s10 + $0xfc0] sm:$0xff]
  %v3016 = vld [vmem:[%s10 + $0xfc8] sm:$0xff]
  %v3017 = vld [vmem:[%s10 + $0xfd0] sm:$0xff]
  %v3018 = vld [vmem:[%s10 + $0xfd8] sm:$0xff]
  %v3019 = vld [vmem:[%s10 + $0xfe0] sm:$0xff]
  %v3020 = vld [vmem:[%s10 + $0xfe8] sm:$0xff]
  %v3021 = vld [vmem:[%s10 + $0xff0] sm:$0xff]
  %v3022 = vld [vmem:[%s10 + $0xff8] sm:$0xff]
  %v3535 = vunpack.c.l.b16 %v2511
  %v3536 = vunpack.c.h.b16 %v2511
  %v3537 = vunpack.c.l.b16 %v2512
  %v3538 = vunpack.c.h.b16 %v2512
  %v3539 = vunpack.c.l.b16 %v2513
  %v3540 = vunpack.c.h.b16 %v2513
  %v3541 = vunpack.c.l.b16 %v2514
  %v3542 = vunpack.c.h.b16 %v2514
  %v3543 = vunpack.c.l.b16 %v2515
  %v3544 = vunpack.c.h.b16 %v2515
  %v3545 = vunpack.c.l.b16 %v2516
  %v3546 = vunpack.c.h.b16 %v2516
  %v3547 = vunpack.c.l.b16 %v2517
  %v3548 = vunpack.c.h.b16 %v2517
  %v3549 = vunpack.c.l.b16 %v2518
  %v3550 = vunpack.c.h.b16 %v2518
  %v3551 = vunpack.c.l.b16 %v2519
  %v3552 = vunpack.c.h.b16 %v2519
  %v3553 = vunpack.c.l.b16 %v2520
  %v3554 = vunpack.c.h.b16 %v2520
  %v3555 = vunpack.c.l.b16 %v2521
  %v3556 = vunpack.c.h.b16 %v2521
  %v3557 = vunpack.c.l.b16 %v2522
  %v3558 = vunpack.c.h.b16 %v2522
  %v3559 = vunpack.c.l.b16 %v2523
  %v3560 = vunpack.c.h.b16 %v2523
  %v3561 = vunpack.c.l.b16 %v2524
  %v3562 = vunpack.c.h.b16 %v2524
  %v3563 = vunpack.c.l.b16 %v2525
  %v3564 = vunpack.c.h.b16 %v2525
  %v3565 = vunpack.c.l.b16 %v2526
  %v3566 = vunpack.c.h.b16 %v2526
  %v3567 = vunpack.c.l.b16 %v2527
  %v3568 = vunpack.c.h.b16 %v2527
  %v3569 = vunpack.c.l.b16 %v2528
  %v3570 = vunpack.c.h.b16 %v2528
  %v3571 = vunpack.c.l.b16 %v2529
  %v3572 = vunpack.c.h.b16 %v2529
  %v3573 = vunpack.c.l.b16 %v2530
  %v3574 = vunpack.c.h.b16 %v2530
  %v3575 = vunpack.c.l.b16 %v2531
  %v3576 = vunpack.c.h.b16 %v2531
  %v3577 = vunpack.c.l.b16 %v2532
  %v3578 = vunpack.c.h.b16 %v2532
  %v3579 = vunpack.c.l.b16 %v2533
  %v3580 = vunpack.c.h.b16 %v2533
  %v3581 = vunpack.c.l.b16 %v2534
  %v3582 = vunpack.c.h.b16 %v2534
  %v3583 = vunpack.c.l.b16 %v2535
  %v3584 = vunpack.c.h.b16 %v2535
  %v3585 = vunpack.c.l.b16 %v2536
  %v3586 = vunpack.c.h.b16 %v2536
  %v3587 = vunpack.c.l.b16 %v2537
  %v3588 = vunpack.c.h.b16 %v2537
  %v3589 = vunpack.c.l.b16 %v2538
  %v3590 = vunpack.c.h.b16 %v2538
  %v3591 = vunpack.c.l.b16 %v2539
  %v3592 = vunpack.c.h.b16 %v2539
  %v3593 = vunpack.c.l.b16 %v2540
  %v3594 = vunpack.c.h.b16 %v2540
  %v3595 = vunpack.c.l.b16 %v2541
  %v3596 = vunpack.c.h.b16 %v2541
  %v3597 = vunpack.c.l.b16 %v2542
  %v3598 = vunpack.c.h.b16 %v2542
  %v3599 = vunpack.c.l.b16 %v2543
  %v3600 = vunpack.c.h.b16 %v2543
  %v3601 = vunpack.c.l.b16 %v2544
  %v3602 = vunpack.c.h.b16 %v2544
  %v3603 = vunpack.c.l.b16 %v2545
  %v3604 = vunpack.c.h.b16 %v2545
  %v3605 = vunpack.c.l.b16 %v2546
  %v3606 = vunpack.c.h.b16 %v2546
  %v3607 = vunpack.c.l.b16 %v2547
  %v3608 = vunpack.c.h.b16 %v2547
  %v3609 = vunpack.c.l.b16 %v2548
  %v3610 = vunpack.c.h.b16 %v2548
  %v3611 = vunpack.c.l.b16 %v2549
  %v3612 = vunpack.c.h.b16 %v2549
  %v3613 = vunpack.c.l.b16 %v2550
  %v3614 = vunpack.c.h.b16 %v2550
  %v3615 = vunpack.c.l.b16 %v2551
  %v3616 = vunpack.c.h.b16 %v2551
  %v3617 = vunpack.c.l.b16 %v2552
  %v3618 = vunpack.c.h.b16 %v2552
  %v3619 = vunpack.c.l.b16 %v2553
  %v3620 = vunpack.c.h.b16 %v2553
  %v3621 = vunpack.c.l.b16 %v2554
  %v3622 = vunpack.c.h.b16 %v2554
  %v3623 = vunpack.c.l.b16 %v2555
  %v3624 = vunpack.c.h.b16 %v2555
  %v3625 = vunpack.c.l.b16 %v2556
  %v3626 = vunpack.c.h.b16 %v2556
  %v3627 = vunpack.c.l.b16 %v2557
  %v3628 = vunpack.c.h.b16 %v2557
  %v3629 = vunpack.c.l.b16 %v2558
  %v3630 = vunpack.c.h.b16 %v2558
  %v3631 = vunpack.c.l.b16 %v2559
  %v3632 = vunpack.c.h.b16 %v2559
  %v3633 = vunpack.c.l.b16 %v2560
  %v3634 = vunpack.c.h.b16 %v2560
  %v3635 = vunpack.c.l.b16 %v2561
  %v3636 = vunpack.c.h.b16 %v2561
  %v3637 = vunpack.c.l.b16 %v2562
  %v3638 = vunpack.c.h.b16 %v2562
  %v3639 = vunpack.c.l.b16 %v2563
  %v3640 = vunpack.c.h.b16 %v2563
  %v3641 = vunpack.c.l.b16 %v2564
  %v3642 = vunpack.c.h.b16 %v2564
  %v3643 = vunpack.c.l.b16 %v2565
  %v3644 = vunpack.c.h.b16 %v2565
  %v3645 = vunpack.c.l.b16 %v2566
  %v3646 = vunpack.c.h.b16 %v2566
  %v3647 = vunpack.c.l.b16 %v2567
  %v3648 = vunpack.c.h.b16 %v2567
  %v3649 = vunpack.c.l.b16 %v2568
  %v3650 = vunpack.c.h.b16 %v2568
  %v3651 = vunpack.c.l.b16 %v2569
  %v3652 = vunpack.c.h.b16 %v2569
  %v3653 = vunpack.c.l.b16 %v2570
  %v3654 = vunpack.c.h.b16 %v2570
  %v3655 = vunpack.c.l.b16 %v2571
  %v3656 = vunpack.c.h.b16 %v2571
  %v3657 = vunpack.c.l.b16 %v2572
  %v3658 = vunpack.c.h.b16 %v2572
  %v3659 = vunpack.c.l.b16 %v2573
  %v3660 = vunpack.c.h.b16 %v2573
  %v3661 = vunpack.c.l.b16 %v2574
  %v3662 = vunpack.c.h.b16 %v2574
  %v3663 = vunpack.c.l.b16 %v2575
  %v3664 = vunpack.c.h.b16 %v2575
  %v3665 = vunpack.c.l.b16 %v2576
  %v3666 = vunpack.c.h.b16 %v2576
  %v3667 = vunpack.c.l.b16 %v2577
  %v3668 = vunpack.c.h.b16 %v2577
  %v3669 = vunpack.c.l.b16 %v2578
  %v3670 = vunpack.c.h.b16 %v2578
  %v3671 = vunpack.c.l.b16 %v2579
  %v3672 = vunpack.c.h.b16 %v2579
  %v3673 = vunpack.c.l.b16 %v2580
  %v3674 = vunpack.c.h.b16 %v2580
  %v3675 = vunpack.c.l.b16 %v2581
  %v3676 = vunpack.c.h.b16 %v2581
  %v3677 = vunpack.c.l.b16 %v2582
  %v3678 = vunpack.c.h.b16 %v2582
  %v3679 = vunpack.c.l.b16 %v2583
  %v3680 = vunpack.c.h.b16 %v2583
  %v3681 = vunpack.c.l.b16 %v2584
  %v3682 = vunpack.c.h.b16 %v2584
  %v3683 = vunpack.c.l.b16 %v2585
  %v3684 = vunpack.c.h.b16 %v2585
  %v3685 = vunpack.c.l.b16 %v2586
  %v3686 = vunpack.c.h.b16 %v2586
  %v3687 = vunpack.c.l.b16 %v2587
  %v3688 = vunpack.c.h.b16 %v2587
  %v3689 = vunpack.c.l.b16 %v2588
  %v3690 = vunpack.c.h.b16 %v2588
  %v3691 = vunpack.c.l.b16 %v2589
  %v3692 = vunpack.c.h.b16 %v2589
  %v3693 = vunpack.c.l.b16 %v2590
  %v3694 = vunpack.c.h.b16 %v2590
  %v3695 = vunpack.c.l.b16 %v2591
  %v3696 = vunpack.c.h.b16 %v2591
  %v3697 = vunpack.c.l.b16 %v2592
  %v3698 = vunpack.c.h.b16 %v2592
  %v3699 = vunpack.c.l.b16 %v2593
  %v3700 = vunpack.c.h.b16 %v2593
  %v3701 = vunpack.c.l.b16 %v2594
  %v3702 = vunpack.c.h.b16 %v2594
  %v3703 = vunpack.c.l.b16 %v2595
  %v3704 = vunpack.c.h.b16 %v2595
  %v3705 = vunpack.c.l.b16 %v2596
  %v3706 = vunpack.c.h.b16 %v2596
  %v3707 = vunpack.c.l.b16 %v2597
  %v3708 = vunpack.c.h.b16 %v2597
  %v3709 = vunpack.c.l.b16 %v2598
  %v3710 = vunpack.c.h.b16 %v2598
  %v3711 = vunpack.c.l.b16 %v2599
  %v3712 = vunpack.c.h.b16 %v2599
  %v3713 = vunpack.c.l.b16 %v2600
  %v3714 = vunpack.c.h.b16 %v2600
  %v3715 = vunpack.c.l.b16 %v2601
  %v3716 = vunpack.c.h.b16 %v2601
  %v3717 = vunpack.c.l.b16 %v2602
  %v3718 = vunpack.c.h.b16 %v2602
  %v3719 = vunpack.c.l.b16 %v2603
  %v3720 = vunpack.c.h.b16 %v2603
  %v3721 = vunpack.c.l.b16 %v2604
  %v3722 = vunpack.c.h.b16 %v2604
  %v3723 = vunpack.c.l.b16 %v2605
  %v3724 = vunpack.c.h.b16 %v2605
  %v3725 = vunpack.c.l.b16 %v2606
  %v3726 = vunpack.c.h.b16 %v2606
  %v3727 = vunpack.c.l.b16 %v2607
  %v3728 = vunpack.c.h.b16 %v2607
  %v3729 = vunpack.c.l.b16 %v2608
  %v3730 = vunpack.c.h.b16 %v2608
  %v3731 = vunpack.c.l.b16 %v2609
  %v3732 = vunpack.c.h.b16 %v2609
  %v3733 = vunpack.c.l.b16 %v2610
  %v3734 = vunpack.c.h.b16 %v2610
  %v3735 = vunpack.c.l.b16 %v2611
  %v3736 = vunpack.c.h.b16 %v2611
  %v3737 = vunpack.c.l.b16 %v2612
  %v3738 = vunpack.c.h.b16 %v2612
  %v3739 = vunpack.c.l.b16 %v2613
  %v3740 = vunpack.c.h.b16 %v2613
  %v3741 = vunpack.c.l.b16 %v2614
  %v3742 = vunpack.c.h.b16 %v2614
  %v3743 = vunpack.c.l.b16 %v2615
  %v3744 = vunpack.c.h.b16 %v2615
  %v3745 = vunpack.c.l.b16 %v2616
  %v3746 = vunpack.c.h.b16 %v2616
  %v3747 = vunpack.c.l.b16 %v2617
  %v3748 = vunpack.c.h.b16 %v2617
  %v3749 = vunpack.c.l.b16 %v2618
  %v3750 = vunpack.c.h.b16 %v2618
  %v3751 = vunpack.c.l.b16 %v2619
  %v3752 = vunpack.c.h.b16 %v2619
  %v3753 = vunpack.c.l.b16 %v2620
  %v3754 = vunpack.c.h.b16 %v2620
  %v3755 = vunpack.c.l.b16 %v2621
  %v3756 = vunpack.c.h.b16 %v2621
  %v3757 = vunpack.c.l.b16 %v2622
  %v3758 = vunpack.c.h.b16 %v2622
  %v3759 = vunpack.c.l.b16 %v2623
  %v3760 = vunpack.c.h.b16 %v2623
  %v3761 = vunpack.c.l.b16 %v2624
  %v3762 = vunpack.c.h.b16 %v2624
  %v3763 = vunpack.c.l.b16 %v2625
  %v3764 = vunpack.c.h.b16 %v2625
  %v3765 = vunpack.c.l.b16 %v2626
  %v3766 = vunpack.c.h.b16 %v2626
  %v3767 = vunpack.c.l.b16 %v2627
  %v3768 = vunpack.c.h.b16 %v2627
  %v3769 = vunpack.c.l.b16 %v2628
  %v3770 = vunpack.c.h.b16 %v2628
  %v3771 = vunpack.c.l.b16 %v2629
  %v3772 = vunpack.c.h.b16 %v2629
  %v3773 = vunpack.c.l.b16 %v2630
  %v3774 = vunpack.c.h.b16 %v2630
  %v3775 = vunpack.c.l.b16 %v2631
  %v3776 = vunpack.c.h.b16 %v2631
  %v3777 = vunpack.c.l.b16 %v2632
  %v3778 = vunpack.c.h.b16 %v2632
  %v3779 = vunpack.c.l.b16 %v2633
  %v3780 = vunpack.c.h.b16 %v2633
  %v3781 = vunpack.c.l.b16 %v2634
  %v3782 = vunpack.c.h.b16 %v2634
  %v3783 = vunpack.c.l.b16 %v2635
  %v3784 = vunpack.c.h.b16 %v2635
  %v3785 = vunpack.c.l.b16 %v2636
  %v3786 = vunpack.c.h.b16 %v2636
  %v3787 = vunpack.c.l.b16 %v2637
  %v3788 = vunpack.c.h.b16 %v2637
  %v3789 = vunpack.c.l.b16 %v2638
  %v3790 = vunpack.c.h.b16 %v2638
  %v3791 = vunpack.c.l.b16 %v2639
  %v3792 = vunpack.c.h.b16 %v2639
  %v3793 = vunpack.c.l.b16 %v2640
  %v3794 = vunpack.c.h.b16 %v2640
  %v3795 = vunpack.c.l.b16 %v2641
  %v3796 = vunpack.c.h.b16 %v2641
  %v3797 = vunpack.c.l.b16 %v2642
  %v3798 = vunpack.c.h.b16 %v2642
  %v3799 = vunpack.c.l.b16 %v2643
  %v3800 = vunpack.c.h.b16 %v2643
  %v3801 = vunpack.c.l.b16 %v2644
  %v3802 = vunpack.c.h.b16 %v2644
  %v3803 = vunpack.c.l.b16 %v2645
  %v3804 = vunpack.c.h.b16 %v2645
  %v3805 = vunpack.c.l.b16 %v2646
  %v3806 = vunpack.c.h.b16 %v2646
  %v3807 = vunpack.c.l.b16 %v2647
  %v3808 = vunpack.c.h.b16 %v2647
  %v3809 = vunpack.c.l.b16 %v2648
  %v3810 = vunpack.c.h.b16 %v2648
  %v3811 = vunpack.c.l.b16 %v2649
  %v3812 = vunpack.c.h.b16 %v2649
  %v3813 = vunpack.c.l.b16 %v2650
  %v3814 = vunpack.c.h.b16 %v2650
  %v3815 = vunpack.c.l.b16 %v2651
  %v3816 = vunpack.c.h.b16 %v2651
  %v3817 = vunpack.c.l.b16 %v2652
  %v3818 = vunpack.c.h.b16 %v2652
  %v3819 = vunpack.c.l.b16 %v2653
  %v3820 = vunpack.c.h.b16 %v2653
  %v3821 = vunpack.c.l.b16 %v2654
  %v3822 = vunpack.c.h.b16 %v2654
  %v3823 = vunpack.c.l.b16 %v2655
  %v3824 = vunpack.c.h.b16 %v2655
  %v3825 = vunpack.c.l.b16 %v2656
  %v3826 = vunpack.c.h.b16 %v2656
  %v3827 = vunpack.c.l.b16 %v2657
  %v3828 = vunpack.c.h.b16 %v2657
  %v3829 = vunpack.c.l.b16 %v2658
  %v3830 = vunpack.c.h.b16 %v2658
  %v3831 = vunpack.c.l.b16 %v2659
  %v3832 = vunpack.c.h.b16 %v2659
  %v3833 = vunpack.c.l.b16 %v2660
  %v3834 = vunpack.c.h.b16 %v2660
  %v3835 = vunpack.c.l.b16 %v2661
  %v3836 = vunpack.c.h.b16 %v2661
  %v3837 = vunpack.c.l.b16 %v2662
  %v3838 = vunpack.c.h.b16 %v2662
  %v3839 = vunpack.c.l.b16 %v2663
  %v3840 = vunpack.c.h.b16 %v2663
  %v3841 = vunpack.c.l.b16 %v2664
  %v3842 = vunpack.c.h.b16 %v2664
  %v3843 = vunpack.c.l.b16 %v2665
  %v3844 = vunpack.c.h.b16 %v2665
  %v3845 = vunpack.c.l.b16 %v2666
  %v3846 = vunpack.c.h.b16 %v2666
  %v3847 = vunpack.c.l.b16 %v2667
  %v3848 = vunpack.c.h.b16 %v2667
  %v3849 = vunpack.c.l.b16 %v2668
  %v3850 = vunpack.c.h.b16 %v2668
  %v3851 = vunpack.c.l.b16 %v2669
  %v3852 = vunpack.c.h.b16 %v2669
  %v3853 = vunpack.c.l.b16 %v2670
  %v3854 = vunpack.c.h.b16 %v2670
  %v3855 = vunpack.c.l.b16 %v2671
  %v3856 = vunpack.c.h.b16 %v2671
  %v3857 = vunpack.c.l.b16 %v2672
  %v3858 = vunpack.c.h.b16 %v2672
  %v3859 = vunpack.c.l.b16 %v2673
  %v3860 = vunpack.c.h.b16 %v2673
  %v3861 = vunpack.c.l.b16 %v2674
  %v3862 = vunpack.c.h.b16 %v2674
  %v3863 = vunpack.c.l.b16 %v2675
  %v3864 = vunpack.c.h.b16 %v2675
  %v3865 = vunpack.c.l.b16 %v2676
  %v3866 = vunpack.c.h.b16 %v2676
  %v3867 = vunpack.c.l.b16 %v2677
  %v3868 = vunpack.c.h.b16 %v2677
  %v3869 = vunpack.c.l.b16 %v2678
  %v3870 = vunpack.c.h.b16 %v2678
  %v3871 = vunpack.c.l.b16 %v2679
  %v3872 = vunpack.c.h.b16 %v2679
  %v3873 = vunpack.c.l.b16 %v2680
  %v3874 = vunpack.c.h.b16 %v2680
  %v3875 = vunpack.c.l.b16 %v2681
  %v3876 = vunpack.c.h.b16 %v2681
  %v3877 = vunpack.c.l.b16 %v2682
  %v3878 = vunpack.c.h.b16 %v2682
  %v3879 = vunpack.c.l.b16 %v2683
  %v3880 = vunpack.c.h.b16 %v2683
  %v3881 = vunpack.c.l.b16 %v2684
  %v3882 = vunpack.c.h.b16 %v2684
  %v3883 = vunpack.c.l.b16 %v2685
  %v3884 = vunpack.c.h.b16 %v2685
  %v3885 = vunpack.c.l.b16 %v2686
  %v3886 = vunpack.c.h.b16 %v2686
  %v3887 = vunpack.c.l.b16 %v2687
  %v3888 = vunpack.c.h.b16 %v2687
  %v3889 = vunpack.c.l.b16 %v2688
  %v3890 = vunpack.c.h.b16 %v2688
  %v3891 = vunpack.c.l.b16 %v2689
  %v3892 = vunpack.c.h.b16 %v2689
  %v3893 = vunpack.c.l.b16 %v2690
  %v3894 = vunpack.c.h.b16 %v2690
  %v3895 = vunpack.c.l.b16 %v2691
  %v3896 = vunpack.c.h.b16 %v2691
  %v3897 = vunpack.c.l.b16 %v2692
  %v3898 = vunpack.c.h.b16 %v2692
  %v3899 = vunpack.c.l.b16 %v2693
  %v3900 = vunpack.c.h.b16 %v2693
  %v3901 = vunpack.c.l.b16 %v2694
  %v3902 = vunpack.c.h.b16 %v2694
  %v3903 = vunpack.c.l.b16 %v2695
  %v3904 = vunpack.c.h.b16 %v2695
  %v3905 = vunpack.c.l.b16 %v2696
  %v3906 = vunpack.c.h.b16 %v2696
  %v3907 = vunpack.c.l.b16 %v2697
  %v3908 = vunpack.c.h.b16 %v2697
  %v3909 = vunpack.c.l.b16 %v2698
  %v3910 = vunpack.c.h.b16 %v2698
  %v3911 = vunpack.c.l.b16 %v2699
  %v3912 = vunpack.c.h.b16 %v2699
  %v3913 = vunpack.c.l.b16 %v2700
  %v3914 = vunpack.c.h.b16 %v2700
  %v3915 = vunpack.c.l.b16 %v2701
  %v3916 = vunpack.c.h.b16 %v2701
  %v3917 = vunpack.c.l.b16 %v2702
  %v3918 = vunpack.c.h.b16 %v2702
  %v3919 = vunpack.c.l.b16 %v2703
  %v3920 = vunpack.c.h.b16 %v2703
  %v3921 = vunpack.c.l.b16 %v2704
  %v3922 = vunpack.c.h.b16 %v2704
  %v3923 = vunpack.c.l.b16 %v2705
  %v3924 = vunpack.c.h.b16 %v2705
  %v3925 = vunpack.c.l.b16 %v2706
  %v3926 = vunpack.c.h.b16 %v2706
  %v3927 = vunpack.c.l.b16 %v2707
  %v3928 = vunpack.c.h.b16 %v2707
  %v3929 = vunpack.c.l.b16 %v2708
  %v3930 = vunpack.c.h.b16 %v2708
  %v3931 = vunpack.c.l.b16 %v2709
  %v3932 = vunpack.c.h.b16 %v2709
  %v3933 = vunpack.c.l.b16 %v2710
  %v3934 = vunpack.c.h.b16 %v2710
  %v3935 = vunpack.c.l.b16 %v2711
  %v3936 = vunpack.c.h.b16 %v2711
  %v3937 = vunpack.c.l.b16 %v2712
  %v3938 = vunpack.c.h.b16 %v2712
  %v3939 = vunpack.c.l.b16 %v2713
  %v3940 = vunpack.c.h.b16 %v2713
  %v3941 = vunpack.c.l.b16 %v2714
  %v3942 = vunpack.c.h.b16 %v2714
  %v3943 = vunpack.c.l.b16 %v2715
  %v3944 = vunpack.c.h.b16 %v2715
  %v3945 = vunpack.c.l.b16 %v2716
  %v3946 = vunpack.c.h.b16 %v2716
  %v3947 = vunpack.c.l.b16 %v2717
  %v3948 = vunpack.c.h.b16 %v2717
  %v3949 = vunpack.c.l.b16 %v2718
  %v3950 = vunpack.c.h.b16 %v2718
  %v3951 = vunpack.c.l.b16 %v2719
  %v3952 = vunpack.c.h.b16 %v2719
  %v3953 = vunpack.c.l.b16 %v2720
  %v3954 = vunpack.c.h.b16 %v2720
  %v3955 = vunpack.c.l.b16 %v2721
  %v3956 = vunpack.c.h.b16 %v2721
  %v3957 = vunpack.c.l.b16 %v2722
  %v3958 = vunpack.c.h.b16 %v2722
  %v3959 = vunpack.c.l.b16 %v2723
  %v3960 = vunpack.c.h.b16 %v2723
  %v3961 = vunpack.c.l.b16 %v2724
  %v3962 = vunpack.c.h.b16 %v2724
  %v3963 = vunpack.c.l.b16 %v2725
  %v3964 = vunpack.c.h.b16 %v2725
  %v3965 = vunpack.c.l.b16 %v2726
  %v3966 = vunpack.c.h.b16 %v2726
  %v3967 = vunpack.c.l.b16 %v2727
  %v3968 = vunpack.c.h.b16 %v2727
  %v3969 = vunpack.c.l.b16 %v2728
  %v3970 = vunpack.c.h.b16 %v2728
  %v3971 = vunpack.c.l.b16 %v2729
  %v3972 = vunpack.c.h.b16 %v2729
  %v3973 = vunpack.c.l.b16 %v2730
  %v3974 = vunpack.c.h.b16 %v2730
  %v3975 = vunpack.c.l.b16 %v2731
  %v3976 = vunpack.c.h.b16 %v2731
  %v3977 = vunpack.c.l.b16 %v2732
  %v3978 = vunpack.c.h.b16 %v2732
  %v3979 = vunpack.c.l.b16 %v2733
  %v3980 = vunpack.c.h.b16 %v2733
  %v3981 = vunpack.c.l.b16 %v2734
  %v3982 = vunpack.c.h.b16 %v2734
  %v3983 = vunpack.c.l.b16 %v2735
  %v3984 = vunpack.c.h.b16 %v2735
  %v3985 = vunpack.c.l.b16 %v2736
  %v3986 = vunpack.c.h.b16 %v2736
  %v3987 = vunpack.c.l.b16 %v2737
  %v3988 = vunpack.c.h.b16 %v2737
  %v3989 = vunpack.c.l.b16 %v2738
  %v3990 = vunpack.c.h.b16 %v2738
  %v3991 = vunpack.c.l.b16 %v2739
  %v3992 = vunpack.c.h.b16 %v2739
  %v3993 = vunpack.c.l.b16 %v2740
  %v3994 = vunpack.c.h.b16 %v2740
  %v3995 = vunpack.c.l.b16 %v2741
  %v3996 = vunpack.c.h.b16 %v2741
  %v3997 = vunpack.c.l.b16 %v2742
  %v3998 = vunpack.c.h.b16 %v2742
  %v3999 = vunpack.c.l.b16 %v2743
  %v4000 = vunpack.c.h.b16 %v2743
  %v4001 = vunpack.c.l.b16 %v2744
  %v4002 = vunpack.c.h.b16 %v2744
  %v4003 = vunpack.c.l.b16 %v2745
  %v4004 = vunpack.c.h.b16 %v2745
  %v4005 = vunpack.c.l.b16 %v2746
  %v4006 = vunpack.c.h.b16 %v2746
  %v4007 = vunpack.c.l.b16 %v2747
  %v4008 = vunpack.c.h.b16 %v2747
  %v4009 = vunpack.c.l.b16 %v2748
  %v4010 = vunpack.c.h.b16 %v2748
  %v4011 = vunpack.c.l.b16 %v2749
  %v4012 = vunpack.c.h.b16 %v2749
  %v4013 = vunpack.c.l.b16 %v2750
  %v4014 = vunpack.c.h.b16 %v2750
  %v4015 = vunpack.c.l.b16 %v2751
  %v4016 = vunpack.c.h.b16 %v2751
  %v4017 = vunpack.c.l.b16 %v2752
  %v4018 = vunpack.c.h.b16 %v2752
  %v4019 = vunpack.c.l.b16 %v2753
  %v4020 = vunpack.c.h.b16 %v2753
  %v4021 = vunpack.c.l.b16 %v2754
  %v4022 = vunpack.c.h.b16 %v2754
  %v4023 = vunpack.c.l.b16 %v2755
  %v4024 = vunpack.c.h.b16 %v2755
  %v4025 = vunpack.c.l.b16 %v2756
  %v4026 = vunpack.c.h.b16 %v2756
  %v4027 = vunpack.c.l.b16 %v2757
  %v4028 = vunpack.c.h.b16 %v2757
  %v4029 = vunpack.c.l.b16 %v2758
  %v4030 = vunpack.c.h.b16 %v2758
  %v4031 = vunpack.c.l.b16 %v2759
  %v4032 = vunpack.c.h.b16 %v2759
  %v4033 = vunpack.c.l.b16 %v2760
  %v4034 = vunpack.c.h.b16 %v2760
  %v4035 = vunpack.c.l.b16 %v2761
  %v4036 = vunpack.c.h.b16 %v2761
  %v4037 = vunpack.c.l.b16 %v2762
  %v4038 = vunpack.c.h.b16 %v2762
  %v4039 = vunpack.c.l.b16 %v2763
  %v4040 = vunpack.c.h.b16 %v2763
  %v4041 = vunpack.c.l.b16 %v2764
  %v4042 = vunpack.c.h.b16 %v2764
  %v4043 = vunpack.c.l.b16 %v2765
  %v4044 = vunpack.c.h.b16 %v2765
  %v4045 = vunpack.c.l.b16 %v2766
  %v4046 = vunpack.c.h.b16 %v2766
  %v4047 = vunpack.c.l.b16 %v2767
  %v4048 = vunpack.c.h.b16 %v2767
  %v4049 = vunpack.c.l.b16 %v2768
  %v4050 = vunpack.c.h.b16 %v2768
  %v4051 = vunpack.c.l.b16 %v2769
  %v4052 = vunpack.c.h.b16 %v2769
  %v4053 = vunpack.c.l.b16 %v2770
  %v4054 = vunpack.c.h.b16 %v2770
  %v4055 = vunpack.c.l.b16 %v2771
  %v4056 = vunpack.c.h.b16 %v2771
  %v4057 = vunpack.c.l.b16 %v2772
  %v4058 = vunpack.c.h.b16 %v2772
  %v4059 = vunpack.c.l.b16 %v2773
  %v4060 = vunpack.c.h.b16 %v2773
  %v4061 = vunpack.c.l.b16 %v2774
  %v4062 = vunpack.c.h.b16 %v2774
  %v4063 = vunpack.c.l.b16 %v2775
  %v4064 = vunpack.c.h.b16 %v2775
  %v4065 = vunpack.c.l.b16 %v2776
  %v4066 = vunpack.c.h.b16 %v2776
  %v4067 = vunpack.c.l.b16 %v2777
  %v4068 = vunpack.c.h.b16 %v2777
  %v4069 = vunpack.c.l.b16 %v2778
  %v4070 = vunpack.c.h.b16 %v2778
  %v4071 = vunpack.c.l.b16 %v2779
  %v4072 = vunpack.c.h.b16 %v2779
  %v4073 = vunpack.c.l.b16 %v2780
  %v4074 = vunpack.c.h.b16 %v2780
  %v4075 = vunpack.c.l.b16 %v2781
  %v4076 = vunpack.c.h.b16 %v2781
  %v4077 = vunpack.c.l.b16 %v2782
  %v4078 = vunpack.c.h.b16 %v2782
  %v4079 = vunpack.c.l.b16 %v2783
  %v4080 = vunpack.c.h.b16 %v2783
  %v4081 = vunpack.c.l.b16 %v2784
  %v4082 = vunpack.c.h.b16 %v2784
  %v4083 = vunpack.c.l.b16 %v2785
  %v4084 = vunpack.c.h.b16 %v2785
  %v4085 = vunpack.c.l.b16 %v2786
  %v4086 = vunpack.c.h.b16 %v2786
  %v4087 = vunpack.c.l.b16 %v2787
  %v4088 = vunpack.c.h.b16 %v2787
  %v4089 = vunpack.c.l.b16 %v2788
  %v4090 = vunpack.c.h.b16 %v2788
  %v4091 = vunpack.c.l.b16 %v2789
  %v4092 = vunpack.c.h.b16 %v2789
  %v4093 = vunpack.c.l.b16 %v2790
  %v4094 = vunpack.c.h.b16 %v2790
  %v4095 = vunpack.c.l.b16 %v2791
  %v4096 = vunpack.c.h.b16 %v2791
  %v4097 = vunpack.c.l.b16 %v2792
  %v4098 = vunpack.c.h.b16 %v2792
  %v4099 = vunpack.c.l.b16 %v2793
  %v4100 = vunpack.c.h.b16 %v2793
  %v4101 = vunpack.c.l.b16 %v2794
  %v4102 = vunpack.c.h.b16 %v2794
  %v4103 = vunpack.c.l.b16 %v2795
  %v4104 = vunpack.c.h.b16 %v2795
  %v4105 = vunpack.c.l.b16 %v2796
  %v4106 = vunpack.c.h.b16 %v2796
  %v4107 = vunpack.c.l.b16 %v2797
  %v4108 = vunpack.c.h.b16 %v2797
  %v4109 = vunpack.c.l.b16 %v2798
  %v4110 = vunpack.c.h.b16 %v2798
  %v4111 = vunpack.c.l.b16 %v2799
  %v4112 = vunpack.c.h.b16 %v2799
  %v4113 = vunpack.c.l.b16 %v2800
  %v4114 = vunpack.c.h.b16 %v2800
  %v4115 = vunpack.c.l.b16 %v2801
  %v4116 = vunpack.c.h.b16 %v2801
  %v4117 = vunpack.c.l.b16 %v2802
  %v4118 = vunpack.c.h.b16 %v2802
  %v4119 = vunpack.c.l.b16 %v2803
  %v4120 = vunpack.c.h.b16 %v2803
  %v4121 = vunpack.c.l.b16 %v2804
  %v4122 = vunpack.c.h.b16 %v2804
  %v4123 = vunpack.c.l.b16 %v2805
  %v4124 = vunpack.c.h.b16 %v2805
  %v4125 = vunpack.c.l.b16 %v2806
  %v4126 = vunpack.c.h.b16 %v2806
  %v4127 = vunpack.c.l.b16 %v2807
  %v4128 = vunpack.c.h.b16 %v2807
  %v4129 = vunpack.c.l.b16 %v2808
  %v4130 = vunpack.c.h.b16 %v2808
  %v4131 = vunpack.c.l.b16 %v2809
  %v4132 = vunpack.c.h.b16 %v2809
  %v4133 = vunpack.c.l.b16 %v2810
  %v4134 = vunpack.c.h.b16 %v2810
  %v4135 = vunpack.c.l.b16 %v2811
  %v4136 = vunpack.c.h.b16 %v2811
  %v4137 = vunpack.c.l.b16 %v2812
  %v4138 = vunpack.c.h.b16 %v2812
  %v4139 = vunpack.c.l.b16 %v2813
  %v4140 = vunpack.c.h.b16 %v2813
  %v4141 = vunpack.c.l.b16 %v2814
  %v4142 = vunpack.c.h.b16 %v2814
  %v4143 = vunpack.c.l.b16 %v2815
  %v4144 = vunpack.c.h.b16 %v2815
  %v4145 = vunpack.c.l.b16 %v2816
  %v4146 = vunpack.c.h.b16 %v2816
  %v4147 = vunpack.c.l.b16 %v2817
  %v4148 = vunpack.c.h.b16 %v2817
  %v4149 = vunpack.c.l.b16 %v2818
  %v4150 = vunpack.c.h.b16 %v2818
  %v4151 = vunpack.c.l.b16 %v2819
  %v4152 = vunpack.c.h.b16 %v2819
  %v4153 = vunpack.c.l.b16 %v2820
  %v4154 = vunpack.c.h.b16 %v2820
  %v4155 = vunpack.c.l.b16 %v2821
  %v4156 = vunpack.c.h.b16 %v2821
  %v4157 = vunpack.c.l.b16 %v2822
  %v4158 = vunpack.c.h.b16 %v2822
  %v4159 = vunpack.c.l.b16 %v2823
  %v4160 = vunpack.c.h.b16 %v2823
  %v4161 = vunpack.c.l.b16 %v2824
  %v4162 = vunpack.c.h.b16 %v2824
  %v4163 = vunpack.c.l.b16 %v2825
  %v4164 = vunpack.c.h.b16 %v2825
  %v4165 = vunpack.c.l.b16 %v2826
  %v4166 = vunpack.c.h.b16 %v2826
  %v4167 = vunpack.c.l.b16 %v2827
  %v4168 = vunpack.c.h.b16 %v2827
  %v4169 = vunpack.c.l.b16 %v2828
  %v4170 = vunpack.c.h.b16 %v2828
  %v4171 = vunpack.c.l.b16 %v2829
  %v4172 = vunpack.c.h.b16 %v2829
  %v4173 = vunpack.c.l.b16 %v2830
  %v4174 = vunpack.c.h.b16 %v2830
  %v4175 = vunpack.c.l.b16 %v2831
  %v4176 = vunpack.c.h.b16 %v2831
  %v4177 = vunpack.c.l.b16 %v2832
  %v4178 = vunpack.c.h.b16 %v2832
  %v4179 = vunpack.c.l.b16 %v2833
  %v4180 = vunpack.c.h.b16 %v2833
  %v4181 = vunpack.c.l.b16 %v2834
  %v4182 = vunpack.c.h.b16 %v2834
  %v4183 = vunpack.c.l.b16 %v2835
  %v4184 = vunpack.c.h.b16 %v2835
  %v4185 = vunpack.c.l.b16 %v2836
  %v4186 = vunpack.c.h.b16 %v2836
  %v4187 = vunpack.c.l.b16 %v2837
  %v4188 = vunpack.c.h.b16 %v2837
  %v4189 = vunpack.c.l.b16 %v2838
  %v4190 = vunpack.c.h.b16 %v2838
  %v4191 = vunpack.c.l.b16 %v2839
  %v4192 = vunpack.c.h.b16 %v2839
  %v4193 = vunpack.c.l.b16 %v2840
  %v4194 = vunpack.c.h.b16 %v2840
  %v4195 = vunpack.c.l.b16 %v2841
  %v4196 = vunpack.c.h.b16 %v2841
  %v4197 = vunpack.c.l.b16 %v2842
  %v4198 = vunpack.c.h.b16 %v2842
  %v4199 = vunpack.c.l.b16 %v2843
  %v4200 = vunpack.c.h.b16 %v2843
  %v4201 = vunpack.c.l.b16 %v2844
  %v4202 = vunpack.c.h.b16 %v2844
  %v4203 = vunpack.c.l.b16 %v2845
  %v4204 = vunpack.c.h.b16 %v2845
  %v4205 = vunpack.c.l.b16 %v2846
  %v4206 = vunpack.c.h.b16 %v2846
  %v4207 = vunpack.c.l.b16 %v2847
  %v4208 = vunpack.c.h.b16 %v2847
  %v4209 = vunpack.c.l.b16 %v2848
  %v4210 = vunpack.c.h.b16 %v2848
  %v4211 = vunpack.c.l.b16 %v2849
  %v4212 = vunpack.c.h.b16 %v2849
  %v4213 = vunpack.c.l.b16 %v2850
  %v4214 = vunpack.c.h.b16 %v2850
  %v4215 = vunpack.c.l.b16 %v2851
  %v4216 = vunpack.c.h.b16 %v2851
  %v4217 = vunpack.c.l.b16 %v2852
  %v4218 = vunpack.c.h.b16 %v2852
  %v4219 = vunpack.c.l.b16 %v2853
  %v4220 = vunpack.c.h.b16 %v2853
  %v4221 = vunpack.c.l.b16 %v2854
  %v4222 = vunpack.c.h.b16 %v2854
  %v4223 = vunpack.c.l.b16 %v2855
  %v4224 = vunpack.c.h.b16 %v2855
  %v4225 = vunpack.c.l.b16 %v2856
  %v4226 = vunpack.c.h.b16 %v2856
  %v4227 = vunpack.c.l.b16 %v2857
  %v4228 = vunpack.c.h.b16 %v2857
  %v4229 = vunpack.c.l.b16 %v2858
  %v4230 = vunpack.c.h.b16 %v2858
  %v4231 = vunpack.c.l.b16 %v2859
  %v4232 = vunpack.c.h.b16 %v2859
  %v4233 = vunpack.c.l.b16 %v2860
  %v4234 = vunpack.c.h.b16 %v2860
  %v4235 = vunpack.c.l.b16 %v2861
  %v4236 = vunpack.c.h.b16 %v2861
  %v4237 = vunpack.c.l.b16 %v2862
  %v4238 = vunpack.c.h.b16 %v2862
  %v4239 = vunpack.c.l.b16 %v2863
  %v4240 = vunpack.c.h.b16 %v2863
  %v4241 = vunpack.c.l.b16 %v2864
  %v4242 = vunpack.c.h.b16 %v2864
  %v4243 = vunpack.c.l.b16 %v2865
  %v4244 = vunpack.c.h.b16 %v2865
  %v4245 = vunpack.c.l.b16 %v2866
  %v4246 = vunpack.c.h.b16 %v2866
  %v4247 = vunpack.c.l.b16 %v2867
  %v4248 = vunpack.c.h.b16 %v2867
  %v4249 = vunpack.c.l.b16 %v2868
  %v4250 = vunpack.c.h.b16 %v2868
  %v4251 = vunpack.c.l.b16 %v2869
  %v4252 = vunpack.c.h.b16 %v2869
  %v4253 = vunpack.c.l.b16 %v2870
  %v4254 = vunpack.c.h.b16 %v2870
  %v4255 = vunpack.c.l.b16 %v2871
  %v4256 = vunpack.c.h.b16 %v2871
  %v4257 = vunpack.c.l.b16 %v2872
  %v4258 = vunpack.c.h.b16 %v2872
  %v4259 = vunpack.c.l.b16 %v2873
  %v4260 = vunpack.c.h.b16 %v2873
  %v4261 = vunpack.c.l.b16 %v2874
  %v4262 = vunpack.c.h.b16 %v2874
  %v4263 = vunpack.c.l.b16 %v2875
  %v4264 = vunpack.c.h.b16 %v2875
  %v4265 = vunpack.c.l.b16 %v2876
  %v4266 = vunpack.c.h.b16 %v2876
  %v4267 = vunpack.c.l.b16 %v2877
  %v4268 = vunpack.c.h.b16 %v2877
  %v4269 = vunpack.c.l.b16 %v2878
  %v4270 = vunpack.c.h.b16 %v2878
  %v4271 = vunpack.c.l.b16 %v2879
  %v4272 = vunpack.c.h.b16 %v2879
  %v4273 = vunpack.c.l.b16 %v2880
  %v4274 = vunpack.c.h.b16 %v2880
  %v4275 = vunpack.c.l.b16 %v2881
  %v4276 = vunpack.c.h.b16 %v2881
  %v4277 = vunpack.c.l.b16 %v2882
  %v4278 = vunpack.c.h.b16 %v2882
  %v4279 = vunpack.c.l.b16 %v2883
  %v4280 = vunpack.c.h.b16 %v2883
  %v4281 = vunpack.c.l.b16 %v2884
  %v4282 = vunpack.c.h.b16 %v2884
  %v4283 = vunpack.c.l.b16 %v2885
  %v4284 = vunpack.c.h.b16 %v2885
  %v4285 = vunpack.c.l.b16 %v2886
  %v4286 = vunpack.c.h.b16 %v2886
  %v4287 = vunpack.c.l.b16 %v2887
  %v4288 = vunpack.c.h.b16 %v2887
  %v4289 = vunpack.c.l.b16 %v2888
  %v4290 = vunpack.c.h.b16 %v2888
  %v4291 = vunpack.c.l.b16 %v2889
  %v4292 = vunpack.c.h.b16 %v2889
  %v4293 = vunpack.c.l.b16 %v2890
  %v4294 = vunpack.c.h.b16 %v2890
  %v4295 = vunpack.c.l.b16 %v2891
  %v4296 = vunpack.c.h.b16 %v2891
  %v4297 = vunpack.c.l.b16 %v2892
  %v4298 = vunpack.c.h.b16 %v2892
  %v4299 = vunpack.c.l.b16 %v2893
  %v4300 = vunpack.c.h.b16 %v2893
  %v4301 = vunpack.c.l.b16 %v2894
  %v4302 = vunpack.c.h.b16 %v2894
  %v4303 = vunpack.c.l.b16 %v2895
  %v4304 = vunpack.c.h.b16 %v2895
  %v4305 = vunpack.c.l.b16 %v2896
  %v4306 = vunpack.c.h.b16 %v2896
  %v4307 = vunpack.c.l.b16 %v2897
  %v4308 = vunpack.c.h.b16 %v2897
  %v4309 = vunpack.c.l.b16 %v2898
  %v4310 = vunpack.c.h.b16 %v2898
  %v4311 = vunpack.c.l.b16 %v2899
  %v4312 = vunpack.c.h.b16 %v2899
  %v4313 = vunpack.c.l.b16 %v2900
  %v4314 = vunpack.c.h.b16 %v2900
  %v4315 = vunpack.c.l.b16 %v2901
  %v4316 = vunpack.c.h.b16 %v2901
  %v4317 = vunpack.c.l.b16 %v2902
  %v4318 = vunpack.c.h.b16 %v2902
  %v4319 = vunpack.c.l.b16 %v2903
  %v4320 = vunpack.c.h.b16 %v2903
  %v4321 = vunpack.c.l.b16 %v2904
  %v4322 = vunpack.c.h.b16 %v2904
  %v4323 = vunpack.c.l.b16 %v2905
  %v4324 = vunpack.c.h.b16 %v2905
  %v4325 = vunpack.c.l.b16 %v2906
  %v4326 = vunpack.c.h.b16 %v2906
  %v4327 = vunpack.c.l.b16 %v2907
  %v4328 = vunpack.c.h.b16 %v2907
  %v4329 = vunpack.c.l.b16 %v2908
  %v4330 = vunpack.c.h.b16 %v2908
  %v4331 = vunpack.c.l.b16 %v2909
  %v4332 = vunpack.c.h.b16 %v2909
  %v4333 = vunpack.c.l.b16 %v2910
  %v4334 = vunpack.c.h.b16 %v2910
  %v4335 = vunpack.c.l.b16 %v2911
  %v4336 = vunpack.c.h.b16 %v2911
  %v4337 = vunpack.c.l.b16 %v2912
  %v4338 = vunpack.c.h.b16 %v2912
  %v4339 = vunpack.c.l.b16 %v2913
  %v4340 = vunpack.c.h.b16 %v2913
  %v4341 = vunpack.c.l.b16 %v2914
  %v4342 = vunpack.c.h.b16 %v2914
  %v4343 = vunpack.c.l.b16 %v2915
  %v4344 = vunpack.c.h.b16 %v2915
  %v4345 = vunpack.c.l.b16 %v2916
  %v4346 = vunpack.c.h.b16 %v2916
  %v4347 = vunpack.c.l.b16 %v2917
  %v4348 = vunpack.c.h.b16 %v2917
  %v4349 = vunpack.c.l.b16 %v2918
  %v4350 = vunpack.c.h.b16 %v2918
  %v4351 = vunpack.c.l.b16 %v2919
  %v4352 = vunpack.c.h.b16 %v2919
  %v4353 = vunpack.c.l.b16 %v2920
  %v4354 = vunpack.c.h.b16 %v2920
  %v4355 = vunpack.c.l.b16 %v2921
  %v4356 = vunpack.c.h.b16 %v2921
  %v4357 = vunpack.c.l.b16 %v2922
  %v4358 = vunpack.c.h.b16 %v2922
  %v4359 = vunpack.c.l.b16 %v2923
  %v4360 = vunpack.c.h.b16 %v2923
  %v4361 = vunpack.c.l.b16 %v2924
  %v4362 = vunpack.c.h.b16 %v2924
  %v4363 = vunpack.c.l.b16 %v2925
  %v4364 = vunpack.c.h.b16 %v2925
  %v4365 = vunpack.c.l.b16 %v2926
  %v4366 = vunpack.c.h.b16 %v2926
  %v4367 = vunpack.c.l.b16 %v2927
  %v4368 = vunpack.c.h.b16 %v2927
  %v4369 = vunpack.c.l.b16 %v2928
  %v4370 = vunpack.c.h.b16 %v2928
  %v4371 = vunpack.c.l.b16 %v2929
  %v4372 = vunpack.c.h.b16 %v2929
  %v4373 = vunpack.c.l.b16 %v2930
  %v4374 = vunpack.c.h.b16 %v2930
  %v4375 = vunpack.c.l.b16 %v2931
  %v4376 = vunpack.c.h.b16 %v2931
  %v4377 = vunpack.c.l.b16 %v2932
  %v4378 = vunpack.c.h.b16 %v2932
  %v4379 = vunpack.c.l.b16 %v2933
  %v4380 = vunpack.c.h.b16 %v2933
  %v4381 = vunpack.c.l.b16 %v2934
  %v4382 = vunpack.c.h.b16 %v2934
  %v4383 = vunpack.c.l.b16 %v2935
  %v4384 = vunpack.c.h.b16 %v2935
  %v4385 = vunpack.c.l.b16 %v2936
  %v4386 = vunpack.c.h.b16 %v2936
  %v4387 = vunpack.c.l.b16 %v2937
  %v4388 = vunpack.c.h.b16 %v2937
  %v4389 = vunpack.c.l.b16 %v2938
  %v4390 = vunpack.c.h.b16 %v2938
  %v4391 = vunpack.c.l.b16 %v2939
  %v4392 = vunpack.c.h.b16 %v2939
  %v4393 = vunpack.c.l.b16 %v2940
  %v4394 = vunpack.c.h.b16 %v2940
  %v4395 = vunpack.c.l.b16 %v2941
  %v4396 = vunpack.c.h.b16 %v2941
  %v4397 = vunpack.c.l.b16 %v2942
  %v4398 = vunpack.c.h.b16 %v2942
  %v4399 = vunpack.c.l.b16 %v2943
  %v4400 = vunpack.c.h.b16 %v2943
  %v4401 = vunpack.c.l.b16 %v2944
  %v4402 = vunpack.c.h.b16 %v2944
  %v4403 = vunpack.c.l.b16 %v2945
  %v4404 = vunpack.c.h.b16 %v2945
  %v4405 = vunpack.c.l.b16 %v2946
  %v4406 = vunpack.c.h.b16 %v2946
  %v4407 = vunpack.c.l.b16 %v2947
  %v4408 = vunpack.c.h.b16 %v2947
  %v4409 = vunpack.c.l.b16 %v2948
  %v4410 = vunpack.c.h.b16 %v2948
  %v4411 = vunpack.c.l.b16 %v2949
  %v4412 = vunpack.c.h.b16 %v2949
  %v4413 = vunpack.c.l.b16 %v2950
  %v4414 = vunpack.c.h.b16 %v2950
  %v4415 = vunpack.c.l.b16 %v2951
  %v4416 = vunpack.c.h.b16 %v2951
  %v4417 = vunpack.c.l.b16 %v2952
  %v4418 = vunpack.c.h.b16 %v2952
  %v4419 = vunpack.c.l.b16 %v2953
  %v4420 = vunpack.c.h.b16 %v2953
  %v4421 = vunpack.c.l.b16 %v2954
  %v4422 = vunpack.c.h.b16 %v2954
  %v4423 = vunpack.c.l.b16 %v2955
  %v4424 = vunpack.c.h.b16 %v2955
  %v4425 = vunpack.c.l.b16 %v2956
  %v4426 = vunpack.c.h.b16 %v2956
  %v4427 = vunpack.c.l.b16 %v2957
  %v4428 = vunpack.c.h.b16 %v2957
  %v4429 = vunpack.c.l.b16 %v2958
  %v4430 = vunpack.c.h.b16 %v2958
  %v4431 = vunpack.c.l.b16 %v2959
  %v4432 = vunpack.c.h.b16 %v2959
  %v4433 = vunpack.c.l.b16 %v2960
  %v4434 = vunpack.c.h.b16 %v2960
  %v4435 = vunpack.c.l.b16 %v2961
  %v4436 = vunpack.c.h.b16 %v2961
  %v4437 = vunpack.c.l.b16 %v2962
  %v4438 = vunpack.c.h.b16 %v2962
  %v4439 = vunpack.c.l.b16 %v2963
  %v4440 = vunpack.c.h.b16 %v2963
  %v4441 = vunpack.c.l.b16 %v2964
  %v4442 = vunpack.c.h.b16 %v2964
  %v4443 = vunpack.c.l.b16 %v2965
  %v4444 = vunpack.c.h.b16 %v2965
  %v4445 = vunpack.c.l.b16 %v2966
  %v4446 = vunpack.c.h.b16 %v2966
  %v4447 = vunpack.c.l.b16 %v2967
  %v4448 = vunpack.c.h.b16 %v2967
  %v4449 = vunpack.c.l.b16 %v2968
  %v4450 = vunpack.c.h.b16 %v2968
  %v4451 = vunpack.c.l.b16 %v2969
  %v4452 = vunpack.c.h.b16 %v2969
  %v4453 = vunpack.c.l.b16 %v2970
  %v4454 = vunpack.c.h.b16 %v2970
  %v4455 = vunpack.c.l.b16 %v2971
  %v4456 = vunpack.c.h.b16 %v2971
  %v4457 = vunpack.c.l.b16 %v2972
  %v4458 = vunpack.c.h.b16 %v2972
  %v4459 = vunpack.c.l.b16 %v2973
  %v4460 = vunpack.c.h.b16 %v2973
  %v4461 = vunpack.c.l.b16 %v2974
  %v4462 = vunpack.c.h.b16 %v2974
  %v4463 = vunpack.c.l.b16 %v2975
  %v4464 = vunpack.c.h.b16 %v2975
  %v4465 = vunpack.c.l.b16 %v2976
  %v4466 = vunpack.c.h.b16 %v2976
  %v4467 = vunpack.c.l.b16 %v2977
  %v4468 = vunpack.c.h.b16 %v2977
  %v4469 = vunpack.c.l.b16 %v2978
  %v4470 = vunpack.c.h.b16 %v2978
  %v4471 = vunpack.c.l.b16 %v2979
  %v4472 = vunpack.c.h.b16 %v2979
  %v4473 = vunpack.c.l.b16 %v2980
  %v4474 = vunpack.c.h.b16 %v2980
  %v4475 = vunpack.c.l.b16 %v2981
  %v4476 = vunpack.c.h.b16 %v2981
  %v4477 = vunpack.c.l.b16 %v2982
  %v4478 = vunpack.c.h.b16 %v2982
  %v4479 = vunpack.c.l.b16 %v2983
  %v4480 = vunpack.c.h.b16 %v2983
  %v4481 = vunpack.c.l.b16 %v2984
  %v4482 = vunpack.c.h.b16 %v2984
  %v4483 = vunpack.c.l.b16 %v2985
  %v4484 = vunpack.c.h.b16 %v2985
  %v4485 = vunpack.c.l.b16 %v2986
  %v4486 = vunpack.c.h.b16 %v2986
  %v4487 = vunpack.c.l.b16 %v2987
  %v4488 = vunpack.c.h.b16 %v2987
  %v4489 = vunpack.c.l.b16 %v2988
  %v4490 = vunpack.c.h.b16 %v2988
  %v4491 = vunpack.c.l.b16 %v2989
  %v4492 = vunpack.c.h.b16 %v2989
  %v4493 = vunpack.c.l.b16 %v2990
  %v4494 = vunpack.c.h.b16 %v2990
  %v4495 = vunpack.c.l.b16 %v2991
  %v4496 = vunpack.c.h.b16 %v2991
  %v4497 = vunpack.c.l.b16 %v2992
  %v4498 = vunpack.c.h.b16 %v2992
  %v4499 = vunpack.c.l.b16 %v2993
  %v4500 = vunpack.c.h.b16 %v2993
  %v4501 = vunpack.c.l.b16 %v2994
  %v4502 = vunpack.c.h.b16 %v2994
  %v4503 = vunpack.c.l.b16 %v2995
  %v4504 = vunpack.c.h.b16 %v2995
  %v4505 = vunpack.c.l.b16 %v2996
  %v4506 = vunpack.c.h.b16 %v2996
  %v4507 = vunpack.c.l.b16 %v2997
  %v4508 = vunpack.c.h.b16 %v2997
  %v4509 = vunpack.c.l.b16 %v2998
  %v4510 = vunpack.c.h.b16 %v2998
  %v4511 = vunpack.c.l.b16 %v2999
  %v4512 = vunpack.c.h.b16 %v2999
  %v4513 = vunpack.c.l.b16 %v3000
  %v4514 = vunpack.c.h.b16 %v3000
  %v4515 = vunpack.c.l.b16 %v3001
  %v4516 = vunpack.c.h.b16 %v3001
  %v4517 = vunpack.c.l.b16 %v3002
  %v4518 = vunpack.c.h.b16 %v3002
  %v4519 = vunpack.c.l.b16 %v3003
  %v4520 = vunpack.c.h.b16 %v3003
  %v4521 = vunpack.c.l.b16 %v3004
  %v4522 = vunpack.c.h.b16 %v3004
  %v4523 = vunpack.c.l.b16 %v3005
  %v4524 = vunpack.c.h.b16 %v3005
  %v4525 = vunpack.c.l.b16 %v3006
  %v4526 = vunpack.c.h.b16 %v3006
  %v4527 = vunpack.c.l.b16 %v3007
  %v4528 = vunpack.c.h.b16 %v3007
  %v4529 = vunpack.c.l.b16 %v3008
  %v4530 = vunpack.c.h.b16 %v3008
  %v4531 = vunpack.c.l.b16 %v3009
  %v4532 = vunpack.c.h.b16 %v3009
  %v4533 = vunpack.c.l.b16 %v3010
  %v4534 = vunpack.c.h.b16 %v3010
  %v4535 = vunpack.c.l.b16 %v3011
  %v4536 = vunpack.c.h.b16 %v3011
  %v4537 = vunpack.c.l.b16 %v3012
  %v4538 = vunpack.c.h.b16 %v3012
  %v4539 = vunpack.c.l.b16 %v3013
  %v4540 = vunpack.c.h.b16 %v3013
  %v4541 = vunpack.c.l.b16 %v3014
  %v4542 = vunpack.c.h.b16 %v3014
  %v4543 = vunpack.c.l.b16 %v3015
  %v4544 = vunpack.c.h.b16 %v3015
  %v4545 = vunpack.c.l.b16 %v3016
  %v4546 = vunpack.c.h.b16 %v3016
  %v4547 = vunpack.c.l.b16 %v3017
  %v4548 = vunpack.c.h.b16 %v3017
  %v4549 = vunpack.c.l.b16 %v3018
  %v4550 = vunpack.c.h.b16 %v3018
  %v4551 = vunpack.c.l.b16 %v3019
  %v4552 = vunpack.c.h.b16 %v3019
  %v4553 = vunpack.c.l.b16 %v3020
  %v4554 = vunpack.c.h.b16 %v3020
  %v4555 = vunpack.c.l.b16 %v3021
  %v4556 = vunpack.c.h.b16 %v3021
  %v4557 = vunpack.c.l.b16 %v3022
  %v4558 = vunpack.c.h.b16 %v3022
  %v4559 = vpack.c.b16 %v3543, %v3535
  %v4560 = vpack.c.b16 %v3544, %v3536
  %v4561 = vpack.c.b16 %v3545, %v3537
  %v4562 = vpack.c.b16 %v3546, %v3538
  %v4563 = vpack.c.b16 %v3547, %v3539
  %v4564 = vpack.c.b16 %v3548, %v3540
  %v4565 = vpack.c.b16 %v3549, %v3541
  %v4566 = vpack.c.b16 %v3550, %v3542
  %v4567 = vpack.c.b16 %v3559, %v3551
  %v4568 = vpack.c.b16 %v3560, %v3552
  %v4569 = vpack.c.b16 %v3561, %v3553
  %v4570 = vpack.c.b16 %v3562, %v3554
  %v4571 = vpack.c.b16 %v3563, %v3555
  %v4572 = vpack.c.b16 %v3564, %v3556
  %v4573 = vpack.c.b16 %v3565, %v3557
  %v4574 = vpack.c.b16 %v3566, %v3558
  %v4575 = vpack.c.b16 %v3575, %v3567
  %v4576 = vpack.c.b16 %v3576, %v3568
  %v4577 = vpack.c.b16 %v3577, %v3569
  %v4578 = vpack.c.b16 %v3578, %v3570
  %v4579 = vpack.c.b16 %v3579, %v3571
  %v4580 = vpack.c.b16 %v3580, %v3572
  %v4581 = vpack.c.b16 %v3581, %v3573
  %v4582 = vpack.c.b16 %v3582, %v3574
  %v4583 = vpack.c.b16 %v3591, %v3583
  %v4584 = vpack.c.b16 %v3592, %v3584
  %v4585 = vpack.c.b16 %v3593, %v3585
  %v4586 = vpack.c.b16 %v3594, %v3586
  %v4587 = vpack.c.b16 %v3595, %v3587
  %v4588 = vpack.c.b16 %v3596, %v3588
  %v4589 = vpack.c.b16 %v3597, %v3589
  %v4590 = vpack.c.b16 %v3598, %v3590
  %v4591 = vpack.c.b16 %v3607, %v3599
  %v4592 = vpack.c.b16 %v3608, %v3600
  %v4593 = vpack.c.b16 %v3609, %v3601
  %v4594 = vpack.c.b16 %v3610, %v3602
  %v4595 = vpack.c.b16 %v3611, %v3603
  %v4596 = vpack.c.b16 %v3612, %v3604
  %v4597 = vpack.c.b16 %v3613, %v3605
  %v4598 = vpack.c.b16 %v3614, %v3606
  %v4599 = vpack.c.b16 %v3623, %v3615
  %v4600 = vpack.c.b16 %v3624, %v3616
  %v4601 = vpack.c.b16 %v3625, %v3617
  %v4602 = vpack.c.b16 %v3626, %v3618
  %v4603 = vpack.c.b16 %v3627, %v3619
  %v4604 = vpack.c.b16 %v3628, %v3620
  %v4605 = vpack.c.b16 %v3629, %v3621
  %v4606 = vpack.c.b16 %v3630, %v3622
  %v4607 = vpack.c.b16 %v3639, %v3631
  %v4608 = vpack.c.b16 %v3640, %v3632
  %v4609 = vpack.c.b16 %v3641, %v3633
  %v4610 = vpack.c.b16 %v3642, %v3634
  %v4611 = vpack.c.b16 %v3643, %v3635
  %v4612 = vpack.c.b16 %v3644, %v3636
  %v4613 = vpack.c.b16 %v3645, %v3637
  %v4614 = vpack.c.b16 %v3646, %v3638
  %v4615 = vpack.c.b16 %v3655, %v3647
  %v4616 = vpack.c.b16 %v3656, %v3648
  %v4617 = vpack.c.b16 %v3657, %v3649
  %v4618 = vpack.c.b16 %v3658, %v3650
  %v4619 = vpack.c.b16 %v3659, %v3651
  %v4620 = vpack.c.b16 %v3660, %v3652
  %v4621 = vpack.c.b16 %v3661, %v3653
  %v4622 = vpack.c.b16 %v3662, %v3654
  %v4623 = vpack.c.b16 %v3671, %v3663
  %v4624 = vpack.c.b16 %v3672, %v3664
  %v4625 = vpack.c.b16 %v3673, %v3665
  %v4626 = vpack.c.b16 %v3674, %v3666
  %v4627 = vpack.c.b16 %v3675, %v3667
  %v4628 = vpack.c.b16 %v3676, %v3668
  %v4629 = vpack.c.b16 %v3677, %v3669
  %v4630 = vpack.c.b16 %v3678, %v3670
  %v4631 = vpack.c.b16 %v3687, %v3679
  %v4632 = vpack.c.b16 %v3688, %v3680
  %v4633 = vpack.c.b16 %v3689, %v3681
  %v4634 = vpack.c.b16 %v3690, %v3682
  %v4635 = vpack.c.b16 %v3691, %v3683
  %v4636 = vpack.c.b16 %v3692, %v3684
  %v4637 = vpack.c.b16 %v3693, %v3685
  %v4638 = vpack.c.b16 %v3694, %v3686
  %v4639 = vpack.c.b16 %v3703, %v3695
  %v4640 = vpack.c.b16 %v3704, %v3696
  %v4641 = vpack.c.b16 %v3705, %v3697
  %v4642 = vpack.c.b16 %v3706, %v3698
  %v4643 = vpack.c.b16 %v3707, %v3699
  %v4644 = vpack.c.b16 %v3708, %v3700
  %v4645 = vpack.c.b16 %v3709, %v3701
  %v4646 = vpack.c.b16 %v3710, %v3702
  %v4647 = vpack.c.b16 %v3719, %v3711
  %v4648 = vpack.c.b16 %v3720, %v3712
  %v4649 = vpack.c.b16 %v3721, %v3713
  %v4650 = vpack.c.b16 %v3722, %v3714
  %v4651 = vpack.c.b16 %v3723, %v3715
  %v4652 = vpack.c.b16 %v3724, %v3716
  %v4653 = vpack.c.b16 %v3725, %v3717
  %v4654 = vpack.c.b16 %v3726, %v3718
  %v4655 = vpack.c.b16 %v3735, %v3727
  %v4656 = vpack.c.b16 %v3736, %v3728
  %v4657 = vpack.c.b16 %v3737, %v3729
  %v4658 = vpack.c.b16 %v3738, %v3730
  %v4659 = vpack.c.b16 %v3739, %v3731
  %v4660 = vpack.c.b16 %v3740, %v3732
  %v4661 = vpack.c.b16 %v3741, %v3733
  %v4662 = vpack.c.b16 %v3742, %v3734
  %v4663 = vpack.c.b16 %v3751, %v3743
  %v4664 = vpack.c.b16 %v3752, %v3744
  %v4665 = vpack.c.b16 %v3753, %v3745
  %v4666 = vpack.c.b16 %v3754, %v3746
  %v4667 = vpack.c.b16 %v3755, %v3747
  %v4668 = vpack.c.b16 %v3756, %v3748
  %v4669 = vpack.c.b16 %v3757, %v3749
  %v4670 = vpack.c.b16 %v3758, %v3750
  %v4671 = vpack.c.b16 %v3767, %v3759
  %v4672 = vpack.c.b16 %v3768, %v3760
  %v4673 = vpack.c.b16 %v3769, %v3761
  %v4674 = vpack.c.b16 %v3770, %v3762
  %v4675 = vpack.c.b16 %v3771, %v3763
  %v4676 = vpack.c.b16 %v3772, %v3764
  %v4677 = vpack.c.b16 %v3773, %v3765
  %v4678 = vpack.c.b16 %v3774, %v3766
  %v4679 = vpack.c.b16 %v3783, %v3775
  %v4680 = vpack.c.b16 %v3784, %v3776
  %v4681 = vpack.c.b16 %v3785, %v3777
  %v4682 = vpack.c.b16 %v3786, %v3778
  %v4683 = vpack.c.b16 %v3787, %v3779
  %v4684 = vpack.c.b16 %v3788, %v3780
  %v4685 = vpack.c.b16 %v3789, %v3781
  %v4686 = vpack.c.b16 %v3790, %v3782
  %v4687 = vpack.c.b16 %v3799, %v3791
  %v4688 = vpack.c.b16 %v3800, %v3792
  %v4689 = vpack.c.b16 %v3801, %v3793
  %v4690 = vpack.c.b16 %v3802, %v3794
  %v4691 = vpack.c.b16 %v3803, %v3795
  %v4692 = vpack.c.b16 %v3804, %v3796
  %v4693 = vpack.c.b16 %v3805, %v3797
  %v4694 = vpack.c.b16 %v3806, %v3798
  %v4695 = vpack.c.b16 %v3815, %v3807
  %v4696 = vpack.c.b16 %v3816, %v3808
  %v4697 = vpack.c.b16 %v3817, %v3809
  %v4698 = vpack.c.b16 %v3818, %v3810
  %v4699 = vpack.c.b16 %v3819, %v3811
  %v4700 = vpack.c.b16 %v3820, %v3812
  %v4701 = vpack.c.b16 %v3821, %v3813
  %v4702 = vpack.c.b16 %v3822, %v3814
  %v4703 = vpack.c.b16 %v3831, %v3823
  %v4704 = vpack.c.b16 %v3832, %v3824
  %v4705 = vpack.c.b16 %v3833, %v3825
  %v4706 = vpack.c.b16 %v3834, %v3826
  %v4707 = vpack.c.b16 %v3835, %v3827
  %v4708 = vpack.c.b16 %v3836, %v3828
  %v4709 = vpack.c.b16 %v3837, %v3829
  %v4710 = vpack.c.b16 %v3838, %v3830
  %v4711 = vpack.c.b16 %v3847, %v3839
  %v4712 = vpack.c.b16 %v3848, %v3840
  %v4713 = vpack.c.b16 %v3849, %v3841
  %v4714 = vpack.c.b16 %v3850, %v3842
  %v4715 = vpack.c.b16 %v3851, %v3843
  %v4716 = vpack.c.b16 %v3852, %v3844
  %v4717 = vpack.c.b16 %v3853, %v3845
  %v4718 = vpack.c.b16 %v3854, %v3846
  %v4719 = vpack.c.b16 %v3863, %v3855
  %v4720 = vpack.c.b16 %v3864, %v3856
  %v4721 = vpack.c.b16 %v3865, %v3857
  %v4722 = vpack.c.b16 %v3866, %v3858
  %v4723 = vpack.c.b16 %v3867, %v3859
  %v4724 = vpack.c.b16 %v3868, %v3860
  %v4725 = vpack.c.b16 %v3869, %v3861
  %v4726 = vpack.c.b16 %v3870, %v3862
  %v4727 = vpack.c.b16 %v3879, %v3871
  %v4728 = vpack.c.b16 %v3880, %v3872
  %v4729 = vpack.c.b16 %v3881, %v3873
  %v4730 = vpack.c.b16 %v3882, %v3874
  %v4731 = vpack.c.b16 %v3883, %v3875
  %v4732 = vpack.c.b16 %v3884, %v3876
  %v4733 = vpack.c.b16 %v3885, %v3877
  %v4734 = vpack.c.b16 %v3886, %v3878
  %v4735 = vpack.c.b16 %v3895, %v3887
  %v4736 = vpack.c.b16 %v3896, %v3888
  %v4737 = vpack.c.b16 %v3897, %v3889
  %v4738 = vpack.c.b16 %v3898, %v3890
  %v4739 = vpack.c.b16 %v3899, %v3891
  %v4740 = vpack.c.b16 %v3900, %v3892
  %v4741 = vpack.c.b16 %v3901, %v3893
  %v4742 = vpack.c.b16 %v3902, %v3894
  %v4743 = vpack.c.b16 %v3911, %v3903
  %v4744 = vpack.c.b16 %v3912, %v3904
  %v4745 = vpack.c.b16 %v3913, %v3905
  %v4746 = vpack.c.b16 %v3914, %v3906
  %v4747 = vpack.c.b16 %v3915, %v3907
  %v4748 = vpack.c.b16 %v3916, %v3908
  %v4749 = vpack.c.b16 %v3917, %v3909
  %v4750 = vpack.c.b16 %v3918, %v3910
  %v4751 = vpack.c.b16 %v3927, %v3919
  %v4752 = vpack.c.b16 %v3928, %v3920
  %v4753 = vpack.c.b16 %v3929, %v3921
  %v4754 = vpack.c.b16 %v3930, %v3922
  %v4755 = vpack.c.b16 %v3931, %v3923
  %v4756 = vpack.c.b16 %v3932, %v3924
  %v4757 = vpack.c.b16 %v3933, %v3925
  %v4758 = vpack.c.b16 %v3934, %v3926
  %v4759 = vpack.c.b16 %v3943, %v3935
  %v4760 = vpack.c.b16 %v3944, %v3936
  %v4761 = vpack.c.b16 %v3945, %v3937
  %v4762 = vpack.c.b16 %v3946, %v3938
  %v4763 = vpack.c.b16 %v3947, %v3939
  %v4764 = vpack.c.b16 %v3948, %v3940
  %v4765 = vpack.c.b16 %v3949, %v3941
  %v4766 = vpack.c.b16 %v3950, %v3942
  %v4767 = vpack.c.b16 %v3959, %v3951
  %v4768 = vpack.c.b16 %v3960, %v3952
  %v4769 = vpack.c.b16 %v3961, %v3953
  %v4770 = vpack.c.b16 %v3962, %v3954
  %v4771 = vpack.c.b16 %v3963, %v3955
  %v4772 = vpack.c.b16 %v3964, %v3956
  %v4773 = vpack.c.b16 %v3965, %v3957
  %v4774 = vpack.c.b16 %v3966, %v3958
  %v4775 = vpack.c.b16 %v3975, %v3967
  %v4776 = vpack.c.b16 %v3976, %v3968
  %v4777 = vpack.c.b16 %v3977, %v3969
  %v4778 = vpack.c.b16 %v3978, %v3970
  %v4779 = vpack.c.b16 %v3979, %v3971
  %v4780 = vpack.c.b16 %v3980, %v3972
  %v4781 = vpack.c.b16 %v3981, %v3973
  %v4782 = vpack.c.b16 %v3982, %v3974
  %v4783 = vpack.c.b16 %v3991, %v3983
  %v4784 = vpack.c.b16 %v3992, %v3984
  %v4785 = vpack.c.b16 %v3993, %v3985
  %v4786 = vpack.c.b16 %v3994, %v3986
  %v4787 = vpack.c.b16 %v3995, %v3987
  %v4788 = vpack.c.b16 %v3996, %v3988
  %v4789 = vpack.c.b16 %v3997, %v3989
  %v4790 = vpack.c.b16 %v3998, %v3990
  %v4791 = vpack.c.b16 %v4007, %v3999
  %v4792 = vpack.c.b16 %v4008, %v4000
  %v4793 = vpack.c.b16 %v4009, %v4001
  %v4794 = vpack.c.b16 %v4010, %v4002
  %v4795 = vpack.c.b16 %v4011, %v4003
  %v4796 = vpack.c.b16 %v4012, %v4004
  %v4797 = vpack.c.b16 %v4013, %v4005
  %v4798 = vpack.c.b16 %v4014, %v4006
  %v4799 = vpack.c.b16 %v4023, %v4015
  %v4800 = vpack.c.b16 %v4024, %v4016
  %v4801 = vpack.c.b16 %v4025, %v4017
  %v4802 = vpack.c.b16 %v4026, %v4018
  %v4803 = vpack.c.b16 %v4027, %v4019
  %v4804 = vpack.c.b16 %v4028, %v4020
  %v4805 = vpack.c.b16 %v4029, %v4021
  %v4806 = vpack.c.b16 %v4030, %v4022
  %v4807 = vpack.c.b16 %v4039, %v4031
  %v4808 = vpack.c.b16 %v4040, %v4032
  %v4809 = vpack.c.b16 %v4041, %v4033
  %v4810 = vpack.c.b16 %v4042, %v4034
  %v4811 = vpack.c.b16 %v4043, %v4035
  %v4812 = vpack.c.b16 %v4044, %v4036
  %v4813 = vpack.c.b16 %v4045, %v4037
  %v4814 = vpack.c.b16 %v4046, %v4038
  %v4815 = vpack.c.b16 %v4055, %v4047
  %v4816 = vpack.c.b16 %v4056, %v4048
  %v4817 = vpack.c.b16 %v4057, %v4049
  %v4818 = vpack.c.b16 %v4058, %v4050
  %v4819 = vpack.c.b16 %v4059, %v4051
  %v4820 = vpack.c.b16 %v4060, %v4052
  %v4821 = vpack.c.b16 %v4061, %v4053
  %v4822 = vpack.c.b16 %v4062, %v4054
  %v4823 = vpack.c.b16 %v4071, %v4063
  %v4824 = vpack.c.b16 %v4072, %v4064
  %v4825 = vpack.c.b16 %v4073, %v4065
  %v4826 = vpack.c.b16 %v4074, %v4066
  %v4827 = vpack.c.b16 %v4075, %v4067
  %v4828 = vpack.c.b16 %v4076, %v4068
  %v4829 = vpack.c.b16 %v4077, %v4069
  %v4830 = vpack.c.b16 %v4078, %v4070
  %v4831 = vpack.c.b16 %v4087, %v4079
  %v4832 = vpack.c.b16 %v4088, %v4080
  %v4833 = vpack.c.b16 %v4089, %v4081
  %v4834 = vpack.c.b16 %v4090, %v4082
  %v4835 = vpack.c.b16 %v4091, %v4083
  %v4836 = vpack.c.b16 %v4092, %v4084
  %v4837 = vpack.c.b16 %v4093, %v4085
  %v4838 = vpack.c.b16 %v4094, %v4086
  %v4839 = vpack.c.b16 %v4103, %v4095
  %v4840 = vpack.c.b16 %v4104, %v4096
  %v4841 = vpack.c.b16 %v4105, %v4097
  %v4842 = vpack.c.b16 %v4106, %v4098
  %v4843 = vpack.c.b16 %v4107, %v4099
  %v4844 = vpack.c.b16 %v4108, %v4100
  %v4845 = vpack.c.b16 %v4109, %v4101
  %v4846 = vpack.c.b16 %v4110, %v4102
  %v4847 = vpack.c.b16 %v4119, %v4111
  %v4848 = vpack.c.b16 %v4120, %v4112
  %v4849 = vpack.c.b16 %v4121, %v4113
  %v4850 = vpack.c.b16 %v4122, %v4114
  %v4851 = vpack.c.b16 %v4123, %v4115
  %v4852 = vpack.c.b16 %v4124, %v4116
  %v4853 = vpack.c.b16 %v4125, %v4117
  %v4854 = vpack.c.b16 %v4126, %v4118
  %v4855 = vpack.c.b16 %v4135, %v4127
  %v4856 = vpack.c.b16 %v4136, %v4128
  %v4857 = vpack.c.b16 %v4137, %v4129
  %v4858 = vpack.c.b16 %v4138, %v4130
  %v4859 = vpack.c.b16 %v4139, %v4131
  %v4860 = vpack.c.b16 %v4140, %v4132
  %v4861 = vpack.c.b16 %v4141, %v4133
  %v4862 = vpack.c.b16 %v4142, %v4134
  %v4863 = vpack.c.b16 %v4151, %v4143
  %v4864 = vpack.c.b16 %v4152, %v4144
  %v4865 = vpack.c.b16 %v4153, %v4145
  %v4866 = vpack.c.b16 %v4154, %v4146
  %v4867 = vpack.c.b16 %v4155, %v4147
  %v4868 = vpack.c.b16 %v4156, %v4148
  %v4869 = vpack.c.b16 %v4157, %v4149
  %v4870 = vpack.c.b16 %v4158, %v4150
  %v4871 = vpack.c.b16 %v4167, %v4159
  %v4872 = vpack.c.b16 %v4168, %v4160
  %v4873 = vpack.c.b16 %v4169, %v4161
  %v4874 = vpack.c.b16 %v4170, %v4162
  %v4875 = vpack.c.b16 %v4171, %v4163
  %v4876 = vpack.c.b16 %v4172, %v4164
  %v4877 = vpack.c.b16 %v4173, %v4165
  %v4878 = vpack.c.b16 %v4174, %v4166
  %v4879 = vpack.c.b16 %v4183, %v4175
  %v4880 = vpack.c.b16 %v4184, %v4176
  %v4881 = vpack.c.b16 %v4185, %v4177
  %v4882 = vpack.c.b16 %v4186, %v4178
  %v4883 = vpack.c.b16 %v4187, %v4179
  %v4884 = vpack.c.b16 %v4188, %v4180
  %v4885 = vpack.c.b16 %v4189, %v4181
  %v4886 = vpack.c.b16 %v4190, %v4182
  %v4887 = vpack.c.b16 %v4199, %v4191
  %v4888 = vpack.c.b16 %v4200, %v4192
  %v4889 = vpack.c.b16 %v4201, %v4193
  %v4890 = vpack.c.b16 %v4202, %v4194
  %v4891 = vpack.c.b16 %v4203, %v4195
  %v4892 = vpack.c.b16 %v4204, %v4196
  %v4893 = vpack.c.b16 %v4205, %v4197
  %v4894 = vpack.c.b16 %v4206, %v4198
  %v4895 = vpack.c.b16 %v4215, %v4207
  %v4896 = vpack.c.b16 %v4216, %v4208
  %v4897 = vpack.c.b16 %v4217, %v4209
  %v4898 = vpack.c.b16 %v4218, %v4210
  %v4899 = vpack.c.b16 %v4219, %v4211
  %v4900 = vpack.c.b16 %v4220, %v4212
  %v4901 = vpack.c.b16 %v4221, %v4213
  %v4902 = vpack.c.b16 %v4222, %v4214
  %v4903 = vpack.c.b16 %v4231, %v4223
  %v4904 = vpack.c.b16 %v4232, %v4224
  %v4905 = vpack.c.b16 %v4233, %v4225
  %v4906 = vpack.c.b16 %v4234, %v4226
  %v4907 = vpack.c.b16 %v4235, %v4227
  %v4908 = vpack.c.b16 %v4236, %v4228
  %v4909 = vpack.c.b16 %v4237, %v4229
  %v4910 = vpack.c.b16 %v4238, %v4230
  %v4911 = vpack.c.b16 %v4247, %v4239
  %v4912 = vpack.c.b16 %v4248, %v4240
  %v4913 = vpack.c.b16 %v4249, %v4241
  %v4914 = vpack.c.b16 %v4250, %v4242
  %v4915 = vpack.c.b16 %v4251, %v4243
  %v4916 = vpack.c.b16 %v4252, %v4244
  %v4917 = vpack.c.b16 %v4253, %v4245
  %v4918 = vpack.c.b16 %v4254, %v4246
  %v4919 = vpack.c.b16 %v4263, %v4255
  %v4920 = vpack.c.b16 %v4264, %v4256
  %v4921 = vpack.c.b16 %v4265, %v4257
  %v4922 = vpack.c.b16 %v4266, %v4258
  %v4923 = vpack.c.b16 %v4267, %v4259
  %v4924 = vpack.c.b16 %v4268, %v4260
  %v4925 = vpack.c.b16 %v4269, %v4261
  %v4926 = vpack.c.b16 %v4270, %v4262
  %v4927 = vpack.c.b16 %v4279, %v4271
  %v4928 = vpack.c.b16 %v4280, %v4272
  %v4929 = vpack.c.b16 %v4281, %v4273
  %v4930 = vpack.c.b16 %v4282, %v4274
  %v4931 = vpack.c.b16 %v4283, %v4275
  %v4932 = vpack.c.b16 %v4284, %v4276
  %v4933 = vpack.c.b16 %v4285, %v4277
  %v4934 = vpack.c.b16 %v4286, %v4278
  %v4935 = vpack.c.b16 %v4295, %v4287
  %v4936 = vpack.c.b16 %v4296, %v4288
  %v4937 = vpack.c.b16 %v4297, %v4289
  %v4938 = vpack.c.b16 %v4298, %v4290
  %v4939 = vpack.c.b16 %v4299, %v4291
  %v4940 = vpack.c.b16 %v4300, %v4292
  %v4941 = vpack.c.b16 %v4301, %v4293
  %v4942 = vpack.c.b16 %v4302, %v4294
  %v4943 = vpack.c.b16 %v4311, %v4303
  %v4944 = vpack.c.b16 %v4312, %v4304
  %v4945 = vpack.c.b16 %v4313, %v4305
  %v4946 = vpack.c.b16 %v4314, %v4306
  %v4947 = vpack.c.b16 %v4315, %v4307
  %v4948 = vpack.c.b16 %v4316, %v4308
  %v4949 = vpack.c.b16 %v4317, %v4309
  %v4950 = vpack.c.b16 %v4318, %v4310
  %v4951 = vpack.c.b16 %v4327, %v4319
  %v4952 = vpack.c.b16 %v4328, %v4320
  %v4953 = vpack.c.b16 %v4329, %v4321
  %v4954 = vpack.c.b16 %v4330, %v4322
  %v4955 = vpack.c.b16 %v4331, %v4323
  %v4956 = vpack.c.b16 %v4332, %v4324
  %v4957 = vpack.c.b16 %v4333, %v4325
  %v4958 = vpack.c.b16 %v4334, %v4326
  %v4959 = vpack.c.b16 %v4343, %v4335
  %v4960 = vpack.c.b16 %v4344, %v4336
  %v4961 = vpack.c.b16 %v4345, %v4337
  %v4962 = vpack.c.b16 %v4346, %v4338
  %v4963 = vpack.c.b16 %v4347, %v4339
  %v4964 = vpack.c.b16 %v4348, %v4340
  %v4965 = vpack.c.b16 %v4349, %v4341
  %v4966 = vpack.c.b16 %v4350, %v4342
  %v4967 = vpack.c.b16 %v4359, %v4351
  %v4968 = vpack.c.b16 %v4360, %v4352
  %v4969 = vpack.c.b16 %v4361, %v4353
  %v4970 = vpack.c.b16 %v4362, %v4354
  %v4971 = vpack.c.b16 %v4363, %v4355
  %v4972 = vpack.c.b16 %v4364, %v4356
  %v4973 = vpack.c.b16 %v4365, %v4357
  %v4974 = vpack.c.b16 %v4366, %v4358
  %v4975 = vpack.c.b16 %v4375, %v4367
  %v4976 = vpack.c.b16 %v4376, %v4368
  %v4977 = vpack.c.b16 %v4377, %v4369
  %v4978 = vpack.c.b16 %v4378, %v4370
  %v4979 = vpack.c.b16 %v4379, %v4371
  %v4980 = vpack.c.b16 %v4380, %v4372
  %v4981 = vpack.c.b16 %v4381, %v4373
  %v4982 = vpack.c.b16 %v4382, %v4374
  %v4983 = vpack.c.b16 %v4391, %v4383
  %v4984 = vpack.c.b16 %v4392, %v4384
  %v4985 = vpack.c.b16 %v4393, %v4385
  %v4986 = vpack.c.b16 %v4394, %v4386
  %v4987 = vpack.c.b16 %v4395, %v4387
  %v4988 = vpack.c.b16 %v4396, %v4388
  %v4989 = vpack.c.b16 %v4397, %v4389
  %v4990 = vpack.c.b16 %v4398, %v4390
  %v4991 = vpack.c.b16 %v4407, %v4399
  %v4992 = vpack.c.b16 %v4408, %v4400
  %v4993 = vpack.c.b16 %v4409, %v4401
  %v4994 = vpack.c.b16 %v4410, %v4402
  %v4995 = vpack.c.b16 %v4411, %v4403
  %v4996 = vpack.c.b16 %v4412, %v4404
  %v4997 = vpack.c.b16 %v4413, %v4405
  %v4998 = vpack.c.b16 %v4414, %v4406
  %v4999 = vpack.c.b16 %v4423, %v4415
  %v5000 = vpack.c.b16 %v4424, %v4416
  %v5001 = vpack.c.b16 %v4425, %v4417
  %v5002 = vpack.c.b16 %v4426, %v4418
  %v5003 = vpack.c.b16 %v4427, %v4419
  %v5004 = vpack.c.b16 %v4428, %v4420
  %v5005 = vpack.c.b16 %v4429, %v4421
  %v5006 = vpack.c.b16 %v4430, %v4422
  %v5007 = vpack.c.b16 %v4439, %v4431
  %v5008 = vpack.c.b16 %v4440, %v4432
  %v5009 = vpack.c.b16 %v4441, %v4433
  %v5010 = vpack.c.b16 %v4442, %v4434
  %v5011 = vpack.c.b16 %v4443, %v4435
  %v5012 = vpack.c.b16 %v4444, %v4436
  %v5013 = vpack.c.b16 %v4445, %v4437
  %v5014 = vpack.c.b16 %v4446, %v4438
  %v5015 = vpack.c.b16 %v4455, %v4447
  %v5016 = vpack.c.b16 %v4456, %v4448
  %v5017 = vpack.c.b16 %v4457, %v4449
  %v5018 = vpack.c.b16 %v4458, %v4450
  %v5019 = vpack.c.b16 %v4459, %v4451
  %v5020 = vpack.c.b16 %v4460, %v4452
  %v5021 = vpack.c.b16 %v4461, %v4453
  %v5022 = vpack.c.b16 %v4462, %v4454
  %v5023 = vpack.c.b16 %v4471, %v4463
  %v5024 = vpack.c.b16 %v4472, %v4464
  %v5025 = vpack.c.b16 %v4473, %v4465
  %v5026 = vpack.c.b16 %v4474, %v4466
  %v5027 = vpack.c.b16 %v4475, %v4467
  %v5028 = vpack.c.b16 %v4476, %v4468
  %v5029 = vpack.c.b16 %v4477, %v4469
  %v5030 = vpack.c.b16 %v4478, %v4470
  %v5031 = vpack.c.b16 %v4487, %v4479
  %v5032 = vpack.c.b16 %v4488, %v4480
  %v5033 = vpack.c.b16 %v4489, %v4481
  %v5034 = vpack.c.b16 %v4490, %v4482
  %v5035 = vpack.c.b16 %v4491, %v4483
  %v5036 = vpack.c.b16 %v4492, %v4484
  %v5037 = vpack.c.b16 %v4493, %v4485
  %v5038 = vpack.c.b16 %v4494, %v4486
  %v5039 = vpack.c.b16 %v4503, %v4495
  %v5040 = vpack.c.b16 %v4504, %v4496
  %v5041 = vpack.c.b16 %v4505, %v4497
  %v5042 = vpack.c.b16 %v4506, %v4498
  %v5043 = vpack.c.b16 %v4507, %v4499
  %v5044 = vpack.c.b16 %v4508, %v4500
  %v5045 = vpack.c.b16 %v4509, %v4501
  %v5046 = vpack.c.b16 %v4510, %v4502
  %v5047 = vpack.c.b16 %v4519, %v4511
  %v5048 = vpack.c.b16 %v4520, %v4512
  %v5049 = vpack.c.b16 %v4521, %v4513
  %v5050 = vpack.c.b16 %v4522, %v4514
  %v5051 = vpack.c.b16 %v4523, %v4515
  %v5052 = vpack.c.b16 %v4524, %v4516
  %v5053 = vpack.c.b16 %v4525, %v4517
  %v5054 = vpack.c.b16 %v4526, %v4518
  %v5055 = vpack.c.b16 %v4535, %v4527
  %v5056 = vpack.c.b16 %v4536, %v4528
  %v5057 = vpack.c.b16 %v4537, %v4529
  %v5058 = vpack.c.b16 %v4538, %v4530
  %v5059 = vpack.c.b16 %v4539, %v4531
  %v5060 = vpack.c.b16 %v4540, %v4532
  %v5061 = vpack.c.b16 %v4541, %v4533
  %v5062 = vpack.c.b16 %v4542, %v4534
  %v5063 = vpack.c.b16 %v4551, %v4543
  %v5064 = vpack.c.b16 %v4552, %v4544
  %v5065 = vpack.c.b16 %v4553, %v4545
  %v5066 = vpack.c.b16 %v4554, %v4546
  %v5067 = vpack.c.b16 %v4555, %v4547
  %v5068 = vpack.c.b16 %v4556, %v4548
  %v5069 = vpack.c.b16 %v4557, %v4549
  %v5070 = vpack.c.b16 %v4558, %v4550
  %5583 = vmatprep.subr.bf16.mxu0 %v4560
  %5584 = vmatpush1.bf16.msra.mxu0 %v4559
  %5585 = vmatprep.subr.bf16.mxu0 %v4568
  %5586 = vmatpush1.bf16.msra.mxu0 %v4567
  %5587 = vmatprep.subr.bf16.mxu0 %v4576
  %5588 = vmatpush1.bf16.msra.mxu0 %v4575
  %5589 = vmatprep.subr.bf16.mxu0 %v4584
  %5590 = vmatpush1.bf16.msra.mxu0 %v4583
  %5591 = vmatprep.subr.bf16.mxu0 %v4592
  %5592 = vmatpush1.bf16.msra.mxu0 %v4591
  %5593 = vmatprep.subr.bf16.mxu0 %v4600
  %5594 = vmatpush1.bf16.msra.mxu0 %v4599
  %5595 = vmatprep.subr.bf16.mxu0 %v4608
  %5596 = vmatpush1.bf16.msra.mxu0 %v4607
  %5597 = vmatprep.subr.bf16.mxu0 %v4616
  %5598 = vmatpush1.bf16.msra.mxu0 %v4615
  %5599 = vmatprep.subr.bf16.mxu0 %v4624
  %5600 = vmatpush1.bf16.msra.mxu0 %v4623
  %5601 = vmatprep.subr.bf16.mxu0 %v4632
  %5602 = vmatpush1.bf16.msra.mxu0 %v4631
  %5603 = vmatprep.subr.bf16.mxu0 %v4640
  %5604 = vmatpush1.bf16.msra.mxu0 %v4639
  %5605 = vmatprep.subr.bf16.mxu0 %v4648
  %5606 = vmatpush1.bf16.msra.mxu0 %v4647
  %5607 = vmatprep.subr.bf16.mxu0 %v4656
  %5608 = vmatpush1.bf16.msra.mxu0 %v4655
  %5609 = vmatprep.subr.bf16.mxu0 %v4664
  %5610 = vmatpush1.bf16.msra.mxu0 %v4663
  %5611 = vmatprep.subr.bf16.mxu0 %v4672
  %5612 = vmatpush1.bf16.msra.mxu0 %v4671
  %5613 = vmatprep.subr.bf16.mxu0 %v4680
  %5614 = vmatpush1.bf16.msra.mxu0 %v4679
  %5615 = vmatprep.mubr.bf16.mxu0 %v2504
  %5616 = vmatmul.mubr.bf16.gmra.mrb[0].mxu0 %v2503
  %v5617 = vpop.f32.mrb[0].mxu0
  %v5618 = vadd.f32 0.0, %v5617
  %v5619 = vpop.f32.mrb[0].mxu0
  %v5620 = vadd.f32 0.0, %v5619
  %v5621 = vpop.f32.mrb[0].mxu0
  %v5622 = vpop.f32.mrb[0].mxu0
  %5623 = vdwg.mxu0
  %5624 = vmatprep.subr.bf16.mxu0 %v4688
  %5625 = vmatpush1.bf16.msra.mxu0 %v4687
  %5626 = vmatprep.subr.bf16.mxu0 %v4696
  %5627 = vmatpush1.bf16.msra.mxu0 %v4695
  %5628 = vmatprep.subr.bf16.mxu0 %v4704
  %5629 = vmatpush1.bf16.msra.mxu0 %v4703
  %5630 = vmatprep.subr.bf16.mxu0 %v4712
  %5631 = vmatpush1.bf16.msra.mxu0 %v4711
  %5632 = vmatprep.subr.bf16.mxu0 %v4720
  %5633 = vmatpush1.bf16.msra.mxu0 %v4719
  %5634 = vmatprep.subr.bf16.mxu0 %v4728
  %5635 = vmatpush1.bf16.msra.mxu0 %v4727
  %5636 = vmatprep.subr.bf16.mxu0 %v4736
  %5637 = vmatpush1.bf16.msra.mxu0 %v4735
  %5638 = vmatprep.subr.bf16.mxu0 %v4744
  %5639 = vmatpush1.bf16.msra.mxu0 %v4743
  %5640 = vmatprep.subr.bf16.mxu0 %v4752
  %5641 = vmatpush1.bf16.msra.mxu0 %v4751
  %5642 = vmatprep.subr.bf16.mxu0 %v4760
  %5643 = vmatpush1.bf16.msra.mxu0 %v4759
  %5644 = vmatprep.subr.bf16.mxu0 %v4768
  %5645 = vmatpush1.bf16.msra.mxu0 %v4767
  %5646 = vmatprep.subr.bf16.mxu0 %v4776
  %5647 = vmatpush1.bf16.msra.mxu0 %v4775
  %5648 = vmatprep.subr.bf16.mxu0 %v4784
  %5649 = vmatpush1.bf16.msra.mxu0 %v4783
  %5650 = vmatprep.subr.bf16.mxu0 %v4792
  %5651 = vmatpush1.bf16.msra.mxu0 %v4791
  %5652 = vmatprep.subr.bf16.mxu0 %v4800
  %5653 = vmatpush1.bf16.msra.mxu0 %v4799
  %5654 = vmatprep.subr.bf16.mxu0 %v4808
  %5655 = vmatpush1.bf16.msra.mxu0 %v4807
  %5656 = vmatprep.mubr.bf16.mxu0 %v2506
  %5657 = vmatmul.mubr.bf16.gmra.mrb[0].mxu0 %v2505
  %v5658 = vpop.f32.mrb[0].mxu0
  %v5659 = vadd.f32 %v5618, %v5658
  %v5660 = vpop.f32.mrb[0].mxu0
  %v5661 = vadd.f32 %v5620, %v5660
  %v5662 = vpop.f32.mrb[0].mxu0
  %v5663 = vpop.f32.mrb[0].mxu0
  %5664 = vdwg.mxu0
  %5665 = vmatprep.subr.bf16.mxu0 %v4816
  %5666 = vmatpush1.bf16.msra.mxu0 %v4815
  %5667 = vmatprep.subr.bf16.mxu0 %v4824
  %5668 = vmatpush1.bf16.msra.mxu0 %v4823
  %5669 = vmatprep.subr.bf16.mxu0 %v4832
  %5670 = vmatpush1.bf16.msra.mxu0 %v4831
  %5671 = vmatprep.subr.bf16.mxu0 %v4840
  %5672 = vmatpush1.bf16.msra.mxu0 %v4839
  %5673 = vmatprep.subr.bf16.mxu0 %v4848
  %5674 = vmatpush1.bf16.msra.mxu0 %v4847
  %5675 = vmatprep.subr.bf16.mxu0 %v4856
  %5676 = vmatpush1.bf16.msra.mxu0 %v4855
  %5677 = vmatprep.subr.bf16.mxu0 %v4864
  %5678 = vmatpush1.bf16.msra.mxu0 %v4863
  %5679 = vmatprep.subr.bf16.mxu0 %v4872
  %5680 = vmatpush1.bf16.msra.mxu0 %v4871
  %5681 = vmatprep.subr.bf16.mxu0 %v4880
  %5682 = vmatpush1.bf16.msra.mxu0 %v4879
  %5683 = vmatprep.subr.bf16.mxu0 %v4888
  %5684 = vmatpush1.bf16.msra.mxu0 %v4887
  %5685 = vmatprep.subr.bf16.mxu0 %v4896
  %5686 = vmatpush1.bf16.msra.mxu0 %v4895
  %5687 = vmatprep.subr.bf16.mxu0 %v4904
  %5688 = vmatpush1.bf16.msra.mxu0 %v4903
  %5689 = vmatprep.subr.bf16.mxu0 %v4912
  %5690 = vmatpush1.bf16.msra.mxu0 %v4911
  %5691 = vmatprep.subr.bf16.mxu0 %v4920
  %5692 = vmatpush1.bf16.msra.mxu0 %v4919
  %5693 = vmatprep.subr.bf16.mxu0 %v4928
  %5694 = vmatpush1.bf16.msra.mxu0 %v4927
  %5695 = vmatprep.subr.bf16.mxu0 %v4936
  %5696 = vmatpush1.bf16.msra.mxu0 %v4935
  %5697 = vmatprep.mubr.bf16.mxu0 %v2508
  %5698 = vmatmul.mubr.bf16.gmra.mrb[0].mxu0 %v2507
  %v5699 = vpop.f32.mrb[0].mxu0
  %v5700 = vadd.f32 %v5659, %v5699
  %v5701 = vpop.f32.mrb[0].mxu0
  %v5702 = vadd.f32 %v5661, %v5701
  %v5703 = vpop.f32.mrb[0].mxu0
  %v5704 = vpop.f32.mrb[0].mxu0
  %5705 = vdwg.mxu0
  %5706 = vmatprep.subr.bf16.mxu0 %v4944
  %5707 = vmatpush1.bf16.msra.mxu0 %v4943
  %5708 = vmatprep.subr.bf16.mxu0 %v4952
  %5709 = vmatpush1.bf16.msra.mxu0 %v4951
  %5710 = vmatprep.subr.bf16.mxu0 %v4960
  %5711 = vmatpush1.bf16.msra.mxu0 %v4959
  %5712 = vmatprep.subr.bf16.mxu0 %v4968
  %5713 = vmatpush1.bf16.msra.mxu0 %v4967
  %5714 = vmatprep.subr.bf16.mxu0 %v4976
  %5715 = vmatpush1.bf16.msra.mxu0 %v4975
  %5716 = vmatprep.subr.bf16.mxu0 %v4984
  %5717 = vmatpush1.bf16.msra.mxu0 %v4983
  %5718 = vmatprep.subr.bf16.mxu0 %v4992
  %5719 = vmatpush1.bf16.msra.mxu0 %v4991
  %5720 = vmatprep.subr.bf16.mxu0 %v5000
  %5721 = vmatpush1.bf16.msra.mxu0 %v4999
  %5722 = vmatprep.subr.bf16.mxu0 %v5008
  %5723 = vmatpush1.bf16.msra.mxu0 %v5007
  %5724 = vmatprep.subr.bf16.mxu0 %v5016
  %5725 = vmatpush1.bf16.msra.mxu0 %v5015
  %5726 = vmatprep.subr.bf16.mxu0 %v5024
  %5727 = vmatpush1.bf16.msra.mxu0 %v5023
  %5728 = vmatprep.subr.bf16.mxu0 %v5032
  %5729 = vmatpush1.bf16.msra.mxu0 %v5031
  %5730 = vmatprep.subr.bf16.mxu0 %v5040
  %5731 = vmatpush1.bf16.msra.mxu0 %v5039
  %5732 = vmatprep.subr.bf16.mxu0 %v5048
  %5733 = vmatpush1.bf16.msra.mxu0 %v5047
  %5734 = vmatprep.subr.bf16.mxu0 %v5056
  %5735 = vmatpush1.bf16.msra.mxu0 %v5055
  %5736 = vmatprep.subr.bf16.mxu0 %v5064
  %5737 = vmatpush1.bf16.msra.mxu0 %v5063
  %5738 = vmatprep.mubr.bf16.mxu0 %v2510
  %5739 = vmatmul.mubr.bf16.gmra.mrb[0].mxu0 %v2509
  %v5740 = vpop.f32.mrb[0].mxu0
  %v5741 = vadd.f32 %v5700, %v5740
  %v5742 = vpop.f32.mrb[0].mxu0
  %v5743 = vadd.f32 %v5702, %v5742
  %v5744 = vpop.f32.mrb[0].mxu0
  %v5745 = vpop.f32.mrb[0].mxu0
  %5746 = vdwg.mxu0
  %5747 = vmatprep.subr.bf16.mxu0 %v4562
  %5748 = vmatpush1.bf16.msra.mxu0 %v4561
  %5749 = vmatprep.subr.bf16.mxu0 %v4570
  %5750 = vmatpush1.bf16.msra.mxu0 %v4569
  %5751 = vmatprep.subr.bf16.mxu0 %v4578
  %5752 = vmatpush1.bf16.msra.mxu0 %v4577
  %5753 = vmatprep.subr.bf16.mxu0 %v4586
  %5754 = vmatpush1.bf16.msra.mxu0 %v4585
  %5755 = vmatprep.subr.bf16.mxu0 %v4594
  %5756 = vmatpush1.bf16.msra.mxu0 %v4593
  %5757 = vmatprep.subr.bf16.mxu0 %v4602
  %5758 = vmatpush1.bf16.msra.mxu0 %v4601
  %5759 = vmatprep.subr.bf16.mxu0 %v4610
  %5760 = vmatpush1.bf16.msra.mxu0 %v4609
  %5761 = vmatprep.subr.bf16.mxu0 %v4618
  %5762 = vmatpush1.bf16.msra.mxu0 %v4617
  %5763 = vmatprep.subr.bf16.mxu0 %v4626
  %5764 = vmatpush1.bf16.msra.mxu0 %v4625
  %5765 = vmatprep.subr.bf16.mxu0 %v4634
  %5766 = vmatpush1.bf16.msra.mxu0 %v4633
  %5767 = vmatprep.subr.bf16.mxu0 %v4642
  %5768 = vmatpush1.bf16.msra.mxu0 %v4641
  %5769 = vmatprep.subr.bf16.mxu0 %v4650
  %5770 = vmatpush1.bf16.msra.mxu0 %v4649
  %5771 = vmatprep.subr.bf16.mxu0 %v4658
  %5772 = vmatpush1.bf16.msra.mxu0 %v4657
  %5773 = vmatprep.subr.bf16.mxu0 %v4666
  %5774 = vmatpush1.bf16.msra.mxu0 %v4665
  %5775 = vmatprep.subr.bf16.mxu0 %v4674
  %5776 = vmatpush1.bf16.msra.mxu0 %v4673
  %5777 = vmatprep.subr.bf16.mxu0 %v4682
  %5778 = vmatpush1.bf16.msra.mxu0 %v4681
  %5779 = vmatprep.mubr.bf16.mxu0 %v2504
  %5780 = vmatmul.mubr.bf16.gmra.mrb[0].mxu0 %v2503
  %v5781 = vpop.f32.mrb[0].mxu0
  %v5782 = vadd.f32 0.0, %v5781
  %v5783 = vpop.f32.mrb[0].mxu0
  %v5784 = vadd.f32 0.0, %v5783
  %v5785 = vpop.f32.mrb[0].mxu0
  %v5786 = vpop.f32.mrb[0].mxu0
  %5787 = vdwg.mxu0
  %5788 = vmatprep.subr.bf16.mxu0 %v4690
  %5789 = vmatpush1.bf16.msra.mxu0 %v4689
  %5790 = vmatprep.subr.bf16.mxu0 %v4698
  %5791 = vmatpush1.bf16.msra.mxu0 %v4697
  %5792 = vmatprep.subr.bf16.mxu0 %v4706
  %5793 = vmatpush1.bf16.msra.mxu0 %v4705
  %5794 = vmatprep.subr.bf16.mxu0 %v4714
  %5795 = vmatpush1.bf16.msra.mxu0 %v4713
  %5796 = vmatprep.subr.bf16.mxu0 %v4722
  %5797 = vmatpush1.bf16.msra.mxu0 %v4721
  %5798 = vmatprep.subr.bf16.mxu0 %v4730
  %5799 = vmatpush1.bf16.msra.mxu0 %v4729
  %5800 = vmatprep.subr.bf16.mxu0 %v4738
  %5801 = vmatpush1.bf16.msra.mxu0 %v4737
  %5802 = vmatprep.subr.bf16.mxu0 %v4746
  %5803 = vmatpush1.bf16.msra.mxu0 %v4745
  %5804 = vmatprep.subr.bf16.mxu0 %v4754
  %5805 = vmatpush1.bf16.msra.mxu0 %v4753
  %5806 = vmatprep.subr.bf16.mxu0 %v4762
  %5807 = vmatpush1.bf16.msra.mxu0 %v4761
  %5808 = vmatprep.subr.bf16.mxu0 %v4770
  %5809 = vmatpush1.bf16.msra.mxu0 %v4769
  %5810 = vmatprep.subr.bf16.mxu0 %v4778
  %5811 = vmatpush1.bf16.msra.mxu0 %v4777
  %5812 = vmatprep.subr.bf16.mxu0 %v4786
  %5813 = vmatpush1.bf16.msra.mxu0 %v4785
  %5814 = vmatprep.subr.bf16.mxu0 %v4794
  %5815 = vmatpush1.bf16.msra.mxu0 %v4793
  %5816 = vmatprep.subr.bf16.mxu0 %v4802
  %5817 = vmatpush1.bf16.msra.mxu0 %v4801
  %5818 = vmatprep.subr.bf16.mxu0 %v4810
  %5819 = vmatpush1.bf16.msra.mxu0 %v4809
  %5820 = vmatprep.mubr.bf16.mxu0 %v2506
  %5821 = vmatmul.mubr.bf16.gmra.mrb[0].mxu0 %v2505
  %v5822 = vpop.f32.mrb[0].mxu0
  %v5823 = vadd.f32 %v5782, %v5822
  %v5824 = vpop.f32.mrb[0].mxu0
  %v5825 = vadd.f32 %v5784, %v5824
  %v5826 = vpop.f32.mrb[0].mxu0
  %v5827 = vpop.f32.mrb[0].mxu0
  %5828 = vdwg.mxu0
  %5829 = vmatprep.subr.bf16.mxu0 %v4818
  %5830 = vmatpush1.bf16.msra.mxu0 %v4817
  %5831 = vmatprep.subr.bf16.mxu0 %v4826
  %5832 = vmatpush1.bf16.msra.mxu0 %v4825
  %5833 = vmatprep.subr.bf16.mxu0 %v4834
  %5834 = vmatpush1.bf16.msra.mxu0 %v4833
  %5835 = vmatprep.subr.bf16.mxu0 %v4842
  %5836 = vmatpush1.bf16.msra.mxu0 %v4841
  %5837 = vmatprep.subr.bf16.mxu0 %v4850
  %5838 = vmatpush1.bf16.msra.mxu0 %v4849
  %5839 = vmatprep.subr.bf16.mxu0 %v4858
  %5840 = vmatpush1.bf16.msra.mxu0 %v4857
  %5841 = vmatprep.subr.bf16.mxu0 %v4866
  %5842 = vmatpush1.bf16.msra.mxu0 %v4865
  %5843 = vmatprep.subr.bf16.mxu0 %v4874
  %5844 = vmatpush1.bf16.msra.mxu0 %v4873
  %5845 = vmatprep.subr.bf16.mxu0 %v4882
  %5846 = vmatpush1.bf16.msra.mxu0 %v4881
  %5847 = vmatprep.subr.bf16.mxu0 %v4890
  %5848 = vmatpush1.bf16.msra.mxu0 %v4889
  %5849 = vmatprep.subr.bf16.mxu0 %v4898
  %5850 = vmatpush1.bf16.msra.mxu0 %v4897
  %5851 = vmatprep.subr.bf16.mxu0 %v4906
  %5852 = vmatpush1.bf16.msra.mxu0 %v4905
  %5853 = vmatprep.subr.bf16.mxu0 %v4914
  %5854 = vmatpush1.bf16.msra.mxu0 %v4913
  %5855 = vmatprep.subr.bf16.mxu0 %v4922
  %5856 = vmatpush1.bf16.msra.mxu0 %v4921
  %5857 = vmatprep.subr.bf16.mxu0 %v4930
  %5858 = vmatpush1.bf16.msra.mxu0 %v4929
  %5859 = vmatprep.subr.bf16.mxu0 %v4938
  %5860 = vmatpush1.bf16.msra.mxu0 %v4937
  %5861 = vmatprep.mubr.bf16.mxu0 %v2508
  %5862 = vmatmul.mubr.bf16.gmra.mrb[0].mxu0 %v2507
  %v5863 = vpop.f32.mrb[0].mxu0
  %v5864 = vadd.f32 %v5823, %v5863
  %v5865 = vpop.f32.mrb[0].mxu0
  %v5866 = vadd.f32 %v5825, %v5865
  %v5867 = vpop.f32.mrb[0].mxu0
  %v5868 = vpop.f32.mrb[0].mxu0
  %5869 = vdwg.mxu0
  %5870 = vmatprep.subr.bf16.mxu0 %v4946
  %5871 = vmatpush1.bf16.msra.mxu0 %v4945
  %5872 = vmatprep.subr.bf16.mxu0 %v4954
  %5873 = vmatpush1.bf16.msra.mxu0 %v4953
  %5874 = vmatprep.subr.bf16.mxu0 %v4962
  %5875 = vmatpush1.bf16.msra.mxu0 %v4961
  %5876 = vmatprep.subr.bf16.mxu0 %v4970
  %5877 = vmatpush1.bf16.msra.mxu0 %v4969
  %5878 = vmatprep.subr.bf16.mxu0 %v4978
  %5879 = vmatpush1.bf16.msra.mxu0 %v4977
  %5880 = vmatprep.subr.bf16.mxu0 %v4986
  %5881 = vmatpush1.bf16.msra.mxu0 %v4985
  %5882 = vmatprep.subr.bf16.mxu0 %v4994
  %5883 = vmatpush1.bf16.msra.mxu0 %v4993
  %5884 = vmatprep.subr.bf16.mxu0 %v5002
  %5885 = vmatpush1.bf16.msra.mxu0 %v5001
  %5886 = vmatprep.subr.bf16.mxu0 %v5010
  %5887 = vmatpush1.bf16.msra.mxu0 %v5009
  %5888 = vmatprep.subr.bf16.mxu0 %v5018
  %5889 = vmatpush1.bf16.msra.mxu0 %v5017
  %5890 = vmatprep.subr.bf16.mxu0 %v5026
  %5891 = vmatpush1.bf16.msra.mxu0 %v5025
  %5892 = vmatprep.subr.bf16.mxu0 %v5034
  %5893 = vmatpush1.bf16.msra.mxu0 %v5033
  %5894 = vmatprep.subr.bf16.mxu0 %v5042
  %5895 = vmatpush1.bf16.msra.mxu0 %v5041
  %5896 = vmatprep.subr.bf16.mxu0 %v5050
  %5897 = vmatpush1.bf16.msra.mxu0 %v5049
  %5898 = vmatprep.subr.bf16.mxu0 %v5058
  %5899 = vmatpush1.bf16.msra.mxu0 %v5057
  %5900 = vmatprep.subr.bf16.mxu0 %v5066
  %5901 = vmatpush1.bf16.msra.mxu0 %v5065
  %5902 = vmatprep.mubr.bf16.mxu0 %v2510
  %5903 = vmatmul.mubr.bf16.gmra.mrb[0].mxu0 %v2509
  %v5904 = vpop.f32.mrb[0].mxu0
  %v5905 = vadd.f32 %v5864, %v5904
  %v5906 = vpop.f32.mrb[0].mxu0
  %v5907 = vadd.f32 %v5866, %v5906
  %v5908 = vpop.f32.mrb[0].mxu0
  %v5909 = vpop.f32.mrb[0].mxu0
  %5910 = vdwg.mxu0
  %5911 = vmatprep.subr.bf16.mxu0 %v4564
  %5912 = vmatpush1.bf16.msra.mxu0 %v4563
  %5913 = vmatprep.subr.bf16.mxu0 %v4572
  %5914 = vmatpush1.bf16.msra.mxu0 %v4571
  %5915 = vmatprep.subr.bf16.mxu0 %v4580
  %5916 = vmatpush1.bf16.msra.mxu0 %v4579
  %5917 = vmatprep.subr.bf16.mxu0 %v4588
  %5918 = vmatpush1.bf16.msra.mxu0 %v4587
  %5919 = vmatprep.subr.bf16.mxu0 %v4596
  %5920 = vmatpush1.bf16.msra.mxu0 %v4595
  %5921 = vmatprep.subr.bf16.mxu0 %v4604
  %5922 = vmatpush1.bf16.msra.mxu0 %v4603
  %5923 = vmatprep.subr.bf16.mxu0 %v4612
  %5924 = vmatpush1.bf16.msra.mxu0 %v4611
  %5925 = vmatprep.subr.bf16.mxu0 %v4620
  %5926 = vmatpush1.bf16.msra.mxu0 %v4619
  %5927 = vmatprep.subr.bf16.mxu0 %v4628
  %5928 = vmatpush1.bf16.msra.mxu0 %v4627
  %5929 = vmatprep.subr.bf16.mxu0 %v4636
  %5930 = vmatpush1.bf16.msra.mxu0 %v4635
  %5931 = vmatprep.subr.bf16.mxu0 %v4644
  %5932 = vmatpush1.bf16.msra.mxu0 %v4643
  %5933 = vmatprep.subr.bf16.mxu0 %v4652
  %5934 = vmatpush1.bf16.msra.mxu0 %v4651
  %5935 = vmatprep.subr.bf16.mxu0 %v4660
  %5936 = vmatpush1.bf16.msra.mxu0 %v4659
  %5937 = vmatprep.subr.bf16.mxu0 %v4668
  %5938 = vmatpush1.bf16.msra.mxu0 %v4667
  %5939 = vmatprep.subr.bf16.mxu0 %v4676
  %5940 = vmatpush1.bf16.msra.mxu0 %v4675
  %5941 = vmatprep.subr.bf16.mxu0 %v4684
  %5942 = vmatpush1.bf16.msra.mxu0 %v4683
  %5943 = vmatprep.mubr.bf16.mxu0 %v2504
  %5944 = vmatmul.mubr.bf16.gmra.mrb[0].mxu0 %v2503
  %v5945 = vpop.f32.mrb[0].mxu0
  %v5946 = vadd.f32 0.0, %v5945
  %v5947 = vpop.f32.mrb[0].mxu0
  %v5948 = vadd.f32 0.0, %v5947
  %v5949 = vpop.f32.mrb[0].mxu0
  %v5950 = vpop.f32.mrb[0].mxu0
  %5951 = vdwg.mxu0
  %5952 = vmatprep.subr.bf16.mxu0 %v4692
  %5953 = vmatpush1.bf16.msra.mxu0 %v4691
  %5954 = vmatprep.subr.bf16.mxu0 %v4700
  %5955 = vmatpush1.bf16.msra.mxu0 %v4699
  %5956 = vmatprep.subr.bf16.mxu0 %v4708
  %5957 = vmatpush1.bf16.msra.mxu0 %v4707
  %5958 = vmatprep.subr.bf16.mxu0 %v4716
  %5959 = vmatpush1.bf16.msra.mxu0 %v4715
  %5960 = vmatprep.subr.bf16.mxu0 %v4724
  %5961 = vmatpush1.bf16.msra.mxu0 %v4723
  %5962 = vmatprep.subr.bf16.mxu0 %v4732
  %5963 = vmatpush1.bf16.msra.mxu0 %v4731
  %5964 = vmatprep.subr.bf16.mxu0 %v4740
  %5965 = vmatpush1.bf16.msra.mxu0 %v4739
  %5966 = vmatprep.subr.bf16.mxu0 %v4748
  %5967 = vmatpush1.bf16.msra.mxu0 %v4747
  %5968 = vmatprep.subr.bf16.mxu0 %v4756
  %5969 = vmatpush1.bf16.msra.mxu0 %v4755
  %5970 = vmatprep.subr.bf16.mxu0 %v4764
  %5971 = vmatpush1.bf16.msra.mxu0 %v4763
  %5972 = vmatprep.subr.bf16.mxu0 %v4772
  %5973 = vmatpush1.bf16.msra.mxu0 %v4771
  %5974 = vmatprep.subr.bf16.mxu0 %v4780
  %5975 = vmatpush1.bf16.msra.mxu0 %v4779
  %5976 = vmatprep.subr.bf16.mxu0 %v4788
  %5977 = vmatpush1.bf16.msra.mxu0 %v4787
  %5978 = vmatprep.subr.bf16.mxu0 %v4796
  %5979 = vmatpush1.bf16.msra.mxu0 %v4795
  %5980 = vmatprep.subr.bf16.mxu0 %v4804
  %5981 = vmatpush1.bf16.msra.mxu0 %v4803
  %5982 = vmatprep.subr.bf16.mxu0 %v4812
  %5983 = vmatpush1.bf16.msra.mxu0 %v4811
  %5984 = vmatprep.mubr.bf16.mxu0 %v2506
  %5985 = vmatmul.mubr.bf16.gmra.mrb[0].mxu0 %v2505
  %v5986 = vpop.f32.mrb[0].mxu0
  %v5987 = vadd.f32 %v5946, %v5986
  %v5988 = vpop.f32.mrb[0].mxu0
  %v5989 = vadd.f32 %v5948, %v5988
  %v5990 = vpop.f32.mrb[0].mxu0
  %v5991 = vpop.f32.mrb[0].mxu0
  %5992 = vdwg.mxu0
  %5993 = vmatprep.subr.bf16.mxu0 %v4820
  %5994 = vmatpush1.bf16.msra.mxu0 %v4819
  %5995 = vmatprep.subr.bf16.mxu0 %v4828
  %5996 = vmatpush1.bf16.msra.mxu0 %v4827
  %5997 = vmatprep.subr.bf16.mxu0 %v4836
  %5998 = vmatpush1.bf16.msra.mxu0 %v4835
  %5999 = vmatprep.subr.bf16.mxu0 %v4844
  %6000 = vmatpush1.bf16.msra.mxu0 %v4843
  %6001 = vmatprep.subr.bf16.mxu0 %v4852
  %6002 = vmatpush1.bf16.msra.mxu0 %v4851
  %6003 = vmatprep.subr.bf16.mxu0 %v4860
  %6004 = vmatpush1.bf16.msra.mxu0 %v4859
  %6005 = vmatprep.subr.bf16.mxu0 %v4868
  %6006 = vmatpush1.bf16.msra.mxu0 %v4867
  %6007 = vmatprep.subr.bf16.mxu0 %v4876
  %6008 = vmatpush1.bf16.msra.mxu0 %v4875
  %6009 = vmatprep.subr.bf16.mxu0 %v4884
  %6010 = vmatpush1.bf16.msra.mxu0 %v4883
  %6011 = vmatprep.subr.bf16.mxu0 %v4892
  %6012 = vmatpush1.bf16.msra.mxu0 %v4891
  %6013 = vmatprep.subr.bf16.mxu0 %v4900
  %6014 = vmatpush1.bf16.msra.mxu0 %v4899
  %6015 = vmatprep.subr.bf16.mxu0 %v4908
  %6016 = vmatpush1.bf16.msra.mxu0 %v4907
  %6017 = vmatprep.subr.bf16.mxu0 %v4916
  %6018 = vmatpush1.bf16.msra.mxu0 %v4915
  %6019 = vmatprep.subr.bf16.mxu0 %v4924
  %6020 = vmatpush1.bf16.msra.mxu0 %v4923
  %6021 = vmatprep.subr.bf16.mxu0 %v4932
  %6022 = vmatpush1.bf16.msra.mxu0 %v4931
  %6023 = vmatprep.subr.bf16.mxu0 %v4940
  %6024 = vmatpush1.bf16.msra.mxu0 %v4939
  %6025 = vmatprep.mubr.bf16.mxu0 %v2508
  %6026 = vmatmul.mubr.bf16.gmra.mrb[0].mxu0 %v2507
  %v6027 = vpop.f32.mrb[0].mxu0
  %v6028 = vadd.f32 %v5987, %v6027
  %v6029 = vpop.f32.mrb[0].mxu0
  %v6030 = vadd.f32 %v5989, %v6029
  %v6031 = vpop.f32.mrb[0].mxu0
  %v6032 = vpop.f32.mrb[0].mxu0
  %6033 = vdwg.mxu0
  %6034 = vmatprep.subr.bf16.mxu0 %v4948
  %6035 = vmatpush1.bf16.msra.mxu0 %v4947
  %6036 = vmatprep.subr.bf16.mxu0 %v4956
  %6037 = vmatpush1.bf16.msra.mxu0 %v4955
  %6038 = vmatprep.subr.bf16.mxu0 %v4964
  %6039 = vmatpush1.bf16.msra.mxu0 %v4963
  %6040 = vmatprep.subr.bf16.mxu0 %v4972
  %6041 = vmatpush1.bf16.msra.mxu0 %v4971
  %6042 = vmatprep.subr.bf16.mxu0 %v4980
  %6043 = vmatpush1.bf16.msra.mxu0 %v4979
  %6044 = vmatprep.subr.bf16.mxu0 %v4988
  %6045 = vmatpush1.bf16.msra.mxu0 %v4987
  %6046 = vmatprep.subr.bf16.mxu0 %v4996
  %6047 = vmatpush1.bf16.msra.mxu0 %v4995
  %6048 = vmatprep.subr.bf16.mxu0 %v5004
  %6049 = vmatpush1.bf16.msra.mxu0 %v5003
  %6050 = vmatprep.subr.bf16.mxu0 %v5012
  %6051 = vmatpush1.bf16.msra.mxu0 %v5011
  %6052 = vmatprep.subr.bf16.mxu0 %v5020
  %6053 = vmatpush1.bf16.msra.mxu0 %v5019
  %6054 = vmatprep.subr.bf16.mxu0 %v5028
  %6055 = vmatpush1.bf16.msra.mxu0 %v5027
  %6056 = vmatprep.subr.bf16.mxu0 %v5036
  %6057 = vmatpush1.bf16.msra.mxu0 %v5035
  %6058 = vmatprep.subr.bf16.mxu0 %v5044
  %6059 = vmatpush1.bf16.msra.mxu0 %v5043
  %6060 = vmatprep.subr.bf16.mxu0 %v5052
  %6061 = vmatpush1.bf16.msra.mxu0 %v5051
  %6062 = vmatprep.subr.bf16.mxu0 %v5060
  %6063 = vmatpush1.bf16.msra.mxu0 %v5059
  %6064 = vmatprep.subr.bf16.mxu0 %v5068
  %6065 = vmatpush1.bf16.msra.mxu0 %v5067
  %6066 = vmatprep.mubr.bf16.mxu0 %v2510
  %6067 = vmatmul.mubr.bf16.gmra.mrb[0].mxu0 %v2509
  %v6068 = vpop.f32.mrb[0].mxu0
  %v6069 = vadd.f32 %v6028, %v6068
  %v6070 = vpop.f32.mrb[0].mxu0
  %v6071 = vadd.f32 %v6030, %v6070
  %v6072 = vpop.f32.mrb[0].mxu0
  %v6073 = vpop.f32.mrb[0].mxu0
  %6074 = vdwg.mxu0
  %6075 = vmatprep.subr.bf16.mxu0 %v4566
  %6076 = vmatpush1.bf16.msra.mxu0 %v4565
  %6077 = vmatprep.subr.bf16.mxu0 %v4574
  %6078 = vmatpush1.bf16.msra.mxu0 %v4573
  %6079 = vmatprep.subr.bf16.mxu0 %v4582
  %6080 = vmatpush1.bf16.msra.mxu0 %v4581
  %6081 = vmatprep.subr.bf16.mxu0 %v4590
  %6082 = vmatpush1.bf16.msra.mxu0 %v4589
  %6083 = vmatprep.subr.bf16.mxu0 %v4598
  %6084 = vmatpush1.bf16.msra.mxu0 %v4597
  %6085 = vmatprep.subr.bf16.mxu0 %v4606
  %6086 = vmatpush1.bf16.msra.mxu0 %v4605
  %6087 = vmatprep.subr.bf16.mxu0 %v4614
  %6088 = vmatpush1.bf16.msra.mxu0 %v4613
  %6089 = vmatprep.subr.bf16.mxu0 %v4622
  %6090 = vmatpush1.bf16.msra.mxu0 %v4621
  %6091 = vmatprep.subr.bf16.mxu0 %v4630
  %6092 = vmatpush1.bf16.msra.mxu0 %v4629
  %6093 = vmatprep.subr.bf16.mxu0 %v4638
  %6094 = vmatpush1.bf16.msra.mxu0 %v4637
  %6095 = vmatprep.subr.bf16.mxu0 %v4646
  %6096 = vmatpush1.bf16.msra.mxu0 %v4645
  %6097 = vmatprep.subr.bf16.mxu0 %v4654
  %6098 = vmatpush1.bf16.msra.mxu0 %v4653
  %6099 = vmatprep.subr.bf16.mxu0 %v4662
  %6100 = vmatpush1.bf16.msra.mxu0 %v4661
  %6101 = vmatprep.subr.bf16.mxu0 %v4670
  %6102 = vmatpush1.bf16.msra.mxu0 %v4669
  %6103 = vmatprep.subr.bf16.mxu0 %v4678
  %6104 = vmatpush1.bf16.msra.mxu0 %v4677
  %6105 = vmatprep.subr.bf16.mxu0 %v4686
  %6106 = vmatpush1.bf16.msra.mxu0 %v4685
  %6107 = vmatprep.mubr.bf16.mxu0 %v2504
  %6108 = vmatmul.mubr.bf16.gmra.mrb[0].mxu0 %v2503
  %v6109 = vpop.f32.mrb[0].mxu0
  %v6110 = vadd.f32 0.0, %v6109
  %v6111 = vpop.f32.mrb[0].mxu0
  %v6112 = vadd.f32 0.0, %v6111
  %v6113 = vpop.f32.mrb[0].mxu0
  %v6114 = vpop.f32.mrb[0].mxu0
  %6115 = vdwg.mxu0
  %6116 = vmatprep.subr.bf16.mxu0 %v4694
  %6117 = vmatpush1.bf16.msra.mxu0 %v4693
  %6118 = vmatprep.subr.bf16.mxu0 %v4702
  %6119 = vmatpush1.bf16.msra.mxu0 %v4701
  %6120 = vmatprep.subr.bf16.mxu0 %v4710
  %6121 = vmatpush1.bf16.msra.mxu0 %v4709
  %6122 = vmatprep.subr.bf16.mxu0 %v4718
  %6123 = vmatpush1.bf16.msra.mxu0 %v4717
  %6124 = vmatprep.subr.bf16.mxu0 %v4726
  %6125 = vmatpush1.bf16.msra.mxu0 %v4725
  %6126 = vmatprep.subr.bf16.mxu0 %v4734
  %6127 = vmatpush1.bf16.msra.mxu0 %v4733
  %6128 = vmatprep.subr.bf16.mxu0 %v4742
  %6129 = vmatpush1.bf16.msra.mxu0 %v4741
  %6130 = vmatprep.subr.bf16.mxu0 %v4750
  %6131 = vmatpush1.bf16.msra.mxu0 %v4749
  %6132 = vmatprep.subr.bf16.mxu0 %v4758
  %6133 = vmatpush1.bf16.msra.mxu0 %v4757
  %6134 = vmatprep.subr.bf16.mxu0 %v4766
  %6135 = vmatpush1.bf16.msra.mxu0 %v4765
  %6136 = vmatprep.subr.bf16.mxu0 %v4774
  %6137 = vmatpush1.bf16.msra.mxu0 %v4773
  %6138 = vmatprep.subr.bf16.mxu0 %v4782
  %6139 = vmatpush1.bf16.msra.mxu0 %v4781
  %6140 = vmatprep.subr.bf16.mxu0 %v4790
  %6141 = vmatpush1.bf16.msra.mxu0 %v4789
  %6142 = vmatprep.subr.bf16.mxu0 %v4798
  %6143 = vmatpush1.bf16.msra.mxu0 %v4797
  %6144 = vmatprep.subr.bf16.mxu0 %v4806
  %6145 = vmatpush1.bf16.msra.mxu0 %v4805
  %6146 = vmatprep.subr.bf16.mxu0 %v4814
  %6147 = vmatpush1.bf16.msra.mxu0 %v4813
  %6148 = vmatprep.mubr.bf16.mxu0 %v2506
  %6149 = vmatmul.mubr.bf16.gmra.mrb[0].mxu0 %v2505
  %v6150 = vpop.f32.mrb[0].mxu0
  %v6151 = vadd.f32 %v6110, %v6150
  %v6152 = vpop.f32.mrb[0].mxu0
  %v6153 = vadd.f32 %v6112, %v6152
  %v6154 = vpop.f32.mrb[0].mxu0
  %v6155 = vpop.f32.mrb[0].mxu0
  %6156 = vdwg.mxu0
  %6157 = vmatprep.subr.bf16.mxu0 %v4822
  %6158 = vmatpush1.bf16.msra.mxu0 %v4821
  %6159 = vmatprep.subr.bf16.mxu0 %v4830
  %6160 = vmatpush1.bf16.msra.mxu0 %v4829
  %6161 = vmatprep.subr.bf16.mxu0 %v4838
  %6162 = vmatpush1.bf16.msra.mxu0 %v4837
  %6163 = vmatprep.subr.bf16.mxu0 %v4846
  %6164 = vmatpush1.bf16.msra.mxu0 %v4845
  %6165 = vmatprep.subr.bf16.mxu0 %v4854
  %6166 = vmatpush1.bf16.msra.mxu0 %v4853
  %6167 = vmatprep.subr.bf16.mxu0 %v4862
  %6168 = vmatpush1.bf16.msra.mxu0 %v4861
  %6169 = vmatprep.subr.bf16.mxu0 %v4870
  %6170 = vmatpush1.bf16.msra.mxu0 %v4869
  %6171 = vmatprep.subr.bf16.mxu0 %v4878
  %6172 = vmatpush1.bf16.msra.mxu0 %v4877
  %6173 = vmatprep.subr.bf16.mxu0 %v4886
  %6174 = vmatpush1.bf16.msra.mxu0 %v4885
  %6175 = vmatprep.subr.bf16.mxu0 %v4894
  %6176 = vmatpush1.bf16.msra.mxu0 %v4893
  %6177 = vmatprep.subr.bf16.mxu0 %v4902
  %6178 = vmatpush1.bf16.msra.mxu0 %v4901
  %6179 = vmatprep.subr.bf16.mxu0 %v4910
  %6180 = vmatpush1.bf16.msra.mxu0 %v4909
  %6181 = vmatprep.subr.bf16.mxu0 %v4918
  %6182 = vmatpush1.bf16.msra.mxu0 %v4917
  %6183 = vmatprep.subr.bf16.mxu0 %v4926
  %6184 = vmatpush1.bf16.msra.mxu0 %v4925
  %6185 = vmatprep.subr.bf16.mxu0 %v4934
  %6186 = vmatpush1.bf16.msra.mxu0 %v4933
  %6187 = vmatprep.subr.bf16.mxu0 %v4942
  %6188 = vmatpush1.bf16.msra.mxu0 %v4941
  %6189 = vmatprep.mubr.bf16.mxu0 %v2508
  %6190 = vmatmul.mubr.bf16.gmra.mrb[0].mxu0 %v2507
  %v6191 = vpop.f32.mrb[0].mxu0
  %v6192 = vadd.f32 %v6151, %v6191
  %v6193 = vpop.f32.mrb[0].mxu0
  %v6194 = vadd.f32 %v6153, %v6193
  %v6195 = vpop.f32.mrb[0].mxu0
  %v6196 = vpop.f32.mrb[0].mxu0
  %6197 = vdwg.mxu0
  %6198 = vmatprep.subr.bf16.mxu0 %v4950
  %6199 = vmatpush1.bf16.msra.mxu0 %v4949
  %6200 = vmatprep.subr.bf16.mxu0 %v4958
  %6201 = vmatpush1.bf16.msra.mxu0 %v4957
  %6202 = vmatprep.subr.bf16.mxu0 %v4966
  %6203 = vmatpush1.bf16.msra.mxu0 %v4965
  %6204 = vmatprep.subr.bf16.mxu0 %v4974
  %6205 = vmatpush1.bf16.msra.mxu0 %v4973
  %6206 = vmatprep.subr.bf16.mxu0 %v4982
  %6207 = vmatpush1.bf16.msra.mxu0 %v4981
  %6208 = vmatprep.subr.bf16.mxu0 %v4990
  %6209 = vmatpush1.bf16.msra.mxu0 %v4989
  %6210 = vmatprep.subr.bf16.mxu0 %v4998
  %6211 = vmatpush1.bf16.msra.mxu0 %v4997
  %6212 = vmatprep.subr.bf16.mxu0 %v5006
  %6213 = vmatpush1.bf16.msra.mxu0 %v5005
  %6214 = vmatprep.subr.bf16.mxu0 %v5014
  %6215 = vmatpush1.bf16.msra.mxu0 %v5013
  %6216 = vmatprep.subr.bf16.mxu0 %v5022
  %6217 = vmatpush1.bf16.msra.mxu0 %v5021
  %6218 = vmatprep.subr.bf16.mxu0 %v5030
  %6219 = vmatpush1.bf16.msra.mxu0 %v5029
  %6220 = vmatprep.subr.bf16.mxu0 %v5038
  %6221 = vmatpush1.bf16.msra.mxu0 %v5037
  %6222 = vmatprep.subr.bf16.mxu0 %v5046
  %6223 = vmatpush1.bf16.msra.mxu0 %v5045
  %6224 = vmatprep.subr.bf16.mxu0 %v5054
  %6225 = vmatpush1.bf16.msra.mxu0 %v5053
  %6226 = vmatprep.subr.bf16.mxu0 %v5062
  %6227 = vmatpush1.bf16.msra.mxu0 %v5061
  %6228 = vmatprep.subr.bf16.mxu0 %v5070
  %6229 = vmatpush1.bf16.msra.mxu0 %v5069
  %6230 = vmatprep.mubr.bf16.mxu0 %v2510
  %6231 = vmatmul.mubr.bf16.gmra.mrb[0].mxu0 %v2509
  %v6232 = vpop.f32.mrb[0].mxu0
  %v6233 = vadd.f32 %v6192, %v6232
  %v6234 = vpop.f32.mrb[0].mxu0
  %v6235 = vadd.f32 %v6194, %v6234
  %v6236 = vpop.f32.mrb[0].mxu0
  %v6237 = vpop.f32.mrb[0].mxu0
  %6238 = vdwg.mxu0
  %v6751 = vunpack.c.l.b16 %v1991
  %v6752 = vunpack.c.h.b16 %v1991
  %v6753 = vunpack.c.l.b16 %v1992
  %v6754 = vunpack.c.h.b16 %v1992
  %v6755 = vunpack.c.l.b16 %v1993
  %v6756 = vunpack.c.h.b16 %v1993
  %v6757 = vunpack.c.l.b16 %v1994
  %v6758 = vunpack.c.h.b16 %v1994
  %v6759 = vunpack.c.l.b16 %v1995
  %v6760 = vunpack.c.h.b16 %v1995
  %v6761 = vunpack.c.l.b16 %v1996
  %v6762 = vunpack.c.h.b16 %v1996
  %v6763 = vunpack.c.l.b16 %v1997
  %v6764 = vunpack.c.h.b16 %v1997
  %v6765 = vunpack.c.l.b16 %v1998
  %v6766 = vunpack.c.h.b16 %v1998
  %v6767 = vunpack.c.l.b16 %v1999
  %v6768 = vunpack.c.h.b16 %v1999
  %v6769 = vunpack.c.l.b16 %v2000
  %v6770 = vunpack.c.h.b16 %v2000
  %v6771 = vunpack.c.l.b16 %v2001
  %v6772 = vunpack.c.h.b16 %v2001
  %v6773 = vunpack.c.l.b16 %v2002
  %v6774 = vunpack.c.h.b16 %v2002
  %v6775 = vunpack.c.l.b16 %v2003
  %v6776 = vunpack.c.h.b16 %v2003
  %v6777 = vunpack.c.l.b16 %v2004
  %v6778 = vunpack.c.h.b16 %v2004
  %v6779 = vunpack.c.l.b16 %v2005
  %v6780 = vunpack.c.h.b16 %v2005
  %v6781 = vunpack.c.l.b16 %v2006
  %v6782 = vunpack.c.h.b16 %v2006
  %v6783 = vunpack.c.l.b16 %v2007
  %v6784 = vunpack.c.h.b16 %v2007
  %v6785 = vunpack.c.l.b16 %v2008
  %v6786 = vunpack.c.h.b16 %v2008
  %v6787 = vunpack.c.l.b16 %v2009
  %v6788 = vunpack.c.h.b16 %v2009
  %v6789 = vunpack.c.l.b16 %v2010
  %v6790 = vunpack.c.h.b16 %v2010
  %v6791 = vunpack.c.l.b16 %v2011
  %v6792 = vunpack.c.h.b16 %v2011
  %v6793 = vunpack.c.l.b16 %v2012
  %v6794 = vunpack.c.h.b16 %v2012
  %v6795 = vunpack.c.l.b16 %v2013
  %v6796 = vunpack.c.h.b16 %v2013
  %v6797 = vunpack.c.l.b16 %v2014
  %v6798 = vunpack.c.h.b16 %v2014
  %v6799 = vunpack.c.l.b16 %v2015
  %v6800 = vunpack.c.h.b16 %v2015
  %v6801 = vunpack.c.l.b16 %v2016
  %v6802 = vunpack.c.h.b16 %v2016
  %v6803 = vunpack.c.l.b16 %v2017
  %v6804 = vunpack.c.h.b16 %v2017
  %v6805 = vunpack.c.l.b16 %v2018
  %v6806 = vunpack.c.h.b16 %v2018
  %v6807 = vunpack.c.l.b16 %v2019
  %v6808 = vunpack.c.h.b16 %v2019
  %v6809 = vunpack.c.l.b16 %v2020
  %v6810 = vunpack.c.h.b16 %v2020
  %v6811 = vunpack.c.l.b16 %v2021
  %v6812 = vunpack.c.h.b16 %v2021
  %v6813 = vunpack.c.l.b16 %v2022
  %v6814 = vunpack.c.h.b16 %v2022
  %v6815 = vunpack.c.l.b16 %v2023
  %v6816 = vunpack.c.h.b16 %v2023
  %v6817 = vunpack.c.l.b16 %v2024
  %v6818 = vunpack.c.h.b16 %v2024
  %v6819 = vunpack.c.l.b16 %v2025
  %v6820 = vunpack.c.h.b16 %v2025
  %v6821 = vunpack.c.l.b16 %v2026
  %v6822 = vunpack.c.h.b16 %v2026
  %v6823 = vunpack.c.l.b16 %v2027
  %v6824 = vunpack.c.h.b16 %v2027
  %v6825 = vunpack.c.l.b16 %v2028
  %v6826 = vunpack.c.h.b16 %v2028
  %v6827 = vunpack.c.l.b16 %v2029
  %v6828 = vunpack.c.h.b16 %v2029
  %v6829 = vunpack.c.l.b16 %v2030
  %v6830 = vunpack.c.h.b16 %v2030
  %v6831 = vunpack.c.l.b16 %v2031
  %v6832 = vunpack.c.h.b16 %v2031
  %v6833 = vunpack.c.l.b16 %v2032
  %v6834 = vunpack.c.h.b16 %v2032
  %v6835 = vunpack.c.l.b16 %v2033
  %v6836 = vunpack.c.h.b16 %v2033
  %v6837 = vunpack.c.l.b16 %v2034
  %v6838 = vunpack.c.h.b16 %v2034
  %v6839 = vunpack.c.l.b16 %v2035
  %v6840 = vunpack.c.h.b16 %v2035
  %v6841 = vunpack.c.l.b16 %v2036
  %v6842 = vunpack.c.h.b16 %v2036
  %v6843 = vunpack.c.l.b16 %v2037
  %v6844 = vunpack.c.h.b16 %v2037
  %v6845 = vunpack.c.l.b16 %v2038
  %v6846 = vunpack.c.h.b16 %v2038
  %v6847 = vunpack.c.l.b16 %v2039
  %v6848 = vunpack.c.h.b16 %v2039
  %v6849 = vunpack.c.l.b16 %v2040
  %v6850 = vunpack.c.h.b16 %v2040
  %v6851 = vunpack.c.l.b16 %v2041
  %v6852 = vunpack.c.h.b16 %v2041
  %v6853 = vunpack.c.l.b16 %v2042
  %v6854 = vunpack.c.h.b16 %v2042
  %v6855 = vunpack.c.l.b16 %v2043
  %v6856 = vunpack.c.h.b16 %v2043
  %v6857 = vunpack.c.l.b16 %v2044
  %v6858 = vunpack.c.h.b16 %v2044
  %v6859 = vunpack.c.l.b16 %v2045
  %v6860 = vunpack.c.h.b16 %v2045
  %v6861 = vunpack.c.l.b16 %v2046
  %v6862 = vunpack.c.h.b16 %v2046
  %v6863 = vunpack.c.l.b16 %v2047
  %v6864 = vunpack.c.h.b16 %v2047
  %v6865 = vunpack.c.l.b16 %v2048
  %v6866 = vunpack.c.h.b16 %v2048
  %v6867 = vunpack.c.l.b16 %v2049
  %v6868 = vunpack.c.h.b16 %v2049
  %v6869 = vunpack.c.l.b16 %v2050
  %v6870 = vunpack.c.h.b16 %v2050
  %v6871 = vunpack.c.l.b16 %v2051
  %v6872 = vunpack.c.h.b16 %v2051
  %v6873 = vunpack.c.l.b16 %v2052
  %v6874 = vunpack.c.h.b16 %v2052
  %v6875 = vunpack.c.l.b16 %v2053
  %v6876 = vunpack.c.h.b16 %v2053
  %v6877 = vunpack.c.l.b16 %v2054
  %v6878 = vunpack.c.h.b16 %v2054
  %v6879 = vunpack.c.l.b16 %v2055
  %v6880 = vunpack.c.h.b16 %v2055
  %v6881 = vunpack.c.l.b16 %v2056
  %v6882 = vunpack.c.h.b16 %v2056
  %v6883 = vunpack.c.l.b16 %v2057
  %v6884 = vunpack.c.h.b16 %v2057
  %v6885 = vunpack.c.l.b16 %v2058
  %v6886 = vunpack.c.h.b16 %v2058
  %v6887 = vunpack.c.l.b16 %v2059
  %v6888 = vunpack.c.h.b16 %v2059
  %v6889 = vunpack.c.l.b16 %v2060
  %v6890 = vunpack.c.h.b16 %v2060
  %v6891 = vunpack.c.l.b16 %v2061
  %v6892 = vunpack.c.h.b16 %v2061
  %v6893 = vunpack.c.l.b16 %v2062
  %v6894 = vunpack.c.h.b16 %v2062
  %v6895 = vunpack.c.l.b16 %v2063
  %v6896 = vunpack.c.h.b16 %v2063
  %v6897 = vunpack.c.l.b16 %v2064
  %v6898 = vunpack.c.h.b16 %v2064
  %v6899 = vunpack.c.l.b16 %v2065
  %v6900 = vunpack.c.h.b16 %v2065
  %v6901 = vunpack.c.l.b16 %v2066
  %v6902 = vunpack.c.h.b16 %v2066
  %v6903 = vunpack.c.l.b16 %v2067
  %v6904 = vunpack.c.h.b16 %v2067
  %v6905 = vunpack.c.l.b16 %v2068
  %v6906 = vunpack.c.h.b16 %v2068
  %v6907 = vunpack.c.l.b16 %v2069
  %v6908 = vunpack.c.h.b16 %v2069
  %v6909 = vunpack.c.l.b16 %v2070
  %v6910 = vunpack.c.h.b16 %v2070
  %v6911 = vunpack.c.l.b16 %v2071
  %v6912 = vunpack.c.h.b16 %v2071
  %v6913 = vunpack.c.l.b16 %v2072
  %v6914 = vunpack.c.h.b16 %v2072
  %v6915 = vunpack.c.l.b16 %v2073
  %v6916 = vunpack.c.h.b16 %v2073
  %v6917 = vunpack.c.l.b16 %v2074
  %v6918 = vunpack.c.h.b16 %v2074
  %v6919 = vunpack.c.l.b16 %v2075
  %v6920 = vunpack.c.h.b16 %v2075
  %v6921 = vunpack.c.l.b16 %v2076
  %v6922 = vunpack.c.h.b16 %v2076
  %v6923 = vunpack.c.l.b16 %v2077
  %v6924 = vunpack.c.h.b16 %v2077
  %v6925 = vunpack.c.l.b16 %v2078
  %v6926 = vunpack.c.h.b16 %v2078
  %v6927 = vunpack.c.l.b16 %v2079
  %v6928 = vunpack.c.h.b16 %v2079
  %v6929 = vunpack.c.l.b16 %v2080
  %v6930 = vunpack.c.h.b16 %v2080
  %v6931 = vunpack.c.l.b16 %v2081
  %v6932 = vunpack.c.h.b16 %v2081
  %v6933 = vunpack.c.l.b16 %v2082
  %v6934 = vunpack.c.h.b16 %v2082
  %v6935 = vunpack.c.l.b16 %v2083
  %v6936 = vunpack.c.h.b16 %v2083
  %v6937 = vunpack.c.l.b16 %v2084
  %v6938 = vunpack.c.h.b16 %v2084
  %v6939 = vunpack.c.l.b16 %v2085
  %v6940 = vunpack.c.h.b16 %v2085
  %v6941 = vunpack.c.l.b16 %v2086
  %v6942 = vunpack.c.h.b16 %v2086
  %v6943 = vunpack.c.l.b16 %v2087
  %v6944 = vunpack.c.h.b16 %v2087
  %v6945 = vunpack.c.l.b16 %v2088
  %v6946 = vunpack.c.h.b16 %v2088
  %v6947 = vunpack.c.l.b16 %v2089
  %v6948 = vunpack.c.h.b16 %v2089
  %v6949 = vunpack.c.l.b16 %v2090
  %v6950 = vunpack.c.h.b16 %v2090
  %v6951 = vunpack.c.l.b16 %v2091
  %v6952 = vunpack.c.h.b16 %v2091
  %v6953 = vunpack.c.l.b16 %v2092
  %v6954 = vunpack.c.h.b16 %v2092
  %v6955 = vunpack.c.l.b16 %v2093
  %v6956 = vunpack.c.h.b16 %v2093
  %v6957 = vunpack.c.l.b16 %v2094
  %v6958 = vunpack.c.h.b16 %v2094
  %v6959 = vunpack.c.l.b16 %v2095
  %v6960 = vunpack.c.h.b16 %v2095
  %v6961 = vunpack.c.l.b16 %v2096
  %v6962 = vunpack.c.h.b16 %v2096
  %v6963 = vunpack.c.l.b16 %v2097
  %v6964 = vunpack.c.h.b16 %v2097
  %v6965 = vunpack.c.l.b16 %v2098
  %v6966 = vunpack.c.h.b16 %v2098
  %v6967 = vunpack.c.l.b16 %v2099
  %v6968 = vunpack.c.h.b16 %v2099
  %v6969 = vunpack.c.l.b16 %v2100
  %v6970 = vunpack.c.h.b16 %v2100
  %v6971 = vunpack.c.l.b16 %v2101
  %v6972 = vunpack.c.h.b16 %v2101
  %v6973 = vunpack.c.l.b16 %v2102
  %v6974 = vunpack.c.h.b16 %v2102
  %v6975 = vunpack.c.l.b16 %v2103
  %v6976 = vunpack.c.h.b16 %v2103
  %v6977 = vunpack.c.l.b16 %v2104
  %v6978 = vunpack.c.h.b16 %v2104
  %v6979 = vunpack.c.l.b16 %v2105
  %v6980 = vunpack.c.h.b16 %v2105
  %v6981 = vunpack.c.l.b16 %v2106
  %v6982 = vunpack.c.h.b16 %v2106
  %v6983 = vunpack.c.l.b16 %v2107
  %v6984 = vunpack.c.h.b16 %v2107
  %v6985 = vunpack.c.l.b16 %v2108
  %v6986 = vunpack.c.h.b16 %v2108
  %v6987 = vunpack.c.l.b16 %v2109
  %v6988 = vunpack.c.h.b16 %v2109
  %v6989 = vunpack.c.l.b16 %v2110
  %v6990 = vunpack.c.h.b16 %v2110
  %v6991 = vunpack.c.l.b16 %v2111
  %v6992 = vunpack.c.h.b16 %v2111
  %v6993 = vunpack.c.l.b16 %v2112
  %v6994 = vunpack.c.h.b16 %v2112
  %v6995 = vunpack.c.l.b16 %v2113
  %v6996 = vunpack.c.h.b16 %v2113
  %v6997 = vunpack.c.l.b16 %v2114
  %v6998 = vunpack.c.h.b16 %v2114
  %v6999 = vunpack.c.l.b16 %v2115
  %v7000 = vunpack.c.h.b16 %v2115
  %v7001 = vunpack.c.l.b16 %v2116
  %v7002 = vunpack.c.h.b16 %v2116
  %v7003 = vunpack.c.l.b16 %v2117
  %v7004 = vunpack.c.h.b16 %v2117
  %v7005 = vunpack.c.l.b16 %v2118
  %v7006 = vunpack.c.h.b16 %v2118
  %v7007 = vunpack.c.l.b16 %v2119
  %v7008 = vunpack.c.h.b16 %v2119
  %v7009 = vunpack.c.l.b16 %v2120
  %v7010 = vunpack.c.h.b16 %v2120
  %v7011 = vunpack.c.l.b16 %v2121
  %v7012 = vunpack.c.h.b16 %v2121
  %v7013 = vunpack.c.l.b16 %v2122
  %v7014 = vunpack.c.h.b16 %v2122
  %v7015 = vunpack.c.l.b16 %v2123
  %v7016 = vunpack.c.h.b16 %v2123
  %v7017 = vunpack.c.l.b16 %v2124
  %v7018 = vunpack.c.h.b16 %v2124
  %v7019 = vunpack.c.l.b16 %v2125
  %v7020 = vunpack.c.h.b16 %v2125
  %v7021 = vunpack.c.l.b16 %v2126
  %v7022 = vunpack.c.h.b16 %v2126
  %v7023 = vunpack.c.l.b16 %v2127
  %v7024 = vunpack.c.h.b16 %v2127
  %v7025 = vunpack.c.l.b16 %v2128
  %v7026 = vunpack.c.h.b16 %v2128
  %v7027 = vunpack.c.l.b16 %v2129
  %v7028 = vunpack.c.h.b16 %v2129
  %v7029 = vunpack.c.l.b16 %v2130
  %v7030 = vunpack.c.h.b16 %v2130
  %v7031 = vunpack.c.l.b16 %v2131
  %v7032 = vunpack.c.h.b16 %v2131
  %v7033 = vunpack.c.l.b16 %v2132
  %v7034 = vunpack.c.h.b16 %v2132
  %v7035 = vunpack.c.l.b16 %v2133
  %v7036 = vunpack.c.h.b16 %v2133
  %v7037 = vunpack.c.l.b16 %v2134
  %v7038 = vunpack.c.h.b16 %v2134
  %v7039 = vunpack.c.l.b16 %v2135
  %v7040 = vunpack.c.h.b16 %v2135
  %v7041 = vunpack.c.l.b16 %v2136
  %v7042 = vunpack.c.h.b16 %v2136
  %v7043 = vunpack.c.l.b16 %v2137
  %v7044 = vunpack.c.h.b16 %v2137
  %v7045 = vunpack.c.l.b16 %v2138
  %v7046 = vunpack.c.h.b16 %v2138
  %v7047 = vunpack.c.l.b16 %v2139
  %v7048 = vunpack.c.h.b16 %v2139
  %v7049 = vunpack.c.l.b16 %v2140
  %v7050 = vunpack.c.h.b16 %v2140
  %v7051 = vunpack.c.l.b16 %v2141
  %v7052 = vunpack.c.h.b16 %v2141
  %v7053 = vunpack.c.l.b16 %v2142
  %v7054 = vunpack.c.h.b16 %v2142
  %v7055 = vunpack.c.l.b16 %v2143
  %v7056 = vunpack.c.h.b16 %v2143
  %v7057 = vunpack.c.l.b16 %v2144
  %v7058 = vunpack.c.h.b16 %v2144
  %v7059 = vunpack.c.l.b16 %v2145
  %v7060 = vunpack.c.h.b16 %v2145
  %v7061 = vunpack.c.l.b16 %v2146
  %v7062 = vunpack.c.h.b16 %v2146
  %v7063 = vunpack.c.l.b16 %v2147
  %v7064 = vunpack.c.h.b16 %v2147
  %v7065 = vunpack.c.l.b16 %v2148
  %v7066 = vunpack.c.h.b16 %v2148
  %v7067 = vunpack.c.l.b16 %v2149
  %v7068 = vunpack.c.h.b16 %v2149
  %v7069 = vunpack.c.l.b16 %v2150
  %v7070 = vunpack.c.h.b16 %v2150
  %v7071 = vunpack.c.l.b16 %v2151
  %v7072 = vunpack.c.h.b16 %v2151
  %v7073 = vunpack.c.l.b16 %v2152
  %v7074 = vunpack.c.h.b16 %v2152
  %v7075 = vunpack.c.l.b16 %v2153
  %v7076 = vunpack.c.h.b16 %v2153
  %v7077 = vunpack.c.l.b16 %v2154
  %v7078 = vunpack.c.h.b16 %v2154
  %v7079 = vunpack.c.l.b16 %v2155
  %v7080 = vunpack.c.h.b16 %v2155
  %v7081 = vunpack.c.l.b16 %v2156
  %v7082 = vunpack.c.h.b16 %v2156
  %v7083 = vunpack.c.l.b16 %v2157
  %v7084 = vunpack.c.h.b16 %v2157
  %v7085 = vunpack.c.l.b16 %v2158
  %v7086 = vunpack.c.h.b16 %v2158
  %v7087 = vunpack.c.l.b16 %v2159
  %v7088 = vunpack.c.h.b16 %v2159
  %v7089 = vunpack.c.l.b16 %v2160
  %v7090 = vunpack.c.h.b16 %v2160
  %v7091 = vunpack.c.l.b16 %v2161
  %v7092 = vunpack.c.h.b16 %v2161
  %v7093 = vunpack.c.l.b16 %v2162
  %v7094 = vunpack.c.h.b16 %v2162
  %v7095 = vunpack.c.l.b16 %v2163
  %v7096 = vunpack.c.h.b16 %v2163
  %v7097 = vunpack.c.l.b16 %v2164
  %v7098 = vunpack.c.h.b16 %v2164
  %v7099 = vunpack.c.l.b16 %v2165
  %v7100 = vunpack.c.h.b16 %v2165
  %v7101 = vunpack.c.l.b16 %v2166
  %v7102 = vunpack.c.h.b16 %v2166
  %v7103 = vunpack.c.l.b16 %v2167
  %v7104 = vunpack.c.h.b16 %v2167
  %v7105 = vunpack.c.l.b16 %v2168
  %v7106 = vunpack.c.h.b16 %v2168
  %v7107 = vunpack.c.l.b16 %v2169
  %v7108 = vunpack.c.h.b16 %v2169
  %v7109 = vunpack.c.l.b16 %v2170
  %v7110 = vunpack.c.h.b16 %v2170
  %v7111 = vunpack.c.l.b16 %v2171
  %v7112 = vunpack.c.h.b16 %v2171
  %v7113 = vunpack.c.l.b16 %v2172
  %v7114 = vunpack.c.h.b16 %v2172
  %v7115 = vunpack.c.l.b16 %v2173
  %v7116 = vunpack.c.h.b16 %v2173
  %v7117 = vunpack.c.l.b16 %v2174
  %v7118 = vunpack.c.h.b16 %v2174
  %v7119 = vunpack.c.l.b16 %v2175
  %v7120 = vunpack.c.h.b16 %v2175
  %v7121 = vunpack.c.l.b16 %v2176
  %v7122 = vunpack.c.h.b16 %v2176
  %v7123 = vunpack.c.l.b16 %v2177
  %v7124 = vunpack.c.h.b16 %v2177
  %v7125 = vunpack.c.l.b16 %v2178
  %v7126 = vunpack.c.h.b16 %v2178
  %v7127 = vunpack.c.l.b16 %v2179
  %v7128 = vunpack.c.h.b16 %v2179
  %v7129 = vunpack.c.l.b16 %v2180
  %v7130 = vunpack.c.h.b16 %v2180
  %v7131 = vunpack.c.l.b16 %v2181
  %v7132 = vunpack.c.h.b16 %v2181
  %v7133 = vunpack.c.l.b16 %v2182
  %v7134 = vunpack.c.h.b16 %v2182
  %v7135 = vunpack.c.l.b16 %v2183
  %v7136 = vunpack.c.h.b16 %v2183
  %v7137 = vunpack.c.l.b16 %v2184
  %v7138 = vunpack.c.h.b16 %v2184
  %v7139 = vunpack.c.l.b16 %v2185
  %v7140 = vunpack.c.h.b16 %v2185
  %v7141 = vunpack.c.l.b16 %v2186
  %v7142 = vunpack.c.h.b16 %v2186
  %v7143 = vunpack.c.l.b16 %v2187
  %v7144 = vunpack.c.h.b16 %v2187
  %v7145 = vunpack.c.l.b16 %v2188
  %v7146 = vunpack.c.h.b16 %v2188
  %v7147 = vunpack.c.l.b16 %v2189
  %v7148 = vunpack.c.h.b16 %v2189
  %v7149 = vunpack.c.l.b16 %v2190
  %v7150 = vunpack.c.h.b16 %v2190
  %v7151 = vunpack.c.l.b16 %v2191
  %v7152 = vunpack.c.h.b16 %v2191
  %v7153 = vunpack.c.l.b16 %v2192
  %v7154 = vunpack.c.h.b16 %v2192
  %v7155 = vunpack.c.l.b16 %v2193
  %v7156 = vunpack.c.h.b16 %v2193
  %v7157 = vunpack.c.l.b16 %v2194
  %v7158 = vunpack.c.h.b16 %v2194
  %v7159 = vunpack.c.l.b16 %v2195
  %v7160 = vunpack.c.h.b16 %v2195
  %v7161 = vunpack.c.l.b16 %v2196
  %v7162 = vunpack.c.h.b16 %v2196
  %v7163 = vunpack.c.l.b16 %v2197
  %v7164 = vunpack.c.h.b16 %v2197
  %v7165 = vunpack.c.l.b16 %v2198
  %v7166 = vunpack.c.h.b16 %v2198
  %v7167 = vunpack.c.l.b16 %v2199
  %v7168 = vunpack.c.h.b16 %v2199
  %v7169 = vunpack.c.l.b16 %v2200
  %v7170 = vunpack.c.h.b16 %v2200
  %v7171 = vunpack.c.l.b16 %v2201
  %v7172 = vunpack.c.h.b16 %v2201
  %v7173 = vunpack.c.l.b16 %v2202
  %v7174 = vunpack.c.h.b16 %v2202
  %v7175 = vunpack.c.l.b16 %v2203
  %v7176 = vunpack.c.h.b16 %v2203
  %v7177 = vunpack.c.l.b16 %v2204
  %v7178 = vunpack.c.h.b16 %v2204
  %v7179 = vunpack.c.l.b16 %v2205
  %v7180 = vunpack.c.h.b16 %v2205
  %v7181 = vunpack.c.l.b16 %v2206
  %v7182 = vunpack.c.h.b16 %v2206
  %v7183 = vunpack.c.l.b16 %v2207
  %v7184 = vunpack.c.h.b16 %v2207
  %v7185 = vunpack.c.l.b16 %v2208
  %v7186 = vunpack.c.h.b16 %v2208
  %v7187 = vunpack.c.l.b16 %v2209
  %v7188 = vunpack.c.h.b16 %v2209
  %v7189 = vunpack.c.l.b16 %v2210
  %v7190 = vunpack.c.h.b16 %v2210
  %v7191 = vunpack.c.l.b16 %v2211
  %v7192 = vunpack.c.h.b16 %v2211
  %v7193 = vunpack.c.l.b16 %v2212
  %v7194 = vunpack.c.h.b16 %v2212
  %v7195 = vunpack.c.l.b16 %v2213
  %v7196 = vunpack.c.h.b16 %v2213
  %v7197 = vunpack.c.l.b16 %v2214
  %v7198 = vunpack.c.h.b16 %v2214
  %v7199 = vunpack.c.l.b16 %v2215
  %v7200 = vunpack.c.h.b16 %v2215
  %v7201 = vunpack.c.l.b16 %v2216
  %v7202 = vunpack.c.h.b16 %v2216
  %v7203 = vunpack.c.l.b16 %v2217
  %v7204 = vunpack.c.h.b16 %v2217
  %v7205 = vunpack.c.l.b16 %v2218
  %v7206 = vunpack.c.h.b16 %v2218
  %v7207 = vunpack.c.l.b16 %v2219
  %v7208 = vunpack.c.h.b16 %v2219
  %v7209 = vunpack.c.l.b16 %v2220
  %v7210 = vunpack.c.h.b16 %v2220
  %v7211 = vunpack.c.l.b16 %v2221
  %v7212 = vunpack.c.h.b16 %v2221
  %v7213 = vunpack.c.l.b16 %v2222
  %v7214 = vunpack.c.h.b16 %v2222
  %v7215 = vunpack.c.l.b16 %v2223
  %v7216 = vunpack.c.h.b16 %v2223
  %v7217 = vunpack.c.l.b16 %v2224
  %v7218 = vunpack.c.h.b16 %v2224
  %v7219 = vunpack.c.l.b16 %v2225
  %v7220 = vunpack.c.h.b16 %v2225
  %v7221 = vunpack.c.l.b16 %v2226
  %v7222 = vunpack.c.h.b16 %v2226
  %v7223 = vunpack.c.l.b16 %v2227
  %v7224 = vunpack.c.h.b16 %v2227
  %v7225 = vunpack.c.l.b16 %v2228
  %v7226 = vunpack.c.h.b16 %v2228
  %v7227 = vunpack.c.l.b16 %v2229
  %v7228 = vunpack.c.h.b16 %v2229
  %v7229 = vunpack.c.l.b16 %v2230
  %v7230 = vunpack.c.h.b16 %v2230
  %v7231 = vunpack.c.l.b16 %v2231
  %v7232 = vunpack.c.h.b16 %v2231
  %v7233 = vunpack.c.l.b16 %v2232
  %v7234 = vunpack.c.h.b16 %v2232
  %v7235 = vunpack.c.l.b16 %v2233
  %v7236 = vunpack.c.h.b16 %v2233
  %v7237 = vunpack.c.l.b16 %v2234
  %v7238 = vunpack.c.h.b16 %v2234
  %v7239 = vunpack.c.l.b16 %v2235
  %v7240 = vunpack.c.h.b16 %v2235
  %v7241 = vunpack.c.l.b16 %v2236
  %v7242 = vunpack.c.h.b16 %v2236
  %v7243 = vunpack.c.l.b16 %v2237
  %v7244 = vunpack.c.h.b16 %v2237
  %v7245 = vunpack.c.l.b16 %v2238
  %v7246 = vunpack.c.h.b16 %v2238
  %v7247 = vunpack.c.l.b16 %v2239
  %v7248 = vunpack.c.h.b16 %v2239
  %v7249 = vunpack.c.l.b16 %v2240
  %v7250 = vunpack.c.h.b16 %v2240
  %v7251 = vunpack.c.l.b16 %v2241
  %v7252 = vunpack.c.h.b16 %v2241
  %v7253 = vunpack.c.l.b16 %v2242
  %v7254 = vunpack.c.h.b16 %v2242
  %v7255 = vunpack.c.l.b16 %v2243
  %v7256 = vunpack.c.h.b16 %v2243
  %v7257 = vunpack.c.l.b16 %v2244
  %v7258 = vunpack.c.h.b16 %v2244
  %v7259 = vunpack.c.l.b16 %v2245
  %v7260 = vunpack.c.h.b16 %v2245
  %v7261 = vunpack.c.l.b16 %v2246
  %v7262 = vunpack.c.h.b16 %v2246
  %v7263 = vunpack.c.l.b16 %v2247
  %v7264 = vunpack.c.h.b16 %v2247
  %v7265 = vunpack.c.l.b16 %v2248
  %v7266 = vunpack.c.h.b16 %v2248
  %v7267 = vunpack.c.l.b16 %v2249
  %v7268 = vunpack.c.h.b16 %v2249
  %v7269 = vunpack.c.l.b16 %v2250
  %v7270 = vunpack.c.h.b16 %v2250
  %v7271 = vunpack.c.l.b16 %v2251
  %v7272 = vunpack.c.h.b16 %v2251
  %v7273 = vunpack.c.l.b16 %v2252
  %v7274 = vunpack.c.h.b16 %v2252
  %v7275 = vunpack.c.l.b16 %v2253
  %v7276 = vunpack.c.h.b16 %v2253
  %v7277 = vunpack.c.l.b16 %v2254
  %v7278 = vunpack.c.h.b16 %v2254
  %v7279 = vunpack.c.l.b16 %v2255
  %v7280 = vunpack.c.h.b16 %v2255
  %v7281 = vunpack.c.l.b16 %v2256
  %v7282 = vunpack.c.h.b16 %v2256
  %v7283 = vunpack.c.l.b16 %v2257
  %v7284 = vunpack.c.h.b16 %v2257
  %v7285 = vunpack.c.l.b16 %v2258
  %v7286 = vunpack.c.h.b16 %v2258
  %v7287 = vunpack.c.l.b16 %v2259
  %v7288 = vunpack.c.h.b16 %v2259
  %v7289 = vunpack.c.l.b16 %v2260
  %v7290 = vunpack.c.h.b16 %v2260
  %v7291 = vunpack.c.l.b16 %v2261
  %v7292 = vunpack.c.h.b16 %v2261
  %v7293 = vunpack.c.l.b16 %v2262
  %v7294 = vunpack.c.h.b16 %v2262
  %v7295 = vunpack.c.l.b16 %v2263
  %v7296 = vunpack.c.h.b16 %v2263
  %v7297 = vunpack.c.l.b16 %v2264
  %v7298 = vunpack.c.h.b16 %v2264
  %v7299 = vunpack.c.l.b16 %v2265
  %v7300 = vunpack.c.h.b16 %v2265
  %v7301 = vunpack.c.l.b16 %v2266
  %v7302 = vunpack.c.h.b16 %v2266
  %v7303 = vunpack.c.l.b16 %v2267
  %v7304 = vunpack.c.h.b16 %v2267
  %v7305 = vunpack.c.l.b16 %v2268
  %v7306 = vunpack.c.h.b16 %v2268
  %v7307 = vunpack.c.l.b16 %v2269
  %v7308 = vunpack.c.h.b16 %v2269
  %v7309 = vunpack.c.l.b16 %v2270
  %v7310 = vunpack.c.h.b16 %v2270
  %v7311 = vunpack.c.l.b16 %v2271
  %v7312 = vunpack.c.h.b16 %v2271
  %v7313 = vunpack.c.l.b16 %v2272
  %v7314 = vunpack.c.h.b16 %v2272
  %v7315 = vunpack.c.l.b16 %v2273
  %v7316 = vunpack.c.h.b16 %v2273
  %v7317 = vunpack.c.l.b16 %v2274
  %v7318 = vunpack.c.h.b16 %v2274
  %v7319 = vunpack.c.l.b16 %v2275
  %v7320 = vunpack.c.h.b16 %v2275
  %v7321 = vunpack.c.l.b16 %v2276
  %v7322 = vunpack.c.h.b16 %v2276
  %v7323 = vunpack.c.l.b16 %v2277
  %v7324 = vunpack.c.h.b16 %v2277
  %v7325 = vunpack.c.l.b16 %v2278
  %v7326 = vunpack.c.h.b16 %v2278
  %v7327 = vunpack.c.l.b16 %v2279
  %v7328 = vunpack.c.h.b16 %v2279
  %v7329 = vunpack.c.l.b16 %v2280
  %v7330 = vunpack.c.h.b16 %v2280
  %v7331 = vunpack.c.l.b16 %v2281
  %v7332 = vunpack.c.h.b16 %v2281
  %v7333 = vunpack.c.l.b16 %v2282
  %v7334 = vunpack.c.h.b16 %v2282
  %v7335 = vunpack.c.l.b16 %v2283
  %v7336 = vunpack.c.h.b16 %v2283
  %v7337 = vunpack.c.l.b16 %v2284
  %v7338 = vunpack.c.h.b16 %v2284
  %v7339 = vunpack.c.l.b16 %v2285
  %v7340 = vunpack.c.h.b16 %v2285
  %v7341 = vunpack.c.l.b16 %v2286
  %v7342 = vunpack.c.h.b16 %v2286
  %v7343 = vunpack.c.l.b16 %v2287
  %v7344 = vunpack.c.h.b16 %v2287
  %v7345 = vunpack.c.l.b16 %v2288
  %v7346 = vunpack.c.h.b16 %v2288
  %v7347 = vunpack.c.l.b16 %v2289
  %v7348 = vunpack.c.h.b16 %v2289
  %v7349 = vunpack.c.l.b16 %v2290
  %v7350 = vunpack.c.h.b16 %v2290
  %v7351 = vunpack.c.l.b16 %v2291
  %v7352 = vunpack.c.h.b16 %v2291
  %v7353 = vunpack.c.l.b16 %v2292
  %v7354 = vunpack.c.h.b16 %v2292
  %v7355 = vunpack.c.l.b16 %v2293
  %v7356 = vunpack.c.h.b16 %v2293
  %v7357 = vunpack.c.l.b16 %v2294
  %v7358 = vunpack.c.h.b16 %v2294
  %v7359 = vunpack.c.l.b16 %v2295
  %v7360 = vunpack.c.h.b16 %v2295
  %v7361 = vunpack.c.l.b16 %v2296
  %v7362 = vunpack.c.h.b16 %v2296
  %v7363 = vunpack.c.l.b16 %v2297
  %v7364 = vunpack.c.h.b16 %v2297
  %v7365 = vunpack.c.l.b16 %v2298
  %v7366 = vunpack.c.h.b16 %v2298
  %v7367 = vunpack.c.l.b16 %v2299
  %v7368 = vunpack.c.h.b16 %v2299
  %v7369 = vunpack.c.l.b16 %v2300
  %v7370 = vunpack.c.h.b16 %v2300
  %v7371 = vunpack.c.l.b16 %v2301
  %v7372 = vunpack.c.h.b16 %v2301
  %v7373 = vunpack.c.l.b16 %v2302
  %v7374 = vunpack.c.h.b16 %v2302
  %v7375 = vunpack.c.l.b16 %v2303
  %v7376 = vunpack.c.h.b16 %v2303
  %v7377 = vunpack.c.l.b16 %v2304
  %v7378 = vunpack.c.h.b16 %v2304
  %v7379 = vunpack.c.l.b16 %v2305
  %v7380 = vunpack.c.h.b16 %v2305
  %v7381 = vunpack.c.l.b16 %v2306
  %v7382 = vunpack.c.h.b16 %v2306
  %v7383 = vunpack.c.l.b16 %v2307
  %v7384 = vunpack.c.h.b16 %v2307
  %v7385 = vunpack.c.l.b16 %v2308
  %v7386 = vunpack.c.h.b16 %v2308
  %v7387 = vunpack.c.l.b16 %v2309
  %v7388 = vunpack.c.h.b16 %v2309
  %v7389 = vunpack.c.l.b16 %v2310
  %v7390 = vunpack.c.h.b16 %v2310
  %v7391 = vunpack.c.l.b16 %v2311
  %v7392 = vunpack.c.h.b16 %v2311
  %v7393 = vunpack.c.l.b16 %v2312
  %v7394 = vunpack.c.h.b16 %v2312
  %v7395 = vunpack.c.l.b16 %v2313
  %v7396 = vunpack.c.h.b16 %v2313
  %v7397 = vunpack.c.l.b16 %v2314
  %v7398 = vunpack.c.h.b16 %v2314
  %v7399 = vunpack.c.l.b16 %v2315
  %v7400 = vunpack.c.h.b16 %v2315
  %v7401 = vunpack.c.l.b16 %v2316
  %v7402 = vunpack.c.h.b16 %v2316
  %v7403 = vunpack.c.l.b16 %v2317
  %v7404 = vunpack.c.h.b16 %v2317
  %v7405 = vunpack.c.l.b16 %v2318
  %v7406 = vunpack.c.h.b16 %v2318
  %v7407 = vunpack.c.l.b16 %v2319
  %v7408 = vunpack.c.h.b16 %v2319
  %v7409 = vunpack.c.l.b16 %v2320
  %v7410 = vunpack.c.h.b16 %v2320
  %v7411 = vunpack.c.l.b16 %v2321
  %v7412 = vunpack.c.h.b16 %v2321
  %v7413 = vunpack.c.l.b16 %v2322
  %v7414 = vunpack.c.h.b16 %v2322
  %v7415 = vunpack.c.l.b16 %v2323
  %v7416 = vunpack.c.h.b16 %v2323
  %v7417 = vunpack.c.l.b16 %v2324
  %v7418 = vunpack.c.h.b16 %v2324
  %v7419 = vunpack.c.l.b16 %v2325
  %v7420 = vunpack.c.h.b16 %v2325
  %v7421 = vunpack.c.l.b16 %v2326
  %v7422 = vunpack.c.h.b16 %v2326
  %v7423 = vunpack.c.l.b16 %v2327
  %v7424 = vunpack.c.h.b16 %v2327
  %v7425 = vunpack.c.l.b16 %v2328
  %v7426 = vunpack.c.h.b16 %v2328
  %v7427 = vunpack.c.l.b16 %v2329
  %v7428 = vunpack.c.h.b16 %v2329
  %v7429 = vunpack.c.l.b16 %v2330
  %v7430 = vunpack.c.h.b16 %v2330
  %v7431 = vunpack.c.l.b16 %v2331
  %v7432 = vunpack.c.h.b16 %v2331
  %v7433 = vunpack.c.l.b16 %v2332
  %v7434 = vunpack.c.h.b16 %v2332
  %v7435 = vunpack.c.l.b16 %v2333
  %v7436 = vunpack.c.h.b16 %v2333
  %v7437 = vunpack.c.l.b16 %v2334
  %v7438 = vunpack.c.h.b16 %v2334
  %v7439 = vunpack.c.l.b16 %v2335
  %v7440 = vunpack.c.h.b16 %v2335
  %v7441 = vunpack.c.l.b16 %v2336
  %v7442 = vunpack.c.h.b16 %v2336
  %v7443 = vunpack.c.l.b16 %v2337
  %v7444 = vunpack.c.h.b16 %v2337
  %v7445 = vunpack.c.l.b16 %v2338
  %v7446 = vunpack.c.h.b16 %v2338
  %v7447 = vunpack.c.l.b16 %v2339
  %v7448 = vunpack.c.h.b16 %v2339
  %v7449 = vunpack.c.l.b16 %v2340
  %v7450 = vunpack.c.h.b16 %v2340
  %v7451 = vunpack.c.l.b16 %v2341
  %v7452 = vunpack.c.h.b16 %v2341
  %v7453 = vunpack.c.l.b16 %v2342
  %v7454 = vunpack.c.h.b16 %v2342
  %v7455 = vunpack.c.l.b16 %v2343
  %v7456 = vunpack.c.h.b16 %v2343
  %v7457 = vunpack.c.l.b16 %v2344
  %v7458 = vunpack.c.h.b16 %v2344
  %v7459 = vunpack.c.l.b16 %v2345
  %v7460 = vunpack.c.h.b16 %v2345
  %v7461 = vunpack.c.l.b16 %v2346
  %v7462 = vunpack.c.h.b16 %v2346
  %v7463 = vunpack.c.l.b16 %v2347
  %v7464 = vunpack.c.h.b16 %v2347
  %v7465 = vunpack.c.l.b16 %v2348
  %v7466 = vunpack.c.h.b16 %v2348
  %v7467 = vunpack.c.l.b16 %v2349
  %v7468 = vunpack.c.h.b16 %v2349
  %v7469 = vunpack.c.l.b16 %v2350
  %v7470 = vunpack.c.h.b16 %v2350
  %v7471 = vunpack.c.l.b16 %v2351
  %v7472 = vunpack.c.h.b16 %v2351
  %v7473 = vunpack.c.l.b16 %v2352
  %v7474 = vunpack.c.h.b16 %v2352
  %v7475 = vunpack.c.l.b16 %v2353
  %v7476 = vunpack.c.h.b16 %v2353
  %v7477 = vunpack.c.l.b16 %v2354
  %v7478 = vunpack.c.h.b16 %v2354
  %v7479 = vunpack.c.l.b16 %v2355
  %v7480 = vunpack.c.h.b16 %v2355
  %v7481 = vunpack.c.l.b16 %v2356
  %v7482 = vunpack.c.h.b16 %v2356
  %v7483 = vunpack.c.l.b16 %v2357
  %v7484 = vunpack.c.h.b16 %v2357
  %v7485 = vunpack.c.l.b16 %v2358
  %v7486 = vunpack.c.h.b16 %v2358
  %v7487 = vunpack.c.l.b16 %v2359
  %v7488 = vunpack.c.h.b16 %v2359
  %v7489 = vunpack.c.l.b16 %v2360
  %v7490 = vunpack.c.h.b16 %v2360
  %v7491 = vunpack.c.l.b16 %v2361
  %v7492 = vunpack.c.h.b16 %v2361
  %v7493 = vunpack.c.l.b16 %v2362
  %v7494 = vunpack.c.h.b16 %v2362
  %v7495 = vunpack.c.l.b16 %v2363
  %v7496 = vunpack.c.h.b16 %v2363
  %v7497 = vunpack.c.l.b16 %v2364
  %v7498 = vunpack.c.h.b16 %v2364
  %v7499 = vunpack.c.l.b16 %v2365
  %v7500 = vunpack.c.h.b16 %v2365
  %v7501 = vunpack.c.l.b16 %v2366
  %v7502 = vunpack.c.h.b16 %v2366
  %v7503 = vunpack.c.l.b16 %v2367
  %v7504 = vunpack.c.h.b16 %v2367
  %v7505 = vunpack.c.l.b16 %v2368
  %v7506 = vunpack.c.h.b16 %v2368
  %v7507 = vunpack.c.l.b16 %v2369
  %v7508 = vunpack.c.h.b16 %v2369
  %v7509 = vunpack.c.l.b16 %v2370
  %v7510 = vunpack.c.h.b16 %v2370
  %v7511 = vunpack.c.l.b16 %v2371
  %v7512 = vunpack.c.h.b16 %v2371
  %v7513 = vunpack.c.l.b16 %v2372
  %v7514 = vunpack.c.h.b16 %v2372
  %v7515 = vunpack.c.l.b16 %v2373
  %v7516 = vunpack.c.h.b16 %v2373
  %v7517 = vunpack.c.l.b16 %v2374
  %v7518 = vunpack.c.h.b16 %v2374
  %v7519 = vunpack.c.l.b16 %v2375
  %v7520 = vunpack.c.h.b16 %v2375
  %v7521 = vunpack.c.l.b16 %v2376
  %v7522 = vunpack.c.h.b16 %v2376
  %v7523 = vunpack.c.l.b16 %v2377
  %v7524 = vunpack.c.h.b16 %v2377
  %v7525 = vunpack.c.l.b16 %v2378
  %v7526 = vunpack.c.h.b16 %v2378
  %v7527 = vunpack.c.l.b16 %v2379
  %v7528 = vunpack.c.h.b16 %v2379
  %v7529 = vunpack.c.l.b16 %v2380
  %v7530 = vunpack.c.h.b16 %v2380
  %v7531 = vunpack.c.l.b16 %v2381
  %v7532 = vunpack.c.h.b16 %v2381
  %v7533 = vunpack.c.l.b16 %v2382
  %v7534 = vunpack.c.h.b16 %v2382
  %v7535 = vunpack.c.l.b16 %v2383
  %v7536 = vunpack.c.h.b16 %v2383
  %v7537 = vunpack.c.l.b16 %v2384
  %v7538 = vunpack.c.h.b16 %v2384
  %v7539 = vunpack.c.l.b16 %v2385
  %v7540 = vunpack.c.h.b16 %v2385
  %v7541 = vunpack.c.l.b16 %v2386
  %v7542 = vunpack.c.h.b16 %v2386
  %v7543 = vunpack.c.l.b16 %v2387
  %v7544 = vunpack.c.h.b16 %v2387
  %v7545 = vunpack.c.l.b16 %v2388
  %v7546 = vunpack.c.h.b16 %v2388
  %v7547 = vunpack.c.l.b16 %v2389
  %v7548 = vunpack.c.h.b16 %v2389
  %v7549 = vunpack.c.l.b16 %v2390
  %v7550 = vunpack.c.h.b16 %v2390
  %v7551 = vunpack.c.l.b16 %v2391
  %v7552 = vunpack.c.h.b16 %v2391
  %v7553 = vunpack.c.l.b16 %v2392
  %v7554 = vunpack.c.h.b16 %v2392
  %v7555 = vunpack.c.l.b16 %v2393
  %v7556 = vunpack.c.h.b16 %v2393
  %v7557 = vunpack.c.l.b16 %v2394
  %v7558 = vunpack.c.h.b16 %v2394
  %v7559 = vunpack.c.l.b16 %v2395
  %v7560 = vunpack.c.h.b16 %v2395
  %v7561 = vunpack.c.l.b16 %v2396
  %v7562 = vunpack.c.h.b16 %v2396
  %v7563 = vunpack.c.l.b16 %v2397
  %v7564 = vunpack.c.h.b16 %v2397
  %v7565 = vunpack.c.l.b16 %v2398
  %v7566 = vunpack.c.h.b16 %v2398
  %v7567 = vunpack.c.l.b16 %v2399
  %v7568 = vunpack.c.h.b16 %v2399
  %v7569 = vunpack.c.l.b16 %v2400
  %v7570 = vunpack.c.h.b16 %v2400
  %v7571 = vunpack.c.l.b16 %v2401
  %v7572 = vunpack.c.h.b16 %v2401
  %v7573 = vunpack.c.l.b16 %v2402
  %v7574 = vunpack.c.h.b16 %v2402
  %v7575 = vunpack.c.l.b16 %v2403
  %v7576 = vunpack.c.h.b16 %v2403
  %v7577 = vunpack.c.l.b16 %v2404
  %v7578 = vunpack.c.h.b16 %v2404
  %v7579 = vunpack.c.l.b16 %v2405
  %v7580 = vunpack.c.h.b16 %v2405
  %v7581 = vunpack.c.l.b16 %v2406
  %v7582 = vunpack.c.h.b16 %v2406
  %v7583 = vunpack.c.l.b16 %v2407
  %v7584 = vunpack.c.h.b16 %v2407
  %v7585 = vunpack.c.l.b16 %v2408
  %v7586 = vunpack.c.h.b16 %v2408
  %v7587 = vunpack.c.l.b16 %v2409
  %v7588 = vunpack.c.h.b16 %v2409
  %v7589 = vunpack.c.l.b16 %v2410
  %v7590 = vunpack.c.h.b16 %v2410
  %v7591 = vunpack.c.l.b16 %v2411
  %v7592 = vunpack.c.h.b16 %v2411
  %v7593 = vunpack.c.l.b16 %v2412
  %v7594 = vunpack.c.h.b16 %v2412
  %v7595 = vunpack.c.l.b16 %v2413
  %v7596 = vunpack.c.h.b16 %v2413
  %v7597 = vunpack.c.l.b16 %v2414
  %v7598 = vunpack.c.h.b16 %v2414
  %v7599 = vunpack.c.l.b16 %v2415
  %v7600 = vunpack.c.h.b16 %v2415
  %v7601 = vunpack.c.l.b16 %v2416
  %v7602 = vunpack.c.h.b16 %v2416
  %v7603 = vunpack.c.l.b16 %v2417
  %v7604 = vunpack.c.h.b16 %v2417
  %v7605 = vunpack.c.l.b16 %v2418
  %v7606 = vunpack.c.h.b16 %v2418
  %v7607 = vunpack.c.l.b16 %v2419
  %v7608 = vunpack.c.h.b16 %v2419
  %v7609 = vunpack.c.l.b16 %v2420
  %v7610 = vunpack.c.h.b16 %v2420
  %v7611 = vunpack.c.l.b16 %v2421
  %v7612 = vunpack.c.h.b16 %v2421
  %v7613 = vunpack.c.l.b16 %v2422
  %v7614 = vunpack.c.h.b16 %v2422
  %v7615 = vunpack.c.l.b16 %v2423
  %v7616 = vunpack.c.h.b16 %v2423
  %v7617 = vunpack.c.l.b16 %v2424
  %v7618 = vunpack.c.h.b16 %v2424
  %v7619 = vunpack.c.l.b16 %v2425
  %v7620 = vunpack.c.h.b16 %v2425
  %v7621 = vunpack.c.l.b16 %v2426
  %v7622 = vunpack.c.h.b16 %v2426
  %v7623 = vunpack.c.l.b16 %v2427
  %v7624 = vunpack.c.h.b16 %v2427
  %v7625 = vunpack.c.l.b16 %v2428
  %v7626 = vunpack.c.h.b16 %v2428
  %v7627 = vunpack.c.l.b16 %v2429
  %v7628 = vunpack.c.h.b16 %v2429
  %v7629 = vunpack.c.l.b16 %v2430
  %v7630 = vunpack.c.h.b16 %v2430
  %v7631 = vunpack.c.l.b16 %v2431
  %v7632 = vunpack.c.h.b16 %v2431
  %v7633 = vunpack.c.l.b16 %v2432
  %v7634 = vunpack.c.h.b16 %v2432
  %v7635 = vunpack.c.l.b16 %v2433
  %v7636 = vunpack.c.h.b16 %v2433
  %v7637 = vunpack.c.l.b16 %v2434
  %v7638 = vunpack.c.h.b16 %v2434
  %v7639 = vunpack.c.l.b16 %v2435
  %v7640 = vunpack.c.h.b16 %v2435
  %v7641 = vunpack.c.l.b16 %v2436
  %v7642 = vunpack.c.h.b16 %v2436
  %v7643 = vunpack.c.l.b16 %v2437
  %v7644 = vunpack.c.h.b16 %v2437
  %v7645 = vunpack.c.l.b16 %v2438
  %v7646 = vunpack.c.h.b16 %v2438
  %v7647 = vunpack.c.l.b16 %v2439
  %v7648 = vunpack.c.h.b16 %v2439
  %v7649 = vunpack.c.l.b16 %v2440
  %v7650 = vunpack.c.h.b16 %v2440
  %v7651 = vunpack.c.l.b16 %v2441
  %v7652 = vunpack.c.h.b16 %v2441
  %v7653 = vunpack.c.l.b16 %v2442
  %v7654 = vunpack.c.h.b16 %v2442
  %v7655 = vunpack.c.l.b16 %v2443
  %v7656 = vunpack.c.h.b16 %v2443
  %v7657 = vunpack.c.l.b16 %v2444
  %v7658 = vunpack.c.h.b16 %v2444
  %v7659 = vunpack.c.l.b16 %v2445
  %v7660 = vunpack.c.h.b16 %v2445
  %v7661 = vunpack.c.l.b16 %v2446
  %v7662 = vunpack.c.h.b16 %v2446
  %v7663 = vunpack.c.l.b16 %v2447
  %v7664 = vunpack.c.h.b16 %v2447
  %v7665 = vunpack.c.l.b16 %v2448
  %v7666 = vunpack.c.h.b16 %v2448
  %v7667 = vunpack.c.l.b16 %v2449
  %v7668 = vunpack.c.h.b16 %v2449
  %v7669 = vunpack.c.l.b16 %v2450
  %v7670 = vunpack.c.h.b16 %v2450
  %v7671 = vunpack.c.l.b16 %v2451
  %v7672 = vunpack.c.h.b16 %v2451
  %v7673 = vunpack.c.l.b16 %v2452
  %v7674 = vunpack.c.h.b16 %v2452
  %v7675 = vunpack.c.l.b16 %v2453
  %v7676 = vunpack.c.h.b16 %v2453
  %v7677 = vunpack.c.l.b16 %v2454
  %v7678 = vunpack.c.h.b16 %v2454
  %v7679 = vunpack.c.l.b16 %v2455
  %v7680 = vunpack.c.h.b16 %v2455
  %v7681 = vunpack.c.l.b16 %v2456
  %v7682 = vunpack.c.h.b16 %v2456
  %v7683 = vunpack.c.l.b16 %v2457
  %v7684 = vunpack.c.h.b16 %v2457
  %v7685 = vunpack.c.l.b16 %v2458
  %v7686 = vunpack.c.h.b16 %v2458
  %v7687 = vunpack.c.l.b16 %v2459
  %v7688 = vunpack.c.h.b16 %v2459
  %v7689 = vunpack.c.l.b16 %v2460
  %v7690 = vunpack.c.h.b16 %v2460
  %v7691 = vunpack.c.l.b16 %v2461
  %v7692 = vunpack.c.h.b16 %v2461
  %v7693 = vunpack.c.l.b16 %v2462
  %v7694 = vunpack.c.h.b16 %v2462
  %v7695 = vunpack.c.l.b16 %v2463
  %v7696 = vunpack.c.h.b16 %v2463
  %v7697 = vunpack.c.l.b16 %v2464
  %v7698 = vunpack.c.h.b16 %v2464
  %v7699 = vunpack.c.l.b16 %v2465
  %v7700 = vunpack.c.h.b16 %v2465
  %v7701 = vunpack.c.l.b16 %v2466
  %v7702 = vunpack.c.h.b16 %v2466
  %v7703 = vunpack.c.l.b16 %v2467
  %v7704 = vunpack.c.h.b16 %v2467
  %v7705 = vunpack.c.l.b16 %v2468
  %v7706 = vunpack.c.h.b16 %v2468
  %v7707 = vunpack.c.l.b16 %v2469
  %v7708 = vunpack.c.h.b16 %v2469
  %v7709 = vunpack.c.l.b16 %v2470
  %v7710 = vunpack.c.h.b16 %v2470
  %v7711 = vunpack.c.l.b16 %v2471
  %v7712 = vunpack.c.h.b16 %v2471
  %v7713 = vunpack.c.l.b16 %v2472
  %v7714 = vunpack.c.h.b16 %v2472
  %v7715 = vunpack.c.l.b16 %v2473
  %v7716 = vunpack.c.h.b16 %v2473
  %v7717 = vunpack.c.l.b16 %v2474
  %v7718 = vunpack.c.h.b16 %v2474
  %v7719 = vunpack.c.l.b16 %v2475
  %v7720 = vunpack.c.h.b16 %v2475
  %v7721 = vunpack.c.l.b16 %v2476
  %v7722 = vunpack.c.h.b16 %v2476
  %v7723 = vunpack.c.l.b16 %v2477
  %v7724 = vunpack.c.h.b16 %v2477
  %v7725 = vunpack.c.l.b16 %v2478
  %v7726 = vunpack.c.h.b16 %v2478
  %v7727 = vunpack.c.l.b16 %v2479
  %v7728 = vunpack.c.h.b16 %v2479
  %v7729 = vunpack.c.l.b16 %v2480
  %v7730 = vunpack.c.h.b16 %v2480
  %v7731 = vunpack.c.l.b16 %v2481
  %v7732 = vunpack.c.h.b16 %v2481
  %v7733 = vunpack.c.l.b16 %v2482
  %v7734 = vunpack.c.h.b16 %v2482
  %v7735 = vunpack.c.l.b16 %v2483
  %v7736 = vunpack.c.h.b16 %v2483
  %v7737 = vunpack.c.l.b16 %v2484
  %v7738 = vunpack.c.h.b16 %v2484
  %v7739 = vunpack.c.l.b16 %v2485
  %v7740 = vunpack.c.h.b16 %v2485
  %v7741 = vunpack.c.l.b16 %v2486
  %v7742 = vunpack.c.h.b16 %v2486
  %v7743 = vunpack.c.l.b16 %v2487
  %v7744 = vunpack.c.h.b16 %v2487
  %v7745 = vunpack.c.l.b16 %v2488
  %v7746 = vunpack.c.h.b16 %v2488
  %v7747 = vunpack.c.l.b16 %v2489
  %v7748 = vunpack.c.h.b16 %v2489
  %v7749 = vunpack.c.l.b16 %v2490
  %v7750 = vunpack.c.h.b16 %v2490
  %v7751 = vunpack.c.l.b16 %v2491
  %v7752 = vunpack.c.h.b16 %v2491
  %v7753 = vunpack.c.l.b16 %v2492
  %v7754 = vunpack.c.h.b16 %v2492
  %v7755 = vunpack.c.l.b16 %v2493
  %v7756 = vunpack.c.h.b16 %v2493
  %v7757 = vunpack.c.l.b16 %v2494
  %v7758 = vunpack.c.h.b16 %v2494
  %v7759 = vunpack.c.l.b16 %v2495
  %v7760 = vunpack.c.h.b16 %v2495
  %v7761 = vunpack.c.l.b16 %v2496
  %v7762 = vunpack.c.h.b16 %v2496
  %v7763 = vunpack.c.l.b16 %v2497
  %v7764 = vunpack.c.h.b16 %v2497
  %v7765 = vunpack.c.l.b16 %v2498
  %v7766 = vunpack.c.h.b16 %v2498
  %v7767 = vunpack.c.l.b16 %v2499
  %v7768 = vunpack.c.h.b16 %v2499
  %v7769 = vunpack.c.l.b16 %v2500
  %v7770 = vunpack.c.h.b16 %v2500
  %v7771 = vunpack.c.l.b16 %v2501
  %v7772 = vunpack.c.h.b16 %v2501
  %v7773 = vunpack.c.l.b16 %v2502
  %v7774 = vunpack.c.h.b16 %v2502
  %v7775 = vpack.c.b16 %v6759, %v6751
  %v7776 = vpack.c.b16 %v6760, %v6752
  %v7777 = vpack.c.b16 %v6761, %v6753
  %v7778 = vpack.c.b16 %v6762, %v6754
  %v7779 = vpack.c.b16 %v6763, %v6755
  %v7780 = vpack.c.b16 %v6764, %v6756
  %v7781 = vpack.c.b16 %v6765, %v6757
  %v7782 = vpack.c.b16 %v6766, %v6758
  %v7783 = vpack.c.b16 %v6775, %v6767
  %v7784 = vpack.c.b16 %v6776, %v6768
  %v7785 = vpack.c.b16 %v6777, %v6769
  %v7786 = vpack.c.b16 %v6778, %v6770
  %v7787 = vpack.c.b16 %v6779, %v6771
  %v7788 = vpack.c.b16 %v6780, %v6772
  %v7789 = vpack.c.b16 %v6781, %v6773
  %v7790 = vpack.c.b16 %v6782, %v6774
  %v7791 = vpack.c.b16 %v6791, %v6783
  %v7792 = vpack.c.b16 %v6792, %v6784
  %v7793 = vpack.c.b16 %v6793, %v6785
  %v7794 = vpack.c.b16 %v6794, %v6786
  %v7795 = vpack.c.b16 %v6795, %v6787
  %v7796 = vpack.c.b16 %v6796, %v6788
  %v7797 = vpack.c.b16 %v6797, %v6789
  %v7798 = vpack.c.b16 %v6798, %v6790
  %v7799 = vpack.c.b16 %v6807, %v6799
  %v7800 = vpack.c.b16 %v6808, %v6800
  %v7801 = vpack.c.b16 %v6809, %v6801
  %v7802 = vpack.c.b16 %v6810, %v6802
  %v7803 = vpack.c.b16 %v6811, %v6803
  %v7804 = vpack.c.b16 %v6812, %v6804
  %v7805 = vpack.c.b16 %v6813, %v6805
  %v7806 = vpack.c.b16 %v6814, %v6806
  %v7807 = vpack.c.b16 %v6823, %v6815
  %v7808 = vpack.c.b16 %v6824, %v6816
  %v7809 = vpack.c.b16 %v6825, %v6817
  %v7810 = vpack.c.b16 %v6826, %v6818
  %v7811 = vpack.c.b16 %v6827, %v6819
  %v7812 = vpack.c.b16 %v6828, %v6820
  %v7813 = vpack.c.b16 %v6829, %v6821
  %v7814 = vpack.c.b16 %v6830, %v6822
  %v7815 = vpack.c.b16 %v6839, %v6831
  %v7816 = vpack.c.b16 %v6840, %v6832
  %v7817 = vpack.c.b16 %v6841, %v6833
  %v7818 = vpack.c.b16 %v6842, %v6834
  %v7819 = vpack.c.b16 %v6843, %v6835
  %v7820 = vpack.c.b16 %v6844, %v6836
  %v7821 = vpack.c.b16 %v6845, %v6837
  %v7822 = vpack.c.b16 %v6846, %v6838
  %v7823 = vpack.c.b16 %v6855, %v6847
  %v7824 = vpack.c.b16 %v6856, %v6848
  %v7825 = vpack.c.b16 %v6857, %v6849
  %v7826 = vpack.c.b16 %v6858, %v6850
  %v7827 = vpack.c.b16 %v6859, %v6851
  %v7828 = vpack.c.b16 %v6860, %v6852
  %v7829 = vpack.c.b16 %v6861, %v6853
  %v7830 = vpack.c.b16 %v6862, %v6854
  %v7831 = vpack.c.b16 %v6871, %v6863
  %v7832 = vpack.c.b16 %v6872, %v6864
  %v7833 = vpack.c.b16 %v6873, %v6865
  %v7834 = vpack.c.b16 %v6874, %v6866
  %v7835 = vpack.c.b16 %v6875, %v6867
  %v7836 = vpack.c.b16 %v6876, %v6868
  %v7837 = vpack.c.b16 %v6877, %v6869
  %v7838 = vpack.c.b16 %v6878, %v6870
  %v7839 = vpack.c.b16 %v6887, %v6879
  %v7840 = vpack.c.b16 %v6888, %v6880
  %v7841 = vpack.c.b16 %v6889, %v6881
  %v7842 = vpack.c.b16 %v6890, %v6882
  %v7843 = vpack.c.b16 %v6891, %v6883
  %v7844 = vpack.c.b16 %v6892, %v6884
  %v7845 = vpack.c.b16 %v6893, %v6885
  %v7846 = vpack.c.b16 %v6894, %v6886
  %v7847 = vpack.c.b16 %v6903, %v6895
  %v7848 = vpack.c.b16 %v6904, %v6896
  %v7849 = vpack.c.b16 %v6905, %v6897
  %v7850 = vpack.c.b16 %v6906, %v6898
  %v7851 = vpack.c.b16 %v6907, %v6899
  %v7852 = vpack.c.b16 %v6908, %v6900
  %v7853 = vpack.c.b16 %v6909, %v6901
  %v7854 = vpack.c.b16 %v6910, %v6902
  %v7855 = vpack.c.b16 %v6919, %v6911
  %v7856 = vpack.c.b16 %v6920, %v6912
  %v7857 = vpack.c.b16 %v6921, %v6913
  %v7858 = vpack.c.b16 %v6922, %v6914
  %v7859 = vpack.c.b16 %v6923, %v6915
  %v7860 = vpack.c.b16 %v6924, %v6916
  %v7861 = vpack.c.b16 %v6925, %v6917
  %v7862 = vpack.c.b16 %v6926, %v6918
  %v7863 = vpack.c.b16 %v6935, %v6927
  %v7864 = vpack.c.b16 %v6936, %v6928
  %v7865 = vpack.c.b16 %v6937, %v6929
  %v7866 = vpack.c.b16 %v6938, %v6930
  %v7867 = vpack.c.b16 %v6939, %v6931
  %v7868 = vpack.c.b16 %v6940, %v6932
  %v7869 = vpack.c.b16 %v6941, %v6933
  %v7870 = vpack.c.b16 %v6942, %v6934
  %v7871 = vpack.c.b16 %v6951, %v6943
  %v7872 = vpack.c.b16 %v6952, %v6944
  %v7873 = vpack.c.b16 %v6953, %v6945
  %v7874 = vpack.c.b16 %v6954, %v6946
  %v7875 = vpack.c.b16 %v6955, %v6947
  %v7876 = vpack.c.b16 %v6956, %v6948
  %v7877 = vpack.c.b16 %v6957, %v6949
  %v7878 = vpack.c.b16 %v6958, %v6950
  %v7879 = vpack.c.b16 %v6967, %v6959
  %v7880 = vpack.c.b16 %v6968, %v6960
  %v7881 = vpack.c.b16 %v6969, %v6961
  %v7882 = vpack.c.b16 %v6970, %v6962
  %v7883 = vpack.c.b16 %v6971, %v6963
  %v7884 = vpack.c.b16 %v6972, %v6964
  %v7885 = vpack.c.b16 %v6973, %v6965
  %v7886 = vpack.c.b16 %v6974, %v6966
  %v7887 = vpack.c.b16 %v6983, %v6975
  %v7888 = vpack.c.b16 %v6984, %v6976
  %v7889 = vpack.c.b16 %v6985, %v6977
  %v7890 = vpack.c.b16 %v6986, %v6978
  %v7891 = vpack.c.b16 %v6987, %v6979
  %v7892 = vpack.c.b16 %v6988, %v6980
  %v7893 = vpack.c.b16 %v6989, %v6981
  %v7894 = vpack.c.b16 %v6990, %v6982
  %v7895 = vpack.c.b16 %v6999, %v6991
  %v7896 = vpack.c.b16 %v7000, %v6992
  %v7897 = vpack.c.b16 %v7001, %v6993
  %v7898 = vpack.c.b16 %v7002, %v6994
  %v7899 = vpack.c.b16 %v7003, %v6995
  %v7900 = vpack.c.b16 %v7004, %v6996
  %v7901 = vpack.c.b16 %v7005, %v6997
  %v7902 = vpack.c.b16 %v7006, %v6998
  %v7903 = vpack.c.b16 %v7015, %v7007
  %v7904 = vpack.c.b16 %v7016, %v7008
  %v7905 = vpack.c.b16 %v7017, %v7009
  %v7906 = vpack.c.b16 %v7018, %v7010
  %v7907 = vpack.c.b16 %v7019, %v7011
  %v7908 = vpack.c.b16 %v7020, %v7012
  %v7909 = vpack.c.b16 %v7021, %v7013
  %v7910 = vpack.c.b16 %v7022, %v7014
  %v7911 = vpack.c.b16 %v7031, %v7023
  %v7912 = vpack.c.b16 %v7032, %v7024
  %v7913 = vpack.c.b16 %v7033, %v7025
  %v7914 = vpack.c.b16 %v7034, %v7026
  %v7915 = vpack.c.b16 %v7035, %v7027
  %v7916 = vpack.c.b16 %v7036, %v7028
  %v7917 = vpack.c.b16 %v7037, %v7029
  %v7918 = vpack.c.b16 %v7038, %v7030
  %v7919 = vpack.c.b16 %v7047, %v7039
  %v7920 = vpack.c.b16 %v7048, %v7040
  %v7921 = vpack.c.b16 %v7049, %v7041
  %v7922 = vpack.c.b16 %v7050, %v7042
  %v7923 = vpack.c.b16 %v7051, %v7043
  %v7924 = vpack.c.b16 %v7052, %v7044
  %v7925 = vpack.c.b16 %v7053, %v7045
  %v7926 = vpack.c.b16 %v7054, %v7046
  %v7927 = vpack.c.b16 %v7063, %v7055
  %v7928 = vpack.c.b16 %v7064, %v7056
  %v7929 = vpack.c.b16 %v7065, %v7057
  %v7930 = vpack.c.b16 %v7066, %v7058
  %v7931 = vpack.c.b16 %v7067, %v7059
  %v7932 = vpack.c.b16 %v7068, %v7060
  %v7933 = vpack.c.b16 %v7069, %v7061
  %v7934 = vpack.c.b16 %v7070, %v7062
  %v7935 = vpack.c.b16 %v7079, %v7071
  %v7936 = vpack.c.b16 %v7080, %v7072
  %v7937 = vpack.c.b16 %v7081, %v7073
  %v7938 = vpack.c.b16 %v7082, %v7074
  %v7939 = vpack.c.b16 %v7083, %v7075
  %v7940 = vpack.c.b16 %v7084, %v7076
  %v7941 = vpack.c.b16 %v7085, %v7077
  %v7942 = vpack.c.b16 %v7086, %v7078
  %v7943 = vpack.c.b16 %v7095, %v7087
  %v7944 = vpack.c.b16 %v7096, %v7088
  %v7945 = vpack.c.b16 %v7097, %v7089
  %v7946 = vpack.c.b16 %v7098, %v7090
  %v7947 = vpack.c.b16 %v7099, %v7091
  %v7948 = vpack.c.b16 %v7100, %v7092
  %v7949 = vpack.c.b16 %v7101, %v7093
  %v7950 = vpack.c.b16 %v7102, %v7094
  %v7951 = vpack.c.b16 %v7111, %v7103
  %v7952 = vpack.c.b16 %v7112, %v7104
  %v7953 = vpack.c.b16 %v7113, %v7105
  %v7954 = vpack.c.b16 %v7114, %v7106
  %v7955 = vpack.c.b16 %v7115, %v7107
  %v7956 = vpack.c.b16 %v7116, %v7108
  %v7957 = vpack.c.b16 %v7117, %v7109
  %v7958 = vpack.c.b16 %v7118, %v7110
  %v7959 = vpack.c.b16 %v7127, %v7119
  %v7960 = vpack.c.b16 %v7128, %v7120
  %v7961 = vpack.c.b16 %v7129, %v7121
  %v7962 = vpack.c.b16 %v7130, %v7122
  %v7963 = vpack.c.b16 %v7131, %v7123
  %v7964 = vpack.c.b16 %v7132, %v7124
  %v7965 = vpack.c.b16 %v7133, %v7125
  %v7966 = vpack.c.b16 %v7134, %v7126
  %v7967 = vpack.c.b16 %v7143, %v7135
  %v7968 = vpack.c.b16 %v7144, %v7136
  %v7969 = vpack.c.b16 %v7145, %v7137
  %v7970 = vpack.c.b16 %v7146, %v7138
  %v7971 = vpack.c.b16 %v7147, %v7139
  %v7972 = vpack.c.b16 %v7148, %v7140
  %v7973 = vpack.c.b16 %v7149, %v7141
  %v7974 = vpack.c.b16 %v7150, %v7142
  %v7975 = vpack.c.b16 %v7159, %v7151
  %v7976 = vpack.c.b16 %v7160, %v7152
  %v7977 = vpack.c.b16 %v7161, %v7153
  %v7978 = vpack.c.b16 %v7162, %v7154
  %v7979 = vpack.c.b16 %v7163, %v7155
  %v7980 = vpack.c.b16 %v7164, %v7156
  %v7981 = vpack.c.b16 %v7165, %v7157
  %v7982 = vpack.c.b16 %v7166, %v7158
  %v7983 = vpack.c.b16 %v7175, %v7167
  %v7984 = vpack.c.b16 %v7176, %v7168
  %v7985 = vpack.c.b16 %v7177, %v7169
  %v7986 = vpack.c.b16 %v7178, %v7170
  %v7987 = vpack.c.b16 %v7179, %v7171
  %v7988 = vpack.c.b16 %v7180, %v7172
  %v7989 = vpack.c.b16 %v7181, %v7173
  %v7990 = vpack.c.b16 %v7182, %v7174
  %v7991 = vpack.c.b16 %v7191, %v7183
  %v7992 = vpack.c.b16 %v7192, %v7184
  %v7993 = vpack.c.b16 %v7193, %v7185
  %v7994 = vpack.c.b16 %v7194, %v7186
  %v7995 = vpack.c.b16 %v7195, %v7187
  %v7996 = vpack.c.b16 %v7196, %v7188
  %v7997 = vpack.c.b16 %v7197, %v7189
  %v7998 = vpack.c.b16 %v7198, %v7190
  %v7999 = vpack.c.b16 %v7207, %v7199
  %v8000 = vpack.c.b16 %v7208, %v7200
  %v8001 = vpack.c.b16 %v7209, %v7201
  %v8002 = vpack.c.b16 %v7210, %v7202
  %v8003 = vpack.c.b16 %v7211, %v7203
  %v8004 = vpack.c.b16 %v7212, %v7204
  %v8005 = vpack.c.b16 %v7213, %v7205
  %v8006 = vpack.c.b16 %v7214, %v7206
  %v8007 = vpack.c.b16 %v7223, %v7215
  %v8008 = vpack.c.b16 %v7224, %v7216
  %v8009 = vpack.c.b16 %v7225, %v7217
  %v8010 = vpack.c.b16 %v7226, %v7218
  %v8011 = vpack.c.b16 %v7227, %v7219
  %v8012 = vpack.c.b16 %v7228, %v7220
  %v8013 = vpack.c.b16 %v7229, %v7221
  %v8014 = vpack.c.b16 %v7230, %v7222
  %v8015 = vpack.c.b16 %v7239, %v7231
  %v8016 = vpack.c.b16 %v7240, %v7232
  %v8017 = vpack.c.b16 %v7241, %v7233
  %v8018 = vpack.c.b16 %v7242, %v7234
  %v8019 = vpack.c.b16 %v7243, %v7235
  %v8020 = vpack.c.b16 %v7244, %v7236
  %v8021 = vpack.c.b16 %v7245, %v7237
  %v8022 = vpack.c.b16 %v7246, %v7238
  %v8023 = vpack.c.b16 %v7255, %v7247
  %v8024 = vpack.c.b16 %v7256, %v7248
  %v8025 = vpack.c.b16 %v7257, %v7249
  %v8026 = vpack.c.b16 %v7258, %v7250
  %v8027 = vpack.c.b16 %v7259, %v7251
  %v8028 = vpack.c.b16 %v7260, %v7252
  %v8029 = vpack.c.b16 %v7261, %v7253
  %v8030 = vpack.c.b16 %v7262, %v7254
  %v8031 = vpack.c.b16 %v7271, %v7263
  %v8032 = vpack.c.b16 %v7272, %v7264
  %v8033 = vpack.c.b16 %v7273, %v7265
  %v8034 = vpack.c.b16 %v7274, %v7266
  %v8035 = vpack.c.b16 %v7275, %v7267
  %v8036 = vpack.c.b16 %v7276, %v7268
  %v8037 = vpack.c.b16 %v7277, %v7269
  %v8038 = vpack.c.b16 %v7278, %v7270
  %v8039 = vpack.c.b16 %v7287, %v7279
  %v8040 = vpack.c.b16 %v7288, %v7280
  %v8041 = vpack.c.b16 %v7289, %v7281
  %v8042 = vpack.c.b16 %v7290, %v7282
  %v8043 = vpack.c.b16 %v7291, %v7283
  %v8044 = vpack.c.b16 %v7292, %v7284
  %v8045 = vpack.c.b16 %v7293, %v7285
  %v8046 = vpack.c.b16 %v7294, %v7286
  %v8047 = vpack.c.b16 %v7303, %v7295
  %v8048 = vpack.c.b16 %v7304, %v7296
  %v8049 = vpack.c.b16 %v7305, %v7297
  %v8050 = vpack.c.b16 %v7306, %v7298
  %v8051 = vpack.c.b16 %v7307, %v7299
  %v8052 = vpack.c.b16 %v7308, %v7300
  %v8053 = vpack.c.b16 %v7309, %v7301
  %v8054 = vpack.c.b16 %v7310, %v7302
  %v8055 = vpack.c.b16 %v7319, %v7311
  %v8056 = vpack.c.b16 %v7320, %v7312
  %v8057 = vpack.c.b16 %v7321, %v7313
  %v8058 = vpack.c.b16 %v7322, %v7314
  %v8059 = vpack.c.b16 %v7323, %v7315
  %v8060 = vpack.c.b16 %v7324, %v7316
  %v8061 = vpack.c.b16 %v7325, %v7317
  %v8062 = vpack.c.b16 %v7326, %v7318
  %v8063 = vpack.c.b16 %v7335, %v7327
  %v8064 = vpack.c.b16 %v7336, %v7328
  %v8065 = vpack.c.b16 %v7337, %v7329
  %v8066 = vpack.c.b16 %v7338, %v7330
  %v8067 = vpack.c.b16 %v7339, %v7331
  %v8068 = vpack.c.b16 %v7340, %v7332
  %v8069 = vpack.c.b16 %v7341, %v7333
  %v8070 = vpack.c.b16 %v7342, %v7334
  %v8071 = vpack.c.b16 %v7351, %v7343
  %v8072 = vpack.c.b16 %v7352, %v7344
  %v8073 = vpack.c.b16 %v7353, %v7345
  %v8074 = vpack.c.b16 %v7354, %v7346
  %v8075 = vpack.c.b16 %v7355, %v7347
  %v8076 = vpack.c.b16 %v7356, %v7348
  %v8077 = vpack.c.b16 %v7357, %v7349
  %v8078 = vpack.c.b16 %v7358, %v7350
  %v8079 = vpack.c.b16 %v7367, %v7359
  %v8080 = vpack.c.b16 %v7368, %v7360
  %v8081 = vpack.c.b16 %v7369, %v7361
  %v8082 = vpack.c.b16 %v7370, %v7362
  %v8083 = vpack.c.b16 %v7371, %v7363
  %v8084 = vpack.c.b16 %v7372, %v7364
  %v8085 = vpack.c.b16 %v7373, %v7365
  %v8086 = vpack.c.b16 %v7374, %v7366
  %v8087 = vpack.c.b16 %v7383, %v7375
  %v8088 = vpack.c.b16 %v7384, %v7376
  %v8089 = vpack.c.b16 %v7385, %v7377
  %v8090 = vpack.c.b16 %v7386, %v7378
  %v8091 = vpack.c.b16 %v7387, %v7379
  %v8092 = vpack.c.b16 %v7388, %v7380
  %v8093 = vpack.c.b16 %v7389, %v7381
  %v8094 = vpack.c.b16 %v7390, %v7382
  %v8095 = vpack.c.b16 %v7399, %v7391
  %v8096 = vpack.c.b16 %v7400, %v7392
  %v8097 = vpack.c.b16 %v7401, %v7393
  %v8098 = vpack.c.b16 %v7402, %v7394
  %v8099 = vpack.c.b16 %v7403, %v7395
  %v8100 = vpack.c.b16 %v7404, %v7396
  %v8101 = vpack.c.b16 %v7405, %v7397
  %v8102 = vpack.c.b16 %v7406, %v7398
  %v8103 = vpack.c.b16 %v7415, %v7407
  %v8104 = vpack.c.b16 %v7416, %v7408
  %v8105 = vpack.c.b16 %v7417, %v7409
  %v8106 = vpack.c.b16 %v7418, %v7410
  %v8107 = vpack.c.b16 %v7419, %v7411
  %v8108 = vpack.c.b16 %v7420, %v7412
  %v8109 = vpack.c.b16 %v7421, %v7413
  %v8110 = vpack.c.b16 %v7422, %v7414
  %v8111 = vpack.c.b16 %v7431, %v7423
  %v8112 = vpack.c.b16 %v7432, %v7424
  %v8113 = vpack.c.b16 %v7433, %v7425
  %v8114 = vpack.c.b16 %v7434, %v7426
  %v8115 = vpack.c.b16 %v7435, %v7427
  %v8116 = vpack.c.b16 %v7436, %v7428
  %v8117 = vpack.c.b16 %v7437, %v7429
  %v8118 = vpack.c.b16 %v7438, %v7430
  %v8119 = vpack.c.b16 %v7447, %v7439
  %v8120 = vpack.c.b16 %v7448, %v7440
  %v8121 = vpack.c.b16 %v7449, %v7441
  %v8122 = vpack.c.b16 %v7450, %v7442
  %v8123 = vpack.c.b16 %v7451, %v7443
  %v8124 = vpack.c.b16 %v7452, %v7444
  %v8125 = vpack.c.b16 %v7453, %v7445
  %v8126 = vpack.c.b16 %v7454, %v7446
  %v8127 = vpack.c.b16 %v7463, %v7455
  %v8128 = vpack.c.b16 %v7464, %v7456
  %v8129 = vpack.c.b16 %v7465, %v7457
  %v8130 = vpack.c.b16 %v7466, %v7458
  %v8131 = vpack.c.b16 %v7467, %v7459
  %v8132 = vpack.c.b16 %v7468, %v7460
  %v8133 = vpack.c.b16 %v7469, %v7461
  %v8134 = vpack.c.b16 %v7470, %v7462
  %v8135 = vpack.c.b16 %v7479, %v7471
  %v8136 = vpack.c.b16 %v7480, %v7472
  %v8137 = vpack.c.b16 %v7481, %v7473
  %v8138 = vpack.c.b16 %v7482, %v7474
  %v8139 = vpack.c.b16 %v7483, %v7475
  %v8140 = vpack.c.b16 %v7484, %v7476
  %v8141 = vpack.c.b16 %v7485, %v7477
  %v8142 = vpack.c.b16 %v7486, %v7478
  %v8143 = vpack.c.b16 %v7495, %v7487
  %v8144 = vpack.c.b16 %v7496, %v7488
  %v8145 = vpack.c.b16 %v7497, %v7489
  %v8146 = vpack.c.b16 %v7498, %v7490
  %v8147 = vpack.c.b16 %v7499, %v7491
  %v8148 = vpack.c.b16 %v7500, %v7492
  %v8149 = vpack.c.b16 %v7501, %v7493
  %v8150 = vpack.c.b16 %v7502, %v7494
  %v8151 = vpack.c.b16 %v7511, %v7503
  %v8152 = vpack.c.b16 %v7512, %v7504
  %v8153 = vpack.c.b16 %v7513, %v7505
  %v8154 = vpack.c.b16 %v7514, %v7506
  %v8155 = vpack.c.b16 %v7515, %v7507
  %v8156 = vpack.c.b16 %v7516, %v7508
  %v8157 = vpack.c.b16 %v7517, %v7509
  %v8158 = vpack.c.b16 %v7518, %v7510
  %v8159 = vpack.c.b16 %v7527, %v7519
  %v8160 = vpack.c.b16 %v7528, %v7520
  %v8161 = vpack.c.b16 %v7529, %v7521
  %v8162 = vpack.c.b16 %v7530, %v7522
  %v8163 = vpack.c.b16 %v7531, %v7523
  %v8164 = vpack.c.b16 %v7532, %v7524
  %v8165 = vpack.c.b16 %v7533, %v7525
  %v8166 = vpack.c.b16 %v7534, %v7526
  %v8167 = vpack.c.b16 %v7543, %v7535
  %v8168 = vpack.c.b16 %v7544, %v7536
  %v8169 = vpack.c.b16 %v7545, %v7537
  %v8170 = vpack.c.b16 %v7546, %v7538
  %v8171 = vpack.c.b16 %v7547, %v7539
  %v8172 = vpack.c.b16 %v7548, %v7540
  %v8173 = vpack.c.b16 %v7549, %v7541
  %v8174 = vpack.c.b16 %v7550, %v7542
  %v8175 = vpack.c.b16 %v7559, %v7551
  %v8176 = vpack.c.b16 %v7560, %v7552
  %v8177 = vpack.c.b16 %v7561, %v7553
  %v8178 = vpack.c.b16 %v7562, %v7554
  %v8179 = vpack.c.b16 %v7563, %v7555
  %v8180 = vpack.c.b16 %v7564, %v7556
  %v8181 = vpack.c.b16 %v7565, %v7557
  %v8182 = vpack.c.b16 %v7566, %v7558
  %v8183 = vpack.c.b16 %v7575, %v7567
  %v8184 = vpack.c.b16 %v7576, %v7568
  %v8185 = vpack.c.b16 %v7577, %v7569
  %v8186 = vpack.c.b16 %v7578, %v7570
  %v8187 = vpack.c.b16 %v7579, %v7571
  %v8188 = vpack.c.b16 %v7580, %v7572
  %v8189 = vpack.c.b16 %v7581, %v7573
  %v8190 = vpack.c.b16 %v7582, %v7574
  %v8191 = vpack.c.b16 %v7591, %v7583
  %v8192 = vpack.c.b16 %v7592, %v7584
  %v8193 = vpack.c.b16 %v7593, %v7585
  %v8194 = vpack.c.b16 %v7594, %v7586
  %v8195 = vpack.c.b16 %v7595, %v7587
  %v8196 = vpack.c.b16 %v7596, %v7588
  %v8197 = vpack.c.b16 %v7597, %v7589
  %v8198 = vpack.c.b16 %v7598, %v7590
  %v8199 = vpack.c.b16 %v7607, %v7599
  %v8200 = vpack.c.b16 %v7608, %v7600
  %v8201 = vpack.c.b16 %v7609, %v7601
  %v8202 = vpack.c.b16 %v7610, %v7602
  %v8203 = vpack.c.b16 %v7611, %v7603
  %v8204 = vpack.c.b16 %v7612, %v7604
  %v8205 = vpack.c.b16 %v7613, %v7605
  %v8206 = vpack.c.b16 %v7614, %v7606
  %v8207 = vpack.c.b16 %v7623, %v7615
  %v8208 = vpack.c.b16 %v7624, %v7616
  %v8209 = vpack.c.b16 %v7625, %v7617
  %v8210 = vpack.c.b16 %v7626, %v7618
  %v8211 = vpack.c.b16 %v7627, %v7619
  %v8212 = vpack.c.b16 %v7628, %v7620
  %v8213 = vpack.c.b16 %v7629, %v7621
  %v8214 = vpack.c.b16 %v7630, %v7622
  %v8215 = vpack.c.b16 %v7639, %v7631
  %v8216 = vpack.c.b16 %v7640, %v7632
  %v8217 = vpack.c.b16 %v7641, %v7633
  %v8218 = vpack.c.b16 %v7642, %v7634
  %v8219 = vpack.c.b16 %v7643, %v7635
  %v8220 = vpack.c.b16 %v7644, %v7636
  %v8221 = vpack.c.b16 %v7645, %v7637
  %v8222 = vpack.c.b16 %v7646, %v7638
  %v8223 = vpack.c.b16 %v7655, %v7647
  %v8224 = vpack.c.b16 %v7656, %v7648
  %v8225 = vpack.c.b16 %v7657, %v7649
  %v8226 = vpack.c.b16 %v7658, %v7650
  %v8227 = vpack.c.b16 %v7659, %v7651
  %v8228 = vpack.c.b16 %v7660, %v7652
  %v8229 = vpack.c.b16 %v7661, %v7653
  %v8230 = vpack.c.b16 %v7662, %v7654
  %v8231 = vpack.c.b16 %v7671, %v7663
  %v8232 = vpack.c.b16 %v7672, %v7664
  %v8233 = vpack.c.b16 %v7673, %v7665
  %v8234 = vpack.c.b16 %v7674, %v7666
  %v8235 = vpack.c.b16 %v7675, %v7667
  %v8236 = vpack.c.b16 %v7676, %v7668
  %v8237 = vpack.c.b16 %v7677, %v7669
  %v8238 = vpack.c.b16 %v7678, %v7670
  %v8239 = vpack.c.b16 %v7687, %v7679
  %v8240 = vpack.c.b16 %v7688, %v7680
  %v8241 = vpack.c.b16 %v7689, %v7681
  %v8242 = vpack.c.b16 %v7690, %v7682
  %v8243 = vpack.c.b16 %v7691, %v7683
  %v8244 = vpack.c.b16 %v7692, %v7684
  %v8245 = vpack.c.b16 %v7693, %v7685
  %v8246 = vpack.c.b16 %v7694, %v7686
  %v8247 = vpack.c.b16 %v7703, %v7695
  %v8248 = vpack.c.b16 %v7704, %v7696
  %v8249 = vpack.c.b16 %v7705, %v7697
  %v8250 = vpack.c.b16 %v7706, %v7698
  %v8251 = vpack.c.b16 %v7707, %v7699
  %v8252 = vpack.c.b16 %v7708, %v7700
  %v8253 = vpack.c.b16 %v7709, %v7701
  %v8254 = vpack.c.b16 %v7710, %v7702
  %v8255 = vpack.c.b16 %v7719, %v7711
  %v8256 = vpack.c.b16 %v7720, %v7712
  %v8257 = vpack.c.b16 %v7721, %v7713
  %v8258 = vpack.c.b16 %v7722, %v7714
  %v8259 = vpack.c.b16 %v7723, %v7715
  %v8260 = vpack.c.b16 %v7724, %v7716
  %v8261 = vpack.c.b16 %v7725, %v7717
  %v8262 = vpack.c.b16 %v7726, %v7718
  %v8263 = vpack.c.b16 %v7735, %v7727
  %v8264 = vpack.c.b16 %v7736, %v7728
  %v8265 = vpack.c.b16 %v7737, %v7729
  %v8266 = vpack.c.b16 %v7738, %v7730
  %v8267 = vpack.c.b16 %v7739, %v7731
  %v8268 = vpack.c.b16 %v7740, %v7732
  %v8269 = vpack.c.b16 %v7741, %v7733
  %v8270 = vpack.c.b16 %v7742, %v7734
  %v8271 = vpack.c.b16 %v7751, %v7743
  %v8272 = vpack.c.b16 %v7752, %v7744
  %v8273 = vpack.c.b16 %v7753, %v7745
  %v8274 = vpack.c.b16 %v7754, %v7746
  %v8275 = vpack.c.b16 %v7755, %v7747
  %v8276 = vpack.c.b16 %v7756, %v7748
  %v8277 = vpack.c.b16 %v7757, %v7749
  %v8278 = vpack.c.b16 %v7758, %v7750
  %v8279 = vpack.c.b16 %v7767, %v7759
  %v8280 = vpack.c.b16 %v7768, %v7760
  %v8281 = vpack.c.b16 %v7769, %v7761
  %v8282 = vpack.c.b16 %v7770, %v7762
  %v8283 = vpack.c.b16 %v7771, %v7763
  %v8284 = vpack.c.b16 %v7772, %v7764
  %v8285 = vpack.c.b16 %v7773, %v7765
  %v8286 = vpack.c.b16 %v7774, %v7766
  %8799 = vmatprep.subr.bf16.mxu0 %v7776
  %8800 = vmatpush1.bf16.msra.mxu0 %v7775
  %8801 = vmatprep.subr.bf16.mxu0 %v7784
  %8802 = vmatpush1.bf16.msra.mxu0 %v7783
  %8803 = vmatprep.subr.bf16.mxu0 %v7792
  %8804 = vmatpush1.bf16.msra.mxu0 %v7791
  %8805 = vmatprep.subr.bf16.mxu0 %v7800
  %8806 = vmatpush1.bf16.msra.mxu0 %v7799
  %8807 = vmatprep.subr.bf16.mxu0 %v7808
  %8808 = vmatpush1.bf16.msra.mxu0 %v7807
  %8809 = vmatprep.subr.bf16.mxu0 %v7816
  %8810 = vmatpush1.bf16.msra.mxu0 %v7815
  %8811 = vmatprep.subr.bf16.mxu0 %v7824
  %8812 = vmatpush1.bf16.msra.mxu0 %v7823
  %8813 = vmatprep.subr.bf16.mxu0 %v7832
  %8814 = vmatpush1.bf16.msra.mxu0 %v7831
  %8815 = vmatprep.subr.bf16.mxu0 %v7840
  %8816 = vmatpush1.bf16.msra.mxu0 %v7839
  %8817 = vmatprep.subr.bf16.mxu0 %v7848
  %8818 = vmatpush1.bf16.msra.mxu0 %v7847
  %8819 = vmatprep.subr.bf16.mxu0 %v7856
  %8820 = vmatpush1.bf16.msra.mxu0 %v7855
  %8821 = vmatprep.subr.bf16.mxu0 %v7864
  %8822 = vmatpush1.bf16.msra.mxu0 %v7863
  %8823 = vmatprep.subr.bf16.mxu0 %v7872
  %8824 = vmatpush1.bf16.msra.mxu0 %v7871
  %8825 = vmatprep.subr.bf16.mxu0 %v7880
  %8826 = vmatpush1.bf16.msra.mxu0 %v7879
  %8827 = vmatprep.subr.bf16.mxu0 %v7888
  %8828 = vmatpush1.bf16.msra.mxu0 %v7887
  %8829 = vmatprep.subr.bf16.mxu0 %v7896
  %8830 = vmatpush1.bf16.msra.mxu0 %v7895
  %8831 = vmatprep.mubr.bf16.mxu0 %v1984
  %8832 = vmatmul.mubr.bf16.gmra.mrb[0].mxu0 %v1983
  %v8833 = vpop.f32.mrb[0].mxu0
  %v8834 = vadd.f32 %v5741, %v8833
  %v8835 = vpop.f32.mrb[0].mxu0
  %v8836 = vadd.f32 %v5743, %v8835
  %v8837 = vpop.f32.mrb[0].mxu0
  %v8838 = vpop.f32.mrb[0].mxu0
  %8839 = vdwg.mxu0
  %8840 = vmatprep.subr.bf16.mxu0 %v7904
  %8841 = vmatpush1.bf16.msra.mxu0 %v7903
  %8842 = vmatprep.subr.bf16.mxu0 %v7912
  %8843 = vmatpush1.bf16.msra.mxu0 %v7911
  %8844 = vmatprep.subr.bf16.mxu0 %v7920
  %8845 = vmatpush1.bf16.msra.mxu0 %v7919
  %8846 = vmatprep.subr.bf16.mxu0 %v7928
  %8847 = vmatpush1.bf16.msra.mxu0 %v7927
  %8848 = vmatprep.subr.bf16.mxu0 %v7936
  %8849 = vmatpush1.bf16.msra.mxu0 %v7935
  %8850 = vmatprep.subr.bf16.mxu0 %v7944
  %8851 = vmatpush1.bf16.msra.mxu0 %v7943
  %8852 = vmatprep.subr.bf16.mxu0 %v7952
  %8853 = vmatpush1.bf16.msra.mxu0 %v7951
  %8854 = vmatprep.subr.bf16.mxu0 %v7960
  %8855 = vmatpush1.bf16.msra.mxu0 %v7959
  %8856 = vmatprep.subr.bf16.mxu0 %v7968
  %8857 = vmatpush1.bf16.msra.mxu0 %v7967
  %8858 = vmatprep.subr.bf16.mxu0 %v7976
  %8859 = vmatpush1.bf16.msra.mxu0 %v7975
  %8860 = vmatprep.subr.bf16.mxu0 %v7984
  %8861 = vmatpush1.bf16.msra.mxu0 %v7983
  %8862 = vmatprep.subr.bf16.mxu0 %v7992
  %8863 = vmatpush1.bf16.msra.mxu0 %v7991
  %8864 = vmatprep.subr.bf16.mxu0 %v8000
  %8865 = vmatpush1.bf16.msra.mxu0 %v7999
  %8866 = vmatprep.subr.bf16.mxu0 %v8008
  %8867 = vmatpush1.bf16.msra.mxu0 %v8007
  %8868 = vmatprep.subr.bf16.mxu0 %v8016
  %8869 = vmatpush1.bf16.msra.mxu0 %v8015
  %8870 = vmatprep.subr.bf16.mxu0 %v8024
  %8871 = vmatpush1.bf16.msra.mxu0 %v8023
  %8872 = vmatprep.mubr.bf16.mxu0 %v1986
  %8873 = vmatmul.mubr.bf16.gmra.mrb[0].mxu0 %v1985
  %v8874 = vpop.f32.mrb[0].mxu0
  %v8875 = vadd.f32 %v8834, %v8874
  %v8876 = vpop.f32.mrb[0].mxu0
  %v8877 = vadd.f32 %v8836, %v8876
  %v8878 = vpop.f32.mrb[0].mxu0
  %v8879 = vpop.f32.mrb[0].mxu0
  %8880 = vdwg.mxu0
  %8881 = vmatprep.subr.bf16.mxu0 %v8032
  %8882 = vmatpush1.bf16.msra.mxu0 %v8031
  %8883 = vmatprep.subr.bf16.mxu0 %v8040
  %8884 = vmatpush1.bf16.msra.mxu0 %v8039
  %8885 = vmatprep.subr.bf16.mxu0 %v8048
  %8886 = vmatpush1.bf16.msra.mxu0 %v8047
  %8887 = vmatprep.subr.bf16.mxu0 %v8056
  %8888 = vmatpush1.bf16.msra.mxu0 %v8055
  %8889 = vmatprep.subr.bf16.mxu0 %v8064
  %8890 = vmatpush1.bf16.msra.mxu0 %v8063
  %8891 = vmatprep.subr.bf16.mxu0 %v8072
  %8892 = vmatpush1.bf16.msra.mxu0 %v8071
  %8893 = vmatprep.subr.bf16.mxu0 %v8080
  %8894 = vmatpush1.bf16.msra.mxu0 %v8079
  %8895 = vmatprep.subr.bf16.mxu0 %v8088
  %8896 = vmatpush1.bf16.msra.mxu0 %v8087
  %8897 = vmatprep.subr.bf16.mxu0 %v8096
  %8898 = vmatpush1.bf16.msra.mxu0 %v8095
  %8899 = vmatprep.subr.bf16.mxu0 %v8104
  %8900 = vmatpush1.bf16.msra.mxu0 %v8103
  %8901 = vmatprep.subr.bf16.mxu0 %v8112
  %8902 = vmatpush1.bf16.msra.mxu0 %v8111
  %8903 = vmatprep.subr.bf16.mxu0 %v8120
  %8904 = vmatpush1.bf16.msra.mxu0 %v8119
  %8905 = vmatprep.subr.bf16.mxu0 %v8128
  %8906 = vmatpush1.bf16.msra.mxu0 %v8127
  %8907 = vmatprep.subr.bf16.mxu0 %v8136
  %8908 = vmatpush1.bf16.msra.mxu0 %v8135
  %8909 = vmatprep.subr.bf16.mxu0 %v8144
  %8910 = vmatpush1.bf16.msra.mxu0 %v8143
  %8911 = vmatprep.subr.bf16.mxu0 %v8152
  %8912 = vmatpush1.bf16.msra.mxu0 %v8151
  %8913 = vmatprep.mubr.bf16.mxu0 %v1988
  %8914 = vmatmul.mubr.bf16.gmra.mrb[0].mxu0 %v1987
  %v8915 = vpop.f32.mrb[0].mxu0
  %v8916 = vadd.f32 %v8875, %v8915
  %v8917 = vpop.f32.mrb[0].mxu0
  %v8918 = vadd.f32 %v8877, %v8917
  %v8919 = vpop.f32.mrb[0].mxu0
  %v8920 = vpop.f32.mrb[0].mxu0
  %8921 = vdwg.mxu0
  %8922 = vmatprep.subr.bf16.mxu0 %v8160
  %8923 = vmatpush1.bf16.msra.mxu0 %v8159
  %8924 = vmatprep.subr.bf16.mxu0 %v8168
  %8925 = vmatpush1.bf16.msra.mxu0 %v8167
  %8926 = vmatprep.subr.bf16.mxu0 %v8176
  %8927 = vmatpush1.bf16.msra.mxu0 %v8175
  %8928 = vmatprep.subr.bf16.mxu0 %v8184
  %8929 = vmatpush1.bf16.msra.mxu0 %v8183
  %8930 = vmatprep.subr.bf16.mxu0 %v8192
  %8931 = vmatpush1.bf16.msra.mxu0 %v8191
  %8932 = vmatprep.subr.bf16.mxu0 %v8200
  %8933 = vmatpush1.bf16.msra.mxu0 %v8199
  %8934 = vmatprep.subr.bf16.mxu0 %v8208
  %8935 = vmatpush1.bf16.msra.mxu0 %v8207
  %8936 = vmatprep.subr.bf16.mxu0 %v8216
  %8937 = vmatpush1.bf16.msra.mxu0 %v8215
  %8938 = vmatprep.subr.bf16.mxu0 %v8224
  %8939 = vmatpush1.bf16.msra.mxu0 %v8223
  %8940 = vmatprep.subr.bf16.mxu0 %v8232
  %8941 = vmatpush1.bf16.msra.mxu0 %v8231
  %8942 = vmatprep.subr.bf16.mxu0 %v8240
  %8943 = vmatpush1.bf16.msra.mxu0 %v8239
  %8944 = vmatprep.subr.bf16.mxu0 %v8248
  %8945 = vmatpush1.bf16.msra.mxu0 %v8247
  %8946 = vmatprep.subr.bf16.mxu0 %v8256
  %8947 = vmatpush1.bf16.msra.mxu0 %v8255
  %8948 = vmatprep.subr.bf16.mxu0 %v8264
  %8949 = vmatpush1.bf16.msra.mxu0 %v8263
  %8950 = vmatprep.subr.bf16.mxu0 %v8272
  %8951 = vmatpush1.bf16.msra.mxu0 %v8271
  %8952 = vmatprep.subr.bf16.mxu0 %v8280
  %8953 = vmatpush1.bf16.msra.mxu0 %v8279
  %8954 = vmatprep.mubr.bf16.mxu0 %v1990
  %8955 = vmatmul.mubr.bf16.gmra.mrb[0].mxu0 %v1989
  %v8956 = vpop.f32.mrb[0].mxu0
  %v8957 = vadd.f32 %v8916, %v8956
  %v8958 = vpop.f32.mrb[0].mxu0
  %v8959 = vadd.f32 %v8918, %v8958
  %v8960 = vpop.f32.mrb[0].mxu0
  %v8961 = vpop.f32.mrb[0].mxu0
  %8962 = vdwg.mxu0
  %8963 = vmatprep.subr.bf16.mxu0 %v7778
  %8964 = vmatpush1.bf16.msra.mxu0 %v7777
  %8965 = vmatprep.subr.bf16.mxu0 %v7786
  %8966 = vmatpush1.bf16.msra.mxu0 %v7785
  %8967 = vmatprep.subr.bf16.mxu0 %v7794
  %8968 = vmatpush1.bf16.msra.mxu0 %v7793
  %8969 = vmatprep.subr.bf16.mxu0 %v7802
  %8970 = vmatpush1.bf16.msra.mxu0 %v7801
  %8971 = vmatprep.subr.bf16.mxu0 %v7810
  %8972 = vmatpush1.bf16.msra.mxu0 %v7809
  %8973 = vmatprep.subr.bf16.mxu0 %v7818
  %8974 = vmatpush1.bf16.msra.mxu0 %v7817
  %8975 = vmatprep.subr.bf16.mxu0 %v7826
  %8976 = vmatpush1.bf16.msra.mxu0 %v7825
  %8977 = vmatprep.subr.bf16.mxu0 %v7834
  %8978 = vmatpush1.bf16.msra.mxu0 %v7833
  %8979 = vmatprep.subr.bf16.mxu0 %v7842
  %8980 = vmatpush1.bf16.msra.mxu0 %v7841
  %8981 = vmatprep.subr.bf16.mxu0 %v7850
  %8982 = vmatpush1.bf16.msra.mxu0 %v7849
  %8983 = vmatprep.subr.bf16.mxu0 %v7858
  %8984 = vmatpush1.bf16.msra.mxu0 %v7857
  %8985 = vmatprep.subr.bf16.mxu0 %v7866
  %8986 = vmatpush1.bf16.msra.mxu0 %v7865
  %8987 = vmatprep.subr.bf16.mxu0 %v7874
  %8988 = vmatpush1.bf16.msra.mxu0 %v7873
  %8989 = vmatprep.subr.bf16.mxu0 %v7882
  %8990 = vmatpush1.bf16.msra.mxu0 %v7881
  %8991 = vmatprep.subr.bf16.mxu0 %v7890
  %8992 = vmatpush1.bf16.msra.mxu0 %v7889
  %8993 = vmatprep.subr.bf16.mxu0 %v7898
  %8994 = vmatpush1.bf16.msra.mxu0 %v7897
  %8995 = vmatprep.mubr.bf16.mxu0 %v1984
  %8996 = vmatmul.mubr.bf16.gmra.mrb[0].mxu0 %v1983
  %v8997 = vpop.f32.mrb[0].mxu0
  %v8998 = vadd.f32 %v5905, %v8997
  %v8999 = vpop.f32.mrb[0].mxu0
  %v9000 = vadd.f32 %v5907, %v8999
  %v9001 = vpop.f32.mrb[0].mxu0
  %v9002 = vpop.f32.mrb[0].mxu0
  %9003 = vdwg.mxu0
  %9004 = vmatprep.subr.bf16.mxu0 %v7906
  %9005 = vmatpush1.bf16.msra.mxu0 %v7905
  %9006 = vmatprep.subr.bf16.mxu0 %v7914
  %9007 = vmatpush1.bf16.msra.mxu0 %v7913
  %9008 = vmatprep.subr.bf16.mxu0 %v7922
  %9009 = vmatpush1.bf16.msra.mxu0 %v7921
  %9010 = vmatprep.subr.bf16.mxu0 %v7930
  %9011 = vmatpush1.bf16.msra.mxu0 %v7929
  %9012 = vmatprep.subr.bf16.mxu0 %v7938
  %9013 = vmatpush1.bf16.msra.mxu0 %v7937
  %9014 = vmatprep.subr.bf16.mxu0 %v7946
  %9015 = vmatpush1.bf16.msra.mxu0 %v7945
  %9016 = vmatprep.subr.bf16.mxu0 %v7954
  %9017 = vmatpush1.bf16.msra.mxu0 %v7953
  %9018 = vmatprep.subr.bf16.mxu0 %v7962
  %9019 = vmatpush1.bf16.msra.mxu0 %v7961
  %9020 = vmatprep.subr.bf16.mxu0 %v7970
  %9021 = vmatpush1.bf16.msra.mxu0 %v7969
  %9022 = vmatprep.subr.bf16.mxu0 %v7978
  %9023 = vmatpush1.bf16.msra.mxu0 %v7977
  %9024 = vmatprep.subr.bf16.mxu0 %v7986
  %9025 = vmatpush1.bf16.msra.mxu0 %v7985
  %9026 = vmatprep.subr.bf16.mxu0 %v7994
  %9027 = vmatpush1.bf16.msra.mxu0 %v7993
  %9028 = vmatprep.subr.bf16.mxu0 %v8002
  %9029 = vmatpush1.bf16.msra.mxu0 %v8001
  %9030 = vmatprep.subr.bf16.mxu0 %v8010
  %9031 = vmatpush1.bf16.msra.mxu0 %v8009
  %9032 = vmatprep.subr.bf16.mxu0 %v8018
  %9033 = vmatpush1.bf16.msra.mxu0 %v8017
  %9034 = vmatprep.subr.bf16.mxu0 %v8026
  %9035 = vmatpush1.bf16.msra.mxu0 %v8025
  %9036 = vmatprep.mubr.bf16.mxu0 %v1986
  %9037 = vmatmul.mubr.bf16.gmra.mrb[0].mxu0 %v1985
  %v9038 = vpop.f32.mrb[0].mxu0
  %v9039 = vadd.f32 %v8998, %v9038
  %v9040 = vpop.f32.mrb[0].mxu0
  %v9041 = vadd.f32 %v9000, %v9040
  %v9042 = vpop.f32.mrb[0].mxu0
  %v9043 = vpop.f32.mrb[0].mxu0
  %9044 = vdwg.mxu0
  %9045 = vmatprep.subr.bf16.mxu0 %v8034
  %9046 = vmatpush1.bf16.msra.mxu0 %v8033
  %9047 = vmatprep.subr.bf16.mxu0 %v8042
  %9048 = vmatpush1.bf16.msra.mxu0 %v8041
  %9049 = vmatprep.subr.bf16.mxu0 %v8050
  %9050 = vmatpush1.bf16.msra.mxu0 %v8049
  %9051 = vmatprep.subr.bf16.mxu0 %v8058
  %9052 = vmatpush1.bf16.msra.mxu0 %v8057
  %9053 = vmatprep.subr.bf16.mxu0 %v8066
  %9054 = vmatpush1.bf16.msra.mxu0 %v8065
  %9055 = vmatprep.subr.bf16.mxu0 %v8074
  %9056 = vmatpush1.bf16.msra.mxu0 %v8073
  %9057 = vmatprep.subr.bf16.mxu0 %v8082
  %9058 = vmatpush1.bf16.msra.mxu0 %v8081
  %9059 = vmatprep.subr.bf16.mxu0 %v8090
  %9060 = vmatpush1.bf16.msra.mxu0 %v8089
  %9061 = vmatprep.subr.bf16.mxu0 %v8098
  %9062 = vmatpush1.bf16.msra.mxu0 %v8097
  %9063 = vmatprep.subr.bf16.mxu0 %v8106
  %9064 = vmatpush1.bf16.msra.mxu0 %v8105
  %9065 = vmatprep.subr.bf16.mxu0 %v8114
  %9066 = vmatpush1.bf16.msra.mxu0 %v8113
  %9067 = vmatprep.subr.bf16.mxu0 %v8122
  %9068 = vmatpush1.bf16.msra.mxu0 %v8121
  %9069 = vmatprep.subr.bf16.mxu0 %v8130
  %9070 = vmatpush1.bf16.msra.mxu0 %v8129
  %9071 = vmatprep.subr.bf16.mxu0 %v8138
  %9072 = vmatpush1.bf16.msra.mxu0 %v8137
  %9073 = vmatprep.subr.bf16.mxu0 %v8146
  %9074 = vmatpush1.bf16.msra.mxu0 %v8145
  %9075 = vmatprep.subr.bf16.mxu0 %v8154
  %9076 = vmatpush1.bf16.msra.mxu0 %v8153
  %9077 = vmatprep.mubr.bf16.mxu0 %v1988
  %9078 = vmatmul.mubr.bf16.gmra.mrb[0].mxu0 %v1987
  %v9079 = vpop.f32.mrb[0].mxu0
  %v9080 = vadd.f32 %v9039, %v9079
  %v9081 = vpop.f32.mrb[0].mxu0
  %v9082 = vadd.f32 %v9041, %v9081
  %v9083 = vpop.f32.mrb[0].mxu0
  %v9084 = vpop.f32.mrb[0].mxu0
  %9085 = vdwg.mxu0
  %9086 = vmatprep.subr.bf16.mxu0 %v8162
  %9087 = vmatpush1.bf16.msra.mxu0 %v8161
  %9088 = vmatprep.subr.bf16.mxu0 %v8170
  %9089 = vmatpush1.bf16.msra.mxu0 %v8169
  %9090 = vmatprep.subr.bf16.mxu0 %v8178
  %9091 = vmatpush1.bf16.msra.mxu0 %v8177
  %9092 = vmatprep.subr.bf16.mxu0 %v8186
  %9093 = vmatpush1.bf16.msra.mxu0 %v8185
  %9094 = vmatprep.subr.bf16.mxu0 %v8194
  %9095 = vmatpush1.bf16.msra.mxu0 %v8193
  %9096 = vmatprep.subr.bf16.mxu0 %v8202
  %9097 = vmatpush1.bf16.msra.mxu0 %v8201
  %9098 = vmatprep.subr.bf16.mxu0 %v8210
  %9099 = vmatpush1.bf16.msra.mxu0 %v8209
  %9100 = vmatprep.subr.bf16.mxu0 %v8218
  %9101 = vmatpush1.bf16.msra.mxu0 %v8217
  %9102 = vmatprep.subr.bf16.mxu0 %v8226
  %9103 = vmatpush1.bf16.msra.mxu0 %v8225
  %9104 = vmatprep.subr.bf16.mxu0 %v8234
  %9105 = vmatpush1.bf16.msra.mxu0 %v8233
  %9106 = vmatprep.subr.bf16.mxu0 %v8242
  %9107 = vmatpush1.bf16.msra.mxu0 %v8241
  %9108 = vmatprep.subr.bf16.mxu0 %v8250
  %9109 = vmatpush1.bf16.msra.mxu0 %v8249
  %9110 = vmatprep.subr.bf16.mxu0 %v8258
  %9111 = vmatpush1.bf16.msra.mxu0 %v8257
  %9112 = vmatprep.subr.bf16.mxu0 %v8266
  %9113 = vmatpush1.bf16.msra.mxu0 %v8265
  %9114 = vmatprep.subr.bf16.mxu0 %v8274
  %9115 = vmatpush1.bf16.msra.mxu0 %v8273
  %9116 = vmatprep.subr.bf16.mxu0 %v8282
  %9117 = vmatpush1.bf16.msra.mxu0 %v8281
  %9118 = vmatprep.mubr.bf16.mxu0 %v1990
  %9119 = vmatmul.mubr.bf16.gmra.mrb[0].mxu0 %v1989
  %v9120 = vpop.f32.mrb[0].mxu0
  %v9121 = vadd.f32 %v9080, %v9120
  %v9122 = vpop.f32.mrb[0].mxu0
  %v9123 = vadd.f32 %v9082, %v9122
  %v9124 = vpop.f32.mrb[0].mxu0
  %v9125 = vpop.f32.mrb[0].mxu0
  %9126 = vdwg.mxu0
  %9127 = vmatprep.subr.bf16.mxu0 %v7780
  %9128 = vmatpush1.bf16.msra.mxu0 %v7779
  %9129 = vmatprep.subr.bf16.mxu0 %v7788
  %9130 = vmatpush1.bf16.msra.mxu0 %v7787
  %9131 = vmatprep.subr.bf16.mxu0 %v7796
  %9132 = vmatpush1.bf16.msra.mxu0 %v7795
  %9133 = vmatprep.subr.bf16.mxu0 %v7804
  %9134 = vmatpush1.bf16.msra.mxu0 %v7803
  %9135 = vmatprep.subr.bf16.mxu0 %v7812
  %9136 = vmatpush1.bf16.msra.mxu0 %v7811
  %9137 = vmatprep.subr.bf16.mxu0 %v7820
  %9138 = vmatpush1.bf16.msra.mxu0 %v7819
  %9139 = vmatprep.subr.bf16.mxu0 %v7828
  %9140 = vmatpush1.bf16.msra.mxu0 %v7827
  %9141 = vmatprep.subr.bf16.mxu0 %v7836
  %9142 = vmatpush1.bf16.msra.mxu0 %v7835
  %9143 = vmatprep.subr.bf16.mxu0 %v7844
  %9144 = vmatpush1.bf16.msra.mxu0 %v7843
  %9145 = vmatprep.subr.bf16.mxu0 %v7852
  %9146 = vmatpush1.bf16.msra.mxu0 %v7851
  %9147 = vmatprep.subr.bf16.mxu0 %v7860
  %9148 = vmatpush1.bf16.msra.mxu0 %v7859
  %9149 = vmatprep.subr.bf16.mxu0 %v7868
  %9150 = vmatpush1.bf16.msra.mxu0 %v7867
  %9151 = vmatprep.subr.bf16.mxu0 %v7876
  %9152 = vmatpush1.bf16.msra.mxu0 %v7875
  %9153 = vmatprep.subr.bf16.mxu0 %v7884
  %9154 = vmatpush1.bf16.msra.mxu0 %v7883
  %9155 = vmatprep.subr.bf16.mxu0 %v7892
  %9156 = vmatpush1.bf16.msra.mxu0 %v7891
  %9157 = vmatprep.subr.bf16.mxu0 %v7900
  %9158 = vmatpush1.bf16.msra.mxu0 %v7899
  %9159 = vmatprep.mubr.bf16.mxu0 %v1984
  %9160 = vmatmul.mubr.bf16.gmra.mrb[0].mxu0 %v1983
  %v9161 = vpop.f32.mrb[0].mxu0
  %v9162 = vadd.f32 %v6069, %v9161
  %v9163 = vpop.f32.mrb[0].mxu0
  %v9164 = vadd.f32 %v6071, %v9163
  %v9165 = vpop.f32.mrb[0].mxu0
  %v9166 = vpop.f32.mrb[0].mxu0
  %9167 = vdwg.mxu0
  %9168 = vmatprep.subr.bf16.mxu0 %v7908
  %9169 = vmatpush1.bf16.msra.mxu0 %v7907
  %9170 = vmatprep.subr.bf16.mxu0 %v7916
  %9171 = vmatpush1.bf16.msra.mxu0 %v7915
  %9172 = vmatprep.subr.bf16.mxu0 %v7924
  %9173 = vmatpush1.bf16.msra.mxu0 %v7923
  %9174 = vmatprep.subr.bf16.mxu0 %v7932
  %9175 = vmatpush1.bf16.msra.mxu0 %v7931
  %9176 = vmatprep.subr.bf16.mxu0 %v7940
  %9177 = vmatpush1.bf16.msra.mxu0 %v7939
  %9178 = vmatprep.subr.bf16.mxu0 %v7948
  %9179 = vmatpush1.bf16.msra.mxu0 %v7947
  %9180 = vmatprep.subr.bf16.mxu0 %v7956
  %9181 = vmatpush1.bf16.msra.mxu0 %v7955
  %9182 = vmatprep.subr.bf16.mxu0 %v7964
  %9183 = vmatpush1.bf16.msra.mxu0 %v7963
  %9184 = vmatprep.subr.bf16.mxu0 %v7972
  %9185 = vmatpush1.bf16.msra.mxu0 %v7971
  %9186 = vmatprep.subr.bf16.mxu0 %v7980
  %9187 = vmatpush1.bf16.msra.mxu0 %v7979
  %9188 = vmatprep.subr.bf16.mxu0 %v7988
  %9189 = vmatpush1.bf16.msra.mxu0 %v7987
  %9190 = vmatprep.subr.bf16.mxu0 %v7996
  %9191 = vmatpush1.bf16.msra.mxu0 %v7995
  %9192 = vmatprep.subr.bf16.mxu0 %v8004
  %9193 = vmatpush1.bf16.msra.mxu0 %v8003
  %9194 = vmatprep.subr.bf16.mxu0 %v8012
  %9195 = vmatpush1.bf16.msra.mxu0 %v8011
  %9196 = vmatprep.subr.bf16.mxu0 %v8020
  %9197 = vmatpush1.bf16.msra.mxu0 %v8019
  %9198 = vmatprep.subr.bf16.mxu0 %v8028
  %9199 = vmatpush1.bf16.msra.mxu0 %v8027
  %9200 = vmatprep.mubr.bf16.mxu0 %v1986
  %9201 = vmatmul.mubr.bf16.gmra.mrb[0].mxu0 %v1985
  %v9202 = vpop.f32.mrb[0].mxu0
  %v9203 = vadd.f32 %v9162, %v9202
  %v9204 = vpop.f32.mrb[0].mxu0
  %v9205 = vadd.f32 %v9164, %v9204
  %v9206 = vpop.f32.mrb[0].mxu0
  %v9207 = vpop.f32.mrb[0].mxu0
  %9208 = vdwg.mxu0
  %9209 = vmatprep.subr.bf16.mxu0 %v8036
  %9210 = vmatpush1.bf16.msra.mxu0 %v8035
  %9211 = vmatprep.subr.bf16.mxu0 %v8044
  %9212 = vmatpush1.bf16.msra.mxu0 %v8043
  %9213 = vmatprep.subr.bf16.mxu0 %v8052
  %9214 = vmatpush1.bf16.msra.mxu0 %v8051
  %9215 = vmatprep.subr.bf16.mxu0 %v8060
  %9216 = vmatpush1.bf16.msra.mxu0 %v8059
  %9217 = vmatprep.subr.bf16.mxu0 %v8068
  %9218 = vmatpush1.bf16.msra.mxu0 %v8067
  %9219 = vmatprep.subr.bf16.mxu0 %v8076
  %9220 = vmatpush1.bf16.msra.mxu0 %v8075
  %9221 = vmatprep.subr.bf16.mxu0 %v8084
  %9222 = vmatpush1.bf16.msra.mxu0 %v8083
  %9223 = vmatprep.subr.bf16.mxu0 %v8092
  %9224 = vmatpush1.bf16.msra.mxu0 %v8091
  %9225 = vmatprep.subr.bf16.mxu0 %v8100
  %9226 = vmatpush1.bf16.msra.mxu0 %v8099
  %9227 = vmatprep.subr.bf16.mxu0 %v8108
  %9228 = vmatpush1.bf16.msra.mxu0 %v8107
  %9229 = vmatprep.subr.bf16.mxu0 %v8116
  %9230 = vmatpush1.bf16.msra.mxu0 %v8115
  %9231 = vmatprep.subr.bf16.mxu0 %v8124
  %9232 = vmatpush1.bf16.msra.mxu0 %v8123
  %9233 = vmatprep.subr.bf16.mxu0 %v8132
  %9234 = vmatpush1.bf16.msra.mxu0 %v8131
  %9235 = vmatprep.subr.bf16.mxu0 %v8140
  %9236 = vmatpush1.bf16.msra.mxu0 %v8139
  %9237 = vmatprep.subr.bf16.mxu0 %v8148
  %9238 = vmatpush1.bf16.msra.mxu0 %v8147
  %9239 = vmatprep.subr.bf16.mxu0 %v8156
  %9240 = vmatpush1.bf16.msra.mxu0 %v8155
  %9241 = vmatprep.mubr.bf16.mxu0 %v1988
  %9242 = vmatmul.mubr.bf16.gmra.mrb[0].mxu0 %v1987
  %v9243 = vpop.f32.mrb[0].mxu0
  %v9244 = vadd.f32 %v9203, %v9243
  %v9245 = vpop.f32.mrb[0].mxu0
  %v9246 = vadd.f32 %v9205, %v9245
  %v9247 = vpop.f32.mrb[0].mxu0
  %v9248 = vpop.f32.mrb[0].mxu0
  %9249 = vdwg.mxu0
  %9250 = vmatprep.subr.bf16.mxu0 %v8164
  %9251 = vmatpush1.bf16.msra.mxu0 %v8163
  %9252 = vmatprep.subr.bf16.mxu0 %v8172
  %9253 = vmatpush1.bf16.msra.mxu0 %v8171
  %9254 = vmatprep.subr.bf16.mxu0 %v8180
  %9255 = vmatpush1.bf16.msra.mxu0 %v8179
  %9256 = vmatprep.subr.bf16.mxu0 %v8188
  %9257 = vmatpush1.bf16.msra.mxu0 %v8187
  %9258 = vmatprep.subr.bf16.mxu0 %v8196
  %9259 = vmatpush1.bf16.msra.mxu0 %v8195
  %9260 = vmatprep.subr.bf16.mxu0 %v8204
  %9261 = vmatpush1.bf16.msra.mxu0 %v8203
  %9262 = vmatprep.subr.bf16.mxu0 %v8212
  %9263 = vmatpush1.bf16.msra.mxu0 %v8211
  %9264 = vmatprep.subr.bf16.mxu0 %v8220
  %9265 = vmatpush1.bf16.msra.mxu0 %v8219
  %9266 = vmatprep.subr.bf16.mxu0 %v8228
  %9267 = vmatpush1.bf16.msra.mxu0 %v8227
  %9268 = vmatprep.subr.bf16.mxu0 %v8236
  %9269 = vmatpush1.bf16.msra.mxu0 %v8235
  %9270 = vmatprep.subr.bf16.mxu0 %v8244
  %9271 = vmatpush1.bf16.msra.mxu0 %v8243
  %9272 = vmatprep.subr.bf16.mxu0 %v8252
  %9273 = vmatpush1.bf16.msra.mxu0 %v8251
  %9274 = vmatprep.subr.bf16.mxu0 %v8260
  %9275 = vmatpush1.bf16.msra.mxu0 %v8259
  %9276 = vmatprep.subr.bf16.mxu0 %v8268
  %9277 = vmatpush1.bf16.msra.mxu0 %v8267
  %9278 = vmatprep.subr.bf16.mxu0 %v8276
  %9279 = vmatpush1.bf16.msra.mxu0 %v8275
  %9280 = vmatprep.subr.bf16.mxu0 %v8284
  %9281 = vmatpush1.bf16.msra.mxu0 %v8283
  %9282 = vmatprep.mubr.bf16.mxu0 %v1990
  %9283 = vmatmul.mubr.bf16.gmra.mrb[0].mxu0 %v1989
  %v9284 = vpop.f32.mrb[0].mxu0
  %v9285 = vadd.f32 %v9244, %v9284
  %v9286 = vpop.f32.mrb[0].mxu0
  %v9287 = vadd.f32 %v9246, %v9286
  %v9288 = vpop.f32.mrb[0].mxu0
  %v9289 = vpop.f32.mrb[0].mxu0
  %9290 = vdwg.mxu0
  %9291 = vmatprep.subr.bf16.mxu0 %v7782
  %9292 = vmatpush1.bf16.msra.mxu0 %v7781
  %9293 = vmatprep.subr.bf16.mxu0 %v7790
  %9294 = vmatpush1.bf16.msra.mxu0 %v7789
  %9295 = vmatprep.subr.bf16.mxu0 %v7798
  %9296 = vmatpush1.bf16.msra.mxu0 %v7797
  %9297 = vmatprep.subr.bf16.mxu0 %v7806
  %9298 = vmatpush1.bf16.msra.mxu0 %v7805
  %9299 = vmatprep.subr.bf16.mxu0 %v7814
  %9300 = vmatpush1.bf16.msra.mxu0 %v7813
  %9301 = vmatprep.subr.bf16.mxu0 %v7822
  %9302 = vmatpush1.bf16.msra.mxu0 %v7821
  %9303 = vmatprep.subr.bf16.mxu0 %v7830
  %9304 = vmatpush1.bf16.msra.mxu0 %v7829
  %9305 = vmatprep.subr.bf16.mxu0 %v7838
  %9306 = vmatpush1.bf16.msra.mxu0 %v7837
  %9307 = vmatprep.subr.bf16.mxu0 %v7846
  %9308 = vmatpush1.bf16.msra.mxu0 %v7845
  %9309 = vmatprep.subr.bf16.mxu0 %v7854
  %9310 = vmatpush1.bf16.msra.mxu0 %v7853
  %9311 = vmatprep.subr.bf16.mxu0 %v7862
  %9312 = vmatpush1.bf16.msra.mxu0 %v7861
  %9313 = vmatprep.subr.bf16.mxu0 %v7870
  %9314 = vmatpush1.bf16.msra.mxu0 %v7869
  %9315 = vmatprep.subr.bf16.mxu0 %v7878
  %9316 = vmatpush1.bf16.msra.mxu0 %v7877
  %9317 = vmatprep.subr.bf16.mxu0 %v7886
  %9318 = vmatpush1.bf16.msra.mxu0 %v7885
  %9319 = vmatprep.subr.bf16.mxu0 %v7894
  %9320 = vmatpush1.bf16.msra.mxu0 %v7893
  %9321 = vmatprep.subr.bf16.mxu0 %v7902
  %9322 = vmatpush1.bf16.msra.mxu0 %v7901
  %9323 = vmatprep.mubr.bf16.mxu0 %v1984
  %9324 = vmatmul.mubr.bf16.gmra.mrb[0].mxu0 %v1983
  %v9325 = vpop.f32.mrb[0].mxu0
  %v9326 = vadd.f32 %v6233, %v9325
  %v9327 = vpop.f32.mrb[0].mxu0
  %v9328 = vadd.f32 %v6235, %v9327
  %v9329 = vpop.f32.mrb[0].mxu0
  %v9330 = vpop.f32.mrb[0].mxu0
  %9331 = vdwg.mxu0
  %9332 = vmatprep.subr.bf16.mxu0 %v7910
  %9333 = vmatpush1.bf16.msra.mxu0 %v7909
  %9334 = vmatprep.subr.bf16.mxu0 %v7918
  %9335 = vmatpush1.bf16.msra.mxu0 %v7917
  %9336 = vmatprep.subr.bf16.mxu0 %v7926
  %9337 = vmatpush1.bf16.msra.mxu0 %v7925
  %9338 = vmatprep.subr.bf16.mxu0 %v7934
  %9339 = vmatpush1.bf16.msra.mxu0 %v7933
  %9340 = vmatprep.subr.bf16.mxu0 %v7942
  %9341 = vmatpush1.bf16.msra.mxu0 %v7941
  %9342 = vmatprep.subr.bf16.mxu0 %v7950
  %9343 = vmatpush1.bf16.msra.mxu0 %v7949
  %9344 = vmatprep.subr.bf16.mxu0 %v7958
  %9345 = vmatpush1.bf16.msra.mxu0 %v7957
  %9346 = vmatprep.subr.bf16.mxu0 %v7966
  %9347 = vmatpush1.bf16.msra.mxu0 %v7965
  %9348 = vmatprep.subr.bf16.mxu0 %v7974
  %9349 = vmatpush1.bf16.msra.mxu0 %v7973
  %9350 = vmatprep.subr.bf16.mxu0 %v7982
  %9351 = vmatpush1.bf16.msra.mxu0 %v7981
  %9352 = vmatprep.subr.bf16.mxu0 %v7990
  %9353 = vmatpush1.bf16.msra.mxu0 %v7989
  %9354 = vmatprep.subr.bf16.mxu0 %v7998
  %9355 = vmatpush1.bf16.msra.mxu0 %v7997
  %9356 = vmatprep.subr.bf16.mxu0 %v8006
  %9357 = vmatpush1.bf16.msra.mxu0 %v8005
  %9358 = vmatprep.subr.bf16.mxu0 %v8014
  %9359 = vmatpush1.bf16.msra.mxu0 %v8013
  %9360 = vmatprep.subr.bf16.mxu0 %v8022
  %9361 = vmatpush1.bf16.msra.mxu0 %v8021
  %9362 = vmatprep.subr.bf16.mxu0 %v8030
  %9363 = vmatpush1.bf16.msra.mxu0 %v8029
  %9364 = vmatprep.mubr.bf16.mxu0 %v1986
  %9365 = vmatmul.mubr.bf16.gmra.mrb[0].mxu0 %v1985
  %v9366 = vpop.f32.mrb[0].mxu0
  %v9367 = vadd.f32 %v9326, %v9366
  %v9368 = vpop.f32.mrb[0].mxu0
  %v9369 = vadd.f32 %v9328, %v9368
  %v9370 = vpop.f32.mrb[0].mxu0
  %v9371 = vpop.f32.mrb[0].mxu0
  %9372 = vdwg.mxu0
  %9373 = vmatprep.subr.bf16.mxu0 %v8038
  %9374 = vmatpush1.bf16.msra.mxu0 %v8037
  %9375 = vmatprep.subr.bf16.mxu0 %v8046
  %9376 = vmatpush1.bf16.msra.mxu0 %v8045
  %9377 = vmatprep.subr.bf16.mxu0 %v8054
  %9378 = vmatpush1.bf16.msra.mxu0 %v8053
  %9379 = vmatprep.subr.bf16.mxu0 %v8062
  %9380 = vmatpush1.bf16.msra.mxu0 %v8061
  %9381 = vmatprep.subr.bf16.mxu0 %v8070
  %9382 = vmatpush1.bf16.msra.mxu0 %v8069
  %9383 = vmatprep.subr.bf16.mxu0 %v8078
  %9384 = vmatpush1.bf16.msra.mxu0 %v8077
  %9385 = vmatprep.subr.bf16.mxu0 %v8086
  %9386 = vmatpush1.bf16.msra.mxu0 %v8085
  %9387 = vmatprep.subr.bf16.mxu0 %v8094
  %9388 = vmatpush1.bf16.msra.mxu0 %v8093
  %9389 = vmatprep.subr.bf16.mxu0 %v8102
  %9390 = vmatpush1.bf16.msra.mxu0 %v8101
  %9391 = vmatprep.subr.bf16.mxu0 %v8110
  %9392 = vmatpush1.bf16.msra.mxu0 %v8109
  %9393 = vmatprep.subr.bf16.mxu0 %v8118
  %9394 = vmatpush1.bf16.msra.mxu0 %v8117
  %9395 = vmatprep.subr.bf16.mxu0 %v8126
  %9396 = vmatpush1.bf16.msra.mxu0 %v8125
  %9397 = vmatprep.subr.bf16.mxu0 %v8134
  %9398 = vmatpush1.bf16.msra.mxu0 %v8133
  %9399 = vmatprep.subr.bf16.mxu0 %v8142
  %9400 = vmatpush1.bf16.msra.mxu0 %v8141
  %9401 = vmatprep.subr.bf16.mxu0 %v8150
  %9402 = vmatpush1.bf16.msra.mxu0 %v8149
  %9403 = vmatprep.subr.bf16.mxu0 %v8158
  %9404 = vmatpush1.bf16.msra.mxu0 %v8157
  %9405 = vmatprep.mubr.bf16.mxu0 %v1988
  %9406 = vmatmul.mubr.bf16.gmra.mrb[0].mxu0 %v1987
  %v9407 = vpop.f32.mrb[0].mxu0
  %v9408 = vadd.f32 %v9367, %v9407
  %v9409 = vpop.f32.mrb[0].mxu0
  %v9410 = vadd.f32 %v9369, %v9409
  %v9411 = vpop.f32.mrb[0].mxu0
  %v9412 = vpop.f32.mrb[0].mxu0
  %9413 = vdwg.mxu0
  %9414 = vmatprep.subr.bf16.mxu0 %v8166
  %9415 = vmatpush1.bf16.msra.mxu0 %v8165
  %9416 = vmatprep.subr.bf16.mxu0 %v8174
  %9417 = vmatpush1.bf16.msra.mxu0 %v8173
  %9418 = vmatprep.subr.bf16.mxu0 %v8182
  %9419 = vmatpush1.bf16.msra.mxu0 %v8181
  %9420 = vmatprep.subr.bf16.mxu0 %v8190
  %9421 = vmatpush1.bf16.msra.mxu0 %v8189
  %9422 = vmatprep.subr.bf16.mxu0 %v8198
  %9423 = vmatpush1.bf16.msra.mxu0 %v8197
  %9424 = vmatprep.subr.bf16.mxu0 %v8206
  %9425 = vmatpush1.bf16.msra.mxu0 %v8205
  %9426 = vmatprep.subr.bf16.mxu0 %v8214
  %9427 = vmatpush1.bf16.msra.mxu0 %v8213
  %9428 = vmatprep.subr.bf16.mxu0 %v8222
  %9429 = vmatpush1.bf16.msra.mxu0 %v8221
  %9430 = vmatprep.subr.bf16.mxu0 %v8230
  %9431 = vmatpush1.bf16.msra.mxu0 %v8229
  %9432 = vmatprep.subr.bf16.mxu0 %v8238
  %9433 = vmatpush1.bf16.msra.mxu0 %v8237
  %9434 = vmatprep.subr.bf16.mxu0 %v8246
  %9435 = vmatpush1.bf16.msra.mxu0 %v8245
  %9436 = vmatprep.subr.bf16.mxu0 %v8254
  %9437 = vmatpush1.bf16.msra.mxu0 %v8253
  %9438 = vmatprep.subr.bf16.mxu0 %v8262
  %9439 = vmatpush1.bf16.msra.mxu0 %v8261
  %9440 = vmatprep.subr.bf16.mxu0 %v8270
  %9441 = vmatpush1.bf16.msra.mxu0 %v8269
  %9442 = vmatprep.subr.bf16.mxu0 %v8278
  %9443 = vmatpush1.bf16.msra.mxu0 %v8277
  %9444 = vmatprep.subr.bf16.mxu0 %v8286
  %9445 = vmatpush1.bf16.msra.mxu0 %v8285
  %9446 = vmatprep.mubr.bf16.mxu0 %v1990
  %9447 = vmatmul.mubr.bf16.gmra.mrb[0].mxu0 %v1989
  %v9448 = vpop.f32.mrb[0].mxu0
  %v9449 = vadd.f32 %v9408, %v9448
  %v9450 = vpop.f32.mrb[0].mxu0
  %v9451 = vadd.f32 %v9410, %v9450
  %v9452 = vpop.f32.mrb[0].mxu0
  %v9453 = vpop.f32.mrb[0].mxu0
  %9454 = vdwg.mxu0
  %v9455 = vld [vmem:[%s11] sm:$0xff]
  %v9457 = vlaneseq
  %v9458 = vshrl.u32 %v9457, 7
  %v9459 = vsub.s32 0, %v9458
  %v9460 = vrot.slane %v9455, %v9459
  %v9461 = vlaneseq
  %v9462 = vshrl.u32 %v9461, 7
  %v9463 = vsub.s32 1, %v9462
  %v9464 = vrot.slane %v9455, %v9463
  %v9465 = vlaneseq
  %v9466 = vshrl.u32 %v9465, 7
  %v9467 = vsub.s32 2, %v9466
  %v9468 = vrot.slane %v9455, %v9467
  %v9469 = vlaneseq
  %v9470 = vshrl.u32 %v9469, 7
  %v9471 = vsub.s32 3, %v9470
  %v9472 = vrot.slane %v9455, %v9471
  %v9473 = vlaneseq
  %v9474 = vshrl.u32 %v9473, 7
  %v9475 = vsub.s32 4, %v9474
  %v9476 = vrot.slane %v9455, %v9475
  %v9477 = vlaneseq
  %v9478 = vshrl.u32 %v9477, 7
  %v9479 = vsub.s32 5, %v9478
  %v9480 = vrot.slane %v9455, %v9479
  %v9481 = vlaneseq
  %v9482 = vshrl.u32 %v9481, 7
  %v9483 = vsub.s32 6, %v9482
  %v9484 = vrot.slane %v9455, %v9483
  %v9485 = vlaneseq
  %v9486 = vshrl.u32 %v9485, 7
  %v9487 = vsub.s32 7, %v9486
  %v9488 = vrot.slane %v9455, %v9487
  %v9497 = vadd.f32 %v8957, %v9460
  %v9498 = vadd.f32 %v8959, %v9464
  %v9499 = vadd.f32 %v9121, %v9468
  %v9500 = vadd.f32 %v9123, %v9472
  %v9501 = vadd.f32 %v9285, %v9476
  %v9502 = vadd.f32 %v9287, %v9480
  %v9503 = vadd.f32 %v9449, %v9484
  %v9504 = vadd.f32 %v9451, %v9488
  %v9505 = vmax.f32 %v9497, 0.0
  %v9506 = vmax.f32 %v9498, 0.0
  %v9507 = vmax.f32 %v9499, 0.0
  %v9508 = vmax.f32 %v9500, 0.0
  %v9509 = vmax.f32 %v9501, 0.0
  %v9510 = vmax.f32 %v9502, 0.0
  %v9511 = vmax.f32 %v9503, 0.0
  %v9512 = vmax.f32 %v9504, 0.0
  %v9513 = vpack.c.bf16 %v9505, %v9505
  %v9514 = vpack.c.bf16 %v9506, %v9506
  %v9515 = vpack.c.bf16 %v9507, %v9507
  %v9516 = vpack.c.bf16 %v9508, %v9508
  %v9517 = vpack.c.bf16 %v9509, %v9509
  %v9518 = vpack.c.bf16 %v9510, %v9510
  %v9519 = vpack.c.bf16 %v9511, %v9511
  %v9520 = vpack.c.bf16 %v9512, %v9512
  %v9521 = vld [vmem:[%s12] sm:$0xff]
  %v9522 = vld [vmem:[%s12 + $0x8] sm:$0xff]
  %v9523 = vld [vmem:[%s12 + $0x10] sm:$0xff]
  %v9524 = vld [vmem:[%s12 + $0x18] sm:$0xff]
  %v9525 = vld [vmem:[%s12 + $0x20] sm:$0xff]
  %v9526 = vld [vmem:[%s12 + $0x28] sm:$0xff]
  %v9527 = vld [vmem:[%s12 + $0x30] sm:$0xff]
  %v9528 = vld [vmem:[%s12 + $0x38] sm:$0xff]
  %v9529 = vld [vmem:[%s12 + $0x40] sm:$0xff]
  %v9530 = vld [vmem:[%s12 + $0x48] sm:$0xff]
  %v9531 = vld [vmem:[%s12 + $0x50] sm:$0xff]
  %v9532 = vld [vmem:[%s12 + $0x58] sm:$0xff]
  %v9533 = vld [vmem:[%s12 + $0x60] sm:$0xff]
  %v9534 = vld [vmem:[%s12 + $0x68] sm:$0xff]
  %v9535 = vld [vmem:[%s12 + $0x70] sm:$0xff]
  %v9536 = vld [vmem:[%s12 + $0x78] sm:$0xff]
  %v9537 = vld [vmem:[%s12 + $0x80] sm:$0xff]
  %v9538 = vld [vmem:[%s12 + $0x88] sm:$0xff]
  %v9539 = vld [vmem:[%s12 + $0x90] sm:$0xff]
  %v9540 = vld [vmem:[%s12 + $0x98] sm:$0xff]
  %v9541 = vld [vmem:[%s12 + $0xa0] sm:$0xff]
  %v9542 = vld [vmem:[%s12 + $0xa8] sm:$0xff]
  %v9543 = vld [vmem:[%s12 + $0xb0] sm:$0xff]
  %v9544 = vld [vmem:[%s12 + $0xb8] sm:$0xff]
  %v9545 = vld [vmem:[%s12 + $0xc0] sm:$0xff]
  %v9546 = vld [vmem:[%s12 + $0xc8] sm:$0xff]
  %v9547 = vld [vmem:[%s12 + $0xd0] sm:$0xff]
  %v9548 = vld [vmem:[%s12 + $0xd8] sm:$0xff]
  %v9549 = vld [vmem:[%s12 + $0xe0] sm:$0xff]
  %v9550 = vld [vmem:[%s12 + $0xe8] sm:$0xff]
  %v9551 = vld [vmem:[%s12 + $0xf0] sm:$0xff]
  %v9552 = vld [vmem:[%s12 + $0xf8] sm:$0xff]
  %v9553 = vld [vmem:[%s12 + $0x100] sm:$0xff]
  %v9554 = vld [vmem:[%s12 + $0x108] sm:$0xff]
  %v9555 = vld [vmem:[%s12 + $0x110] sm:$0xff]
  %v9556 = vld [vmem:[%s12 + $0x118] sm:$0xff]
  %v9557 = vld [vmem:[%s12 + $0x120] sm:$0xff]
  %v9558 = vld [vmem:[%s12 + $0x128] sm:$0xff]
  %v9559 = vld [vmem:[%s12 + $0x130] sm:$0xff]
  %v9560 = vld [vmem:[%s12 + $0x138] sm:$0xff]
  %v9561 = vld [vmem:[%s12 + $0x140] sm:$0xff]
  %v9562 = vld [vmem:[%s12 + $0x148] sm:$0xff]
  %v9563 = vld [vmem:[%s12 + $0x150] sm:$0xff]
  %v9564 = vld [vmem:[%s12 + $0x158] sm:$0xff]
  %v9565 = vld [vmem:[%s12 + $0x160] sm:$0xff]
  %v9566 = vld [vmem:[%s12 + $0x168] sm:$0xff]
  %v9567 = vld [vmem:[%s12 + $0x170] sm:$0xff]
  %v9568 = vld [vmem:[%s12 + $0x178] sm:$0xff]
  %v9569 = vld [vmem:[%s12 + $0x180] sm:$0xff]
  %v9570 = vld [vmem:[%s12 + $0x188] sm:$0xff]
  %v9571 = vld [vmem:[%s12 + $0x190] sm:$0xff]
  %v9572 = vld [vmem:[%s12 + $0x198] sm:$0xff]
  %v9573 = vld [vmem:[%s12 + $0x1a0] sm:$0xff]
  %v9574 = vld [vmem:[%s12 + $0x1a8] sm:$0xff]
  %v9575 = vld [vmem:[%s12 + $0x1b0] sm:$0xff]
  %v9576 = vld [vmem:[%s12 + $0x1b8] sm:$0xff]
  %v9577 = vld [vmem:[%s12 + $0x1c0] sm:$0xff]
  %v9578 = vld [vmem:[%s12 + $0x1c8] sm:$0xff]
  %v9579 = vld [vmem:[%s12 + $0x1d0] sm:$0xff]
  %v9580 = vld [vmem:[%s12 + $0x1d8] sm:$0xff]
  %v9581 = vld [vmem:[%s12 + $0x1e0] sm:$0xff]
  %v9582 = vld [vmem:[%s12 + $0x1e8] sm:$0xff]
  %v9583 = vld [vmem:[%s12 + $0x1f0] sm:$0xff]
  %v9584 = vld [vmem:[%s12 + $0x1f8] sm:$0xff]
  %v9585 = vld [vmem:[%s12 + $0x200] sm:$0xff]
  %v9586 = vld [vmem:[%s12 + $0x208] sm:$0xff]
  %v9587 = vld [vmem:[%s12 + $0x210] sm:$0xff]
  %v9588 = vld [vmem:[%s12 + $0x218] sm:$0xff]
  %v9589 = vld [vmem:[%s12 + $0x220] sm:$0xff]
  %v9590 = vld [vmem:[%s12 + $0x228] sm:$0xff]
  %v9591 = vld [vmem:[%s12 + $0x230] sm:$0xff]
  %v9592 = vld [vmem:[%s12 + $0x238] sm:$0xff]
  %v9593 = vld [vmem:[%s12 + $0x240] sm:$0xff]
  %v9594 = vld [vmem:[%s12 + $0x248] sm:$0xff]
  %v9595 = vld [vmem:[%s12 + $0x250] sm:$0xff]
  %v9596 = vld [vmem:[%s12 + $0x258] sm:$0xff]
  %v9597 = vld [vmem:[%s12 + $0x260] sm:$0xff]
  %v9598 = vld [vmem:[%s12 + $0x268] sm:$0xff]
  %v9599 = vld [vmem:[%s12 + $0x270] sm:$0xff]
  %v9600 = vld [vmem:[%s12 + $0x278] sm:$0xff]
  %v9601 = vld [vmem:[%s12 + $0x280] sm:$0xff]
  %v9602 = vld [vmem:[%s12 + $0x288] sm:$0xff]
  %v9603 = vld [vmem:[%s12 + $0x290] sm:$0xff]
  %v9604 = vld [vmem:[%s12 + $0x298] sm:$0xff]
  %v9605 = vld [vmem:[%s12 + $0x2a0] sm:$0xff]
  %v9606 = vld [vmem:[%s12 + $0x2a8] sm:$0xff]
  %v9607 = vld [vmem:[%s12 + $0x2b0] sm:$0xff]
  %v9608 = vld [vmem:[%s12 + $0x2b8] sm:$0xff]
  %v9609 = vld [vmem:[%s12 + $0x2c0] sm:$0xff]
  %v9610 = vld [vmem:[%s12 + $0x2c8] sm:$0xff]
  %v9611 = vld [vmem:[%s12 + $0x2d0] sm:$0xff]
  %v9612 = vld [vmem:[%s12 + $0x2d8] sm:$0xff]
  %v9613 = vld [vmem:[%s12 + $0x2e0] sm:$0xff]
  %v9614 = vld [vmem:[%s12 + $0x2e8] sm:$0xff]
  %v9615 = vld [vmem:[%s12 + $0x2f0] sm:$0xff]
  %v9616 = vld [vmem:[%s12 + $0x2f8] sm:$0xff]
  %v9617 = vld [vmem:[%s12 + $0x300] sm:$0xff]
  %v9618 = vld [vmem:[%s12 + $0x308] sm:$0xff]
  %v9619 = vld [vmem:[%s12 + $0x310] sm:$0xff]
  %v9620 = vld [vmem:[%s12 + $0x318] sm:$0xff]
  %v9621 = vld [vmem:[%s12 + $0x320] sm:$0xff]
  %v9622 = vld [vmem:[%s12 + $0x328] sm:$0xff]
  %v9623 = vld [vmem:[%s12 + $0x330] sm:$0xff]
  %v9624 = vld [vmem:[%s12 + $0x338] sm:$0xff]
  %v9625 = vld [vmem:[%s12 + $0x340] sm:$0xff]
  %v9626 = vld [vmem:[%s12 + $0x348] sm:$0xff]
  %v9627 = vld [vmem:[%s12 + $0x350] sm:$0xff]
  %v9628 = vld [vmem:[%s12 + $0x358] sm:$0xff]
  %v9629 = vld [vmem:[%s12 + $0x360] sm:$0xff]
  %v9630 = vld [vmem:[%s12 + $0x368] sm:$0xff]
  %v9631 = vld [vmem:[%s12 + $0x370] sm:$0xff]
  %v9632 = vld [vmem:[%s12 + $0x378] sm:$0xff]
  %v9633 = vld [vmem:[%s12 + $0x380] sm:$0xff]
  %v9634 = vld [vmem:[%s12 + $0x388] sm:$0xff]
  %v9635 = vld [vmem:[%s12 + $0x390] sm:$0xff]
  %v9636 = vld [vmem:[%s12 + $0x398] sm:$0xff]
  %v9637 = vld [vmem:[%s12 + $0x3a0] sm:$0xff]
  %v9638 = vld [vmem:[%s12 + $0x3a8] sm:$0xff]
  %v9639 = vld [vmem:[%s12 + $0x3b0] sm:$0xff]
  %v9640 = vld [vmem:[%s12 + $0x3b8] sm:$0xff]
  %v9641 = vld [vmem:[%s12 + $0x3c0] sm:$0xff]
  %v9642 = vld [vmem:[%s12 + $0x3c8] sm:$0xff]
  %v9643 = vld [vmem:[%s12 + $0x3d0] sm:$0xff]
  %v9644 = vld [vmem:[%s12 + $0x3d8] sm:$0xff]
  %v9645 = vld [vmem:[%s12 + $0x3e0] sm:$0xff]
  %v9646 = vld [vmem:[%s12 + $0x3e8] sm:$0xff]
  %v9647 = vld [vmem:[%s12 + $0x3f0] sm:$0xff]
  %v9648 = vld [vmem:[%s12 + $0x3f8] sm:$0xff]
  %v9649 = vld [vmem:[%s12 + $0x400] sm:$0xff]
  %v9650 = vld [vmem:[%s12 + $0x408] sm:$0xff]
  %v9651 = vld [vmem:[%s12 + $0x410] sm:$0xff]
  %v9652 = vld [vmem:[%s12 + $0x418] sm:$0xff]
  %v9653 = vld [vmem:[%s12 + $0x420] sm:$0xff]
  %v9654 = vld [vmem:[%s12 + $0x428] sm:$0xff]
  %v9655 = vld [vmem:[%s12 + $0x430] sm:$0xff]
  %v9656 = vld [vmem:[%s12 + $0x438] sm:$0xff]
  %v9657 = vld [vmem:[%s12 + $0x440] sm:$0xff]
  %v9658 = vld [vmem:[%s12 + $0x448] sm:$0xff]
  %v9659 = vld [vmem:[%s12 + $0x450] sm:$0xff]
  %v9660 = vld [vmem:[%s12 + $0x458] sm:$0xff]
  %v9661 = vld [vmem:[%s12 + $0x460] sm:$0xff]
  %v9662 = vld [vmem:[%s12 + $0x468] sm:$0xff]
  %v9663 = vld [vmem:[%s12 + $0x470] sm:$0xff]
  %v9664 = vld [vmem:[%s12 + $0x478] sm:$0xff]
  %v9665 = vld [vmem:[%s12 + $0x480] sm:$0xff]
  %v9666 = vld [vmem:[%s12 + $0x488] sm:$0xff]
  %v9667 = vld [vmem:[%s12 + $0x490] sm:$0xff]
  %v9668 = vld [vmem:[%s12 + $0x498] sm:$0xff]
  %v9669 = vld [vmem:[%s12 + $0x4a0] sm:$0xff]
  %v9670 = vld [vmem:[%s12 + $0x4a8] sm:$0xff]
  %v9671 = vld [vmem:[%s12 + $0x4b0] sm:$0xff]
  %v9672 = vld [vmem:[%s12 + $0x4b8] sm:$0xff]
  %v9673 = vld [vmem:[%s12 + $0x4c0] sm:$0xff]
  %v9674 = vld [vmem:[%s12 + $0x4c8] sm:$0xff]
  %v9675 = vld [vmem:[%s12 + $0x4d0] sm:$0xff]
  %v9676 = vld [vmem:[%s12 + $0x4d8] sm:$0xff]
  %v9677 = vld [vmem:[%s12 + $0x4e0] sm:$0xff]
  %v9678 = vld [vmem:[%s12 + $0x4e8] sm:$0xff]
  %v9679 = vld [vmem:[%s12 + $0x4f0] sm:$0xff]
  %v9680 = vld [vmem:[%s12 + $0x4f8] sm:$0xff]
  %v9681 = vld [vmem:[%s12 + $0x500] sm:$0xff]
  %v9682 = vld [vmem:[%s12 + $0x508] sm:$0xff]
  %v9683 = vld [vmem:[%s12 + $0x510] sm:$0xff]
  %v9684 = vld [vmem:[%s12 + $0x518] sm:$0xff]
  %v9685 = vld [vmem:[%s12 + $0x520] sm:$0xff]
  %v9686 = vld [vmem:[%s12 + $0x528] sm:$0xff]
  %v9687 = vld [vmem:[%s12 + $0x530] sm:$0xff]
  %v9688 = vld [vmem:[%s12 + $0x538] sm:$0xff]
  %v9689 = vld [vmem:[%s12 + $0x540] sm:$0xff]
  %v9690 = vld [vmem:[%s12 + $0x548] sm:$0xff]
  %v9691 = vld [vmem:[%s12 + $0x550] sm:$0xff]
  %v9692 = vld [vmem:[%s12 + $0x558] sm:$0xff]
  %v9693 = vld [vmem:[%s12 + $0x560] sm:$0xff]
  %v9694 = vld [vmem:[%s12 + $0x568] sm:$0xff]
  %v9695 = vld [vmem:[%s12 + $0x570] sm:$0xff]
  %v9696 = vld [vmem:[%s12 + $0x578] sm:$0xff]
  %v9697 = vld [vmem:[%s12 + $0x580] sm:$0xff]
  %v9698 = vld [vmem:[%s12 + $0x588] sm:$0xff]
  %v9699 = vld [vmem:[%s12 + $0x590] sm:$0xff]
  %v9700 = vld [vmem:[%s12 + $0x598] sm:$0xff]
  %v9701 = vld [vmem:[%s12 + $0x5a0] sm:$0xff]
  %v9702 = vld [vmem:[%s12 + $0x5a8] sm:$0xff]
  %v9703 = vld [vmem:[%s12 + $0x5b0] sm:$0xff]
  %v9704 = vld [vmem:[%s12 + $0x5b8] sm:$0xff]
  %v9705 = vld [vmem:[%s12 + $0x5c0] sm:$0xff]
  %v9706 = vld [vmem:[%s12 + $0x5c8] sm:$0xff]
  %v9707 = vld [vmem:[%s12 + $0x5d0] sm:$0xff]
  %v9708 = vld [vmem:[%s12 + $0x5d8] sm:$0xff]
  %v9709 = vld [vmem:[%s12 + $0x5e0] sm:$0xff]
  %v9710 = vld [vmem:[%s12 + $0x5e8] sm:$0xff]
  %v9711 = vld [vmem:[%s12 + $0x5f0] sm:$0xff]
  %v9712 = vld [vmem:[%s12 + $0x5f8] sm:$0xff]
  %v9713 = vld [vmem:[%s12 + $0x600] sm:$0xff]
  %v9714 = vld [vmem:[%s12 + $0x608] sm:$0xff]
  %v9715 = vld [vmem:[%s12 + $0x610] sm:$0xff]
  %v9716 = vld [vmem:[%s12 + $0x618] sm:$0xff]
  %v9717 = vld [vmem:[%s12 + $0x620] sm:$0xff]
  %v9718 = vld [vmem:[%s12 + $0x628] sm:$0xff]
  %v9719 = vld [vmem:[%s12 + $0x630] sm:$0xff]
  %v9720 = vld [vmem:[%s12 + $0x638] sm:$0xff]
  %v9721 = vld [vmem:[%s12 + $0x640] sm:$0xff]
  %v9722 = vld [vmem:[%s12 + $0x648] sm:$0xff]
  %v9723 = vld [vmem:[%s12 + $0x650] sm:$0xff]
  %v9724 = vld [vmem:[%s12 + $0x658] sm:$0xff]
  %v9725 = vld [vmem:[%s12 + $0x660] sm:$0xff]
  %v9726 = vld [vmem:[%s12 + $0x668] sm:$0xff]
  %v9727 = vld [vmem:[%s12 + $0x670] sm:$0xff]
  %v9728 = vld [vmem:[%s12 + $0x678] sm:$0xff]
  %v9729 = vld [vmem:[%s12 + $0x680] sm:$0xff]
  %v9730 = vld [vmem:[%s12 + $0x688] sm:$0xff]
  %v9731 = vld [vmem:[%s12 + $0x690] sm:$0xff]
  %v9732 = vld [vmem:[%s12 + $0x698] sm:$0xff]
  %v9733 = vld [vmem:[%s12 + $0x6a0] sm:$0xff]
  %v9734 = vld [vmem:[%s12 + $0x6a8] sm:$0xff]
  %v9735 = vld [vmem:[%s12 + $0x6b0] sm:$0xff]
  %v9736 = vld [vmem:[%s12 + $0x6b8] sm:$0xff]
  %v9737 = vld [vmem:[%s12 + $0x6c0] sm:$0xff]
  %v9738 = vld [vmem:[%s12 + $0x6c8] sm:$0xff]
  %v9739 = vld [vmem:[%s12 + $0x6d0] sm:$0xff]
  %v9740 = vld [vmem:[%s12 + $0x6d8] sm:$0xff]
  %v9741 = vld [vmem:[%s12 + $0x6e0] sm:$0xff]
  %v9742 = vld [vmem:[%s12 + $0x6e8] sm:$0xff]
  %v9743 = vld [vmem:[%s12 + $0x6f0] sm:$0xff]
  %v9744 = vld [vmem:[%s12 + $0x6f8] sm:$0xff]
  %v9745 = vld [vmem:[%s12 + $0x700] sm:$0xff]
  %v9746 = vld [vmem:[%s12 + $0x708] sm:$0xff]
  %v9747 = vld [vmem:[%s12 + $0x710] sm:$0xff]
  %v9748 = vld [vmem:[%s12 + $0x718] sm:$0xff]
  %v9749 = vld [vmem:[%s12 + $0x720] sm:$0xff]
  %v9750 = vld [vmem:[%s12 + $0x728] sm:$0xff]
  %v9751 = vld [vmem:[%s12 + $0x730] sm:$0xff]
  %v9752 = vld [vmem:[%s12 + $0x738] sm:$0xff]
  %v9753 = vld [vmem:[%s12 + $0x740] sm:$0xff]
  %v9754 = vld [vmem:[%s12 + $0x748] sm:$0xff]
  %v9755 = vld [vmem:[%s12 + $0x750] sm:$0xff]
  %v9756 = vld [vmem:[%s12 + $0x758] sm:$0xff]
  %v9757 = vld [vmem:[%s12 + $0x760] sm:$0xff]
  %v9758 = vld [vmem:[%s12 + $0x768] sm:$0xff]
  %v9759 = vld [vmem:[%s12 + $0x770] sm:$0xff]
  %v9760 = vld [vmem:[%s12 + $0x778] sm:$0xff]
  %v9761 = vld [vmem:[%s12 + $0x780] sm:$0xff]
  %v9762 = vld [vmem:[%s12 + $0x788] sm:$0xff]
  %v9763 = vld [vmem:[%s12 + $0x790] sm:$0xff]
  %v9764 = vld [vmem:[%s12 + $0x798] sm:$0xff]
  %v9765 = vld [vmem:[%s12 + $0x7a0] sm:$0xff]
  %v9766 = vld [vmem:[%s12 + $0x7a8] sm:$0xff]
  %v9767 = vld [vmem:[%s12 + $0x7b0] sm:$0xff]
  %v9768 = vld [vmem:[%s12 + $0x7b8] sm:$0xff]
  %v9769 = vld [vmem:[%s12 + $0x7c0] sm:$0xff]
  %v9770 = vld [vmem:[%s12 + $0x7c8] sm:$0xff]
  %v9771 = vld [vmem:[%s12 + $0x7d0] sm:$0xff]
  %v9772 = vld [vmem:[%s12 + $0x7d8] sm:$0xff]
  %v9773 = vld [vmem:[%s12 + $0x7e0] sm:$0xff]
  %v9774 = vld [vmem:[%s12 + $0x7e8] sm:$0xff]
  %v9775 = vld [vmem:[%s12 + $0x7f0] sm:$0xff]
  %v9776 = vld [vmem:[%s12 + $0x7f8] sm:$0xff]
  %v9777 = vld [vmem:[%s13] sm:$0xf]
  %v9779 = vlaneseq
  %v9780 = vshrl.u32 %v9779, 7
  %v9781 = vsub.s32 0, %v9780
  %v9782 = vrot.slane %v9777, %v9781
  %v9783 = vlaneseq
  %v9784 = vshrl.u32 %v9783, 7
  %v9785 = vsub.s32 1, %v9784
  %v9786 = vrot.slane %v9777, %v9785
  %v9787 = vlaneseq
  %v9788 = vshrl.u32 %v9787, 7
  %v9789 = vsub.s32 2, %v9788
  %v9790 = vrot.slane %v9777, %v9789
  %v9791 = vlaneseq
  %v9792 = vshrl.u32 %v9791, 7
  %v9793 = vsub.s32 3, %v9792
  %v9794 = vrot.slane %v9777, %v9793
  %v10055 = vunpack.c.l.b16 %v9521
  %v10056 = vunpack.c.h.b16 %v9521
  %v10057 = vunpack.c.l.b16 %v9522
  %v10058 = vunpack.c.h.b16 %v9522
  %v10059 = vunpack.c.l.b16 %v9523
  %v10060 = vunpack.c.h.b16 %v9523
  %v10061 = vunpack.c.l.b16 %v9524
  %v10062 = vunpack.c.h.b16 %v9524
  %v10063 = vunpack.c.l.b16 %v9525
  %v10064 = vunpack.c.h.b16 %v9525
  %v10065 = vunpack.c.l.b16 %v9526
  %v10066 = vunpack.c.h.b16 %v9526
  %v10067 = vunpack.c.l.b16 %v9527
  %v10068 = vunpack.c.h.b16 %v9527
  %v10069 = vunpack.c.l.b16 %v9528
  %v10070 = vunpack.c.h.b16 %v9528
  %v10071 = vunpack.c.l.b16 %v9529
  %v10072 = vunpack.c.h.b16 %v9529
  %v10073 = vunpack.c.l.b16 %v9530
  %v10074 = vunpack.c.h.b16 %v9530
  %v10075 = vunpack.c.l.b16 %v9531
  %v10076 = vunpack.c.h.b16 %v9531
  %v10077 = vunpack.c.l.b16 %v9532
  %v10078 = vunpack.c.h.b16 %v9532
  %v10079 = vunpack.c.l.b16 %v9533
  %v10080 = vunpack.c.h.b16 %v9533
  %v10081 = vunpack.c.l.b16 %v9534
  %v10082 = vunpack.c.h.b16 %v9534
  %v10083 = vunpack.c.l.b16 %v9535
  %v10084 = vunpack.c.h.b16 %v9535
  %v10085 = vunpack.c.l.b16 %v9536
  %v10086 = vunpack.c.h.b16 %v9536
  %v10087 = vunpack.c.l.b16 %v9537
  %v10088 = vunpack.c.h.b16 %v9537
  %v10089 = vunpack.c.l.b16 %v9538
  %v10090 = vunpack.c.h.b16 %v9538
  %v10091 = vunpack.c.l.b16 %v9539
  %v10092 = vunpack.c.h.b16 %v9539
  %v10093 = vunpack.c.l.b16 %v9540
  %v10094 = vunpack.c.h.b16 %v9540
  %v10095 = vunpack.c.l.b16 %v9541
  %v10096 = vunpack.c.h.b16 %v9541
  %v10097 = vunpack.c.l.b16 %v9542
  %v10098 = vunpack.c.h.b16 %v9542
  %v10099 = vunpack.c.l.b16 %v9543
  %v10100 = vunpack.c.h.b16 %v9543
  %v10101 = vunpack.c.l.b16 %v9544
  %v10102 = vunpack.c.h.b16 %v9544
  %v10103 = vunpack.c.l.b16 %v9545
  %v10104 = vunpack.c.h.b16 %v9545
  %v10105 = vunpack.c.l.b16 %v9546
  %v10106 = vunpack.c.h.b16 %v9546
  %v10107 = vunpack.c.l.b16 %v9547
  %v10108 = vunpack.c.h.b16 %v9547
  %v10109 = vunpack.c.l.b16 %v9548
  %v10110 = vunpack.c.h.b16 %v9548
  %v10111 = vunpack.c.l.b16 %v9549
  %v10112 = vunpack.c.h.b16 %v9549
  %v10113 = vunpack.c.l.b16 %v9550
  %v10114 = vunpack.c.h.b16 %v9550
  %v10115 = vunpack.c.l.b16 %v9551
  %v10116 = vunpack.c.h.b16 %v9551
  %v10117 = vunpack.c.l.b16 %v9552
  %v10118 = vunpack.c.h.b16 %v9552
  %v10119 = vunpack.c.l.b16 %v9553
  %v10120 = vunpack.c.h.b16 %v9553
  %v10121 = vunpack.c.l.b16 %v9554
  %v10122 = vunpack.c.h.b16 %v9554
  %v10123 = vunpack.c.l.b16 %v9555
  %v10124 = vunpack.c.h.b16 %v9555
  %v10125 = vunpack.c.l.b16 %v9556
  %v10126 = vunpack.c.h.b16 %v9556
  %v10127 = vunpack.c.l.b16 %v9557
  %v10128 = vunpack.c.h.b16 %v9557
  %v10129 = vunpack.c.l.b16 %v9558
  %v10130 = vunpack.c.h.b16 %v9558
  %v10131 = vunpack.c.l.b16 %v9559
  %v10132 = vunpack.c.h.b16 %v9559
  %v10133 = vunpack.c.l.b16 %v9560
  %v10134 = vunpack.c.h.b16 %v9560
  %v10135 = vunpack.c.l.b16 %v9561
  %v10136 = vunpack.c.h.b16 %v9561
  %v10137 = vunpack.c.l.b16 %v9562
  %v10138 = vunpack.c.h.b16 %v9562
  %v10139 = vunpack.c.l.b16 %v9563
  %v10140 = vunpack.c.h.b16 %v9563
  %v10141 = vunpack.c.l.b16 %v9564
  %v10142 = vunpack.c.h.b16 %v9564
  %v10143 = vunpack.c.l.b16 %v9565
  %v10144 = vunpack.c.h.b16 %v9565
  %v10145 = vunpack.c.l.b16 %v9566
  %v10146 = vunpack.c.h.b16 %v9566
  %v10147 = vunpack.c.l.b16 %v9567
  %v10148 = vunpack.c.h.b16 %v9567
  %v10149 = vunpack.c.l.b16 %v9568
  %v10150 = vunpack.c.h.b16 %v9568
  %v10151 = vunpack.c.l.b16 %v9569
  %v10152 = vunpack.c.h.b16 %v9569
  %v10153 = vunpack.c.l.b16 %v9570
  %v10154 = vunpack.c.h.b16 %v9570
  %v10155 = vunpack.c.l.b16 %v9571
  %v10156 = vunpack.c.h.b16 %v9571
  %v10157 = vunpack.c.l.b16 %v9572
  %v10158 = vunpack.c.h.b16 %v9572
  %v10159 = vunpack.c.l.b16 %v9573
  %v10160 = vunpack.c.h.b16 %v9573
  %v10161 = vunpack.c.l.b16 %v9574
  %v10162 = vunpack.c.h.b16 %v9574
  %v10163 = vunpack.c.l.b16 %v9575
  %v10164 = vunpack.c.h.b16 %v9575
  %v10165 = vunpack.c.l.b16 %v9576
  %v10166 = vunpack.c.h.b16 %v9576
  %v10167 = vunpack.c.l.b16 %v9577
  %v10168 = vunpack.c.h.b16 %v9577
  %v10169 = vunpack.c.l.b16 %v9578
  %v10170 = vunpack.c.h.b16 %v9578
  %v10171 = vunpack.c.l.b16 %v9579
  %v10172 = vunpack.c.h.b16 %v9579
  %v10173 = vunpack.c.l.b16 %v9580
  %v10174 = vunpack.c.h.b16 %v9580
  %v10175 = vunpack.c.l.b16 %v9581
  %v10176 = vunpack.c.h.b16 %v9581
  %v10177 = vunpack.c.l.b16 %v9582
  %v10178 = vunpack.c.h.b16 %v9582
  %v10179 = vunpack.c.l.b16 %v9583
  %v10180 = vunpack.c.h.b16 %v9583
  %v10181 = vunpack.c.l.b16 %v9584
  %v10182 = vunpack.c.h.b16 %v9584
  %v10183 = vunpack.c.l.b16 %v9585
  %v10184 = vunpack.c.h.b16 %v9585
  %v10185 = vunpack.c.l.b16 %v9586
  %v10186 = vunpack.c.h.b16 %v9586
  %v10187 = vunpack.c.l.b16 %v9587
  %v10188 = vunpack.c.h.b16 %v9587
  %v10189 = vunpack.c.l.b16 %v9588
  %v10190 = vunpack.c.h.b16 %v9588
  %v10191 = vunpack.c.l.b16 %v9589
  %v10192 = vunpack.c.h.b16 %v9589
  %v10193 = vunpack.c.l.b16 %v9590
  %v10194 = vunpack.c.h.b16 %v9590
  %v10195 = vunpack.c.l.b16 %v9591
  %v10196 = vunpack.c.h.b16 %v9591
  %v10197 = vunpack.c.l.b16 %v9592
  %v10198 = vunpack.c.h.b16 %v9592
  %v10199 = vunpack.c.l.b16 %v9593
  %v10200 = vunpack.c.h.b16 %v9593
  %v10201 = vunpack.c.l.b16 %v9594
  %v10202 = vunpack.c.h.b16 %v9594
  %v10203 = vunpack.c.l.b16 %v9595
  %v10204 = vunpack.c.h.b16 %v9595
  %v10205 = vunpack.c.l.b16 %v9596
  %v10206 = vunpack.c.h.b16 %v9596
  %v10207 = vunpack.c.l.b16 %v9597
  %v10208 = vunpack.c.h.b16 %v9597
  %v10209 = vunpack.c.l.b16 %v9598
  %v10210 = vunpack.c.h.b16 %v9598
  %v10211 = vunpack.c.l.b16 %v9599
  %v10212 = vunpack.c.h.b16 %v9599
  %v10213 = vunpack.c.l.b16 %v9600
  %v10214 = vunpack.c.h.b16 %v9600
  %v10215 = vunpack.c.l.b16 %v9601
  %v10216 = vunpack.c.h.b16 %v9601
  %v10217 = vunpack.c.l.b16 %v9602
  %v10218 = vunpack.c.h.b16 %v9602
  %v10219 = vunpack.c.l.b16 %v9603
  %v10220 = vunpack.c.h.b16 %v9603
  %v10221 = vunpack.c.l.b16 %v9604
  %v10222 = vunpack.c.h.b16 %v9604
  %v10223 = vunpack.c.l.b16 %v9605
  %v10224 = vunpack.c.h.b16 %v9605
  %v10225 = vunpack.c.l.b16 %v9606
  %v10226 = vunpack.c.h.b16 %v9606
  %v10227 = vunpack.c.l.b16 %v9607
  %v10228 = vunpack.c.h.b16 %v9607
  %v10229 = vunpack.c.l.b16 %v9608
  %v10230 = vunpack.c.h.b16 %v9608
  %v10231 = vunpack.c.l.b16 %v9609
  %v10232 = vunpack.c.h.b16 %v9609
  %v10233 = vunpack.c.l.b16 %v9610
  %v10234 = vunpack.c.h.b16 %v9610
  %v10235 = vunpack.c.l.b16 %v9611
  %v10236 = vunpack.c.h.b16 %v9611
  %v10237 = vunpack.c.l.b16 %v9612
  %v10238 = vunpack.c.h.b16 %v9612
  %v10239 = vunpack.c.l.b16 %v9613
  %v10240 = vunpack.c.h.b16 %v9613
  %v10241 = vunpack.c.l.b16 %v9614
  %v10242 = vunpack.c.h.b16 %v9614
  %v10243 = vunpack.c.l.b16 %v9615
  %v10244 = vunpack.c.h.b16 %v9615
  %v10245 = vunpack.c.l.b16 %v9616
  %v10246 = vunpack.c.h.b16 %v9616
  %v10247 = vunpack.c.l.b16 %v9617
  %v10248 = vunpack.c.h.b16 %v9617
  %v10249 = vunpack.c.l.b16 %v9618
  %v10250 = vunpack.c.h.b16 %v9618
  %v10251 = vunpack.c.l.b16 %v9619
  %v10252 = vunpack.c.h.b16 %v9619
  %v10253 = vunpack.c.l.b16 %v9620
  %v10254 = vunpack.c.h.b16 %v9620
  %v10255 = vunpack.c.l.b16 %v9621
  %v10256 = vunpack.c.h.b16 %v9621
  %v10257 = vunpack.c.l.b16 %v9622
  %v10258 = vunpack.c.h.b16 %v9622
  %v10259 = vunpack.c.l.b16 %v9623
  %v10260 = vunpack.c.h.b16 %v9623
  %v10261 = vunpack.c.l.b16 %v9624
  %v10262 = vunpack.c.h.b16 %v9624
  %v10263 = vunpack.c.l.b16 %v9625
  %v10264 = vunpack.c.h.b16 %v9625
  %v10265 = vunpack.c.l.b16 %v9626
  %v10266 = vunpack.c.h.b16 %v9626
  %v10267 = vunpack.c.l.b16 %v9627
  %v10268 = vunpack.c.h.b16 %v9627
  %v10269 = vunpack.c.l.b16 %v9628
  %v10270 = vunpack.c.h.b16 %v9628
  %v10271 = vunpack.c.l.b16 %v9629
  %v10272 = vunpack.c.h.b16 %v9629
  %v10273 = vunpack.c.l.b16 %v9630
  %v10274 = vunpack.c.h.b16 %v9630
  %v10275 = vunpack.c.l.b16 %v9631
  %v10276 = vunpack.c.h.b16 %v9631
  %v10277 = vunpack.c.l.b16 %v9632
  %v10278 = vunpack.c.h.b16 %v9632
  %v10279 = vunpack.c.l.b16 %v9633
  %v10280 = vunpack.c.h.b16 %v9633
  %v10281 = vunpack.c.l.b16 %v9634
  %v10282 = vunpack.c.h.b16 %v9634
  %v10283 = vunpack.c.l.b16 %v9635
  %v10284 = vunpack.c.h.b16 %v9635
  %v10285 = vunpack.c.l.b16 %v9636
  %v10286 = vunpack.c.h.b16 %v9636
  %v10287 = vunpack.c.l.b16 %v9637
  %v10288 = vunpack.c.h.b16 %v9637
  %v10289 = vunpack.c.l.b16 %v9638
  %v10290 = vunpack.c.h.b16 %v9638
  %v10291 = vunpack.c.l.b16 %v9639
  %v10292 = vunpack.c.h.b16 %v9639
  %v10293 = vunpack.c.l.b16 %v9640
  %v10294 = vunpack.c.h.b16 %v9640
  %v10295 = vunpack.c.l.b16 %v9641
  %v10296 = vunpack.c.h.b16 %v9641
  %v10297 = vunpack.c.l.b16 %v9642
  %v10298 = vunpack.c.h.b16 %v9642
  %v10299 = vunpack.c.l.b16 %v9643
  %v10300 = vunpack.c.h.b16 %v9643
  %v10301 = vunpack.c.l.b16 %v9644
  %v10302 = vunpack.c.h.b16 %v9644
  %v10303 = vunpack.c.l.b16 %v9645
  %v10304 = vunpack.c.h.b16 %v9645
  %v10305 = vunpack.c.l.b16 %v9646
  %v10306 = vunpack.c.h.b16 %v9646
  %v10307 = vunpack.c.l.b16 %v9647
  %v10308 = vunpack.c.h.b16 %v9647
  %v10309 = vunpack.c.l.b16 %v9648
  %v10310 = vunpack.c.h.b16 %v9648
  %v10311 = vunpack.c.l.b16 %v9649
  %v10312 = vunpack.c.h.b16 %v9649
  %v10313 = vunpack.c.l.b16 %v9650
  %v10314 = vunpack.c.h.b16 %v9650
  %v10315 = vunpack.c.l.b16 %v9651
  %v10316 = vunpack.c.h.b16 %v9651
  %v10317 = vunpack.c.l.b16 %v9652
  %v10318 = vunpack.c.h.b16 %v9652
  %v10319 = vunpack.c.l.b16 %v9653
  %v10320 = vunpack.c.h.b16 %v9653
  %v10321 = vunpack.c.l.b16 %v9654
  %v10322 = vunpack.c.h.b16 %v9654
  %v10323 = vunpack.c.l.b16 %v9655
  %v10324 = vunpack.c.h.b16 %v9655
  %v10325 = vunpack.c.l.b16 %v9656
  %v10326 = vunpack.c.h.b16 %v9656
  %v10327 = vunpack.c.l.b16 %v9657
  %v10328 = vunpack.c.h.b16 %v9657
  %v10329 = vunpack.c.l.b16 %v9658
  %v10330 = vunpack.c.h.b16 %v9658
  %v10331 = vunpack.c.l.b16 %v9659
  %v10332 = vunpack.c.h.b16 %v9659
  %v10333 = vunpack.c.l.b16 %v9660
  %v10334 = vunpack.c.h.b16 %v9660
  %v10335 = vunpack.c.l.b16 %v9661
  %v10336 = vunpack.c.h.b16 %v9661
  %v10337 = vunpack.c.l.b16 %v9662
  %v10338 = vunpack.c.h.b16 %v9662
  %v10339 = vunpack.c.l.b16 %v9663
  %v10340 = vunpack.c.h.b16 %v9663
  %v10341 = vunpack.c.l.b16 %v9664
  %v10342 = vunpack.c.h.b16 %v9664
  %v10343 = vunpack.c.l.b16 %v9665
  %v10344 = vunpack.c.h.b16 %v9665
  %v10345 = vunpack.c.l.b16 %v9666
  %v10346 = vunpack.c.h.b16 %v9666
  %v10347 = vunpack.c.l.b16 %v9667
  %v10348 = vunpack.c.h.b16 %v9667
  %v10349 = vunpack.c.l.b16 %v9668
  %v10350 = vunpack.c.h.b16 %v9668
  %v10351 = vunpack.c.l.b16 %v9669
  %v10352 = vunpack.c.h.b16 %v9669
  %v10353 = vunpack.c.l.b16 %v9670
  %v10354 = vunpack.c.h.b16 %v9670
  %v10355 = vunpack.c.l.b16 %v9671
  %v10356 = vunpack.c.h.b16 %v9671
  %v10357 = vunpack.c.l.b16 %v9672
  %v10358 = vunpack.c.h.b16 %v9672
  %v10359 = vunpack.c.l.b16 %v9673
  %v10360 = vunpack.c.h.b16 %v9673
  %v10361 = vunpack.c.l.b16 %v9674
  %v10362 = vunpack.c.h.b16 %v9674
  %v10363 = vunpack.c.l.b16 %v9675
  %v10364 = vunpack.c.h.b16 %v9675
  %v10365 = vunpack.c.l.b16 %v9676
  %v10366 = vunpack.c.h.b16 %v9676
  %v10367 = vunpack.c.l.b16 %v9677
  %v10368 = vunpack.c.h.b16 %v9677
  %v10369 = vunpack.c.l.b16 %v9678
  %v10370 = vunpack.c.h.b16 %v9678
  %v10371 = vunpack.c.l.b16 %v9679
  %v10372 = vunpack.c.h.b16 %v9679
  %v10373 = vunpack.c.l.b16 %v9680
  %v10374 = vunpack.c.h.b16 %v9680
  %v10375 = vunpack.c.l.b16 %v9681
  %v10376 = vunpack.c.h.b16 %v9681
  %v10377 = vunpack.c.l.b16 %v9682
  %v10378 = vunpack.c.h.b16 %v9682
  %v10379 = vunpack.c.l.b16 %v9683
  %v10380 = vunpack.c.h.b16 %v9683
  %v10381 = vunpack.c.l.b16 %v9684
  %v10382 = vunpack.c.h.b16 %v9684
  %v10383 = vunpack.c.l.b16 %v9685
  %v10384 = vunpack.c.h.b16 %v9685
  %v10385 = vunpack.c.l.b16 %v9686
  %v10386 = vunpack.c.h.b16 %v9686
  %v10387 = vunpack.c.l.b16 %v9687
  %v10388 = vunpack.c.h.b16 %v9687
  %v10389 = vunpack.c.l.b16 %v9688
  %v10390 = vunpack.c.h.b16 %v9688
  %v10391 = vunpack.c.l.b16 %v9689
  %v10392 = vunpack.c.h.b16 %v9689
  %v10393 = vunpack.c.l.b16 %v9690
  %v10394 = vunpack.c.h.b16 %v9690
  %v10395 = vunpack.c.l.b16 %v9691
  %v10396 = vunpack.c.h.b16 %v9691
  %v10397 = vunpack.c.l.b16 %v9692
  %v10398 = vunpack.c.h.b16 %v9692
  %v10399 = vunpack.c.l.b16 %v9693
  %v10400 = vunpack.c.h.b16 %v9693
  %v10401 = vunpack.c.l.b16 %v9694
  %v10402 = vunpack.c.h.b16 %v9694
  %v10403 = vunpack.c.l.b16 %v9695
  %v10404 = vunpack.c.h.b16 %v9695
  %v10405 = vunpack.c.l.b16 %v9696
  %v10406 = vunpack.c.h.b16 %v9696
  %v10407 = vunpack.c.l.b16 %v9697
  %v10408 = vunpack.c.h.b16 %v9697
  %v10409 = vunpack.c.l.b16 %v9698
  %v10410 = vunpack.c.h.b16 %v9698
  %v10411 = vunpack.c.l.b16 %v9699
  %v10412 = vunpack.c.h.b16 %v9699
  %v10413 = vunpack.c.l.b16 %v9700
  %v10414 = vunpack.c.h.b16 %v9700
  %v10415 = vunpack.c.l.b16 %v9701
  %v10416 = vunpack.c.h.b16 %v9701
  %v10417 = vunpack.c.l.b16 %v9702
  %v10418 = vunpack.c.h.b16 %v9702
  %v10419 = vunpack.c.l.b16 %v9703
  %v10420 = vunpack.c.h.b16 %v9703
  %v10421 = vunpack.c.l.b16 %v9704
  %v10422 = vunpack.c.h.b16 %v9704
  %v10423 = vunpack.c.l.b16 %v9705
  %v10424 = vunpack.c.h.b16 %v9705
  %v10425 = vunpack.c.l.b16 %v9706
  %v10426 = vunpack.c.h.b16 %v9706
  %v10427 = vunpack.c.l.b16 %v9707
  %v10428 = vunpack.c.h.b16 %v9707
  %v10429 = vunpack.c.l.b16 %v9708
  %v10430 = vunpack.c.h.b16 %v9708
  %v10431 = vunpack.c.l.b16 %v9709
  %v10432 = vunpack.c.h.b16 %v9709
  %v10433 = vunpack.c.l.b16 %v9710
  %v10434 = vunpack.c.h.b16 %v9710
  %v10435 = vunpack.c.l.b16 %v9711
  %v10436 = vunpack.c.h.b16 %v9711
  %v10437 = vunpack.c.l.b16 %v9712
  %v10438 = vunpack.c.h.b16 %v9712
  %v10439 = vunpack.c.l.b16 %v9713
  %v10440 = vunpack.c.h.b16 %v9713
  %v10441 = vunpack.c.l.b16 %v9714
  %v10442 = vunpack.c.h.b16 %v9714
  %v10443 = vunpack.c.l.b16 %v9715
  %v10444 = vunpack.c.h.b16 %v9715
  %v10445 = vunpack.c.l.b16 %v9716
  %v10446 = vunpack.c.h.b16 %v9716
  %v10447 = vunpack.c.l.b16 %v9717
  %v10448 = vunpack.c.h.b16 %v9717
  %v10449 = vunpack.c.l.b16 %v9718
  %v10450 = vunpack.c.h.b16 %v9718
  %v10451 = vunpack.c.l.b16 %v9719
  %v10452 = vunpack.c.h.b16 %v9719
  %v10453 = vunpack.c.l.b16 %v9720
  %v10454 = vunpack.c.h.b16 %v9720
  %v10455 = vunpack.c.l.b16 %v9721
  %v10456 = vunpack.c.h.b16 %v9721
  %v10457 = vunpack.c.l.b16 %v9722
  %v10458 = vunpack.c.h.b16 %v9722
  %v10459 = vunpack.c.l.b16 %v9723
  %v10460 = vunpack.c.h.b16 %v9723
  %v10461 = vunpack.c.l.b16 %v9724
  %v10462 = vunpack.c.h.b16 %v9724
  %v10463 = vunpack.c.l.b16 %v9725
  %v10464 = vunpack.c.h.b16 %v9725
  %v10465 = vunpack.c.l.b16 %v9726
  %v10466 = vunpack.c.h.b16 %v9726
  %v10467 = vunpack.c.l.b16 %v9727
  %v10468 = vunpack.c.h.b16 %v9727
  %v10469 = vunpack.c.l.b16 %v9728
  %v10470 = vunpack.c.h.b16 %v9728
  %v10471 = vunpack.c.l.b16 %v9729
  %v10472 = vunpack.c.h.b16 %v9729
  %v10473 = vunpack.c.l.b16 %v9730
  %v10474 = vunpack.c.h.b16 %v9730
  %v10475 = vunpack.c.l.b16 %v9731
  %v10476 = vunpack.c.h.b16 %v9731
  %v10477 = vunpack.c.l.b16 %v9732
  %v10478 = vunpack.c.h.b16 %v9732
  %v10479 = vunpack.c.l.b16 %v9733
  %v10480 = vunpack.c.h.b16 %v9733
  %v10481 = vunpack.c.l.b16 %v9734
  %v10482 = vunpack.c.h.b16 %v9734
  %v10483 = vunpack.c.l.b16 %v9735
  %v10484 = vunpack.c.h.b16 %v9735
  %v10485 = vunpack.c.l.b16 %v9736
  %v10486 = vunpack.c.h.b16 %v9736
  %v10487 = vunpack.c.l.b16 %v9737
  %v10488 = vunpack.c.h.b16 %v9737
  %v10489 = vunpack.c.l.b16 %v9738
  %v10490 = vunpack.c.h.b16 %v9738
  %v10491 = vunpack.c.l.b16 %v9739
  %v10492 = vunpack.c.h.b16 %v9739
  %v10493 = vunpack.c.l.b16 %v9740
  %v10494 = vunpack.c.h.b16 %v9740
  %v10495 = vunpack.c.l.b16 %v9741
  %v10496 = vunpack.c.h.b16 %v9741
  %v10497 = vunpack.c.l.b16 %v9742
  %v10498 = vunpack.c.h.b16 %v9742
  %v10499 = vunpack.c.l.b16 %v9743
  %v10500 = vunpack.c.h.b16 %v9743
  %v10501 = vunpack.c.l.b16 %v9744
  %v10502 = vunpack.c.h.b16 %v9744
  %v10503 = vunpack.c.l.b16 %v9745
  %v10504 = vunpack.c.h.b16 %v9745
  %v10505 = vunpack.c.l.b16 %v9746
  %v10506 = vunpack.c.h.b16 %v9746
  %v10507 = vunpack.c.l.b16 %v9747
  %v10508 = vunpack.c.h.b16 %v9747
  %v10509 = vunpack.c.l.b16 %v9748
  %v10510 = vunpack.c.h.b16 %v9748
  %v10511 = vunpack.c.l.b16 %v9749
  %v10512 = vunpack.c.h.b16 %v9749
  %v10513 = vunpack.c.l.b16 %v9750
  %v10514 = vunpack.c.h.b16 %v9750
  %v10515 = vunpack.c.l.b16 %v9751
  %v10516 = vunpack.c.h.b16 %v9751
  %v10517 = vunpack.c.l.b16 %v9752
  %v10518 = vunpack.c.h.b16 %v9752
  %v10519 = vunpack.c.l.b16 %v9753
  %v10520 = vunpack.c.h.b16 %v9753
  %v10521 = vunpack.c.l.b16 %v9754
  %v10522 = vunpack.c.h.b16 %v9754
  %v10523 = vunpack.c.l.b16 %v9755
  %v10524 = vunpack.c.h.b16 %v9755
  %v10525 = vunpack.c.l.b16 %v9756
  %v10526 = vunpack.c.h.b16 %v9756
  %v10527 = vunpack.c.l.b16 %v9757
  %v10528 = vunpack.c.h.b16 %v9757
  %v10529 = vunpack.c.l.b16 %v9758
  %v10530 = vunpack.c.h.b16 %v9758
  %v10531 = vunpack.c.l.b16 %v9759
  %v10532 = vunpack.c.h.b16 %v9759
  %v10533 = vunpack.c.l.b16 %v9760
  %v10534 = vunpack.c.h.b16 %v9760
  %v10535 = vunpack.c.l.b16 %v9761
  %v10536 = vunpack.c.h.b16 %v9761
  %v10537 = vunpack.c.l.b16 %v9762
  %v10538 = vunpack.c.h.b16 %v9762
  %v10539 = vunpack.c.l.b16 %v9763
  %v10540 = vunpack.c.h.b16 %v9763
  %v10541 = vunpack.c.l.b16 %v9764
  %v10542 = vunpack.c.h.b16 %v9764
  %v10543 = vunpack.c.l.b16 %v9765
  %v10544 = vunpack.c.h.b16 %v9765
  %v10545 = vunpack.c.l.b16 %v9766
  %v10546 = vunpack.c.h.b16 %v9766
  %v10547 = vunpack.c.l.b16 %v9767
  %v10548 = vunpack.c.h.b16 %v9767
  %v10549 = vunpack.c.l.b16 %v9768
  %v10550 = vunpack.c.h.b16 %v9768
  %v10551 = vunpack.c.l.b16 %v9769
  %v10552 = vunpack.c.h.b16 %v9769
  %v10553 = vunpack.c.l.b16 %v9770
  %v10554 = vunpack.c.h.b16 %v9770
  %v10555 = vunpack.c.l.b16 %v9771
  %v10556 = vunpack.c.h.b16 %v9771
  %v10557 = vunpack.c.l.b16 %v9772
  %v10558 = vunpack.c.h.b16 %v9772
  %v10559 = vunpack.c.l.b16 %v9773
  %v10560 = vunpack.c.h.b16 %v9773
  %v10561 = vunpack.c.l.b16 %v9774
  %v10562 = vunpack.c.h.b16 %v9774
  %v10563 = vunpack.c.l.b16 %v9775
  %v10564 = vunpack.c.h.b16 %v9775
  %v10565 = vunpack.c.l.b16 %v9776
  %v10566 = vunpack.c.h.b16 %v9776
  %v10567 = vpack.c.b16 %v10059, %v10055
  %v10568 = vpack.c.b16 %v10060, %v10056
  %v10569 = vpack.c.b16 %v10061, %v10057
  %v10570 = vpack.c.b16 %v10062, %v10058
  %v10571 = vpack.c.b16 %v10067, %v10063
  %v10572 = vpack.c.b16 %v10068, %v10064
  %v10573 = vpack.c.b16 %v10069, %v10065
  %v10574 = vpack.c.b16 %v10070, %v10066
  %v10575 = vpack.c.b16 %v10075, %v10071
  %v10576 = vpack.c.b16 %v10076, %v10072
  %v10577 = vpack.c.b16 %v10077, %v10073
  %v10578 = vpack.c.b16 %v10078, %v10074
  %v10579 = vpack.c.b16 %v10083, %v10079
  %v10580 = vpack.c.b16 %v10084, %v10080
  %v10581 = vpack.c.b16 %v10085, %v10081
  %v10582 = vpack.c.b16 %v10086, %v10082
  %v10583 = vpack.c.b16 %v10091, %v10087
  %v10584 = vpack.c.b16 %v10092, %v10088
  %v10585 = vpack.c.b16 %v10093, %v10089
  %v10586 = vpack.c.b16 %v10094, %v10090
  %v10587 = vpack.c.b16 %v10099, %v10095
  %v10588 = vpack.c.b16 %v10100, %v10096
  %v10589 = vpack.c.b16 %v10101, %v10097
  %v10590 = vpack.c.b16 %v10102, %v10098
  %v10591 = vpack.c.b16 %v10107, %v10103
  %v10592 = vpack.c.b16 %v10108, %v10104
  %v10593 = vpack.c.b16 %v10109, %v10105
  %v10594 = vpack.c.b16 %v10110, %v10106
  %v10595 = vpack.c.b16 %v10115, %v10111
  %v10596 = vpack.c.b16 %v10116, %v10112
  %v10597 = vpack.c.b16 %v10117, %v10113
  %v10598 = vpack.c.b16 %v10118, %v10114
  %v10599 = vpack.c.b16 %v10123, %v10119
  %v10600 = vpack.c.b16 %v10124, %v10120
  %v10601 = vpack.c.b16 %v10125, %v10121
  %v10602 = vpack.c.b16 %v10126, %v10122
  %v10603 = vpack.c.b16 %v10131, %v10127
  %v10604 = vpack.c.b16 %v10132, %v10128
  %v10605 = vpack.c.b16 %v10133, %v10129
  %v10606 = vpack.c.b16 %v10134, %v10130
  %v10607 = vpack.c.b16 %v10139, %v10135
  %v10608 = vpack.c.b16 %v10140, %v10136
  %v10609 = vpack.c.b16 %v10141, %v10137
  %v10610 = vpack.c.b16 %v10142, %v10138
  %v10611 = vpack.c.b16 %v10147, %v10143
  %v10612 = vpack.c.b16 %v10148, %v10144
  %v10613 = vpack.c.b16 %v10149, %v10145
  %v10614 = vpack.c.b16 %v10150, %v10146
  %v10615 = vpack.c.b16 %v10155, %v10151
  %v10616 = vpack.c.b16 %v10156, %v10152
  %v10617 = vpack.c.b16 %v10157, %v10153
  %v10618 = vpack.c.b16 %v10158, %v10154
  %v10619 = vpack.c.b16 %v10163, %v10159
  %v10620 = vpack.c.b16 %v10164, %v10160
  %v10621 = vpack.c.b16 %v10165, %v10161
  %v10622 = vpack.c.b16 %v10166, %v10162
  %v10623 = vpack.c.b16 %v10171, %v10167
  %v10624 = vpack.c.b16 %v10172, %v10168
  %v10625 = vpack.c.b16 %v10173, %v10169
  %v10626 = vpack.c.b16 %v10174, %v10170
  %v10627 = vpack.c.b16 %v10179, %v10175
  %v10628 = vpack.c.b16 %v10180, %v10176
  %v10629 = vpack.c.b16 %v10181, %v10177
  %v10630 = vpack.c.b16 %v10182, %v10178
  %v10631 = vpack.c.b16 %v10187, %v10183
  %v10632 = vpack.c.b16 %v10188, %v10184
  %v10633 = vpack.c.b16 %v10189, %v10185
  %v10634 = vpack.c.b16 %v10190, %v10186
  %v10635 = vpack.c.b16 %v10195, %v10191
  %v10636 = vpack.c.b16 %v10196, %v10192
  %v10637 = vpack.c.b16 %v10197, %v10193
  %v10638 = vpack.c.b16 %v10198, %v10194
  %v10639 = vpack.c.b16 %v10203, %v10199
  %v10640 = vpack.c.b16 %v10204, %v10200
  %v10641 = vpack.c.b16 %v10205, %v10201
  %v10642 = vpack.c.b16 %v10206, %v10202
  %v10643 = vpack.c.b16 %v10211, %v10207
  %v10644 = vpack.c.b16 %v10212, %v10208
  %v10645 = vpack.c.b16 %v10213, %v10209
  %v10646 = vpack.c.b16 %v10214, %v10210
  %v10647 = vpack.c.b16 %v10219, %v10215
  %v10648 = vpack.c.b16 %v10220, %v10216
  %v10649 = vpack.c.b16 %v10221, %v10217
  %v10650 = vpack.c.b16 %v10222, %v10218
  %v10651 = vpack.c.b16 %v10227, %v10223
  %v10652 = vpack.c.b16 %v10228, %v10224
  %v10653 = vpack.c.b16 %v10229, %v10225
  %v10654 = vpack.c.b16 %v10230, %v10226
  %v10655 = vpack.c.b16 %v10235, %v10231
  %v10656 = vpack.c.b16 %v10236, %v10232
  %v10657 = vpack.c.b16 %v10237, %v10233
  %v10658 = vpack.c.b16 %v10238, %v10234
  %v10659 = vpack.c.b16 %v10243, %v10239
  %v10660 = vpack.c.b16 %v10244, %v10240
  %v10661 = vpack.c.b16 %v10245, %v10241
  %v10662 = vpack.c.b16 %v10246, %v10242
  %v10663 = vpack.c.b16 %v10251, %v10247
  %v10664 = vpack.c.b16 %v10252, %v10248
  %v10665 = vpack.c.b16 %v10253, %v10249
  %v10666 = vpack.c.b16 %v10254, %v10250
  %v10667 = vpack.c.b16 %v10259, %v10255
  %v10668 = vpack.c.b16 %v10260, %v10256
  %v10669 = vpack.c.b16 %v10261, %v10257
  %v10670 = vpack.c.b16 %v10262, %v10258
  %v10671 = vpack.c.b16 %v10267, %v10263
  %v10672 = vpack.c.b16 %v10268, %v10264
  %v10673 = vpack.c.b16 %v10269, %v10265
  %v10674 = vpack.c.b16 %v10270, %v10266
  %v10675 = vpack.c.b16 %v10275, %v10271
  %v10676 = vpack.c.b16 %v10276, %v10272
  %v10677 = vpack.c.b16 %v10277, %v10273
  %v10678 = vpack.c.b16 %v10278, %v10274
  %v10679 = vpack.c.b16 %v10283, %v10279
  %v10680 = vpack.c.b16 %v10284, %v10280
  %v10681 = vpack.c.b16 %v10285, %v10281
  %v10682 = vpack.c.b16 %v10286, %v10282
  %v10683 = vpack.c.b16 %v10291, %v10287
  %v10684 = vpack.c.b16 %v10292, %v10288
  %v10685 = vpack.c.b16 %v10293, %v10289
  %v10686 = vpack.c.b16 %v10294, %v10290
  %v10687 = vpack.c.b16 %v10299, %v10295
  %v10688 = vpack.c.b16 %v10300, %v10296
  %v10689 = vpack.c.b16 %v10301, %v10297
  %v10690 = vpack.c.b16 %v10302, %v10298
  %v10691 = vpack.c.b16 %v10307, %v10303
  %v10692 = vpack.c.b16 %v10308, %v10304
  %v10693 = vpack.c.b16 %v10309, %v10305
  %v10694 = vpack.c.b16 %v10310, %v10306
  %v10695 = vpack.c.b16 %v10315, %v10311
  %v10696 = vpack.c.b16 %v10316, %v10312
  %v10697 = vpack.c.b16 %v10317, %v10313
  %v10698 = vpack.c.b16 %v10318, %v10314
  %v10699 = vpack.c.b16 %v10323, %v10319
  %v10700 = vpack.c.b16 %v10324, %v10320
  %v10701 = vpack.c.b16 %v10325, %v10321
  %v10702 = vpack.c.b16 %v10326, %v10322
  %v10703 = vpack.c.b16 %v10331, %v10327
  %v10704 = vpack.c.b16 %v10332, %v10328
  %v10705 = vpack.c.b16 %v10333, %v10329
  %v10706 = vpack.c.b16 %v10334, %v10330
  %v10707 = vpack.c.b16 %v10339, %v10335
  %v10708 = vpack.c.b16 %v10340, %v10336
  %v10709 = vpack.c.b16 %v10341, %v10337
  %v10710 = vpack.c.b16 %v10342, %v10338
  %v10711 = vpack.c.b16 %v10347, %v10343
  %v10712 = vpack.c.b16 %v10348, %v10344
  %v10713 = vpack.c.b16 %v10349, %v10345
  %v10714 = vpack.c.b16 %v10350, %v10346
  %v10715 = vpack.c.b16 %v10355, %v10351
  %v10716 = vpack.c.b16 %v10356, %v10352
  %v10717 = vpack.c.b16 %v10357, %v10353
  %v10718 = vpack.c.b16 %v10358, %v10354
  %v10719 = vpack.c.b16 %v10363, %v10359
  %v10720 = vpack.c.b16 %v10364, %v10360
  %v10721 = vpack.c.b16 %v10365, %v10361
  %v10722 = vpack.c.b16 %v10366, %v10362
  %v10723 = vpack.c.b16 %v10371, %v10367
  %v10724 = vpack.c.b16 %v10372, %v10368
  %v10725 = vpack.c.b16 %v10373, %v10369
  %v10726 = vpack.c.b16 %v10374, %v10370
  %v10727 = vpack.c.b16 %v10379, %v10375
  %v10728 = vpack.c.b16 %v10380, %v10376
  %v10729 = vpack.c.b16 %v10381, %v10377
  %v10730 = vpack.c.b16 %v10382, %v10378
  %v10731 = vpack.c.b16 %v10387, %v10383
  %v10732 = vpack.c.b16 %v10388, %v10384
  %v10733 = vpack.c.b16 %v10389, %v10385
  %v10734 = vpack.c.b16 %v10390, %v10386
  %v10735 = vpack.c.b16 %v10395, %v10391
  %v10736 = vpack.c.b16 %v10396, %v10392
  %v10737 = vpack.c.b16 %v10397, %v10393
  %v10738 = vpack.c.b16 %v10398, %v10394
  %v10739 = vpack.c.b16 %v10403, %v10399
  %v10740 = vpack.c.b16 %v10404, %v10400
  %v10741 = vpack.c.b16 %v10405, %v10401
  %v10742 = vpack.c.b16 %v10406, %v10402
  %v10743 = vpack.c.b16 %v10411, %v10407
  %v10744 = vpack.c.b16 %v10412, %v10408
  %v10745 = vpack.c.b16 %v10413, %v10409
  %v10746 = vpack.c.b16 %v10414, %v10410
  %v10747 = vpack.c.b16 %v10419, %v10415
  %v10748 = vpack.c.b16 %v10420, %v10416
  %v10749 = vpack.c.b16 %v10421, %v10417
  %v10750 = vpack.c.b16 %v10422, %v10418
  %v10751 = vpack.c.b16 %v10427, %v10423
  %v10752 = vpack.c.b16 %v10428, %v10424
  %v10753 = vpack.c.b16 %v10429, %v10425
  %v10754 = vpack.c.b16 %v10430, %v10426
  %v10755 = vpack.c.b16 %v10435, %v10431
  %v10756 = vpack.c.b16 %v10436, %v10432
  %v10757 = vpack.c.b16 %v10437, %v10433
  %v10758 = vpack.c.b16 %v10438, %v10434
  %v10759 = vpack.c.b16 %v10443, %v10439
  %v10760 = vpack.c.b16 %v10444, %v10440
  %v10761 = vpack.c.b16 %v10445, %v10441
  %v10762 = vpack.c.b16 %v10446, %v10442
  %v10763 = vpack.c.b16 %v10451, %v10447
  %v10764 = vpack.c.b16 %v10452, %v10448
  %v10765 = vpack.c.b16 %v10453, %v10449
  %v10766 = vpack.c.b16 %v10454, %v10450
  %v10767 = vpack.c.b16 %v10459, %v10455
  %v10768 = vpack.c.b16 %v10460, %v10456
  %v10769 = vpack.c.b16 %v10461, %v10457
  %v10770 = vpack.c.b16 %v10462, %v10458
  %v10771 = vpack.c.b16 %v10467, %v10463
  %v10772 = vpack.c.b16 %v10468, %v10464
  %v10773 = vpack.c.b16 %v10469, %v10465
  %v10774 = vpack.c.b16 %v10470, %v10466
  %v10775 = vpack.c.b16 %v10475, %v10471
  %v10776 = vpack.c.b16 %v10476, %v10472
  %v10777 = vpack.c.b16 %v10477, %v10473
  %v10778 = vpack.c.b16 %v10478, %v10474
  %v10779 = vpack.c.b16 %v10483, %v10479
  %v10780 = vpack.c.b16 %v10484, %v10480
  %v10781 = vpack.c.b16 %v10485, %v10481
  %v10782 = vpack.c.b16 %v10486, %v10482
  %v10783 = vpack.c.b16 %v10491, %v10487
  %v10784 = vpack.c.b16 %v10492, %v10488
  %v10785 = vpack.c.b16 %v10493, %v10489
  %v10786 = vpack.c.b16 %v10494, %v10490
  %v10787 = vpack.c.b16 %v10499, %v10495
  %v10788 = vpack.c.b16 %v10500, %v10496
  %v10789 = vpack.c.b16 %v10501, %v10497
  %v10790 = vpack.c.b16 %v10502, %v10498
  %v10791 = vpack.c.b16 %v10507, %v10503
  %v10792 = vpack.c.b16 %v10508, %v10504
  %v10793 = vpack.c.b16 %v10509, %v10505
  %v10794 = vpack.c.b16 %v10510, %v10506
  %v10795 = vpack.c.b16 %v10515, %v10511
  %v10796 = vpack.c.b16 %v10516, %v10512
  %v10797 = vpack.c.b16 %v10517, %v10513
  %v10798 = vpack.c.b16 %v10518, %v10514
  %v10799 = vpack.c.b16 %v10523, %v10519
  %v10800 = vpack.c.b16 %v10524, %v10520
  %v10801 = vpack.c.b16 %v10525, %v10521
  %v10802 = vpack.c.b16 %v10526, %v10522
  %v10803 = vpack.c.b16 %v10531, %v10527
  %v10804 = vpack.c.b16 %v10532, %v10528
  %v10805 = vpack.c.b16 %v10533, %v10529
  %v10806 = vpack.c.b16 %v10534, %v10530
  %v10807 = vpack.c.b16 %v10539, %v10535
  %v10808 = vpack.c.b16 %v10540, %v10536
  %v10809 = vpack.c.b16 %v10541, %v10537
  %v10810 = vpack.c.b16 %v10542, %v10538
  %v10811 = vpack.c.b16 %v10547, %v10543
  %v10812 = vpack.c.b16 %v10548, %v10544
  %v10813 = vpack.c.b16 %v10549, %v10545
  %v10814 = vpack.c.b16 %v10550, %v10546
  %v10815 = vpack.c.b16 %v10555, %v10551
  %v10816 = vpack.c.b16 %v10556, %v10552
  %v10817 = vpack.c.b16 %v10557, %v10553
  %v10818 = vpack.c.b16 %v10558, %v10554
  %v10819 = vpack.c.b16 %v10563, %v10559
  %v10820 = vpack.c.b16 %v10564, %v10560
  %v10821 = vpack.c.b16 %v10565, %v10561
  %v10822 = vpack.c.b16 %v10566, %v10562
  %11079 = vmatprep.subr.bf16.mxu0 %v10568
  %11080 = vmatpush1.bf16.msra.mxu0 %v10567
  %11081 = vmatprep.subr.bf16.mxu0 %v10572
  %11082 = vmatpush1.bf16.msra.mxu0 %v10571
  %11083 = vmatprep.subr.bf16.mxu0 %v10576
  %11084 = vmatpush1.bf16.msra.mxu0 %v10575
  %11085 = vmatprep.subr.bf16.mxu0 %v10580
  %11086 = vmatpush1.bf16.msra.mxu0 %v10579
  %11087 = vmatprep.subr.bf16.mxu0 %v10584
  %11088 = vmatpush1.bf16.msra.mxu0 %v10583
  %11089 = vmatprep.subr.bf16.mxu0 %v10588
  %11090 = vmatpush1.bf16.msra.mxu0 %v10587
  %11091 = vmatprep.subr.bf16.mxu0 %v10592
  %11092 = vmatpush1.bf16.msra.mxu0 %v10591
  %11093 = vmatprep.subr.bf16.mxu0 %v10596
  %11094 = vmatpush1.bf16.msra.mxu0 %v10595
  %11095 = vmatprep.subr.bf16.mxu0 %v10600
  %11096 = vmatpush1.bf16.msra.mxu0 %v10599
  %11097 = vmatprep.subr.bf16.mxu0 %v10604
  %11098 = vmatpush1.bf16.msra.mxu0 %v10603
  %11099 = vmatprep.subr.bf16.mxu0 %v10608
  %11100 = vmatpush1.bf16.msra.mxu0 %v10607
  %11101 = vmatprep.subr.bf16.mxu0 %v10612
  %11102 = vmatpush1.bf16.msra.mxu0 %v10611
  %11103 = vmatprep.subr.bf16.mxu0 %v10616
  %11104 = vmatpush1.bf16.msra.mxu0 %v10615
  %11105 = vmatprep.subr.bf16.mxu0 %v10620
  %11106 = vmatpush1.bf16.msra.mxu0 %v10619
  %11107 = vmatprep.subr.bf16.mxu0 %v10624
  %11108 = vmatpush1.bf16.msra.mxu0 %v10623
  %11109 = vmatprep.subr.bf16.mxu0 %v10628
  %11110 = vmatpush1.bf16.msra.mxu0 %v10627
  %11111 = vmatprep.mubr.bf16.mxu0 %v9514
  %11112 = vmatmul.mubr.bf16.gmra.mrb[0].mxu0 %v9513
  %v11113 = vpop.f32.mrb[0].mxu0
  %v11114 = vadd.f32 %v9782, %v11113
  %v11115 = vpop.f32.mrb[0].mxu0
  %v11116 = vadd.f32 %v9786, %v11115
  %v11117 = vpop.f32.mrb[0].mxu0
  %v11118 = vpop.f32.mrb[0].mxu0
  %11119 = vdwg.mxu0
  %11120 = vmatprep.subr.bf16.mxu0 %v10632
  %11121 = vmatpush1.bf16.msra.mxu0 %v10631
  %11122 = vmatprep.subr.bf16.mxu0 %v10636
  %11123 = vmatpush1.bf16.msra.mxu0 %v10635
  %11124 = vmatprep.subr.bf16.mxu0 %v10640
  %11125 = vmatpush1.bf16.msra.mxu0 %v10639
  %11126 = vmatprep.subr.bf16.mxu0 %v10644
  %11127 = vmatpush1.bf16.msra.mxu0 %v10643
  %11128 = vmatprep.subr.bf16.mxu0 %v10648
  %11129 = vmatpush1.bf16.msra.mxu0 %v10647
  %11130 = vmatprep.subr.bf16.mxu0 %v10652
  %11131 = vmatpush1.bf16.msra.mxu0 %v10651
  %11132 = vmatprep.subr.bf16.mxu0 %v10656
  %11133 = vmatpush1.bf16.msra.mxu0 %v10655
  %11134 = vmatprep.subr.bf16.mxu0 %v10660
  %11135 = vmatpush1.bf16.msra.mxu0 %v10659
  %11136 = vmatprep.subr.bf16.mxu0 %v10664
  %11137 = vmatpush1.bf16.msra.mxu0 %v10663
  %11138 = vmatprep.subr.bf16.mxu0 %v10668
  %11139 = vmatpush1.bf16.msra.mxu0 %v10667
  %11140 = vmatprep.subr.bf16.mxu0 %v10672
  %11141 = vmatpush1.bf16.msra.mxu0 %v10671
  %11142 = vmatprep.subr.bf16.mxu0 %v10676
  %11143 = vmatpush1.bf16.msra.mxu0 %v10675
  %11144 = vmatprep.subr.bf16.mxu0 %v10680
  %11145 = vmatpush1.bf16.msra.mxu0 %v10679
  %11146 = vmatprep.subr.bf16.mxu0 %v10684
  %11147 = vmatpush1.bf16.msra.mxu0 %v10683
  %11148 = vmatprep.subr.bf16.mxu0 %v10688
  %11149 = vmatpush1.bf16.msra.mxu0 %v10687
  %11150 = vmatprep.subr.bf16.mxu0 %v10692
  %11151 = vmatpush1.bf16.msra.mxu0 %v10691
  %11152 = vmatprep.mubr.bf16.mxu0 %v9516
  %11153 = vmatmul.mubr.bf16.gmra.mrb[0].mxu0 %v9515
  %v11154 = vpop.f32.mrb[0].mxu0
  %v11155 = vadd.f32 %v11114, %v11154
  %v11156 = vpop.f32.mrb[0].mxu0
  %v11157 = vadd.f32 %v11116, %v11156
  %v11158 = vpop.f32.mrb[0].mxu0
  %v11159 = vpop.f32.mrb[0].mxu0
  %11160 = vdwg.mxu0
  %11161 = vmatprep.subr.bf16.mxu0 %v10696
  %11162 = vmatpush1.bf16.msra.mxu0 %v10695
  %11163 = vmatprep.subr.bf16.mxu0 %v10700
  %11164 = vmatpush1.bf16.msra.mxu0 %v10699
  %11165 = vmatprep.subr.bf16.mxu0 %v10704
  %11166 = vmatpush1.bf16.msra.mxu0 %v10703
  %11167 = vmatprep.subr.bf16.mxu0 %v10708
  %11168 = vmatpush1.bf16.msra.mxu0 %v10707
  %11169 = vmatprep.subr.bf16.mxu0 %v10712
  %11170 = vmatpush1.bf16.msra.mxu0 %v10711
  %11171 = vmatprep.subr.bf16.mxu0 %v10716
  %11172 = vmatpush1.bf16.msra.mxu0 %v10715
  %11173 = vmatprep.subr.bf16.mxu0 %v10720
  %11174 = vmatpush1.bf16.msra.mxu0 %v10719
  %11175 = vmatprep.subr.bf16.mxu0 %v10724
  %11176 = vmatpush1.bf16.msra.mxu0 %v10723
  %11177 = vmatprep.subr.bf16.mxu0 %v10728
  %11178 = vmatpush1.bf16.msra.mxu0 %v10727
  %11179 = vmatprep.subr.bf16.mxu0 %v10732
  %11180 = vmatpush1.bf16.msra.mxu0 %v10731
  %11181 = vmatprep.subr.bf16.mxu0 %v10736
  %11182 = vmatpush1.bf16.msra.mxu0 %v10735
  %11183 = vmatprep.subr.bf16.mxu0 %v10740
  %11184 = vmatpush1.bf16.msra.mxu0 %v10739
  %11185 = vmatprep.subr.bf16.mxu0 %v10744
  %11186 = vmatpush1.bf16.msra.mxu0 %v10743
  %11187 = vmatprep.subr.bf16.mxu0 %v10748
  %11188 = vmatpush1.bf16.msra.mxu0 %v10747
  %11189 = vmatprep.subr.bf16.mxu0 %v10752
  %11190 = vmatpush1.bf16.msra.mxu0 %v10751
  %11191 = vmatprep.subr.bf16.mxu0 %v10756
  %11192 = vmatpush1.bf16.msra.mxu0 %v10755
  %11193 = vmatprep.mubr.bf16.mxu0 %v9518
  %11194 = vmatmul.mubr.bf16.gmra.mrb[0].mxu0 %v9517
  %v11195 = vpop.f32.mrb[0].mxu0
  %v11196 = vadd.f32 %v11155, %v11195
  %v11197 = vpop.f32.mrb[0].mxu0
  %v11198 = vadd.f32 %v11157, %v11197
  %v11199 = vpop.f32.mrb[0].mxu0
  %v11200 = vpop.f32.mrb[0].mxu0
  %11201 = vdwg.mxu0
  %11202 = vmatprep.subr.bf16.mxu0 %v10760
  %11203 = vmatpush1.bf16.msra.mxu0 %v10759
  %11204 = vmatprep.subr.bf16.mxu0 %v10764
  %11205 = vmatpush1.bf16.msra.mxu0 %v10763
  %11206 = vmatprep.subr.bf16.mxu0 %v10768
  %11207 = vmatpush1.bf16.msra.mxu0 %v10767
  %11208 = vmatprep.subr.bf16.mxu0 %v10772
  %11209 = vmatpush1.bf16.msra.mxu0 %v10771
  %11210 = vmatprep.subr.bf16.mxu0 %v10776
  %11211 = vmatpush1.bf16.msra.mxu0 %v10775
  %11212 = vmatprep.subr.bf16.mxu0 %v10780
  %11213 = vmatpush1.bf16.msra.mxu0 %v10779
  %11214 = vmatprep.subr.bf16.mxu0 %v10784
  %11215 = vmatpush1.bf16.msra.mxu0 %v10783
  %11216 = vmatprep.subr.bf16.mxu0 %v10788
  %11217 = vmatpush1.bf16.msra.mxu0 %v10787
  %11218 = vmatprep.subr.bf16.mxu0 %v10792
  %11219 = vmatpush1.bf16.msra.mxu0 %v10791
  %11220 = vmatprep.subr.bf16.mxu0 %v10796
  %11221 = vmatpush1.bf16.msra.mxu0 %v10795
  %11222 = vmatprep.subr.bf16.mxu0 %v10800
  %11223 = vmatpush1.bf16.msra.mxu0 %v10799
  %11224 = vmatprep.subr.bf16.mxu0 %v10804
  %11225 = vmatpush1.bf16.msra.mxu0 %v10803
  %11226 = vmatprep.subr.bf16.mxu0 %v10808
  %11227 = vmatpush1.bf16.msra.mxu0 %v10807
  %11228 = vmatprep.subr.bf16.mxu0 %v10812
  %11229 = vmatpush1.bf16.msra.mxu0 %v10811
  %11230 = vmatprep.subr.bf16.mxu0 %v10816
  %11231 = vmatpush1.bf16.msra.mxu0 %v10815
  %11232 = vmatprep.subr.bf16.mxu0 %v10820
  %11233 = vmatpush1.bf16.msra.mxu0 %v10819
  %11234 = vmatprep.mubr.bf16.mxu0 %v9520
  %11235 = vmatmul.mubr.bf16.gmra.mrb[0].mxu0 %v9519
  %v11236 = vpop.f32.mrb[0].mxu0
  %v11237 = vadd.f32 %v11196, %v11236
  %v11238 = vpop.f32.mrb[0].mxu0
  %v11239 = vadd.f32 %v11198, %v11238
  %v11240 = vpop.f32.mrb[0].mxu0
  %v11241 = vpop.f32.mrb[0].mxu0
  %11242 = vdwg.mxu0
  %11243 = vmatprep.subr.bf16.mxu0 %v10570
  %11244 = vmatpush1.bf16.msra.mxu0 %v10569
  %11245 = vmatprep.subr.bf16.mxu0 %v10574
  %11246 = vmatpush1.bf16.msra.mxu0 %v10573
  %11247 = vmatprep.subr.bf16.mxu0 %v10578
  %11248 = vmatpush1.bf16.msra.mxu0 %v10577
  %11249 = vmatprep.subr.bf16.mxu0 %v10582
  %11250 = vmatpush1.bf16.msra.mxu0 %v10581
  %11251 = vmatprep.subr.bf16.mxu0 %v10586
  %11252 = vmatpush1.bf16.msra.mxu0 %v10585
  %11253 = vmatprep.subr.bf16.mxu0 %v10590
  %11254 = vmatpush1.bf16.msra.mxu0 %v10589
  %11255 = vmatprep.subr.bf16.mxu0 %v10594
  %11256 = vmatpush1.bf16.msra.mxu0 %v10593
  %11257 = vmatprep.subr.bf16.mxu0 %v10598
  %11258 = vmatpush1.bf16.msra.mxu0 %v10597
  %11259 = vmatprep.subr.bf16.mxu0 %v10602
  %11260 = vmatpush1.bf16.msra.mxu0 %v10601
  %11261 = vmatprep.subr.bf16.mxu0 %v10606
  %11262 = vmatpush1.bf16.msra.mxu0 %v10605
  %11263 = vmatprep.subr.bf16.mxu0 %v10610
  %11264 = vmatpush1.bf16.msra.mxu0 %v10609
  %11265 = vmatprep.subr.bf16.mxu0 %v10614
  %11266 = vmatpush1.bf16.msra.mxu0 %v10613
  %11267 = vmatprep.subr.bf16.mxu0 %v10618
  %11268 = vmatpush1.bf16.msra.mxu0 %v10617
  %11269 = vmatprep.subr.bf16.mxu0 %v10622
  %11270 = vmatpush1.bf16.msra.mxu0 %v10621
  %11271 = vmatprep.subr.bf16.mxu0 %v10626
  %11272 = vmatpush1.bf16.msra.mxu0 %v10625
  %11273 = vmatprep.subr.bf16.mxu0 %v10630
  %11274 = vmatpush1.bf16.msra.mxu0 %v10629
  %11275 = vmatprep.mubr.bf16.mxu0 %v9514
  %11276 = vmatmul.mubr.bf16.gmra.mrb[0].mxu0 %v9513
  %v11277 = vpop.f32.mrb[0].mxu0
  %v11278 = vadd.f32 %v9790, %v11277
  %v11279 = vpop.f32.mrb[0].mxu0
  %v11280 = vadd.f32 %v9794, %v11279
  %v11281 = vpop.f32.mrb[0].mxu0
  %v11282 = vpop.f32.mrb[0].mxu0
  %11283 = vdwg.mxu0
  %11284 = vmatprep.subr.bf16.mxu0 %v10634
  %11285 = vmatpush1.bf16.msra.mxu0 %v10633
  %11286 = vmatprep.subr.bf16.mxu0 %v10638
  %11287 = vmatpush1.bf16.msra.mxu0 %v10637
  %11288 = vmatprep.subr.bf16.mxu0 %v10642
  %11289 = vmatpush1.bf16.msra.mxu0 %v10641
  %11290 = vmatprep.subr.bf16.mxu0 %v10646
  %11291 = vmatpush1.bf16.msra.mxu0 %v10645
  %11292 = vmatprep.subr.bf16.mxu0 %v10650
  %11293 = vmatpush1.bf16.msra.mxu0 %v10649
  %11294 = vmatprep.subr.bf16.mxu0 %v10654
  %11295 = vmatpush1.bf16.msra.mxu0 %v10653
  %11296 = vmatprep.subr.bf16.mxu0 %v10658
  %11297 = vmatpush1.bf16.msra.mxu0 %v10657
  %11298 = vmatprep.subr.bf16.mxu0 %v10662
  %11299 = vmatpush1.bf16.msra.mxu0 %v10661
  %11300 = vmatprep.subr.bf16.mxu0 %v10666
  %11301 = vmatpush1.bf16.msra.mxu0 %v10665
  %11302 = vmatprep.subr.bf16.mxu0 %v10670
  %11303 = vmatpush1.bf16.msra.mxu0 %v10669
  %11304 = vmatprep.subr.bf16.mxu0 %v10674
  %11305 = vmatpush1.bf16.msra.mxu0 %v10673
  %11306 = vmatprep.subr.bf16.mxu0 %v10678
  %11307 = vmatpush1.bf16.msra.mxu0 %v10677
  %11308 = vmatprep.subr.bf16.mxu0 %v10682
  %11309 = vmatpush1.bf16.msra.mxu0 %v10681
  %11310 = vmatprep.subr.bf16.mxu0 %v10686
  %11311 = vmatpush1.bf16.msra.mxu0 %v10685
  %11312 = vmatprep.subr.bf16.mxu0 %v10690
  %11313 = vmatpush1.bf16.msra.mxu0 %v10689
  %11314 = vmatprep.subr.bf16.mxu0 %v10694
  %11315 = vmatpush1.bf16.msra.mxu0 %v10693
  %11316 = vmatprep.mubr.bf16.mxu0 %v9516
  %11317 = vmatmul.mubr.bf16.gmra.mrb[0].mxu0 %v9515
  %v11318 = vpop.f32.mrb[0].mxu0
  %v11319 = vadd.f32 %v11278, %v11318
  %v11320 = vpop.f32.mrb[0].mxu0
  %v11321 = vadd.f32 %v11280, %v11320
  %v11322 = vpop.f32.mrb[0].mxu0
  %v11323 = vpop.f32.mrb[0].mxu0
  %11324 = vdwg.mxu0
  %11325 = vmatprep.subr.bf16.mxu0 %v10698
  %11326 = vmatpush1.bf16.msra.mxu0 %v10697
  %11327 = vmatprep.subr.bf16.mxu0 %v10702
  %11328 = vmatpush1.bf16.msra.mxu0 %v10701
  %11329 = vmatprep.subr.bf16.mxu0 %v10706
  %11330 = vmatpush1.bf16.msra.mxu0 %v10705
  %11331 = vmatprep.subr.bf16.mxu0 %v10710
  %11332 = vmatpush1.bf16.msra.mxu0 %v10709
  %11333 = vmatprep.subr.bf16.mxu0 %v10714
  %11334 = vmatpush1.bf16.msra.mxu0 %v10713
  %11335 = vmatprep.subr.bf16.mxu0 %v10718
  %11336 = vmatpush1.bf16.msra.mxu0 %v10717
  %11337 = vmatprep.subr.bf16.mxu0 %v10722
  %11338 = vmatpush1.bf16.msra.mxu0 %v10721
  %11339 = vmatprep.subr.bf16.mxu0 %v10726
  %11340 = vmatpush1.bf16.msra.mxu0 %v10725
  %11341 = vmatprep.subr.bf16.mxu0 %v10730
  %11342 = vmatpush1.bf16.msra.mxu0 %v10729
  %11343 = vmatprep.subr.bf16.mxu0 %v10734
  %11344 = vmatpush1.bf16.msra.mxu0 %v10733
  %11345 = vmatprep.subr.bf16.mxu0 %v10738
  %11346 = vmatpush1.bf16.msra.mxu0 %v10737
  %11347 = vmatprep.subr.bf16.mxu0 %v10742
  %11348 = vmatpush1.bf16.msra.mxu0 %v10741
  %11349 = vmatprep.subr.bf16.mxu0 %v10746
  %11350 = vmatpush1.bf16.msra.mxu0 %v10745
  %11351 = vmatprep.subr.bf16.mxu0 %v10750
  %11352 = vmatpush1.bf16.msra.mxu0 %v10749
  %11353 = vmatprep.subr.bf16.mxu0 %v10754
  %11354 = vmatpush1.bf16.msra.mxu0 %v10753
  %11355 = vmatprep.subr.bf16.mxu0 %v10758
  %11356 = vmatpush1.bf16.msra.mxu0 %v10757
  %11357 = vmatprep.mubr.bf16.mxu0 %v9518
  %11358 = vmatmul.mubr.bf16.gmra.mrb[0].mxu0 %v9517
  %v11359 = vpop.f32.mrb[0].mxu0
  %v11360 = vadd.f32 %v11319, %v11359
  %v11361 = vpop.f32.mrb[0].mxu0
  %v11362 = vadd.f32 %v11321, %v11361
  %v11363 = vpop.f32.mrb[0].mxu0
  %v11364 = vpop.f32.mrb[0].mxu0
  %11365 = vdwg.mxu0
  %11366 = vmatprep.subr.bf16.mxu0 %v10762
  %11367 = vmatpush1.bf16.msra.mxu0 %v10761
  %11368 = vmatprep.subr.bf16.mxu0 %v10766
  %11369 = vmatpush1.bf16.msra.mxu0 %v10765
  %11370 = vmatprep.subr.bf16.mxu0 %v10770
  %11371 = vmatpush1.bf16.msra.mxu0 %v10769
  %11372 = vmatprep.subr.bf16.mxu0 %v10774
  %11373 = vmatpush1.bf16.msra.mxu0 %v10773
  %11374 = vmatprep.subr.bf16.mxu0 %v10778
  %11375 = vmatpush1.bf16.msra.mxu0 %v10777
  %11376 = vmatprep.subr.bf16.mxu0 %v10782
  %11377 = vmatpush1.bf16.msra.mxu0 %v10781
  %11378 = vmatprep.subr.bf16.mxu0 %v10786
  %11379 = vmatpush1.bf16.msra.mxu0 %v10785
  %11380 = vmatprep.subr.bf16.mxu0 %v10790
  %11381 = vmatpush1.bf16.msra.mxu0 %v10789
  %11382 = vmatprep.subr.bf16.mxu0 %v10794
  %11383 = vmatpush1.bf16.msra.mxu0 %v10793
  %11384 = vmatprep.subr.bf16.mxu0 %v10798
  %11385 = vmatpush1.bf16.msra.mxu0 %v10797
  %11386 = vmatprep.subr.bf16.mxu0 %v10802
  %11387 = vmatpush1.bf16.msra.mxu0 %v10801
  %11388 = vmatprep.subr.bf16.mxu0 %v10806
  %11389 = vmatpush1.bf16.msra.mxu0 %v10805
  %11390 = vmatprep.subr.bf16.mxu0 %v10810
  %11391 = vmatpush1.bf16.msra.mxu0 %v10809
  %11392 = vmatprep.subr.bf16.mxu0 %v10814
  %11393 = vmatpush1.bf16.msra.mxu0 %v10813
  %11394 = vmatprep.subr.bf16.mxu0 %v10818
  %11395 = vmatpush1.bf16.msra.mxu0 %v10817
  %11396 = vmatprep.subr.bf16.mxu0 %v10822
  %11397 = vmatpush1.bf16.msra.mxu0 %v10821
  %11398 = vmatprep.mubr.bf16.mxu0 %v9520
  %11399 = vmatmul.mubr.bf16.gmra.mrb[0].mxu0 %v9519
  %v11400 = vpop.f32.mrb[0].mxu0
  %v11401 = vadd.f32 %v11360, %v11400
  %v11402 = vpop.f32.mrb[0].mxu0
  %v11403 = vadd.f32 %v11362, %v11402
  %v11404 = vpop.f32.mrb[0].mxu0
  %v11405 = vpop.f32.mrb[0].mxu0
  %11406 = vdwg.mxu0
  %v11407 = vmax.f32 %v11237, 0.0
  %v11408 = vmax.f32 %v11239, 0.0
  %v11409 = vmax.f32 %v11401, 0.0
  %v11410 = vmax.f32 %v11403, 0.0
  %v11411 = vpack.c.bf16 %v11407, %v11407
  %v11412 = vpack.c.bf16 %v11408, %v11408
  %v11413 = vpack.c.bf16 %v11409, %v11409
  %v11414 = vpack.c.bf16 %v11410, %v11410
  %v11415 = vld [vmem:[%s14] sm:$0xff]
  %v11416 = vld [vmem:[%s14 + $0x8] sm:$0xff]
  %v11417 = vld [vmem:[%s14 + $0x10] sm:$0xff]
  %v11418 = vld [vmem:[%s14 + $0x18] sm:$0xff]
  %v11419 = vld [vmem:[%s14 + $0x20] sm:$0xff]
  %v11420 = vld [vmem:[%s14 + $0x28] sm:$0xff]
  %v11421 = vld [vmem:[%s14 + $0x30] sm:$0xff]
  %v11422 = vld [vmem:[%s14 + $0x38] sm:$0xff]
  %v11423 = vld [vmem:[%s14 + $0x40] sm:$0xff]
  %v11424 = vld [vmem:[%s14 + $0x48] sm:$0xff]
  %v11425 = vld [vmem:[%s14 + $0x50] sm:$0xff]
  %v11426 = vld [vmem:[%s14 + $0x58] sm:$0xff]
  %v11427 = vld [vmem:[%s14 + $0x60] sm:$0xff]
  %v11428 = vld [vmem:[%s14 + $0x68] sm:$0xff]
  %v11429 = vld [vmem:[%s14 + $0x70] sm:$0xff]
  %v11430 = vld [vmem:[%s14 + $0x78] sm:$0xff]
  %v11431 = vld [vmem:[%s14 + $0x80] sm:$0xff]
  %v11432 = vld [vmem:[%s14 + $0x88] sm:$0xff]
  %v11433 = vld [vmem:[%s14 + $0x90] sm:$0xff]
  %v11434 = vld [vmem:[%s14 + $0x98] sm:$0xff]
  %v11435 = vld [vmem:[%s14 + $0xa0] sm:$0xff]
  %v11436 = vld [vmem:[%s14 + $0xa8] sm:$0xff]
  %v11437 = vld [vmem:[%s14 + $0xb0] sm:$0xff]
  %v11438 = vld [vmem:[%s14 + $0xb8] sm:$0xff]
  %v11439 = vld [vmem:[%s14 + $0xc0] sm:$0xff]
  %v11440 = vld [vmem:[%s14 + $0xc8] sm:$0xff]
  %v11441 = vld [vmem:[%s14 + $0xd0] sm:$0xff]
  %v11442 = vld [vmem:[%s14 + $0xd8] sm:$0xff]
  %v11443 = vld [vmem:[%s14 + $0xe0] sm:$0xff]
  %v11444 = vld [vmem:[%s14 + $0xe8] sm:$0xff]
  %v11445 = vld [vmem:[%s14 + $0xf0] sm:$0xff]
  %v11446 = vld [vmem:[%s14 + $0xf8] sm:$0xff]
  %v11447 = vld [vmem:[%s14 + $0x100] sm:$0xff]
  %v11448 = vld [vmem:[%s14 + $0x108] sm:$0xff]
  %v11449 = vld [vmem:[%s14 + $0x110] sm:$0xff]
  %v11450 = vld [vmem:[%s14 + $0x118] sm:$0xff]
  %v11451 = vld [vmem:[%s14 + $0x120] sm:$0xff]
  %v11452 = vld [vmem:[%s14 + $0x128] sm:$0xff]
  %v11453 = vld [vmem:[%s14 + $0x130] sm:$0xff]
  %v11454 = vld [vmem:[%s14 + $0x138] sm:$0xff]
  %v11455 = vld [vmem:[%s14 + $0x140] sm:$0xff]
  %v11456 = vld [vmem:[%s14 + $0x148] sm:$0xff]
  %v11457 = vld [vmem:[%s14 + $0x150] sm:$0xff]
  %v11458 = vld [vmem:[%s14 + $0x158] sm:$0xff]
  %v11459 = vld [vmem:[%s14 + $0x160] sm:$0xff]
  %v11460 = vld [vmem:[%s14 + $0x168] sm:$0xff]
  %v11461 = vld [vmem:[%s14 + $0x170] sm:$0xff]
  %v11462 = vld [vmem:[%s14 + $0x178] sm:$0xff]
  %v11463 = vld [vmem:[%s14 + $0x180] sm:$0xff]
  %v11464 = vld [vmem:[%s14 + $0x188] sm:$0xff]
  %v11465 = vld [vmem:[%s14 + $0x190] sm:$0xff]
  %v11466 = vld [vmem:[%s14 + $0x198] sm:$0xff]
  %v11467 = vld [vmem:[%s14 + $0x1a0] sm:$0xff]
  %v11468 = vld [vmem:[%s14 + $0x1a8] sm:$0xff]
  %v11469 = vld [vmem:[%s14 + $0x1b0] sm:$0xff]
  %v11470 = vld [vmem:[%s14 + $0x1b8] sm:$0xff]
  %v11471 = vld [vmem:[%s14 + $0x1c0] sm:$0xff]
  %v11472 = vld [vmem:[%s14 + $0x1c8] sm:$0xff]
  %v11473 = vld [vmem:[%s14 + $0x1d0] sm:$0xff]
  %v11474 = vld [vmem:[%s14 + $0x1d8] sm:$0xff]
  %v11475 = vld [vmem:[%s14 + $0x1e0] sm:$0xff]
  %v11476 = vld [vmem:[%s14 + $0x1e8] sm:$0xff]
  %v11477 = vld [vmem:[%s14 + $0x1f0] sm:$0xff]
  %v11478 = vld [vmem:[%s14 + $0x1f8] sm:$0xff]
  %v11479 = vld [vmem:[%s15] sm:$0x3]
  %v11481 = vlaneseq
  %v11482 = vshrl.u32 %v11481, 7
  %v11483 = vsub.s32 0, %v11482
  %v11484 = vrot.slane %v11479, %v11483
  %v11485 = vlaneseq
  %v11486 = vshrl.u32 %v11485, 7
  %v11487 = vsub.s32 1, %v11486
  %v11488 = vrot.slane %v11479, %v11487
  %v11555 = vunpack.c.l.b16 %v11415
  %v11556 = vunpack.c.h.b16 %v11415
  %v11557 = vunpack.c.l.b16 %v11416
  %v11558 = vunpack.c.h.b16 %v11416
  %v11559 = vunpack.c.l.b16 %v11417
  %v11560 = vunpack.c.h.b16 %v11417
  %v11561 = vunpack.c.l.b16 %v11418
  %v11562 = vunpack.c.h.b16 %v11418
  %v11563 = vunpack.c.l.b16 %v11419
  %v11564 = vunpack.c.h.b16 %v11419
  %v11565 = vunpack.c.l.b16 %v11420
  %v11566 = vunpack.c.h.b16 %v11420
  %v11567 = vunpack.c.l.b16 %v11421
  %v11568 = vunpack.c.h.b16 %v11421
  %v11569 = vunpack.c.l.b16 %v11422
  %v11570 = vunpack.c.h.b16 %v11422
  %v11571 = vunpack.c.l.b16 %v11423
  %v11572 = vunpack.c.h.b16 %v11423
  %v11573 = vunpack.c.l.b16 %v11424
  %v11574 = vunpack.c.h.b16 %v11424
  %v11575 = vunpack.c.l.b16 %v11425
  %v11576 = vunpack.c.h.b16 %v11425
  %v11577 = vunpack.c.l.b16 %v11426
  %v11578 = vunpack.c.h.b16 %v11426
  %v11579 = vunpack.c.l.b16 %v11427
  %v11580 = vunpack.c.h.b16 %v11427
  %v11581 = vunpack.c.l.b16 %v11428
  %v11582 = vunpack.c.h.b16 %v11428
  %v11583 = vunpack.c.l.b16 %v11429
  %v11584 = vunpack.c.h.b16 %v11429
  %v11585 = vunpack.c.l.b16 %v11430
  %v11586 = vunpack.c.h.b16 %v11430
  %v11587 = vunpack.c.l.b16 %v11431
  %v11588 = vunpack.c.h.b16 %v11431
  %v11589 = vunpack.c.l.b16 %v11432
  %v11590 = vunpack.c.h.b16 %v11432
  %v11591 = vunpack.c.l.b16 %v11433
  %v11592 = vunpack.c.h.b16 %v11433
  %v11593 = vunpack.c.l.b16 %v11434
  %v11594 = vunpack.c.h.b16 %v11434
  %v11595 = vunpack.c.l.b16 %v11435
  %v11596 = vunpack.c.h.b16 %v11435
  %v11597 = vunpack.c.l.b16 %v11436
  %v11598 = vunpack.c.h.b16 %v11436
  %v11599 = vunpack.c.l.b16 %v11437
  %v11600 = vunpack.c.h.b16 %v11437
  %v11601 = vunpack.c.l.b16 %v11438
  %v11602 = vunpack.c.h.b16 %v11438
  %v11603 = vunpack.c.l.b16 %v11439
  %v11604 = vunpack.c.h.b16 %v11439
  %v11605 = vunpack.c.l.b16 %v11440
  %v11606 = vunpack.c.h.b16 %v11440
  %v11607 = vunpack.c.l.b16 %v11441
  %v11608 = vunpack.c.h.b16 %v11441
  %v11609 = vunpack.c.l.b16 %v11442
  %v11610 = vunpack.c.h.b16 %v11442
  %v11611 = vunpack.c.l.b16 %v11443
  %v11612 = vunpack.c.h.b16 %v11443
  %v11613 = vunpack.c.l.b16 %v11444
  %v11614 = vunpack.c.h.b16 %v11444
  %v11615 = vunpack.c.l.b16 %v11445
  %v11616 = vunpack.c.h.b16 %v11445
  %v11617 = vunpack.c.l.b16 %v11446
  %v11618 = vunpack.c.h.b16 %v11446
  %v11619 = vunpack.c.l.b16 %v11447
  %v11620 = vunpack.c.h.b16 %v11447
  %v11621 = vunpack.c.l.b16 %v11448
  %v11622 = vunpack.c.h.b16 %v11448
  %v11623 = vunpack.c.l.b16 %v11449
  %v11624 = vunpack.c.h.b16 %v11449
  %v11625 = vunpack.c.l.b16 %v11450
  %v11626 = vunpack.c.h.b16 %v11450
  %v11627 = vunpack.c.l.b16 %v11451
  %v11628 = vunpack.c.h.b16 %v11451
  %v11629 = vunpack.c.l.b16 %v11452
  %v11630 = vunpack.c.h.b16 %v11452
  %v11631 = vunpack.c.l.b16 %v11453
  %v11632 = vunpack.c.h.b16 %v11453
  %v11633 = vunpack.c.l.b16 %v11454
  %v11634 = vunpack.c.h.b16 %v11454
  %v11635 = vunpack.c.l.b16 %v11455
  %v11636 = vunpack.c.h.b16 %v11455
  %v11637 = vunpack.c.l.b16 %v11456
  %v11638 = vunpack.c.h.b16 %v11456
  %v11639 = vunpack.c.l.b16 %v11457
  %v11640 = vunpack.c.h.b16 %v11457
  %v11641 = vunpack.c.l.b16 %v11458
  %v11642 = vunpack.c.h.b16 %v11458
  %v11643 = vunpack.c.l.b16 %v11459
  %v11644 = vunpack.c.h.b16 %v11459
  %v11645 = vunpack.c.l.b16 %v11460
  %v11646 = vunpack.c.h.b16 %v11460
  %v11647 = vunpack.c.l.b16 %v11461
  %v11648 = vunpack.c.h.b16 %v11461
  %v11649 = vunpack.c.l.b16 %v11462
  %v11650 = vunpack.c.h.b16 %v11462
  %v11651 = vunpack.c.l.b16 %v11463
  %v11652 = vunpack.c.h.b16 %v11463
  %v11653 = vunpack.c.l.b16 %v11464
  %v11654 = vunpack.c.h.b16 %v11464
  %v11655 = vunpack.c.l.b16 %v11465
  %v11656 = vunpack.c.h.b16 %v11465
  %v11657 = vunpack.c.l.b16 %v11466
  %v11658 = vunpack.c.h.b16 %v11466
  %v11659 = vunpack.c.l.b16 %v11467
  %v11660 = vunpack.c.h.b16 %v11467
  %v11661 = vunpack.c.l.b16 %v11468
  %v11662 = vunpack.c.h.b16 %v11468
  %v11663 = vunpack.c.l.b16 %v11469
  %v11664 = vunpack.c.h.b16 %v11469
  %v11665 = vunpack.c.l.b16 %v11470
  %v11666 = vunpack.c.h.b16 %v11470
  %v11667 = vunpack.c.l.b16 %v11471
  %v11668 = vunpack.c.h.b16 %v11471
  %v11669 = vunpack.c.l.b16 %v11472
  %v11670 = vunpack.c.h.b16 %v11472
  %v11671 = vunpack.c.l.b16 %v11473
  %v11672 = vunpack.c.h.b16 %v11473
  %v11673 = vunpack.c.l.b16 %v11474
  %v11674 = vunpack.c.h.b16 %v11474
  %v11675 = vunpack.c.l.b16 %v11475
  %v11676 = vunpack.c.h.b16 %v11475
  %v11677 = vunpack.c.l.b16 %v11476
  %v11678 = vunpack.c.h.b16 %v11476
  %v11679 = vunpack.c.l.b16 %v11477
  %v11680 = vunpack.c.h.b16 %v11477
  %v11681 = vunpack.c.l.b16 %v11478
  %v11682 = vunpack.c.h.b16 %v11478
  %v11683 = vpack.c.b16 %v11557, %v11555
  %v11684 = vpack.c.b16 %v11558, %v11556
  %v11685 = vpack.c.b16 %v11561, %v11559
  %v11686 = vpack.c.b16 %v11562, %v11560
  %v11687 = vpack.c.b16 %v11565, %v11563
  %v11688 = vpack.c.b16 %v11566, %v11564
  %v11689 = vpack.c.b16 %v11569, %v11567
  %v11690 = vpack.c.b16 %v11570, %v11568
  %v11691 = vpack.c.b16 %v11573, %v11571
  %v11692 = vpack.c.b16 %v11574, %v11572
  %v11693 = vpack.c.b16 %v11577, %v11575
  %v11694 = vpack.c.b16 %v11578, %v11576
  %v11695 = vpack.c.b16 %v11581, %v11579
  %v11696 = vpack.c.b16 %v11582, %v11580
  %v11697 = vpack.c.b16 %v11585, %v11583
  %v11698 = vpack.c.b16 %v11586, %v11584
  %v11699 = vpack.c.b16 %v11589, %v11587
  %v11700 = vpack.c.b16 %v11590, %v11588
  %v11701 = vpack.c.b16 %v11593, %v11591
  %v11702 = vpack.c.b16 %v11594, %v11592
  %v11703 = vpack.c.b16 %v11597, %v11595
  %v11704 = vpack.c.b16 %v11598, %v11596
  %v11705 = vpack.c.b16 %v11601, %v11599
  %v11706 = vpack.c.b16 %v11602, %v11600
  %v11707 = vpack.c.b16 %v11605, %v11603
  %v11708 = vpack.c.b16 %v11606, %v11604
  %v11709 = vpack.c.b16 %v11609, %v11607
  %v11710 = vpack.c.b16 %v11610, %v11608
  %v11711 = vpack.c.b16 %v11613, %v11611
  %v11712 = vpack.c.b16 %v11614, %v11612
  %v11713 = vpack.c.b16 %v11617, %v11615
  %v11714 = vpack.c.b16 %v11618, %v11616
  %v11715 = vpack.c.b16 %v11621, %v11619
  %v11716 = vpack.c.b16 %v11622, %v11620
  %v11717 = vpack.c.b16 %v11625, %v11623
  %v11718 = vpack.c.b16 %v11626, %v11624
  %v11719 = vpack.c.b16 %v11629, %v11627
  %v11720 = vpack.c.b16 %v11630, %v11628
  %v11721 = vpack.c.b16 %v11633, %v11631
  %v11722 = vpack.c.b16 %v11634, %v11632
  %v11723 = vpack.c.b16 %v11637, %v11635
  %v11724 = vpack.c.b16 %v11638, %v11636
  %v11725 = vpack.c.b16 %v11641, %v11639
  %v11726 = vpack.c.b16 %v11642, %v11640
  %v11727 = vpack.c.b16 %v11645, %v11643
  %v11728 = vpack.c.b16 %v11646, %v11644
  %v11729 = vpack.c.b16 %v11649, %v11647
  %v11730 = vpack.c.b16 %v11650, %v11648
  %v11731 = vpack.c.b16 %v11653, %v11651
  %v11732 = vpack.c.b16 %v11654, %v11652
  %v11733 = vpack.c.b16 %v11657, %v11655
  %v11734 = vpack.c.b16 %v11658, %v11656
  %v11735 = vpack.c.b16 %v11661, %v11659
  %v11736 = vpack.c.b16 %v11662, %v11660
  %v11737 = vpack.c.b16 %v11665, %v11663
  %v11738 = vpack.c.b16 %v11666, %v11664
  %v11739 = vpack.c.b16 %v11669, %v11667
  %v11740 = vpack.c.b16 %v11670, %v11668
  %v11741 = vpack.c.b16 %v11673, %v11671
  %v11742 = vpack.c.b16 %v11674, %v11672
  %v11743 = vpack.c.b16 %v11677, %v11675
  %v11744 = vpack.c.b16 %v11678, %v11676
  %v11745 = vpack.c.b16 %v11681, %v11679
  %v11746 = vpack.c.b16 %v11682, %v11680
  %11811 = vmatprep.subr.bf16.mxu0 %v11684
  %11812 = vmatpush1.bf16.msra.mxu0 %v11683
  %11813 = vmatprep.subr.bf16.mxu0 %v11686
  %11814 = vmatpush1.bf16.msra.mxu0 %v11685
  %11815 = vmatprep.subr.bf16.mxu0 %v11688
  %11816 = vmatpush1.bf16.msra.mxu0 %v11687
  %11817 = vmatprep.subr.bf16.mxu0 %v11690
  %11818 = vmatpush1.bf16.msra.mxu0 %v11689
  %11819 = vmatprep.subr.bf16.mxu0 %v11692
  %11820 = vmatpush1.bf16.msra.mxu0 %v11691
  %11821 = vmatprep.subr.bf16.mxu0 %v11694
  %11822 = vmatpush1.bf16.msra.mxu0 %v11693
  %11823 = vmatprep.subr.bf16.mxu0 %v11696
  %11824 = vmatpush1.bf16.msra.mxu0 %v11695
  %11825 = vmatprep.subr.bf16.mxu0 %v11698
  %11826 = vmatpush1.bf16.msra.mxu0 %v11697
  %11827 = vmatprep.subr.bf16.mxu0 %v11700
  %11828 = vmatpush1.bf16.msra.mxu0 %v11699
  %11829 = vmatprep.subr.bf16.mxu0 %v11702
  %11830 = vmatpush1.bf16.msra.mxu0 %v11701
  %11831 = vmatprep.subr.bf16.mxu0 %v11704
  %11832 = vmatpush1.bf16.msra.mxu0 %v11703
  %11833 = vmatprep.subr.bf16.mxu0 %v11706
  %11834 = vmatpush1.bf16.msra.mxu0 %v11705
  %11835 = vmatprep.subr.bf16.mxu0 %v11708
  %11836 = vmatpush1.bf16.msra.mxu0 %v11707
  %11837 = vmatprep.subr.bf16.mxu0 %v11710
  %11838 = vmatpush1.bf16.msra.mxu0 %v11709
  %11839 = vmatprep.subr.bf16.mxu0 %v11712
  %11840 = vmatpush1.bf16.msra.mxu0 %v11711
  %11841 = vmatprep.subr.bf16.mxu0 %v11714
  %11842 = vmatpush1.bf16.msra.mxu0 %v11713
  %11843 = vmatprep.mubr.bf16.mxu0 %v11412
  %11844 = vmatmul.mubr.bf16.gmra.mrb[0].mxu0 %v11411
  %v11845 = vpop.f32.mrb[0].mxu0
  %v11846 = vadd.f32 %v11484, %v11845
  %v11847 = vpop.f32.mrb[0].mxu0
  %v11848 = vadd.f32 %v11488, %v11847
  %v11849 = vpop.f32.mrb[0].mxu0
  %v11850 = vpop.f32.mrb[0].mxu0
  %11851 = vdwg.mxu0
  %11852 = vmatprep.subr.bf16.mxu0 %v11716
  %11853 = vmatpush1.bf16.msra.mxu0 %v11715
  %11854 = vmatprep.subr.bf16.mxu0 %v11718
  %11855 = vmatpush1.bf16.msra.mxu0 %v11717
  %11856 = vmatprep.subr.bf16.mxu0 %v11720
  %11857 = vmatpush1.bf16.msra.mxu0 %v11719
  %11858 = vmatprep.subr.bf16.mxu0 %v11722
  %11859 = vmatpush1.bf16.msra.mxu0 %v11721
  %11860 = vmatprep.subr.bf16.mxu0 %v11724
  %11861 = vmatpush1.bf16.msra.mxu0 %v11723
  %11862 = vmatprep.subr.bf16.mxu0 %v11726
  %11863 = vmatpush1.bf16.msra.mxu0 %v11725
  %11864 = vmatprep.subr.bf16.mxu0 %v11728
  %11865 = vmatpush1.bf16.msra.mxu0 %v11727
  %11866 = vmatprep.subr.bf16.mxu0 %v11730
  %11867 = vmatpush1.bf16.msra.mxu0 %v11729
  %11868 = vmatprep.subr.bf16.mxu0 %v11732
  %11869 = vmatpush1.bf16.msra.mxu0 %v11731
  %11870 = vmatprep.subr.bf16.mxu0 %v11734
  %11871 = vmatpush1.bf16.msra.mxu0 %v11733
  %11872 = vmatprep.subr.bf16.mxu0 %v11736
  %11873 = vmatpush1.bf16.msra.mxu0 %v11735
  %11874 = vmatprep.subr.bf16.mxu0 %v11738
  %11875 = vmatpush1.bf16.msra.mxu0 %v11737
  %11876 = vmatprep.subr.bf16.mxu0 %v11740
  %11877 = vmatpush1.bf16.msra.mxu0 %v11739
  %11878 = vmatprep.subr.bf16.mxu0 %v11742
  %11879 = vmatpush1.bf16.msra.mxu0 %v11741
  %11880 = vmatprep.subr.bf16.mxu0 %v11744
  %11881 = vmatpush1.bf16.msra.mxu0 %v11743
  %11882 = vmatprep.subr.bf16.mxu0 %v11746
  %11883 = vmatpush1.bf16.msra.mxu0 %v11745
  %11884 = vmatprep.mubr.bf16.mxu0 %v11414
  %11885 = vmatmul.mubr.bf16.gmra.mrb[0].mxu0 %v11413
  %v11886 = vpop.f32.mrb[0].mxu0
  %v11887 = vadd.f32 %v11846, %v11886
  %v11888 = vpop.f32.mrb[0].mxu0
  %v11889 = vadd.f32 %v11848, %v11888
  %v11890 = vpop.f32.mrb[0].mxu0
  %v11891 = vpop.f32.mrb[0].mxu0
  %11892 = vdwg.mxu0
  %11893 = vmax.xlane.f32.xlu0 %v11887
  %v11894 = vpop.xlane.xlu0 %11893
  %v11895 = vsub.f32 %v11887, %v11894
  %v11896 = vmul.f32 %v11895, 1.442695
  %v11897 = vpow.pop %v11896
  %11898 = vadd.xlane.f32.xlu0 %v11897
  %v11899 = vpop.xlane.xlu0 %11898
  %v11900 = vlog2.pop %v11899
  %v11901 = vmul.f32 %v11900, 0.6931472
  %v11902 = vsub.f32 %v11895, %v11901
  %11903 = vst [vmem:[%s16] sm:$0xff] %v11902
  %11904 = vst [vmem:[%s17] sm:$0xff] %v11889
  // Predicated region
  $region66: #{policy_value_net.1} parent=0 // pred_check
    _
  $region67: #{policy_value_net.1} parent=0 // pred_check_branch
    %11906 = sbr.rel (0) target = $region69
  $region68: #{policy_value_net.1} parent=0 // pred_region
    _
  $region69: #{policy_value_net.1} parent=0 // pred_fallthru
    _
  // Predicated region
  $region70: #{policy_value_net.1} parent=0 // pred_check
    _
  $region71: #{policy_value_net.1} parent=0 // pred_check_branch
    %11908 = sbr.rel (0) target = $region73
  $region72: #{policy_value_net.1} parent=0 // pred_region
    _
  $region73: #{policy_value_net.1} parent=0 // pred_fallthru
    _
  // Predicated region
  $region74: #{policy_value_net.1} parent=0 // pred_check
    _
  $region75: #{policy_value_net.1} parent=0 // pred_check_branch
    %11910 = sbr.rel (0) target = $region77
  $region76: #{policy_value_net.1} parent=0 // pred_region
    _
  $region77: #{policy_value_net.1} parent=0 // pred_fallthru
    _
  // Predicated region
  $region78: #{policy_value_net.1} parent=0 // pred_check
    _
  $region79: #{policy_value_net.1} parent=0 // pred_check_branch
    %11912 = sbr.rel (0) target = $region81
  $region80: #{policy_value_net.1} parent=0 // pred_region
    _
  $region81: #{policy_value_net.1} parent=0 // pred_fallthru
    _

</llo_original>
